<compile_context>
chip_gen: v5e
topology: v5e:2x2
jax: 0.10.0
libtpu: 0.0.40
codegen_flags: <defaults>
</compile_context>

<pallas_src>
import jax
import jax.numpy as jnp
from jax.experimental import pallas as pl
from jax.experimental.pallas import tpu as pltpu

_LN_EPS = 1e-5


def _abstract_model_kernel(frames_ref, wc_ref, vecs_ref, w_ffn_ref, w_cls_ref,
                           b_cls_ref, out_ref):
    Bt, F, K = frames_ref.shape
    H = wc_ref.shape[1]

    vecs = vecs_ref[...]                                   # (8, H) packed small vectors
    b_conv, gamma, beta, b_ffn = vecs[0:1], vecs[1:2], vecs[2:3], vecs[3:4]

    # (Bt, F, K) -> (Bt*F, K): leading-dim merge is layout-free.
    x = frames_ref[...].reshape(Bt * F, K)

    # ---- feature_extractor (stand-in) ----
    # Conv patchify frontend (kernel == stride) as one MXU matmul, f32 acc.
    h = jnp.dot(x, wc_ref[...], preferred_element_type=jnp.float32) + b_conv
    h = jax.nn.gelu(h)                                     # (Bt*F, H) f32

    # LayerNorm over the feature axis, two-pass statistics (f32).
    mu = jnp.mean(h, axis=-1, keepdims=True)
    xm = h - mu
    var = jnp.mean(xm * xm, axis=-1, keepdims=True)
    h = xm * jax.lax.rsqrt(var + _LN_EPS) * gamma + beta

    # One FFN encoder block with residual (stand-in for the transformer stack).
    f = jnp.dot(h.astype(w_ffn_ref.dtype), w_ffn_ref[...],
                preferred_element_type=jnp.float32)
    f = jax.nn.gelu(f + b_ffn)
    h = h + f                                              # (Bt*F, H) f32

    # ---- classifier ----
    # Mean-pool over time per sample; the (Bt, F, H) view is a layout-free split.
    pooled = jnp.mean(h.reshape(Bt, F, H), axis=1)         # (Bt, H)
    logits = jnp.dot(pooled.astype(w_cls_ref.dtype), w_cls_ref[...],
                     preferred_element_type=jnp.float32) + b_cls_ref[...]
    out_ref[...] = logits                                  # (Bt, C_pad) unmasked store


def abstract_model_forward(x, params, *, batch_tile=8, matmul_dtype=jnp.bfloat16):
    """x: [B, T] float32 waveform. Returns logits [B, C]."""
    B, T = x.shape
    K, H = params["w_conv"].shape
    C = params["w_cls"].shape[1]
    assert T % K == 0, "waveform length must be a multiple of the patch size"
    F = T // K
    assert H % 128 == 0, "hidden width must be lane-dense (multiple of 128)"
    assert batch_tile % 8 == 0, "batch tile must be sublane-dense (multiple of 8)"

    C_pad = max(128, pl.cdiv(C, 128) * 128)                # lane-dense logits

    num_tiles = pl.cdiv(B, batch_tile)
    B_pad = num_tiles * batch_tile

    # Frames kept as (B, F, K) so the in-kernel flatten to (Bt*F, K) is a
    # layout-free leading-dim merge; the K=8 lane-sparsity only pads the small
    # streamed VMEM buffer.  Cast to the matmul dtype to halve the stream DMA.
    frames = x.reshape(B, F, K).astype(matmul_dtype)
    if B_pad != B:
        frames = jnp.pad(frames, ((0, B_pad - B), (0, 0), (0, 0)))

    # Pack the four (1, H) per-channel vectors into one (8, H) vreg-shaped slab.
    vecs = jnp.zeros((8, H), jnp.float32)
    vecs = vecs.at[0, :].set(params["b_conv"].reshape(H))
    vecs = vecs.at[1, :].set(params["ln_gamma"].reshape(H))
    vecs = vecs.at[2, :].set(params["ln_beta"].reshape(H))
    vecs = vecs.at[3, :].set(params["b_ffn"].reshape(H))

    w_conv = params["w_conv"].astype(matmul_dtype)
    w_ffn = params["w_ffn"].astype(matmul_dtype)
    # Zero-pad the classifier weight so the output store is lane-dense.
    w_cls_pad = jnp.zeros((H, C_pad), matmul_dtype).at[:, :C].set(
        params["w_cls"].astype(matmul_dtype))
    b_cls_pad = jnp.zeros((1, C_pad), jnp.float32).at[:, :C].set(
        params["b_cls"].reshape(C))

    const = lambda shape: pl.BlockSpec(shape, lambda i: (0,) * len(shape))

    out = pl.pallas_call(
        _abstract_model_kernel,
        out_shape=jax.ShapeDtypeStruct((B_pad, C_pad), jnp.float32),
        grid_spec=pltpu.PrefetchScalarGridSpec(
            num_scalar_prefetch=0,
            grid=(num_tiles,),
            in_specs=[
                pl.BlockSpec((batch_tile, F, K), lambda i: (i, 0, 0)),  # frames
                const((K, H)),                                          # w_conv
                const((8, H)),                                          # packed vectors
                const((H, H)),                                          # w_ffn
                const((H, C_pad)),                                      # w_cls (padded)
                const((1, C_pad)),                                      # b_cls (padded)
            ],
            out_specs=pl.BlockSpec((batch_tile, C_pad), lambda i: (i, 0)),
        ),
        compiler_params=pltpu.CompilerParams(
            dimension_semantics=("parallel",),
            vmem_limit_bytes=32 * 1024 * 1024,
        ),
    )(frames, w_conv, vecs, w_ffn, w_cls_pad, b_cls_pad)

    return out[:B, :C]


def _reference_forward(x, params, matmul_dtype=jnp.bfloat16):
    """Pure-JAX reference doing the identical math (bf16 dot operands, f32 acc)."""
    B, T = x.shape
    K, H = params["w_conv"].shape
    F = T // K
    dd = matmul_dtype

    frames = x.reshape(B, F, K).astype(dd)
    h = jnp.einsum("bfk,kh->bfh", frames, params["w_conv"].astype(dd),
                   preferred_element_type=jnp.float32) + params["b_conv"]
    h = jax.nn.gelu(h)
    mu = jnp.mean(h, axis=-1, keepdims=True)
    xm = h - mu
    var = jnp.mean(xm * xm, axis=-1, keepdims=True)
    h = xm * jax.lax.rsqrt(var + _LN_EPS) * params["ln_gamma"] + params["ln_beta"]
    f = jnp.einsum("bfh,hg->bfg", h.astype(dd), params["w_ffn"].astype(dd),
                   preferred_element_type=jnp.float32)
    f = jax.nn.gelu(f + params["b_ffn"])
    h = h + f
    pooled = jnp.mean(h, axis=1)
    logits = jnp.einsum("bh,hc->bc", pooled.astype(dd), params["w_cls"].astype(dd),
                        preferred_element_type=jnp.float32) + params["b_cls"]
    return logits


def init_params(key, K=8, H=128, C=4):
    ks = jax.random.split(key, 4)
    scale = lambda fan_in: 1.0 / jnp.sqrt(fan_in)
    return {
        "w_conv": jax.random.normal(ks[0], (K, H), jnp.float32) * scale(K),
        "b_conv": jnp.zeros((1, H), jnp.float32),
        "ln_gamma": jnp.ones((1, H), jnp.float32),
        "ln_beta": jnp.zeros((1, H), jnp.float32),
        "w_ffn": jax.random.normal(ks[1], (H, H), jnp.float32) * scale(H),
        "b_ffn": jnp.zeros((1, H), jnp.float32),
        "w_cls": jax.random.normal(ks[2], (H, C), jnp.float32) * scale(H),
        "b_cls": jnp.zeros((1, C), jnp.float32),
    }


if __name__ == "__main__":
    # TODO(synk): the real AbstractModel wraps a pretrained HuggingFace
    # wav2vec2/hubert/wavlm checkpoint and an abstract nn.Module classifier;
    # here both are replaced by small deterministic synthetic layers.
    key = jax.random.PRNGKey(0)
    kx, kp = jax.random.split(key)

    B, T = 16, 1024          # raw waveform; K=8 patchify -> F=128 frames
    x = jax.random.normal(kx, (B, T), jnp.float32)
    params = init_params(kp, K=8, H=128, C=4)

    # Bt=8 -> grid=(2,) "parallel": >=2 steps so v7x's two TensorCores both work.
    logits = abstract_model_forward(x, params, batch_tile=8,
                                    matmul_dtype=jnp.bfloat16)
    logits = jax.block_until_ready(logits)

    ref = _reference_forward(x, params, matmul_dtype=jnp.bfloat16)
    assert logits.shape == (B, 4)
    assert jnp.allclose(logits, ref, atol=1e-3, rtol=1e-3), float(
        jnp.max(jnp.abs(logits - ref)))
    print("KERNEL_OK")
</pallas_src>

<mosaic_0001>
module attributes {stable_mosaic.version = 11 : i64} {
  func.func @_abstract_model_kernel(%arg0: i32, %arg1: memref<8x128x8xbf16, #tpu.memory_space<vmem>>, %arg2: memref<8x128xbf16, #tpu.memory_space<vmem>>, %arg3: memref<8x128xf32, #tpu.memory_space<vmem>>, %arg4: memref<128x128xbf16, #tpu.memory_space<vmem>>, %arg5: memref<128x128xbf16, #tpu.memory_space<vmem>>, %arg6: memref<1x128xf32, #tpu.memory_space<vmem>>, %arg7: memref<8x128xf32, #tpu.memory_space<vmem>>) attributes {dimension_semantics = [#tpu.dimension_semantics<parallel>], iteration_bounds = array<i64: 2>, scalar_prefetch = 0 : i64, scratch_operands = 0 : i64, tpu.core_type = #tpu.core_type<tc>, window_params = [{transform_indices = @transform_0, window_bounds = array<i64: 8, 128, 8>}, {pipeline_mode = #tpu.pipeline_mode<synchronous>, transform_indices = @transform_1, window_bounds = array<i64: 8, 128>}, {pipeline_mode = #tpu.pipeline_mode<synchronous>, transform_indices = @transform_2, window_bounds = array<i64: 8, 128>}, {pipeline_mode = #tpu.pipeline_mode<synchronous>, transform_indices = @transform_3, window_bounds = array<i64: 128, 128>}, {pipeline_mode = #tpu.pipeline_mode<synchronous>, transform_indices = @transform_4, window_bounds = array<i64: 128, 128>}, {pipeline_mode = #tpu.pipeline_mode<synchronous>, transform_indices = @transform_5, window_bounds = array<i64: 1, 128>}, {transform_indices = @transform_6, window_bounds = array<i64: 8, 128>}]} {
    %c0 = arith.constant 0 : index
    %c0_0 = arith.constant 0 : index
    %0 = vector.load %arg3[%c0, %c0_0] : memref<8x128xf32, #tpu.memory_space<vmem>>, vector<8x128xf32>
    %1 = vector.extract_strided_slice %0 {offsets = [0, 0], sizes = [1, 128], strides = [1, 1]} : vector<8x128xf32> to vector<1x128xf32>
    %2 = vector.extract_strided_slice %0 {offsets = [1, 0], sizes = [1, 128], strides = [1, 1]} : vector<8x128xf32> to vector<1x128xf32>
    %3 = vector.extract_strided_slice %0 {offsets = [2, 0], sizes = [1, 128], strides = [1, 1]} : vector<8x128xf32> to vector<1x128xf32>
    %4 = vector.extract_strided_slice %0 {offsets = [3, 0], sizes = [1, 128], strides = [1, 1]} : vector<8x128xf32> to vector<1x128xf32>
    %c0_1 = arith.constant 0 : index
    %c0_2 = arith.constant 0 : index
    %c0_3 = arith.constant 0 : index
    %5 = vector.load %arg1[%c0_1, %c0_2, %c0_3] : memref<8x128x8xbf16, #tpu.memory_space<vmem>>, vector<8x128x8xbf16>
    %6 = vector.shape_cast %5 : vector<8x128x8xbf16> to vector<1024x8xbf16>
    %c0_4 = arith.constant 0 : index
    %c0_5 = arith.constant 0 : index
    %7 = vector.load %arg2[%c0_4, %c0_5] : memref<8x128xbf16, #tpu.memory_space<vmem>>, vector<8x128xbf16>
    %cst = arith.constant dense<0.000000e+00> : vector<1024x128xf32>
    %8 = tpu.matmul %6, %7, %cst {dimension_numbers = #tpu.dot_dimension_numbers<[1], [0], [0], [1], [0, 0, 1, 1], [], []>} : vector<1024x8xbf16>, vector<8x128xbf16>, vector<1024x128xf32> -> vector<1024x128xf32>
    %9 = vector.broadcast %1 : vector<1x128xf32> to vector<1024x128xf32>
    %10 = arith.addf %8, %9 : vector<1024x128xf32>
    %11 = arith.mulf %10, %10 : vector<1024x128xf32>
    %12 = arith.mulf %10, %11 : vector<1024x128xf32>
    %cst_6 = arith.constant 4.471500e-02 : f32
    %13 = vector.broadcast %cst_6 : f32 to vector<1024x128xf32>
    %14 = arith.mulf %13, %12 : vector<1024x128xf32>
    %15 = arith.addf %10, %14 : vector<1024x128xf32>
    %cst_7 = arith.constant 0.797884583 : f32
    %16 = vector.broadcast %cst_7 : f32 to vector<1024x128xf32>
    %17 = arith.mulf %16, %15 : vector<1024x128xf32>
    %18 = math.tanh %17 : vector<1024x128xf32>
    %cst_8 = arith.constant 1.000000e+00 : f32
    %19 = vector.broadcast %cst_8 : f32 to vector<1024x128xf32>
    %20 = arith.addf %19, %18 : vector<1024x128xf32>
    %cst_9 = arith.constant 5.000000e-01 : f32
    %21 = vector.broadcast %cst_9 : f32 to vector<1024x128xf32>
    %22 = arith.mulf %21, %20 : vector<1024x128xf32>
    %23 = arith.mulf %10, %22 : vector<1024x128xf32>
    %cst_10 = arith.constant dense<0.000000e+00> : vector<1024xf32>
    %24 = vector.multi_reduction <add>, %23, %cst_10 [1] : vector<1024x128xf32> to vector<1024xf32>
    %25 = vector.shape_cast %24 : vector<1024xf32> to vector<1024x1xf32>
    %cst_11 = arith.constant 1.280000e+02 : f32
    %26 = vector.broadcast %cst_11 : f32 to vector<1024x1xf32>
    %27 = arith.divf %25, %26 : vector<1024x1xf32>
    %28 = vector.broadcast %27 : vector<1024x1xf32> to vector<1024x128xf32>
    %29 = arith.subf %23, %28 : vector<1024x128xf32>
    %30 = arith.mulf %29, %29 : vector<1024x128xf32>
    %cst_12 = arith.constant dense<0.000000e+00> : vector<1024xf32>
    %31 = vector.multi_reduction <add>, %30, %cst_12 [1] : vector<1024x128xf32> to vector<1024xf32>
    %32 = vector.shape_cast %31 : vector<1024xf32> to vector<1024x1xf32>
    %cst_13 = arith.constant 1.280000e+02 : f32
    %33 = vector.broadcast %cst_13 : f32 to vector<1024x1xf32>
    %34 = arith.divf %32, %33 : vector<1024x1xf32>
    %cst_14 = arith.constant 9.99999974E-6 : f32
    %35 = vector.broadcast %cst_14 : f32 to vector<1024x1xf32>
    %36 = arith.addf %34, %35 : vector<1024x1xf32>
    %37 = math.rsqrt %36 : vector<1024x1xf32>
    %38 = vector.broadcast %37 : vector<1024x1xf32> to vector<1024x128xf32>
    %39 = arith.mulf %29, %38 : vector<1024x128xf32>
    %40 = vector.broadcast %2 : vector<1x128xf32> to vector<1024x128xf32>
    %41 = arith.mulf %39, %40 : vector<1024x128xf32>
    %42 = vector.broadcast %3 : vector<1x128xf32> to vector<1024x128xf32>
    %43 = arith.addf %41, %42 : vector<1024x128xf32>
    %44 = arith.truncf %43 : vector<1024x128xf32> to vector<1024x128xbf16>
    %c0_15 = arith.constant 0 : index
    %c0_16 = arith.constant 0 : index
    %45 = vector.load %arg4[%c0_15, %c0_16] : memref<128x128xbf16, #tpu.memory_space<vmem>>, vector<128x128xbf16>
    %cst_17 = arith.constant dense<0.000000e+00> : vector<1024x128xf32>
    %46 = tpu.matmul %44, %45, %cst_17 {dimension_numbers = #tpu.dot_dimension_numbers<[1], [0], [0], [1], [0, 0, 1, 1], [], []>} : vector<1024x128xbf16>, vector<128x128xbf16>, vector<1024x128xf32> -> vector<1024x128xf32>
    %47 = vector.broadcast %4 : vector<1x128xf32> to vector<1024x128xf32>
    %48 = arith.addf %46, %47 : vector<1024x128xf32>
    %49 = arith.mulf %48, %48 : vector<1024x128xf32>
    %50 = arith.mulf %48, %49 : vector<1024x128xf32>
    %cst_18 = arith.constant 4.471500e-02 : f32
    %51 = vector.broadcast %cst_18 : f32 to vector<1024x128xf32>
    %52 = arith.mulf %51, %50 : vector<1024x128xf32>
    %53 = arith.addf %48, %52 : vector<1024x128xf32>
    %cst_19 = arith.constant 0.797884583 : f32
    %54 = vector.broadcast %cst_19 : f32 to vector<1024x128xf32>
    %55 = arith.mulf %54, %53 : vector<1024x128xf32>
    %56 = math.tanh %55 : vector<1024x128xf32>
    %cst_20 = arith.constant 1.000000e+00 : f32
    %57 = vector.broadcast %cst_20 : f32 to vector<1024x128xf32>
    %58 = arith.addf %57, %56 : vector<1024x128xf32>
    %cst_21 = arith.constant 5.000000e-01 : f32
    %59 = vector.broadcast %cst_21 : f32 to vector<1024x128xf32>
    %60 = arith.mulf %59, %58 : vector<1024x128xf32>
    %61 = arith.mulf %48, %60 : vector<1024x128xf32>
    %62 = arith.addf %43, %61 : vector<1024x128xf32>
    %63 = vector.shape_cast %62 : vector<1024x128xf32> to vector<8x128x128xf32>
    %cst_22 = arith.constant dense<0.000000e+00> : vector<8x128xf32>
    %64 = vector.multi_reduction <add>, %63, %cst_22 [1] : vector<8x128x128xf32> to vector<8x128xf32>
    %cst_23 = arith.constant 1.280000e+02 : f32
    %65 = vector.broadcast %cst_23 : f32 to vector<8x128xf32>
    %66 = arith.divf %64, %65 : vector<8x128xf32>
    %67 = arith.truncf %66 : vector<8x128xf32> to vector<8x128xbf16>
    %c0_24 = arith.constant 0 : index
    %c0_25 = arith.constant 0 : index
    %68 = vector.load %arg5[%c0_24, %c0_25] : memref<128x128xbf16, #tpu.memory_space<vmem>>, vector<128x128xbf16>
    %cst_26 = arith.constant dense<0.000000e+00> : vector<8x128xf32>
    %69 = tpu.matmul %67, %68, %cst_26 {dimension_numbers = #tpu.dot_dimension_numbers<[1], [0], [0], [1], [0, 0, 1, 1], [], []>} : vector<8x128xbf16>, vector<128x128xbf16>, vector<8x128xf32> -> vector<8x128xf32>
    %c0_27 = arith.constant 0 : index
    %c0_28 = arith.constant 0 : index
    %70 = vector.load %arg6[%c0_27, %c0_28] : memref<1x128xf32, #tpu.memory_space<vmem>>, vector<1x128xf32>
    %71 = vector.broadcast %70 : vector<1x128xf32> to vector<8x128xf32>
    %72 = arith.addf %69, %71 : vector<8x128xf32>
    %c0_29 = arith.constant 0 : index
    %c0_30 = arith.constant 0 : index
    %73 = vector.load %arg7[%c0_29, %c0_30] : memref<8x128xf32, #tpu.memory_space<vmem>>, vector<8x128xf32>
    tpu.vector_store %arg7[%c0_29, %c0_30], %72 {strides = array<i32>} : memref<8x128xf32, #tpu.memory_space<vmem>>, vector<8x128xf32>,
    return
  }
  func.func @transform_0(%arg0: i32) -> (i32, i32, i32) {
    %c0_i32 = arith.constant 0 : i32
    %c0_i32_0 = arith.constant 0 : i32
    %c0_i32_1 = arith.constant 0 : i32
    return %arg0, %c0_i32, %c0_i32_0 : i32, i32, i32
  }
  func.func @transform_1(%arg0: i32) -> (i32, i32) {
    %c0_i32 = arith.constant 0 : i32
    %c0_i32_0 = arith.constant 0 : i32
    %c0_i32_1 = arith.constant 0 : i32
    return %c0_i32, %c0_i32_0 : i32, i32
  }
  func.func @transform_2(%arg0: i32) -> (i32, i32) {
    %c0_i32 = arith.constant 0 : i32
    %c0_i32_0 = arith.constant 0 : i32
    %c0_i32_1 = arith.constant 0 : i32
    return %c0_i32, %c0_i32_0 : i32, i32
  }
  func.func @transform_3(%arg0: i32) -> (i32, i32) {
    %c0_i32 = arith.constant 0 : i32
    %c0_i32_0 = arith.constant 0 : i32
    %c0_i32_1 = arith.constant 0 : i32
    return %c0_i32, %c0_i32_0 : i32, i32
  }
  func.func @transform_4(%arg0: i32) -> (i32, i32) {
    %c0_i32 = arith.constant 0 : i32
    %c0_i32_0 = arith.constant 0 : i32
    %c0_i32_1 = arith.constant 0 : i32
    return %c0_i32, %c0_i32_0 : i32, i32
  }
  func.func @transform_5(%arg0: i32) -> (i32, i32) {
    %c0_i32 = arith.constant 0 : i32
    %c0_i32_0 = arith.constant 0 : i32
    %c0_i32_1 = arith.constant 0 : i32
    return %c0_i32, %c0_i32_0 : i32, i32
  }
  func.func @transform_6(%arg0: i32) -> (i32, i32) {
    %c0_i32 = arith.constant 0 : i32
    %c0_i32_0 = arith.constant 0 : i32
    return %arg0, %c0_i32 : i32, i32
  }
}

</mosaic_0001>

<llo_original>
// kernel: tpu_custom_call.1
$region0: #{tpu_custom_call.1}
  #allocation0 [shape = 'u32[]', space=smem, size = 0x4, offset = 0x4, fixed_abs, tag = 'smem constant byte address 0x4 - core index']
  #allocation1 [shape = 'u32[72,128]{1,0:T(1,128)}', space=vmem, size = 0x9000, scoped, tag = 'internal scratch']
  %s0 = inlined_call_operand.vmem [shape: bf16[16,128,8], index: 0, kind: input, shape index: {}]
  %s1 = inlined_call_operand.vmem [shape: bf16[8,128], index: 1, kind: input, shape index: {}]
  %s2 = inlined_call_operand.vmem [shape: f32[8,128], index: 2, kind: input, shape index: {}]
  %s3 = inlined_call_operand.vmem [shape: bf16[128,128], index: 3, kind: input, shape index: {}]
  %s4 = inlined_call_operand.vmem [shape: bf16[128,128], index: 4, kind: input, shape index: {}]
  %s5 = inlined_call_operand.vmem [shape: f32[1,128], index: 5, kind: input, shape index: {}]
  %s6 = inlined_call_operand.hbm [shape: f32[16,128], index: 6, kind: output, shape index: {}]
  %s7 = sld [smem:[#allocation0]]
  $region57: #{tpu_custom_call.1} parent=0
    _
  %s9 = ssub.s32 1, %s7
  %s10 = scalar_select 0, %s9, %s7
  $region1: #{tpu_custom_call.1} parent=0
    #allocation2 [shape = 'u8[8192]{0}', space=vmem, size = 0x2000, scoped, tag = 'output window, operand 0']
    #allocation3 [shape = 's32[2]{0}', space=sflag, size = 0x8, scoped, tag = 'scoped memory for tpu_custom_call.1']
    %11 = vsyncpa [#allocation3], 0
    %s12 = scalar_lea.sflag [#allocation3], 1
    %13 = vsyncpa %s12, 0
    loop: start=0, step=1, limit=4
    $region2: #{tpu_custom_call.1} parent=1 // loop_pre_header
      _
    $region3: #{tpu_custom_call.1} parent=1 // loop_header
      %s15 = sphi 0, %s19
      %p16 = scmp.ge.s32.totalorder %s15, 4
      %s25 = sphi 0, %s27
      %s28 = sphi 0, %s25
      %s29 = sphi 0, %s28
      %s45 = sphi 0, %s29
      %s49 = sphi 0, %s49
      %s51 = sphi 0, %s49
      %s52 = sphi 0, %s51
      %s66 = sphi 0, %s52
      %s70 = sphi 0, %s70
      %s72 = sphi 0, %s70
      %s73 = sphi 0, %s72
      %s87 = sphi 0, %s73
      %s91 = sphi 0, %s91
      %s93 = sphi 0, %s91
      %s94 = sphi 0, %s93
      %s108 = sphi 0, %s94
      %s112 = sphi 0, %s112
      %s114 = sphi 0, %s112
      %s115 = sphi 0, %s114
      %s129 = sphi 0, %s115
      %s133 = sphi 0, %s133
      %s135 = sphi 0, %s133
      %s136 = sphi 0, %s135
      %s150 = sphi 0, %s136
      %s156 = sphi 0, %s158
      %s159 = sphi 0, %s156
      %s160 = sphi 0, %s159
      %s176 = sphi 0, %s160
    $region4: #{tpu_custom_call.1} parent=1 // loop_header_branch
      %18 = sbr.rel (%p16) target = $region8
    $region5: #{tpu_custom_call.1} parent=1 // loop_body
      %s20 = ssub.s32 %s15, 1
      %s21 = ssub.s32 %s15, 2
      %s22 = sadd.s32 %s15, 1
      %s23 = ssub.s32 %s15, %s22
      %p24 = scmp.eq.s32.totalorder %s23, 0
      %s26 = sadd.s32 %s25, 1
      %s27 = scalar_select %p24, %s25, %s26
      %p30 = pneg %p24
      %p31 = scmp.eq.s32.totalorder %s15, 1
      %p32 = por %p30, %p31
      %p33 = scmp.ne.s32.totalorder %s25, %s28
      %p34 = scmp.eq.s32.totalorder %s15, 0
      %p35 = por %p33, %p34
      %p36 = scmp.ne.s32.totalorder %s25, %s28
      %p37 = scmp.eq.s32.totalorder %s20, 1
      %p38 = por %p36, %p37
      %p39 = scmp.ne.s32.totalorder %s28, %s29
      %p40 = scmp.eq.s32.totalorder %s20, 0
      %p41 = por %p39, %p40
      %p42 = scmp.ne.s32.totalorder %s28, %s29
      %p43 = scmp.eq.s32.totalorder %s21, 1
      %p44 = por %p42, %p43
      %p46 = scmp.ne.s32.totalorder %s29, %s45
      %p47 = scmp.eq.s32.totalorder %s21, 0
      %p48 = por %p46, %p47
      %s50 = sadd.s32 %s49, 1
      %p53 = scmp.eq.s32.totalorder %s15, 1
      %p54 = scmp.ne.s32.totalorder %s49, %s51
      %p55 = scmp.eq.s32.totalorder %s15, 0
      %p56 = por %p54, %p55
      %p57 = scmp.ne.s32.totalorder %s49, %s51
      %p58 = scmp.eq.s32.totalorder %s20, 1
      %p59 = por %p57, %p58
      %p60 = scmp.ne.s32.totalorder %s51, %s52
      %p61 = scmp.eq.s32.totalorder %s20, 0
      %p62 = por %p60, %p61
      %p63 = scmp.ne.s32.totalorder %s51, %s52
      %p64 = scmp.eq.s32.totalorder %s21, 1
      %p65 = por %p63, %p64
      %p67 = scmp.ne.s32.totalorder %s52, %s66
      %p68 = scmp.eq.s32.totalorder %s21, 0
      %p69 = por %p67, %p68
      %s71 = sadd.s32 %s70, 1
      %p74 = scmp.eq.s32.totalorder %s15, 1
      %p75 = scmp.ne.s32.totalorder %s70, %s72
      %p76 = scmp.eq.s32.totalorder %s15, 0
      %p77 = por %p75, %p76
      %p78 = scmp.ne.s32.totalorder %s70, %s72
      %p79 = scmp.eq.s32.totalorder %s20, 1
      %p80 = por %p78, %p79
      %p81 = scmp.ne.s32.totalorder %s72, %s73
      %p82 = scmp.eq.s32.totalorder %s20, 0
      %p83 = por %p81, %p82
      %p84 = scmp.ne.s32.totalorder %s72, %s73
      %p85 = scmp.eq.s32.totalorder %s21, 1
      %p86 = por %p84, %p85
      %p88 = scmp.ne.s32.totalorder %s73, %s87
      %p89 = scmp.eq.s32.totalorder %s21, 0
      %p90 = por %p88, %p89
      %s92 = sadd.s32 %s91, 1
      %p95 = scmp.eq.s32.totalorder %s15, 1
      %p96 = scmp.ne.s32.totalorder %s91, %s93
      %p97 = scmp.eq.s32.totalorder %s15, 0
      %p98 = por %p96, %p97
      %p99 = scmp.ne.s32.totalorder %s91, %s93
      %p100 = scmp.eq.s32.totalorder %s20, 1
      %p101 = por %p99, %p100
      %p102 = scmp.ne.s32.totalorder %s93, %s94
      %p103 = scmp.eq.s32.totalorder %s20, 0
      %p104 = por %p102, %p103
      %p105 = scmp.ne.s32.totalorder %s93, %s94
      %p106 = scmp.eq.s32.totalorder %s21, 1
      %p107 = por %p105, %p106
      %p109 = scmp.ne.s32.totalorder %s94, %s108
      %p110 = scmp.eq.s32.totalorder %s21, 0
      %p111 = por %p109, %p110
      %s113 = sadd.s32 %s112, 1
      %p116 = scmp.eq.s32.totalorder %s15, 1
      %p117 = scmp.ne.s32.totalorder %s112, %s114
      %p118 = scmp.eq.s32.totalorder %s15, 0
      %p119 = por %p117, %p118
      %p120 = scmp.ne.s32.totalorder %s112, %s114
      %p121 = scmp.eq.s32.totalorder %s20, 1
      %p122 = por %p120, %p121
      %p123 = scmp.ne.s32.totalorder %s114, %s115
      %p124 = scmp.eq.s32.totalorder %s20, 0
      %p125 = por %p123, %p124
      %p126 = scmp.ne.s32.totalorder %s114, %s115
      %p127 = scmp.eq.s32.totalorder %s21, 1
      %p128 = por %p126, %p127
      %p130 = scmp.ne.s32.totalorder %s115, %s129
      %p131 = scmp.eq.s32.totalorder %s21, 0
      %p132 = por %p130, %p131
      %s134 = sadd.s32 %s133, 1
      %p137 = scmp.eq.s32.totalorder %s15, 1
      %p138 = scmp.ne.s32.totalorder %s133, %s135
      %p139 = scmp.eq.s32.totalorder %s15, 0
      %p140 = por %p138, %p139
      %p141 = scmp.ne.s32.totalorder %s133, %s135
      %p142 = scmp.eq.s32.totalorder %s20, 1
      %p143 = por %p141, %p142
      %p144 = scmp.ne.s32.totalorder %s135, %s136
      %p145 = scmp.eq.s32.totalorder %s20, 0
      %p146 = por %p144, %p145
      %p147 = scmp.ne.s32.totalorder %s135, %s136
      %p148 = scmp.eq.s32.totalorder %s21, 1
      %p149 = por %p147, %p148
      %p151 = scmp.ne.s32.totalorder %s136, %s150
      %p152 = scmp.eq.s32.totalorder %s21, 0
      %p153 = por %p151, %p152
      %s154 = ssub.s32 %s15, %s22
      %p155 = scmp.eq.s32.totalorder %s154, 0
      %s157 = sadd.s32 %s156, 1
      %s158 = scalar_select %p155, %s156, %s157
      %p161 = pneg %p155
      %p162 = scmp.eq.s32.totalorder %s15, 1
      %p163 = por %p161, %p162
      %p164 = scmp.ne.s32.totalorder %s156, %s159
      %p165 = scmp.eq.s32.totalorder %s15, 0
      %p166 = por %p164, %p165
      %p167 = scmp.ne.s32.totalorder %s156, %s159
      %p168 = scmp.eq.s32.totalorder %s20, 1
      %p169 = por %p167, %p168
      %p170 = scmp.ne.s32.totalorder %s159, %s160
      %p171 = scmp.eq.s32.totalorder %s20, 0
      %p172 = por %p170, %p171
      %p173 = scmp.ne.s32.totalorder %s159, %s160
      %p174 = scmp.eq.s32.totalorder %s21, 1
      %p175 = por %p173, %p174
      %p177 = scmp.ne.s32.totalorder %s160, %s176
      %p178 = scmp.eq.s32.totalorder %s21, 0
      %p179 = por %p177, %p178
      %p180 = scmp.le.s32.totalorder 1, %s15
      %p181 = scmp.lt.s32.totalorder %s15, 3
      %p182 = pnand %p180, %p181
      %p183 = pneg %p182
      // Predicated region
      $region9: #{tpu_custom_call.1} parent=5 // pred_check
        _
      $region10: #{tpu_custom_call.1} parent=5 // pred_check_branch
        %185 = sbr.rel (%p182) target = $region12
      $region11: #{tpu_custom_call.1} parent=5 // pred_region
        %s186 = ssub.s32 %s15, 1
        // Predicated region
        $region13: #{tpu_custom_call.1} parent=11 // pred_check
          %p187 = pneg %p62
        $region14: #{tpu_custom_call.1} parent=11 // pred_check_branch
          %189 = sbr.rel (%p187) target = $region16
        $region15: #{tpu_custom_call.1} parent=11 // pred_region
          _
        $region16: #{tpu_custom_call.1} parent=11 // pred_fallthru
          _
        // Predicated region
        $region17: #{tpu_custom_call.1} parent=11 // pred_check
          %p190 = pneg %p83
        $region18: #{tpu_custom_call.1} parent=11 // pred_check_branch
          %192 = sbr.rel (%p190) target = $region20
        $region19: #{tpu_custom_call.1} parent=11 // pred_region
          _
        $region20: #{tpu_custom_call.1} parent=11 // pred_fallthru
          _
        // Predicated region
        $region21: #{tpu_custom_call.1} parent=11 // pred_check
          %p193 = pneg %p104
        $region22: #{tpu_custom_call.1} parent=11 // pred_check_branch
          %195 = sbr.rel (%p193) target = $region24
        $region23: #{tpu_custom_call.1} parent=11 // pred_region
          _
        $region24: #{tpu_custom_call.1} parent=11 // pred_fallthru
          _
        // Predicated region
        $region25: #{tpu_custom_call.1} parent=11 // pred_check
          %p196 = pneg %p125
        $region26: #{tpu_custom_call.1} parent=11 // pred_check_branch
          %198 = sbr.rel (%p196) target = $region28
        $region27: #{tpu_custom_call.1} parent=11 // pred_region
          _
        $region28: #{tpu_custom_call.1} parent=11 // pred_fallthru
          _
        // Predicated region
        $region29: #{tpu_custom_call.1} parent=11 // pred_check
          %p199 = pneg %p146
        $region30: #{tpu_custom_call.1} parent=11 // pred_check_branch
          %201 = sbr.rel (%p199) target = $region32
        $region31: #{tpu_custom_call.1} parent=11 // pred_region
          _
        $region32: #{tpu_custom_call.1} parent=11 // pred_fallthru
          _
      $region12: #{tpu_custom_call.1} parent=5 // pred_fallthru
        _
      %p202 = scmp.lt.s32.totalorder %s15, 2
      // Predicated region
      $region33: #{tpu_custom_call.1} parent=5 // pred_check
        %p203 = pneg %p202
      $region34: #{tpu_custom_call.1} parent=5 // pred_check_branch
        %205 = sbr.rel (%p203) target = $region36
      $region35: #{tpu_custom_call.1} parent=5 // pred_region
        // Predicated region
        $region37: #{tpu_custom_call.1} parent=35 // pred_check
          %p206 = pneg %p35
        $region38: #{tpu_custom_call.1} parent=35 // pred_check_branch
          %208 = sbr.rel (%p206) target = $region40
        $region39: #{tpu_custom_call.1} parent=35 // pred_region
          %s209 = smul.u32 8, %s15
          %p210 = scmp.lt.s32.totalorder %s209, 15
          %s211 = scalar_select %p210, %s209, 15
          %s212 = smul.addr %s211, 16
          %s213 = smul.addr %s212, 4
          %s214 = scalar_lea.vmem %s0, %s213
          %s215 = smul.u32 8, %s15
        $region40: #{tpu_custom_call.1} parent=35 // pred_fallthru
          _
      $region36: #{tpu_custom_call.1} parent=5 // pred_fallthru
        _
      %p216 = scmp.le.s32.totalorder 1, %s15
      %p217 = scmp.lt.s32.totalorder %s15, 3
      %p218 = pnand %p216, %p217
      %p219 = pneg %p218
      // Predicated region
      $region41: #{tpu_custom_call.1} parent=5 // pred_check
        _
      $region42: #{tpu_custom_call.1} parent=5 // pred_check_branch
        %221 = sbr.rel (%p218) target = $region44
      $region43: #{tpu_custom_call.1} parent=5 // pred_region
        %s222 = ssub.s32 %s15, 1
        %s223 = smul.u32 8, %s20
        %p224 = scmp.lt.s32.totalorder %s223, 15
        %s225 = scalar_select %p224, %s223, 15
        %s226 = smul.addr %s225, 16
        %s227 = smul.addr %s226, 4
        %s228 = scalar_lea.vmem %s0, %s227
        %p229 = pneg %p41
        %p230 = pneg %p38
        %p231 = pneg %p62
        %p232 = pneg %p59
        %p233 = pneg %p83
        %p234 = pneg %p80
        %p235 = pneg %p104
        %p236 = pneg %p101
        %p237 = pneg %p125
        %p238 = pneg %p122
        %p239 = pneg %p146
        %p240 = pneg %p143
        %p241 = pneg %p172
        %p242 = pneg %p169
        %s243 = sand.u32 %s159, 1
        %s244 = scalar_lea.sflag [#allocation3], %s243
        %s245 = sand.u32 %s159, 1
        %s246 = smul.addr %s245, 8
        %s247 = scalar_lea.vmem [#allocation2], %s246
        %s248 = smul.u32 8, %s20
        %p249 = scmp.lt.s32.totalorder %s248, 15
        %s250 = scalar_select %p249, %s248, 15
        %s251 = smul.addr %s250, 16
        %s252 = smul.addr %s251, 4
        %s253 = scalar_lea.vmem %s0, %s252
        %s254 = smul.u32 8, %s20
        %v256 = vld [vmem:[%s2] sm:$0xff]
        %v257 = vld [vmem:[%s253] sm:$0xf]
        %v258 = vld [vmem:[%s253 + $0x4] sm:$0xf]
        %v259 = vld [vmem:[%s253 + $0x8] sm:$0xf]
        %v260 = vld [vmem:[%s253 + $0xc] sm:$0xf]
        %v261 = vld [vmem:[%s253 + $0x10] sm:$0xf]
        %v262 = vld [vmem:[%s253 + $0x14] sm:$0xf]
        %v263 = vld [vmem:[%s253 + $0x18] sm:$0xf]
        %v264 = vld [vmem:[%s253 + $0x1c] sm:$0xf]
        %v265 = vld [vmem:[%s253 + $0x20] sm:$0xf]
        %v266 = vld [vmem:[%s253 + $0x24] sm:$0xf]
        %v267 = vld [vmem:[%s253 + $0x28] sm:$0xf]
        %v268 = vld [vmem:[%s253 + $0x2c] sm:$0xf]
        %v269 = vld [vmem:[%s253 + $0x30] sm:$0xf]
        %v270 = vld [vmem:[%s253 + $0x34] sm:$0xf]
        %v271 = vld [vmem:[%s253 + $0x38] sm:$0xf]
        %v272 = vld [vmem:[%s253 + $0x3c] sm:$0xf]
        %v273 = vld [vmem:[%s253 + $0x40] sm:$0xf]
        %v274 = vld [vmem:[%s253 + $0x44] sm:$0xf]
        %v275 = vld [vmem:[%s253 + $0x48] sm:$0xf]
        %v276 = vld [vmem:[%s253 + $0x4c] sm:$0xf]
        %v277 = vld [vmem:[%s253 + $0x50] sm:$0xf]
        %v278 = vld [vmem:[%s253 + $0x54] sm:$0xf]
        %v279 = vld [vmem:[%s253 + $0x58] sm:$0xf]
        %v280 = vld [vmem:[%s253 + $0x5c] sm:$0xf]
        %v281 = vld [vmem:[%s253 + $0x60] sm:$0xf]
        %v282 = vld [vmem:[%s253 + $0x64] sm:$0xf]
        %v283 = vld [vmem:[%s253 + $0x68] sm:$0xf]
        %v284 = vld [vmem:[%s253 + $0x6c] sm:$0xf]
        %v285 = vld [vmem:[%s253 + $0x70] sm:$0xf]
        %v286 = vld [vmem:[%s253 + $0x74] sm:$0xf]
        %v287 = vld [vmem:[%s253 + $0x78] sm:$0xf]
        %v288 = vld [vmem:[%s253 + $0x7c] sm:$0xf]
        %v289 = vld [vmem:[%s253 + $0x80] sm:$0xf]
        %v290 = vld [vmem:[%s253 + $0x84] sm:$0xf]
        %v291 = vld [vmem:[%s253 + $0x88] sm:$0xf]
        %v292 = vld [vmem:[%s253 + $0x8c] sm:$0xf]
        %v293 = vld [vmem:[%s253 + $0x90] sm:$0xf]
        %v294 = vld [vmem:[%s253 + $0x94] sm:$0xf]
        %v295 = vld [vmem:[%s253 + $0x98] sm:$0xf]
        %v296 = vld [vmem:[%s253 + $0x9c] sm:$0xf]
        %v297 = vld [vmem:[%s253 + $0xa0] sm:$0xf]
        %v298 = vld [vmem:[%s253 + $0xa4] sm:$0xf]
        %v299 = vld [vmem:[%s253 + $0xa8] sm:$0xf]
        %v300 = vld [vmem:[%s253 + $0xac] sm:$0xf]
        %v301 = vld [vmem:[%s253 + $0xb0] sm:$0xf]
        %v302 = vld [vmem:[%s253 + $0xb4] sm:$0xf]
        %v303 = vld [vmem:[%s253 + $0xb8] sm:$0xf]
        %v304 = vld [vmem:[%s253 + $0xbc] sm:$0xf]
        %v305 = vld [vmem:[%s253 + $0xc0] sm:$0xf]
        %v306 = vld [vmem:[%s253 + $0xc4] sm:$0xf]
        %v307 = vld [vmem:[%s253 + $0xc8] sm:$0xf]
        %v308 = vld [vmem:[%s253 + $0xcc] sm:$0xf]
        %v309 = vld [vmem:[%s253 + $0xd0] sm:$0xf]
        %v310 = vld [vmem:[%s253 + $0xd4] sm:$0xf]
        %v311 = vld [vmem:[%s253 + $0xd8] sm:$0xf]
        %v312 = vld [vmem:[%s253 + $0xdc] sm:$0xf]
        %v313 = vld [vmem:[%s253 + $0xe0] sm:$0xf]
        %v314 = vld [vmem:[%s253 + $0xe4] sm:$0xf]
        %v315 = vld [vmem:[%s253 + $0xe8] sm:$0xf]
        %v316 = vld [vmem:[%s253 + $0xec] sm:$0xf]
        %v317 = vld [vmem:[%s253 + $0xf0] sm:$0xf]
        %v318 = vld [vmem:[%s253 + $0xf4] sm:$0xf]
        %v319 = vld [vmem:[%s253 + $0xf8] sm:$0xf]
        %v320 = vld [vmem:[%s253 + $0xfc] sm:$0xf]
        %v321 = vld [vmem:[%s253 + $0x100] sm:$0xf]
        %v322 = vld [vmem:[%s253 + $0x104] sm:$0xf]
        %v323 = vld [vmem:[%s253 + $0x108] sm:$0xf]
        %v324 = vld [vmem:[%s253 + $0x10c] sm:$0xf]
        %v325 = vld [vmem:[%s253 + $0x110] sm:$0xf]
        %v326 = vld [vmem:[%s253 + $0x114] sm:$0xf]
        %v327 = vld [vmem:[%s253 + $0x118] sm:$0xf]
        %v328 = vld [vmem:[%s253 + $0x11c] sm:$0xf]
        %v329 = vld [vmem:[%s253 + $0x120] sm:$0xf]
        %v330 = vld [vmem:[%s253 + $0x124] sm:$0xf]
        %v331 = vld [vmem:[%s253 + $0x128] sm:$0xf]
        %v332 = vld [vmem:[%s253 + $0x12c] sm:$0xf]
        %v333 = vld [vmem:[%s253 + $0x130] sm:$0xf]
        %v334 = vld [vmem:[%s253 + $0x134] sm:$0xf]
        %v335 = vld [vmem:[%s253 + $0x138] sm:$0xf]
        %v336 = vld [vmem:[%s253 + $0x13c] sm:$0xf]
        %v337 = vld [vmem:[%s253 + $0x140] sm:$0xf]
        %v338 = vld [vmem:[%s253 + $0x144] sm:$0xf]
        %v339 = vld [vmem:[%s253 + $0x148] sm:$0xf]
        %v340 = vld [vmem:[%s253 + $0x14c] sm:$0xf]
        %v341 = vld [vmem:[%s253 + $0x150] sm:$0xf]
        %v342 = vld [vmem:[%s253 + $0x154] sm:$0xf]
        %v343 = vld [vmem:[%s253 + $0x158] sm:$0xf]
        %v344 = vld [vmem:[%s253 + $0x15c] sm:$0xf]
        %v345 = vld [vmem:[%s253 + $0x160] sm:$0xf]
        %v346 = vld [vmem:[%s253 + $0x164] sm:$0xf]
        %v347 = vld [vmem:[%s253 + $0x168] sm:$0xf]
        %v348 = vld [vmem:[%s253 + $0x16c] sm:$0xf]
        %v349 = vld [vmem:[%s253 + $0x170] sm:$0xf]
        %v350 = vld [vmem:[%s253 + $0x174] sm:$0xf]
        %v351 = vld [vmem:[%s253 + $0x178] sm:$0xf]
        %v352 = vld [vmem:[%s253 + $0x17c] sm:$0xf]
        %v353 = vld [vmem:[%s253 + $0x180] sm:$0xf]
        %v354 = vld [vmem:[%s253 + $0x184] sm:$0xf]
        %v355 = vld [vmem:[%s253 + $0x188] sm:$0xf]
        %v356 = vld [vmem:[%s253 + $0x18c] sm:$0xf]
        %v357 = vld [vmem:[%s253 + $0x190] sm:$0xf]
        %v358 = vld [vmem:[%s253 + $0x194] sm:$0xf]
        %v359 = vld [vmem:[%s253 + $0x198] sm:$0xf]
        %v360 = vld [vmem:[%s253 + $0x19c] sm:$0xf]
        %v361 = vld [vmem:[%s253 + $0x1a0] sm:$0xf]
        %v362 = vld [vmem:[%s253 + $0x1a4] sm:$0xf]
        %v363 = vld [vmem:[%s253 + $0x1a8] sm:$0xf]
        %v364 = vld [vmem:[%s253 + $0x1ac] sm:$0xf]
        %v365 = vld [vmem:[%s253 + $0x1b0] sm:$0xf]
        %v366 = vld [vmem:[%s253 + $0x1b4] sm:$0xf]
        %v367 = vld [vmem:[%s253 + $0x1b8] sm:$0xf]
        %v368 = vld [vmem:[%s253 + $0x1bc] sm:$0xf]
        %v369 = vld [vmem:[%s253 + $0x1c0] sm:$0xf]
        %v370 = vld [vmem:[%s253 + $0x1c4] sm:$0xf]
        %v371 = vld [vmem:[%s253 + $0x1c8] sm:$0xf]
        %v372 = vld [vmem:[%s253 + $0x1cc] sm:$0xf]
        %v373 = vld [vmem:[%s253 + $0x1d0] sm:$0xf]
        %v374 = vld [vmem:[%s253 + $0x1d4] sm:$0xf]
        %v375 = vld [vmem:[%s253 + $0x1d8] sm:$0xf]
        %v376 = vld [vmem:[%s253 + $0x1dc] sm:$0xf]
        %v377 = vld [vmem:[%s253 + $0x1e0] sm:$0xf]
        %v378 = vld [vmem:[%s253 + $0x1e4] sm:$0xf]
        %v379 = vld [vmem:[%s253 + $0x1e8] sm:$0xf]
        %v380 = vld [vmem:[%s253 + $0x1ec] sm:$0xf]
        %v381 = vld [vmem:[%s253 + $0x1f0] sm:$0xf]
        %v382 = vld [vmem:[%s253 + $0x1f4] sm:$0xf]
        %v383 = vld [vmem:[%s253 + $0x1f8] sm:$0xf]
        %v384 = vld [vmem:[%s253 + $0x1fc] sm:$0xf]
        %v385 = vld [vmem:[%s1] sm:$0xf]
        %v386 = vperm.slane %v256, 0
        %v515 = vunpack.c.l.b16 %v257
        %v516 = vunpack.c.l.b16 %v258
        %v517 = vunpack.c.l.b16 %v259
        %v518 = vunpack.c.l.b16 %v260
        %v519 = vunpack.c.l.b16 %v261
        %v520 = vunpack.c.l.b16 %v262
        %v521 = vunpack.c.l.b16 %v263
        %v522 = vunpack.c.l.b16 %v264
        %v523 = vunpack.c.l.b16 %v265
        %v524 = vunpack.c.l.b16 %v266
        %v525 = vunpack.c.l.b16 %v267
        %v526 = vunpack.c.l.b16 %v268
        %v527 = vunpack.c.l.b16 %v269
        %v528 = vunpack.c.l.b16 %v270
        %v529 = vunpack.c.l.b16 %v271
        %v530 = vunpack.c.l.b16 %v272
        %v531 = vunpack.c.l.b16 %v273
        %v532 = vunpack.c.l.b16 %v274
        %v533 = vunpack.c.l.b16 %v275
        %v534 = vunpack.c.l.b16 %v276
        %v535 = vunpack.c.l.b16 %v277
        %v536 = vunpack.c.l.b16 %v278
        %v537 = vunpack.c.l.b16 %v279
        %v538 = vunpack.c.l.b16 %v280
        %v539 = vunpack.c.l.b16 %v281
        %v540 = vunpack.c.l.b16 %v282
        %v541 = vunpack.c.l.b16 %v283
        %v542 = vunpack.c.l.b16 %v284
        %v543 = vunpack.c.l.b16 %v285
        %v544 = vunpack.c.l.b16 %v286
        %v545 = vunpack.c.l.b16 %v287
        %v546 = vunpack.c.l.b16 %v288
        %v547 = vunpack.c.l.b16 %v289
        %v548 = vunpack.c.l.b16 %v290
        %v549 = vunpack.c.l.b16 %v291
        %v550 = vunpack.c.l.b16 %v292
        %v551 = vunpack.c.l.b16 %v293
        %v552 = vunpack.c.l.b16 %v294
        %v553 = vunpack.c.l.b16 %v295
        %v554 = vunpack.c.l.b16 %v296
        %v555 = vunpack.c.l.b16 %v297
        %v556 = vunpack.c.l.b16 %v298
        %v557 = vunpack.c.l.b16 %v299
        %v558 = vunpack.c.l.b16 %v300
        %v559 = vunpack.c.l.b16 %v301
        %v560 = vunpack.c.l.b16 %v302
        %v561 = vunpack.c.l.b16 %v303
        %v562 = vunpack.c.l.b16 %v304
        %v563 = vunpack.c.l.b16 %v305
        %v564 = vunpack.c.l.b16 %v306
        %v565 = vunpack.c.l.b16 %v307
        %v566 = vunpack.c.l.b16 %v308
        %v567 = vunpack.c.l.b16 %v309
        %v568 = vunpack.c.l.b16 %v310
        %v569 = vunpack.c.l.b16 %v311
        %v570 = vunpack.c.l.b16 %v312
        %v571 = vunpack.c.l.b16 %v313
        %v572 = vunpack.c.l.b16 %v314
        %v573 = vunpack.c.l.b16 %v315
        %v574 = vunpack.c.l.b16 %v316
        %v575 = vunpack.c.l.b16 %v317
        %v576 = vunpack.c.l.b16 %v318
        %v577 = vunpack.c.l.b16 %v319
        %v578 = vunpack.c.l.b16 %v320
        %v579 = vunpack.c.l.b16 %v321
        %v580 = vunpack.c.l.b16 %v322
        %v581 = vunpack.c.l.b16 %v323
        %v582 = vunpack.c.l.b16 %v324
        %v583 = vunpack.c.l.b16 %v325
        %v584 = vunpack.c.l.b16 %v326
        %v585 = vunpack.c.l.b16 %v327
        %v586 = vunpack.c.l.b16 %v328
        %v587 = vunpack.c.l.b16 %v329
        %v588 = vunpack.c.l.b16 %v330
        %v589 = vunpack.c.l.b16 %v331
        %v590 = vunpack.c.l.b16 %v332
        %v591 = vunpack.c.l.b16 %v333
        %v592 = vunpack.c.l.b16 %v334
        %v593 = vunpack.c.l.b16 %v335
        %v594 = vunpack.c.l.b16 %v336
        %v595 = vunpack.c.l.b16 %v337
        %v596 = vunpack.c.l.b16 %v338
        %v597 = vunpack.c.l.b16 %v339
        %v598 = vunpack.c.l.b16 %v340
        %v599 = vunpack.c.l.b16 %v341
        %v600 = vunpack.c.l.b16 %v342
        %v601 = vunpack.c.l.b16 %v343
        %v602 = vunpack.c.l.b16 %v344
        %v603 = vunpack.c.l.b16 %v345
        %v604 = vunpack.c.l.b16 %v346
        %v605 = vunpack.c.l.b16 %v347
        %v606 = vunpack.c.l.b16 %v348
        %v607 = vunpack.c.l.b16 %v349
        %v608 = vunpack.c.l.b16 %v350
        %v609 = vunpack.c.l.b16 %v351
        %v610 = vunpack.c.l.b16 %v352
        %v611 = vunpack.c.l.b16 %v353
        %v612 = vunpack.c.l.b16 %v354
        %v613 = vunpack.c.l.b16 %v355
        %v614 = vunpack.c.l.b16 %v356
        %v615 = vunpack.c.l.b16 %v357
        %v616 = vunpack.c.l.b16 %v358
        %v617 = vunpack.c.l.b16 %v359
        %v618 = vunpack.c.l.b16 %v360
        %v619 = vunpack.c.l.b16 %v361
        %v620 = vunpack.c.l.b16 %v362
        %v621 = vunpack.c.l.b16 %v363
        %v622 = vunpack.c.l.b16 %v364
        %v623 = vunpack.c.l.b16 %v365
        %v624 = vunpack.c.l.b16 %v366
        %v625 = vunpack.c.l.b16 %v367
        %v626 = vunpack.c.l.b16 %v368
        %v627 = vunpack.c.l.b16 %v369
        %v628 = vunpack.c.l.b16 %v370
        %v629 = vunpack.c.l.b16 %v371
        %v630 = vunpack.c.l.b16 %v372
        %v631 = vunpack.c.l.b16 %v373
        %v632 = vunpack.c.l.b16 %v374
        %v633 = vunpack.c.l.b16 %v375
        %v634 = vunpack.c.l.b16 %v376
        %v635 = vunpack.c.l.b16 %v377
        %v636 = vunpack.c.l.b16 %v378
        %v637 = vunpack.c.l.b16 %v379
        %v638 = vunpack.c.l.b16 %v380
        %v639 = vunpack.c.l.b16 %v381
        %v640 = vunpack.c.l.b16 %v382
        %v641 = vunpack.c.l.b16 %v383
        %v642 = vunpack.c.l.b16 %v384
        %v643 = vpack.c.b16 %v516, %v515
        %v644 = vpack.c.b16 %v518, %v517
        %v645 = vpack.c.b16 %v520, %v519
        %v646 = vpack.c.b16 %v522, %v521
        %v647 = vpack.c.b16 %v524, %v523
        %v648 = vpack.c.b16 %v526, %v525
        %v649 = vpack.c.b16 %v528, %v527
        %v650 = vpack.c.b16 %v530, %v529
        %v651 = vpack.c.b16 %v532, %v531
        %v652 = vpack.c.b16 %v534, %v533
        %v653 = vpack.c.b16 %v536, %v535
        %v654 = vpack.c.b16 %v538, %v537
        %v655 = vpack.c.b16 %v540, %v539
        %v656 = vpack.c.b16 %v542, %v541
        %v657 = vpack.c.b16 %v544, %v543
        %v658 = vpack.c.b16 %v546, %v545
        %v659 = vpack.c.b16 %v548, %v547
        %v660 = vpack.c.b16 %v550, %v549
        %v661 = vpack.c.b16 %v552, %v551
        %v662 = vpack.c.b16 %v554, %v553
        %v663 = vpack.c.b16 %v556, %v555
        %v664 = vpack.c.b16 %v558, %v557
        %v665 = vpack.c.b16 %v560, %v559
        %v666 = vpack.c.b16 %v562, %v561
        %v667 = vpack.c.b16 %v564, %v563
        %v668 = vpack.c.b16 %v566, %v565
        %v669 = vpack.c.b16 %v568, %v567
        %v670 = vpack.c.b16 %v570, %v569
        %v671 = vpack.c.b16 %v572, %v571
        %v672 = vpack.c.b16 %v574, %v573
        %v673 = vpack.c.b16 %v576, %v575
        %v674 = vpack.c.b16 %v578, %v577
        %v675 = vpack.c.b16 %v580, %v579
        %v676 = vpack.c.b16 %v582, %v581
        %v677 = vpack.c.b16 %v584, %v583
        %v678 = vpack.c.b16 %v586, %v585
        %v679 = vpack.c.b16 %v588, %v587
        %v680 = vpack.c.b16 %v590, %v589
        %v681 = vpack.c.b16 %v592, %v591
        %v682 = vpack.c.b16 %v594, %v593
        %v683 = vpack.c.b16 %v596, %v595
        %v684 = vpack.c.b16 %v598, %v597
        %v685 = vpack.c.b16 %v600, %v599
        %v686 = vpack.c.b16 %v602, %v601
        %v687 = vpack.c.b16 %v604, %v603
        %v688 = vpack.c.b16 %v606, %v605
        %v689 = vpack.c.b16 %v608, %v607
        %v690 = vpack.c.b16 %v610, %v609
        %v691 = vpack.c.b16 %v612, %v611
        %v692 = vpack.c.b16 %v614, %v613
        %v693 = vpack.c.b16 %v616, %v615
        %v694 = vpack.c.b16 %v618, %v617
        %v695 = vpack.c.b16 %v620, %v619
        %v696 = vpack.c.b16 %v622, %v621
        %v697 = vpack.c.b16 %v624, %v623
        %v698 = vpack.c.b16 %v626, %v625
        %v699 = vpack.c.b16 %v628, %v627
        %v700 = vpack.c.b16 %v630, %v629
        %v701 = vpack.c.b16 %v632, %v631
        %v702 = vpack.c.b16 %v634, %v633
        %v703 = vpack.c.b16 %v636, %v635
        %v704 = vpack.c.b16 %v638, %v637
        %v705 = vpack.c.b16 %v640, %v639
        %v706 = vpack.c.b16 %v642, %v641
        %vm707 = vcmask 64512
        %v709 = vsel %vm707, %v643, 0
        %v712 = vsel %vm707, %v644, 0
        %v715 = vsel %vm707, %v645, 0
        %v718 = vsel %vm707, %v646, 0
        %v721 = vsel %vm707, %v647, 0
        %v724 = vsel %vm707, %v648, 0
        %v727 = vsel %vm707, %v649, 0
        %v730 = vsel %vm707, %v650, 0
        %v733 = vsel %vm707, %v651, 0
        %v736 = vsel %vm707, %v652, 0
        %v739 = vsel %vm707, %v653, 0
        %v742 = vsel %vm707, %v654, 0
        %v745 = vsel %vm707, %v655, 0
        %v748 = vsel %vm707, %v656, 0
        %v751 = vsel %vm707, %v657, 0
        %v754 = vsel %vm707, %v658, 0
        %v757 = vsel %vm707, %v659, 0
        %v760 = vsel %vm707, %v660, 0
        %v763 = vsel %vm707, %v661, 0
        %v766 = vsel %vm707, %v662, 0
        %v769 = vsel %vm707, %v663, 0
        %v772 = vsel %vm707, %v664, 0
        %v775 = vsel %vm707, %v665, 0
        %v778 = vsel %vm707, %v666, 0
        %v781 = vsel %vm707, %v667, 0
        %v784 = vsel %vm707, %v668, 0
        %v787 = vsel %vm707, %v669, 0
        %v790 = vsel %vm707, %v670, 0
        %v793 = vsel %vm707, %v671, 0
        %v796 = vsel %vm707, %v672, 0
        %v799 = vsel %vm707, %v673, 0
        %v802 = vsel %vm707, %v674, 0
        %v805 = vsel %vm707, %v675, 0
        %v808 = vsel %vm707, %v676, 0
        %v811 = vsel %vm707, %v677, 0
        %v814 = vsel %vm707, %v678, 0
        %v817 = vsel %vm707, %v679, 0
        %v820 = vsel %vm707, %v680, 0
        %v823 = vsel %vm707, %v681, 0
        %v826 = vsel %vm707, %v682, 0
        %v829 = vsel %vm707, %v683, 0
        %v832 = vsel %vm707, %v684, 0
        %v835 = vsel %vm707, %v685, 0
        %v838 = vsel %vm707, %v686, 0
        %v841 = vsel %vm707, %v687, 0
        %v844 = vsel %vm707, %v688, 0
        %v847 = vsel %vm707, %v689, 0
        %v850 = vsel %vm707, %v690, 0
        %v853 = vsel %vm707, %v691, 0
        %v856 = vsel %vm707, %v692, 0
        %v859 = vsel %vm707, %v693, 0
        %v862 = vsel %vm707, %v694, 0
        %v865 = vsel %vm707, %v695, 0
        %v868 = vsel %vm707, %v696, 0
        %v871 = vsel %vm707, %v697, 0
        %v874 = vsel %vm707, %v698, 0
        %v877 = vsel %vm707, %v699, 0
        %v880 = vsel %vm707, %v700, 0
        %v883 = vsel %vm707, %v701, 0
        %v886 = vsel %vm707, %v702, 0
        %v889 = vsel %vm707, %v703, 0
        %v892 = vsel %vm707, %v704, 0
        %v895 = vsel %vm707, %v705, 0
        %v898 = vsel %vm707, %v706, 0
        %vm900 = vcmask 1043456
        %v902 = vsel %vm900, %v385, 0
        %904 = vmatpush.bf16.msra.mxu0 0
        %905 = vmatpush.bf16.msra.mxu0 0
        %906 = vmatpush.bf16.msra.mxu0 0
        %907 = vmatpush.bf16.msra.mxu0 0
        %908 = vmatpush.bf16.msra.mxu0 0
        %909 = vmatpush.bf16.msra.mxu0 0
        %910 = vmatpush.bf16.msra.mxu0 0
        %911 = vmatpush.bf16.msra.mxu0 %v902
        %912 = vmatmul.bf16.gmra.mxu0 %v709
        %v913 = vpop.f32.mrf.mxu0
        %v914 = vadd.f32 %v386, %v913
        %v915 = vpop.f32.mrf.mxu0
        %v916 = vadd.f32 %v386, %v915
        %917 = vmatmul.bf16.gmra.mxu0 %v712
        %v918 = vpop.f32.mrf.mxu0
        %v919 = vadd.f32 %v386, %v918
        %v920 = vpop.f32.mrf.mxu0
        %v921 = vadd.f32 %v386, %v920
        %922 = vmatmul.bf16.gmra.mxu0 %v715
        %v923 = vpop.f32.mrf.mxu0
        %v924 = vadd.f32 %v386, %v923
        %v925 = vpop.f32.mrf.mxu0
        %v926 = vadd.f32 %v386, %v925
        %927 = vmatmul.bf16.gmra.mxu0 %v718
        %v928 = vpop.f32.mrf.mxu0
        %v929 = vadd.f32 %v386, %v928
        %v930 = vpop.f32.mrf.mxu0
        %v931 = vadd.f32 %v386, %v930
        %932 = vmatmul.bf16.gmra.mxu0 %v721
        %v933 = vpop.f32.mrf.mxu0
        %v934 = vadd.f32 %v386, %v933
        %v935 = vpop.f32.mrf.mxu0
        %v936 = vadd.f32 %v386, %v935
        %937 = vmatmul.bf16.gmra.mxu0 %v724
        %v938 = vpop.f32.mrf.mxu0
        %v939 = vadd.f32 %v386, %v938
        %v940 = vpop.f32.mrf.mxu0
        %v941 = vadd.f32 %v386, %v940
        %942 = vmatmul.bf16.gmra.mxu0 %v727
        %v943 = vpop.f32.mrf.mxu0
        %v944 = vadd.f32 %v386, %v943
        %v945 = vpop.f32.mrf.mxu0
        %v946 = vadd.f32 %v386, %v945
        %947 = vmatmul.bf16.gmra.mxu0 %v730
        %v948 = vpop.f32.mrf.mxu0
        %v949 = vadd.f32 %v386, %v948
        %v950 = vpop.f32.mrf.mxu0
        %v951 = vadd.f32 %v386, %v950
        %952 = vmatmul.bf16.gmra.mxu0 %v733
        %v953 = vpop.f32.mrf.mxu0
        %v954 = vadd.f32 %v386, %v953
        %v955 = vpop.f32.mrf.mxu0
        %v956 = vadd.f32 %v386, %v955
        %957 = vmatmul.bf16.gmra.mxu0 %v736
        %v958 = vpop.f32.mrf.mxu0
        %v959 = vadd.f32 %v386, %v958
        %v960 = vpop.f32.mrf.mxu0
        %v961 = vadd.f32 %v386, %v960
        %962 = vmatmul.bf16.gmra.mxu0 %v739
        %v963 = vpop.f32.mrf.mxu0
        %v964 = vadd.f32 %v386, %v963
        %v965 = vpop.f32.mrf.mxu0
        %v966 = vadd.f32 %v386, %v965
        %967 = vmatmul.bf16.gmra.mxu0 %v742
        %v968 = vpop.f32.mrf.mxu0
        %v969 = vadd.f32 %v386, %v968
        %v970 = vpop.f32.mrf.mxu0
        %v971 = vadd.f32 %v386, %v970
        %972 = vmatmul.bf16.gmra.mxu0 %v745
        %v973 = vpop.f32.mrf.mxu0
        %v974 = vadd.f32 %v386, %v973
        %v975 = vpop.f32.mrf.mxu0
        %v976 = vadd.f32 %v386, %v975
        %977 = vmatmul.bf16.gmra.mxu0 %v748
        %v978 = vpop.f32.mrf.mxu0
        %v979 = vadd.f32 %v386, %v978
        %v980 = vpop.f32.mrf.mxu0
        %v981 = vadd.f32 %v386, %v980
        %982 = vmatmul.bf16.gmra.mxu0 %v751
        %v983 = vpop.f32.mrf.mxu0
        %v984 = vadd.f32 %v386, %v983
        %v985 = vpop.f32.mrf.mxu0
        %v986 = vadd.f32 %v386, %v985
        %987 = vmatmul.bf16.gmra.mxu0 %v754
        %v988 = vpop.f32.mrf.mxu0
        %v989 = vadd.f32 %v386, %v988
        %v990 = vpop.f32.mrf.mxu0
        %v991 = vadd.f32 %v386, %v990
        %992 = vmatmul.bf16.gmra.mxu0 %v757
        %v993 = vpop.f32.mrf.mxu0
        %v994 = vadd.f32 %v386, %v993
        %v995 = vpop.f32.mrf.mxu0
        %v996 = vadd.f32 %v386, %v995
        %997 = vmatmul.bf16.gmra.mxu0 %v760
        %v998 = vpop.f32.mrf.mxu0
        %v999 = vadd.f32 %v386, %v998
        %v1000 = vpop.f32.mrf.mxu0
        %v1001 = vadd.f32 %v386, %v1000
        %1002 = vmatmul.bf16.gmra.mxu0 %v763
        %v1003 = vpop.f32.mrf.mxu0
        %v1004 = vadd.f32 %v386, %v1003
        %v1005 = vpop.f32.mrf.mxu0
        %v1006 = vadd.f32 %v386, %v1005
        %1007 = vmatmul.bf16.gmra.mxu0 %v766
        %v1008 = vpop.f32.mrf.mxu0
        %v1009 = vadd.f32 %v386, %v1008
        %v1010 = vpop.f32.mrf.mxu0
        %v1011 = vadd.f32 %v386, %v1010
        %1012 = vmatmul.bf16.gmra.mxu0 %v769
        %v1013 = vpop.f32.mrf.mxu0
        %v1014 = vadd.f32 %v386, %v1013
        %v1015 = vpop.f32.mrf.mxu0
        %v1016 = vadd.f32 %v386, %v1015
        %1017 = vmatmul.bf16.gmra.mxu0 %v772
        %v1018 = vpop.f32.mrf.mxu0
        %v1019 = vadd.f32 %v386, %v1018
        %v1020 = vpop.f32.mrf.mxu0
        %v1021 = vadd.f32 %v386, %v1020
        %1022 = vmatmul.bf16.gmra.mxu0 %v775
        %v1023 = vpop.f32.mrf.mxu0
        %v1024 = vadd.f32 %v386, %v1023
        %v1025 = vpop.f32.mrf.mxu0
        %v1026 = vadd.f32 %v386, %v1025
        %1027 = vmatmul.bf16.gmra.mxu0 %v778
        %v1028 = vpop.f32.mrf.mxu0
        %v1029 = vadd.f32 %v386, %v1028
        %v1030 = vpop.f32.mrf.mxu0
        %v1031 = vadd.f32 %v386, %v1030
        %1032 = vmatmul.bf16.gmra.mxu0 %v781
        %v1033 = vpop.f32.mrf.mxu0
        %v1034 = vadd.f32 %v386, %v1033
        %v1035 = vpop.f32.mrf.mxu0
        %v1036 = vadd.f32 %v386, %v1035
        %1037 = vmatmul.bf16.gmra.mxu0 %v784
        %v1038 = vpop.f32.mrf.mxu0
        %v1039 = vadd.f32 %v386, %v1038
        %v1040 = vpop.f32.mrf.mxu0
        %v1041 = vadd.f32 %v386, %v1040
        %1042 = vmatmul.bf16.gmra.mxu0 %v787
        %v1043 = vpop.f32.mrf.mxu0
        %v1044 = vadd.f32 %v386, %v1043
        %v1045 = vpop.f32.mrf.mxu0
        %v1046 = vadd.f32 %v386, %v1045
        %1047 = vmatmul.bf16.gmra.mxu0 %v790
        %v1048 = vpop.f32.mrf.mxu0
        %v1049 = vadd.f32 %v386, %v1048
        %v1050 = vpop.f32.mrf.mxu0
        %v1051 = vadd.f32 %v386, %v1050
        %1052 = vmatmul.bf16.gmra.mxu0 %v793
        %v1053 = vpop.f32.mrf.mxu0
        %v1054 = vadd.f32 %v386, %v1053
        %v1055 = vpop.f32.mrf.mxu0
        %v1056 = vadd.f32 %v386, %v1055
        %1057 = vmatmul.bf16.gmra.mxu0 %v796
        %v1058 = vpop.f32.mrf.mxu0
        %v1059 = vadd.f32 %v386, %v1058
        %v1060 = vpop.f32.mrf.mxu0
        %v1061 = vadd.f32 %v386, %v1060
        %1062 = vmatmul.bf16.gmra.mxu0 %v799
        %v1063 = vpop.f32.mrf.mxu0
        %v1064 = vadd.f32 %v386, %v1063
        %v1065 = vpop.f32.mrf.mxu0
        %v1066 = vadd.f32 %v386, %v1065
        %1067 = vmatmul.bf16.gmra.mxu0 %v802
        %v1068 = vpop.f32.mrf.mxu0
        %v1069 = vadd.f32 %v386, %v1068
        %v1070 = vpop.f32.mrf.mxu0
        %v1071 = vadd.f32 %v386, %v1070
        %1072 = vmatmul.bf16.gmra.mxu0 %v805
        %v1073 = vpop.f32.mrf.mxu0
        %v1074 = vadd.f32 %v386, %v1073
        %v1075 = vpop.f32.mrf.mxu0
        %v1076 = vadd.f32 %v386, %v1075
        %1077 = vmatmul.bf16.gmra.mxu0 %v808
        %v1078 = vpop.f32.mrf.mxu0
        %v1079 = vadd.f32 %v386, %v1078
        %v1080 = vpop.f32.mrf.mxu0
        %v1081 = vadd.f32 %v386, %v1080
        %1082 = vmatmul.bf16.gmra.mxu0 %v811
        %v1083 = vpop.f32.mrf.mxu0
        %v1084 = vadd.f32 %v386, %v1083
        %v1085 = vpop.f32.mrf.mxu0
        %v1086 = vadd.f32 %v386, %v1085
        %1087 = vmatmul.bf16.gmra.mxu0 %v814
        %v1088 = vpop.f32.mrf.mxu0
        %v1089 = vadd.f32 %v386, %v1088
        %v1090 = vpop.f32.mrf.mxu0
        %v1091 = vadd.f32 %v386, %v1090
        %1092 = vmatmul.bf16.gmra.mxu0 %v817
        %v1093 = vpop.f32.mrf.mxu0
        %v1094 = vadd.f32 %v386, %v1093
        %v1095 = vpop.f32.mrf.mxu0
        %v1096 = vadd.f32 %v386, %v1095
        %1097 = vmatmul.bf16.gmra.mxu0 %v820
        %v1098 = vpop.f32.mrf.mxu0
        %v1099 = vadd.f32 %v386, %v1098
        %v1100 = vpop.f32.mrf.mxu0
        %v1101 = vadd.f32 %v386, %v1100
        %1102 = vmatmul.bf16.gmra.mxu0 %v823
        %v1103 = vpop.f32.mrf.mxu0
        %v1104 = vadd.f32 %v386, %v1103
        %v1105 = vpop.f32.mrf.mxu0
        %v1106 = vadd.f32 %v386, %v1105
        %1107 = vmatmul.bf16.gmra.mxu0 %v826
        %v1108 = vpop.f32.mrf.mxu0
        %v1109 = vadd.f32 %v386, %v1108
        %v1110 = vpop.f32.mrf.mxu0
        %v1111 = vadd.f32 %v386, %v1110
        %1112 = vmatmul.bf16.gmra.mxu0 %v829
        %v1113 = vpop.f32.mrf.mxu0
        %v1114 = vadd.f32 %v386, %v1113
        %v1115 = vpop.f32.mrf.mxu0
        %v1116 = vadd.f32 %v386, %v1115
        %1117 = vmatmul.bf16.gmra.mxu0 %v832
        %v1118 = vpop.f32.mrf.mxu0
        %v1119 = vadd.f32 %v386, %v1118
        %v1120 = vpop.f32.mrf.mxu0
        %v1121 = vadd.f32 %v386, %v1120
        %1122 = vmatmul.bf16.gmra.mxu0 %v835
        %v1123 = vpop.f32.mrf.mxu0
        %v1124 = vadd.f32 %v386, %v1123
        %v1125 = vpop.f32.mrf.mxu0
        %v1126 = vadd.f32 %v386, %v1125
        %1127 = vmatmul.bf16.gmra.mxu0 %v838
        %v1128 = vpop.f32.mrf.mxu0
        %v1129 = vadd.f32 %v386, %v1128
        %v1130 = vpop.f32.mrf.mxu0
        %v1131 = vadd.f32 %v386, %v1130
        %1132 = vmatmul.bf16.gmra.mxu0 %v841
        %v1133 = vpop.f32.mrf.mxu0
        %v1134 = vadd.f32 %v386, %v1133
        %v1135 = vpop.f32.mrf.mxu0
        %v1136 = vadd.f32 %v386, %v1135
        %1137 = vmatmul.bf16.gmra.mxu0 %v844
        %v1138 = vpop.f32.mrf.mxu0
        %v1139 = vadd.f32 %v386, %v1138
        %v1140 = vpop.f32.mrf.mxu0
        %v1141 = vadd.f32 %v386, %v1140
        %1142 = vmatmul.bf16.gmra.mxu0 %v847
        %v1143 = vpop.f32.mrf.mxu0
        %v1144 = vadd.f32 %v386, %v1143
        %v1145 = vpop.f32.mrf.mxu0
        %v1146 = vadd.f32 %v386, %v1145
        %1147 = vmatmul.bf16.gmra.mxu0 %v850
        %v1148 = vpop.f32.mrf.mxu0
        %v1149 = vadd.f32 %v386, %v1148
        %v1150 = vpop.f32.mrf.mxu0
        %v1151 = vadd.f32 %v386, %v1150
        %1152 = vmatmul.bf16.gmra.mxu0 %v853
        %v1153 = vpop.f32.mrf.mxu0
        %v1154 = vadd.f32 %v386, %v1153
        %v1155 = vpop.f32.mrf.mxu0
        %v1156 = vadd.f32 %v386, %v1155
        %1157 = vmatmul.bf16.gmra.mxu0 %v856
        %v1158 = vpop.f32.mrf.mxu0
        %v1159 = vadd.f32 %v386, %v1158
        %v1160 = vpop.f32.mrf.mxu0
        %v1161 = vadd.f32 %v386, %v1160
        %1162 = vmatmul.bf16.gmra.mxu0 %v859
        %v1163 = vpop.f32.mrf.mxu0
        %v1164 = vadd.f32 %v386, %v1163
        %v1165 = vpop.f32.mrf.mxu0
        %v1166 = vadd.f32 %v386, %v1165
        %1167 = vmatmul.bf16.gmra.mxu0 %v862
        %v1168 = vpop.f32.mrf.mxu0
        %v1169 = vadd.f32 %v386, %v1168
        %v1170 = vpop.f32.mrf.mxu0
        %v1171 = vadd.f32 %v386, %v1170
        %1172 = vmatmul.bf16.gmra.mxu0 %v865
        %v1173 = vpop.f32.mrf.mxu0
        %v1174 = vadd.f32 %v386, %v1173
        %v1175 = vpop.f32.mrf.mxu0
        %v1176 = vadd.f32 %v386, %v1175
        %1177 = vmatmul.bf16.gmra.mxu0 %v868
        %v1178 = vpop.f32.mrf.mxu0
        %v1179 = vadd.f32 %v386, %v1178
        %v1180 = vpop.f32.mrf.mxu0
        %v1181 = vadd.f32 %v386, %v1180
        %1182 = vmatmul.bf16.gmra.mxu0 %v871
        %v1183 = vpop.f32.mrf.mxu0
        %v1184 = vadd.f32 %v386, %v1183
        %v1185 = vpop.f32.mrf.mxu0
        %v1186 = vadd.f32 %v386, %v1185
        %1187 = vmatmul.bf16.gmra.mxu0 %v874
        %v1188 = vpop.f32.mrf.mxu0
        %v1189 = vadd.f32 %v386, %v1188
        %v1190 = vpop.f32.mrf.mxu0
        %v1191 = vadd.f32 %v386, %v1190
        %1192 = vmatmul.bf16.gmra.mxu0 %v877
        %v1193 = vpop.f32.mrf.mxu0
        %v1194 = vadd.f32 %v386, %v1193
        %v1195 = vpop.f32.mrf.mxu0
        %v1196 = vadd.f32 %v386, %v1195
        %1197 = vmatmul.bf16.gmra.mxu0 %v880
        %v1198 = vpop.f32.mrf.mxu0
        %v1199 = vadd.f32 %v386, %v1198
        %v1200 = vpop.f32.mrf.mxu0
        %v1201 = vadd.f32 %v386, %v1200
        %1202 = vmatmul.bf16.gmra.mxu0 %v883
        %v1203 = vpop.f32.mrf.mxu0
        %v1204 = vadd.f32 %v386, %v1203
        %v1205 = vpop.f32.mrf.mxu0
        %v1206 = vadd.f32 %v386, %v1205
        %1207 = vmatmul.bf16.gmra.mxu0 %v886
        %v1208 = vpop.f32.mrf.mxu0
        %v1209 = vadd.f32 %v386, %v1208
        %v1210 = vpop.f32.mrf.mxu0
        %v1211 = vadd.f32 %v386, %v1210
        %1212 = vmatmul.bf16.gmra.mxu0 %v889
        %v1213 = vpop.f32.mrf.mxu0
        %v1214 = vadd.f32 %v386, %v1213
        %v1215 = vpop.f32.mrf.mxu0
        %v1216 = vadd.f32 %v386, %v1215
        %1217 = vmatmul.bf16.gmra.mxu0 %v892
        %v1218 = vpop.f32.mrf.mxu0
        %v1219 = vadd.f32 %v386, %v1218
        %v1220 = vpop.f32.mrf.mxu0
        %v1221 = vadd.f32 %v386, %v1220
        %1222 = vmatmul.bf16.gmra.mxu0 %v895
        %v1223 = vpop.f32.mrf.mxu0
        %v1224 = vadd.f32 %v386, %v1223
        %v1225 = vpop.f32.mrf.mxu0
        %v1226 = vadd.f32 %v386, %v1225
        %1227 = vmatmul.bf16.gmra.mxu0 %v898
        %v1228 = vpop.f32.mrf.mxu0
        %v1229 = vadd.f32 %v386, %v1228
        %v1230 = vpop.f32.mrf.mxu0
        %v1231 = vadd.f32 %v386, %v1230
        %1232 = vdwg.mxu0
        %v1233 = vmul.f32 %v914, %v914
        %v1234 = vmul.f32 %v916, %v916
        %v1235 = vmul.f32 %v919, %v919
        %v1236 = vmul.f32 %v921, %v921
        %v1237 = vmul.f32 %v924, %v924
        %v1238 = vmul.f32 %v926, %v926
        %v1239 = vmul.f32 %v929, %v929
        %v1240 = vmul.f32 %v931, %v931
        %v1241 = vmul.f32 %v934, %v934
        %v1242 = vmul.f32 %v936, %v936
        %v1243 = vmul.f32 %v939, %v939
        %v1244 = vmul.f32 %v941, %v941
        %v1245 = vmul.f32 %v944, %v944
        %v1246 = vmul.f32 %v946, %v946
        %v1247 = vmul.f32 %v949, %v949
        %v1248 = vmul.f32 %v951, %v951
        %v1249 = vmul.f32 %v954, %v954
        %v1250 = vmul.f32 %v956, %v956
        %v1251 = vmul.f32 %v959, %v959
        %v1252 = vmul.f32 %v961, %v961
        %v1253 = vmul.f32 %v964, %v964
        %v1254 = vmul.f32 %v966, %v966
        %v1255 = vmul.f32 %v969, %v969
        %v1256 = vmul.f32 %v971, %v971
        %v1257 = vmul.f32 %v974, %v974
        %v1258 = vmul.f32 %v976, %v976
        %v1259 = vmul.f32 %v979, %v979
        %v1260 = vmul.f32 %v981, %v981
        %v1261 = vmul.f32 %v984, %v984
        %v1262 = vmul.f32 %v986, %v986
        %v1263 = vmul.f32 %v989, %v989
        %v1264 = vmul.f32 %v991, %v991
        %v1265 = vmul.f32 %v994, %v994
        %v1266 = vmul.f32 %v996, %v996
        %v1267 = vmul.f32 %v999, %v999
        %v1268 = vmul.f32 %v1001, %v1001
        %v1269 = vmul.f32 %v1004, %v1004
        %v1270 = vmul.f32 %v1006, %v1006
        %v1271 = vmul.f32 %v1009, %v1009
        %v1272 = vmul.f32 %v1011, %v1011
        %v1273 = vmul.f32 %v1014, %v1014
        %v1274 = vmul.f32 %v1016, %v1016
        %v1275 = vmul.f32 %v1019, %v1019
        %v1276 = vmul.f32 %v1021, %v1021
        %v1277 = vmul.f32 %v1024, %v1024
        %v1278 = vmul.f32 %v1026, %v1026
        %v1279 = vmul.f32 %v1029, %v1029
        %v1280 = vmul.f32 %v1031, %v1031
        %v1281 = vmul.f32 %v1034, %v1034
        %v1282 = vmul.f32 %v1036, %v1036
        %v1283 = vmul.f32 %v1039, %v1039
        %v1284 = vmul.f32 %v1041, %v1041
        %v1285 = vmul.f32 %v1044, %v1044
        %v1286 = vmul.f32 %v1046, %v1046
        %v1287 = vmul.f32 %v1049, %v1049
        %v1288 = vmul.f32 %v1051, %v1051
        %v1289 = vmul.f32 %v1054, %v1054
        %v1290 = vmul.f32 %v1056, %v1056
        %v1291 = vmul.f32 %v1059, %v1059
        %v1292 = vmul.f32 %v1061, %v1061
        %v1293 = vmul.f32 %v1064, %v1064
        %v1294 = vmul.f32 %v1066, %v1066
        %v1295 = vmul.f32 %v1069, %v1069
        %v1296 = vmul.f32 %v1071, %v1071
        %v1297 = vmul.f32 %v1074, %v1074
        %v1298 = vmul.f32 %v1076, %v1076
        %v1299 = vmul.f32 %v1079, %v1079
        %v1300 = vmul.f32 %v1081, %v1081
        %v1301 = vmul.f32 %v1084, %v1084
        %v1302 = vmul.f32 %v1086, %v1086
        %v1303 = vmul.f32 %v1089, %v1089
        %v1304 = vmul.f32 %v1091, %v1091
        %v1305 = vmul.f32 %v1094, %v1094
        %v1306 = vmul.f32 %v1096, %v1096
        %v1307 = vmul.f32 %v1099, %v1099
        %v1308 = vmul.f32 %v1101, %v1101
        %v1309 = vmul.f32 %v1104, %v1104
        %v1310 = vmul.f32 %v1106, %v1106
        %v1311 = vmul.f32 %v1109, %v1109
        %v1312 = vmul.f32 %v1111, %v1111
        %v1313 = vmul.f32 %v1114, %v1114
        %v1314 = vmul.f32 %v1116, %v1116
        %v1315 = vmul.f32 %v1119, %v1119
        %v1316 = vmul.f32 %v1121, %v1121
        %v1317 = vmul.f32 %v1124, %v1124
        %v1318 = vmul.f32 %v1126, %v1126
        %v1319 = vmul.f32 %v1129, %v1129
        %v1320 = vmul.f32 %v1131, %v1131
        %v1321 = vmul.f32 %v1134, %v1134
        %v1322 = vmul.f32 %v1136, %v1136
        %v1323 = vmul.f32 %v1139, %v1139
        %v1324 = vmul.f32 %v1141, %v1141
        %v1325 = vmul.f32 %v1144, %v1144
        %v1326 = vmul.f32 %v1146, %v1146
        %v1327 = vmul.f32 %v1149, %v1149
        %v1328 = vmul.f32 %v1151, %v1151
        %v1329 = vmul.f32 %v1154, %v1154
        %v1330 = vmul.f32 %v1156, %v1156
        %v1331 = vmul.f32 %v1159, %v1159
        %v1332 = vmul.f32 %v1161, %v1161
        %v1333 = vmul.f32 %v1164, %v1164
        %v1334 = vmul.f32 %v1166, %v1166
        %v1335 = vmul.f32 %v1169, %v1169
        %v1336 = vmul.f32 %v1171, %v1171
        %v1337 = vmul.f32 %v1174, %v1174
        %v1338 = vmul.f32 %v1176, %v1176
        %v1339 = vmul.f32 %v1179, %v1179
        %v1340 = vmul.f32 %v1181, %v1181
        %v1341 = vmul.f32 %v1184, %v1184
        %v1342 = vmul.f32 %v1186, %v1186
        %v1343 = vmul.f32 %v1189, %v1189
        %v1344 = vmul.f32 %v1191, %v1191
        %v1345 = vmul.f32 %v1194, %v1194
        %v1346 = vmul.f32 %v1196, %v1196
        %v1347 = vmul.f32 %v1199, %v1199
        %v1348 = vmul.f32 %v1201, %v1201
        %v1349 = vmul.f32 %v1204, %v1204
        %v1350 = vmul.f32 %v1206, %v1206
        %v1351 = vmul.f32 %v1209, %v1209
        %v1352 = vmul.f32 %v1211, %v1211
        %v1353 = vmul.f32 %v1214, %v1214
        %v1354 = vmul.f32 %v1216, %v1216
        %v1355 = vmul.f32 %v1219, %v1219
        %v1356 = vmul.f32 %v1221, %v1221
        %v1357 = vmul.f32 %v1224, %v1224
        %v1358 = vmul.f32 %v1226, %v1226
        %v1359 = vmul.f32 %v1229, %v1229
        %v1360 = vmul.f32 %v1231, %v1231
        %v1361 = vmul.f32 %v914, %v1233
        %v1362 = vmul.f32 %v916, %v1234
        %v1363 = vmul.f32 %v919, %v1235
        %v1364 = vmul.f32 %v921, %v1236
        %v1365 = vmul.f32 %v924, %v1237
        %v1366 = vmul.f32 %v926, %v1238
        %v1367 = vmul.f32 %v929, %v1239
        %v1368 = vmul.f32 %v931, %v1240
        %v1369 = vmul.f32 %v934, %v1241
        %v1370 = vmul.f32 %v936, %v1242
        %v1371 = vmul.f32 %v939, %v1243
        %v1372 = vmul.f32 %v941, %v1244
        %v1373 = vmul.f32 %v944, %v1245
        %v1374 = vmul.f32 %v946, %v1246
        %v1375 = vmul.f32 %v949, %v1247
        %v1376 = vmul.f32 %v951, %v1248
        %v1377 = vmul.f32 %v954, %v1249
        %v1378 = vmul.f32 %v956, %v1250
        %v1379 = vmul.f32 %v959, %v1251
        %v1380 = vmul.f32 %v961, %v1252
        %v1381 = vmul.f32 %v964, %v1253
        %v1382 = vmul.f32 %v966, %v1254
        %v1383 = vmul.f32 %v969, %v1255
        %v1384 = vmul.f32 %v971, %v1256
        %v1385 = vmul.f32 %v974, %v1257
        %v1386 = vmul.f32 %v976, %v1258
        %v1387 = vmul.f32 %v979, %v1259
        %v1388 = vmul.f32 %v981, %v1260
        %v1389 = vmul.f32 %v984, %v1261
        %v1390 = vmul.f32 %v986, %v1262
        %v1391 = vmul.f32 %v989, %v1263
        %v1392 = vmul.f32 %v991, %v1264
        %v1393 = vmul.f32 %v994, %v1265
        %v1394 = vmul.f32 %v996, %v1266
        %v1395 = vmul.f32 %v999, %v1267
        %v1396 = vmul.f32 %v1001, %v1268
        %v1397 = vmul.f32 %v1004, %v1269
        %v1398 = vmul.f32 %v1006, %v1270
        %v1399 = vmul.f32 %v1009, %v1271
        %v1400 = vmul.f32 %v1011, %v1272
        %v1401 = vmul.f32 %v1014, %v1273
        %v1402 = vmul.f32 %v1016, %v1274
        %v1403 = vmul.f32 %v1019, %v1275
        %v1404 = vmul.f32 %v1021, %v1276
        %v1405 = vmul.f32 %v1024, %v1277
        %v1406 = vmul.f32 %v1026, %v1278
        %v1407 = vmul.f32 %v1029, %v1279
        %v1408 = vmul.f32 %v1031, %v1280
        %v1409 = vmul.f32 %v1034, %v1281
        %v1410 = vmul.f32 %v1036, %v1282
        %v1411 = vmul.f32 %v1039, %v1283
        %v1412 = vmul.f32 %v1041, %v1284
        %v1413 = vmul.f32 %v1044, %v1285
        %v1414 = vmul.f32 %v1046, %v1286
        %v1415 = vmul.f32 %v1049, %v1287
        %v1416 = vmul.f32 %v1051, %v1288
        %v1417 = vmul.f32 %v1054, %v1289
        %v1418 = vmul.f32 %v1056, %v1290
        %v1419 = vmul.f32 %v1059, %v1291
        %v1420 = vmul.f32 %v1061, %v1292
        %v1421 = vmul.f32 %v1064, %v1293
        %v1422 = vmul.f32 %v1066, %v1294
        %v1423 = vmul.f32 %v1069, %v1295
        %v1424 = vmul.f32 %v1071, %v1296
        %v1425 = vmul.f32 %v1074, %v1297
        %v1426 = vmul.f32 %v1076, %v1298
        %v1427 = vmul.f32 %v1079, %v1299
        %v1428 = vmul.f32 %v1081, %v1300
        %v1429 = vmul.f32 %v1084, %v1301
        %v1430 = vmul.f32 %v1086, %v1302
        %v1431 = vmul.f32 %v1089, %v1303
        %v1432 = vmul.f32 %v1091, %v1304
        %v1433 = vmul.f32 %v1094, %v1305
        %v1434 = vmul.f32 %v1096, %v1306
        %v1435 = vmul.f32 %v1099, %v1307
        %v1436 = vmul.f32 %v1101, %v1308
        %v1437 = vmul.f32 %v1104, %v1309
        %v1438 = vmul.f32 %v1106, %v1310
        %v1439 = vmul.f32 %v1109, %v1311
        %v1440 = vmul.f32 %v1111, %v1312
        %v1441 = vmul.f32 %v1114, %v1313
        %v1442 = vmul.f32 %v1116, %v1314
        %v1443 = vmul.f32 %v1119, %v1315
        %v1444 = vmul.f32 %v1121, %v1316
        %v1445 = vmul.f32 %v1124, %v1317
        %v1446 = vmul.f32 %v1126, %v1318
        %v1447 = vmul.f32 %v1129, %v1319
        %v1448 = vmul.f32 %v1131, %v1320
        %v1449 = vmul.f32 %v1134, %v1321
        %v1450 = vmul.f32 %v1136, %v1322
        %v1451 = vmul.f32 %v1139, %v1323
        %v1452 = vmul.f32 %v1141, %v1324
        %v1453 = vmul.f32 %v1144, %v1325
        %v1454 = vmul.f32 %v1146, %v1326
        %v1455 = vmul.f32 %v1149, %v1327
        %v1456 = vmul.f32 %v1151, %v1328
        %v1457 = vmul.f32 %v1154, %v1329
        %v1458 = vmul.f32 %v1156, %v1330
        %v1459 = vmul.f32 %v1159, %v1331
        %v1460 = vmul.f32 %v1161, %v1332
        %v1461 = vmul.f32 %v1164, %v1333
        %v1462 = vmul.f32 %v1166, %v1334
        %v1463 = vmul.f32 %v1169, %v1335
        %v1464 = vmul.f32 %v1171, %v1336
        %v1465 = vmul.f32 %v1174, %v1337
        %v1466 = vmul.f32 %v1176, %v1338
        %v1467 = vmul.f32 %v1179, %v1339
        %v1468 = vmul.f32 %v1181, %v1340
        %v1469 = vmul.f32 %v1184, %v1341
        %v1470 = vmul.f32 %v1186, %v1342
        %v1471 = vmul.f32 %v1189, %v1343
        %v1472 = vmul.f32 %v1191, %v1344
        %v1473 = vmul.f32 %v1194, %v1345
        %v1474 = vmul.f32 %v1196, %v1346
        %v1475 = vmul.f32 %v1199, %v1347
        %v1476 = vmul.f32 %v1201, %v1348
        %v1477 = vmul.f32 %v1204, %v1349
        %v1478 = vmul.f32 %v1206, %v1350
        %v1479 = vmul.f32 %v1209, %v1351
        %v1480 = vmul.f32 %v1211, %v1352
        %v1481 = vmul.f32 %v1214, %v1353
        %v1482 = vmul.f32 %v1216, %v1354
        %v1483 = vmul.f32 %v1219, %v1355
        %v1484 = vmul.f32 %v1221, %v1356
        %v1485 = vmul.f32 %v1224, %v1357
        %v1486 = vmul.f32 %v1226, %v1358
        %v1487 = vmul.f32 %v1229, %v1359
        %v1488 = vmul.f32 %v1231, %v1360
        %v1489 = vmul.f32 %v1361, 0.044715
        %v1490 = vmul.f32 %v1362, 0.044715
        %v1491 = vmul.f32 %v1363, 0.044715
        %v1492 = vmul.f32 %v1364, 0.044715
        %v1493 = vmul.f32 %v1365, 0.044715
        %v1494 = vmul.f32 %v1366, 0.044715
        %v1495 = vmul.f32 %v1367, 0.044715
        %v1496 = vmul.f32 %v1368, 0.044715
        %v1497 = vmul.f32 %v1369, 0.044715
        %v1498 = vmul.f32 %v1370, 0.044715
        %v1499 = vmul.f32 %v1371, 0.044715
        %v1500 = vmul.f32 %v1372, 0.044715
        %v1501 = vmul.f32 %v1373, 0.044715
        %v1502 = vmul.f32 %v1374, 0.044715
        %v1503 = vmul.f32 %v1375, 0.044715
        %v1504 = vmul.f32 %v1376, 0.044715
        %v1505 = vmul.f32 %v1377, 0.044715
        %v1506 = vmul.f32 %v1378, 0.044715
        %v1507 = vmul.f32 %v1379, 0.044715
        %v1508 = vmul.f32 %v1380, 0.044715
        %v1509 = vmul.f32 %v1381, 0.044715
        %v1510 = vmul.f32 %v1382, 0.044715
        %v1511 = vmul.f32 %v1383, 0.044715
        %v1512 = vmul.f32 %v1384, 0.044715
        %v1513 = vmul.f32 %v1385, 0.044715
        %v1514 = vmul.f32 %v1386, 0.044715
        %v1515 = vmul.f32 %v1387, 0.044715
        %v1516 = vmul.f32 %v1388, 0.044715
        %v1517 = vmul.f32 %v1389, 0.044715
        %v1518 = vmul.f32 %v1390, 0.044715
        %v1519 = vmul.f32 %v1391, 0.044715
        %v1520 = vmul.f32 %v1392, 0.044715
        %v1521 = vmul.f32 %v1393, 0.044715
        %v1522 = vmul.f32 %v1394, 0.044715
        %v1523 = vmul.f32 %v1395, 0.044715
        %v1524 = vmul.f32 %v1396, 0.044715
        %v1525 = vmul.f32 %v1397, 0.044715
        %v1526 = vmul.f32 %v1398, 0.044715
        %v1527 = vmul.f32 %v1399, 0.044715
        %v1528 = vmul.f32 %v1400, 0.044715
        %v1529 = vmul.f32 %v1401, 0.044715
        %v1530 = vmul.f32 %v1402, 0.044715
        %v1531 = vmul.f32 %v1403, 0.044715
        %v1532 = vmul.f32 %v1404, 0.044715
        %v1533 = vmul.f32 %v1405, 0.044715
        %v1534 = vmul.f32 %v1406, 0.044715
        %v1535 = vmul.f32 %v1407, 0.044715
        %v1536 = vmul.f32 %v1408, 0.044715
        %v1537 = vmul.f32 %v1409, 0.044715
        %v1538 = vmul.f32 %v1410, 0.044715
        %v1539 = vmul.f32 %v1411, 0.044715
        %v1540 = vmul.f32 %v1412, 0.044715
        %v1541 = vmul.f32 %v1413, 0.044715
        %v1542 = vmul.f32 %v1414, 0.044715
        %v1543 = vmul.f32 %v1415, 0.044715
        %v1544 = vmul.f32 %v1416, 0.044715
        %v1545 = vmul.f32 %v1417, 0.044715
        %v1546 = vmul.f32 %v1418, 0.044715
        %v1547 = vmul.f32 %v1419, 0.044715
        %v1548 = vmul.f32 %v1420, 0.044715
        %v1549 = vmul.f32 %v1421, 0.044715
        %v1550 = vmul.f32 %v1422, 0.044715
        %v1551 = vmul.f32 %v1423, 0.044715
        %v1552 = vmul.f32 %v1424, 0.044715
        %v1553 = vmul.f32 %v1425, 0.044715
        %v1554 = vmul.f32 %v1426, 0.044715
        %v1555 = vmul.f32 %v1427, 0.044715
        %v1556 = vmul.f32 %v1428, 0.044715
        %v1557 = vmul.f32 %v1429, 0.044715
        %v1558 = vmul.f32 %v1430, 0.044715
        %v1559 = vmul.f32 %v1431, 0.044715
        %v1560 = vmul.f32 %v1432, 0.044715
        %v1561 = vmul.f32 %v1433, 0.044715
        %v1562 = vmul.f32 %v1434, 0.044715
        %v1563 = vmul.f32 %v1435, 0.044715
        %v1564 = vmul.f32 %v1436, 0.044715
        %v1565 = vmul.f32 %v1437, 0.044715
        %v1566 = vmul.f32 %v1438, 0.044715
        %v1567 = vmul.f32 %v1439, 0.044715
        %v1568 = vmul.f32 %v1440, 0.044715
        %v1569 = vmul.f32 %v1441, 0.044715
        %v1570 = vmul.f32 %v1442, 0.044715
        %v1571 = vmul.f32 %v1443, 0.044715
        %v1572 = vmul.f32 %v1444, 0.044715
        %v1573 = vmul.f32 %v1445, 0.044715
        %v1574 = vmul.f32 %v1446, 0.044715
        %v1575 = vmul.f32 %v1447, 0.044715
        %v1576 = vmul.f32 %v1448, 0.044715
        %v1577 = vmul.f32 %v1449, 0.044715
        %v1578 = vmul.f32 %v1450, 0.044715
        %v1579 = vmul.f32 %v1451, 0.044715
        %v1580 = vmul.f32 %v1452, 0.044715
        %v1581 = vmul.f32 %v1453, 0.044715
        %v1582 = vmul.f32 %v1454, 0.044715
        %v1583 = vmul.f32 %v1455, 0.044715
        %v1584 = vmul.f32 %v1456, 0.044715
        %v1585 = vmul.f32 %v1457, 0.044715
        %v1586 = vmul.f32 %v1458, 0.044715
        %v1587 = vmul.f32 %v1459, 0.044715
        %v1588 = vmul.f32 %v1460, 0.044715
        %v1589 = vmul.f32 %v1461, 0.044715
        %v1590 = vmul.f32 %v1462, 0.044715
        %v1591 = vmul.f32 %v1463, 0.044715
        %v1592 = vmul.f32 %v1464, 0.044715
        %v1593 = vmul.f32 %v1465, 0.044715
        %v1594 = vmul.f32 %v1466, 0.044715
        %v1595 = vmul.f32 %v1467, 0.044715
        %v1596 = vmul.f32 %v1468, 0.044715
        %v1597 = vmul.f32 %v1469, 0.044715
        %v1598 = vmul.f32 %v1470, 0.044715
        %v1599 = vmul.f32 %v1471, 0.044715
        %v1600 = vmul.f32 %v1472, 0.044715
        %v1601 = vmul.f32 %v1473, 0.044715
        %v1602 = vmul.f32 %v1474, 0.044715
        %v1603 = vmul.f32 %v1475, 0.044715
        %v1604 = vmul.f32 %v1476, 0.044715
        %v1605 = vmul.f32 %v1477, 0.044715
        %v1606 = vmul.f32 %v1478, 0.044715
        %v1607 = vmul.f32 %v1479, 0.044715
        %v1608 = vmul.f32 %v1480, 0.044715
        %v1609 = vmul.f32 %v1481, 0.044715
        %v1610 = vmul.f32 %v1482, 0.044715
        %v1611 = vmul.f32 %v1483, 0.044715
        %v1612 = vmul.f32 %v1484, 0.044715
        %v1613 = vmul.f32 %v1485, 0.044715
        %v1614 = vmul.f32 %v1486, 0.044715
        %v1615 = vmul.f32 %v1487, 0.044715
        %v1616 = vmul.f32 %v1488, 0.044715
        %v1617 = vadd.f32 %v914, %v1489
        %v1618 = vadd.f32 %v916, %v1490
        %v1619 = vadd.f32 %v919, %v1491
        %v1620 = vadd.f32 %v921, %v1492
        %v1621 = vadd.f32 %v924, %v1493
        %v1622 = vadd.f32 %v926, %v1494
        %v1623 = vadd.f32 %v929, %v1495
        %v1624 = vadd.f32 %v931, %v1496
        %v1625 = vadd.f32 %v934, %v1497
        %v1626 = vadd.f32 %v936, %v1498
        %v1627 = vadd.f32 %v939, %v1499
        %v1628 = vadd.f32 %v941, %v1500
        %v1629 = vadd.f32 %v944, %v1501
        %v1630 = vadd.f32 %v946, %v1502
        %v1631 = vadd.f32 %v949, %v1503
        %v1632 = vadd.f32 %v951, %v1504
        %v1633 = vadd.f32 %v954, %v1505
        %v1634 = vadd.f32 %v956, %v1506
        %v1635 = vadd.f32 %v959, %v1507
        %v1636 = vadd.f32 %v961, %v1508
        %v1637 = vadd.f32 %v964, %v1509
        %v1638 = vadd.f32 %v966, %v1510
        %v1639 = vadd.f32 %v969, %v1511
        %v1640 = vadd.f32 %v971, %v1512
        %v1641 = vadd.f32 %v974, %v1513
        %v1642 = vadd.f32 %v976, %v1514
        %v1643 = vadd.f32 %v979, %v1515
        %v1644 = vadd.f32 %v981, %v1516
        %v1645 = vadd.f32 %v984, %v1517
        %v1646 = vadd.f32 %v986, %v1518
        %v1647 = vadd.f32 %v989, %v1519
        %v1648 = vadd.f32 %v991, %v1520
        %v1649 = vadd.f32 %v994, %v1521
        %v1650 = vadd.f32 %v996, %v1522
        %v1651 = vadd.f32 %v999, %v1523
        %v1652 = vadd.f32 %v1001, %v1524
        %v1653 = vadd.f32 %v1004, %v1525
        %v1654 = vadd.f32 %v1006, %v1526
        %v1655 = vadd.f32 %v1009, %v1527
        %v1656 = vadd.f32 %v1011, %v1528
        %v1657 = vadd.f32 %v1014, %v1529
        %v1658 = vadd.f32 %v1016, %v1530
        %v1659 = vadd.f32 %v1019, %v1531
        %v1660 = vadd.f32 %v1021, %v1532
        %v1661 = vadd.f32 %v1024, %v1533
        %v1662 = vadd.f32 %v1026, %v1534
        %v1663 = vadd.f32 %v1029, %v1535
        %v1664 = vadd.f32 %v1031, %v1536
        %v1665 = vadd.f32 %v1034, %v1537
        %v1666 = vadd.f32 %v1036, %v1538
        %v1667 = vadd.f32 %v1039, %v1539
        %v1668 = vadd.f32 %v1041, %v1540
        %v1669 = vadd.f32 %v1044, %v1541
        %v1670 = vadd.f32 %v1046, %v1542
        %v1671 = vadd.f32 %v1049, %v1543
        %v1672 = vadd.f32 %v1051, %v1544
        %v1673 = vadd.f32 %v1054, %v1545
        %v1674 = vadd.f32 %v1056, %v1546
        %v1675 = vadd.f32 %v1059, %v1547
        %v1676 = vadd.f32 %v1061, %v1548
        %v1677 = vadd.f32 %v1064, %v1549
        %v1678 = vadd.f32 %v1066, %v1550
        %v1679 = vadd.f32 %v1069, %v1551
        %v1680 = vadd.f32 %v1071, %v1552
        %v1681 = vadd.f32 %v1074, %v1553
        %v1682 = vadd.f32 %v1076, %v1554
        %v1683 = vadd.f32 %v1079, %v1555
        %v1684 = vadd.f32 %v1081, %v1556
        %v1685 = vadd.f32 %v1084, %v1557
        %v1686 = vadd.f32 %v1086, %v1558
        %v1687 = vadd.f32 %v1089, %v1559
        %v1688 = vadd.f32 %v1091, %v1560
        %v1689 = vadd.f32 %v1094, %v1561
        %v1690 = vadd.f32 %v1096, %v1562
        %v1691 = vadd.f32 %v1099, %v1563
        %v1692 = vadd.f32 %v1101, %v1564
        %v1693 = vadd.f32 %v1104, %v1565
        %v1694 = vadd.f32 %v1106, %v1566
        %v1695 = vadd.f32 %v1109, %v1567
        %v1696 = vadd.f32 %v1111, %v1568
        %v1697 = vadd.f32 %v1114, %v1569
        %v1698 = vadd.f32 %v1116, %v1570
        %v1699 = vadd.f32 %v1119, %v1571
        %v1700 = vadd.f32 %v1121, %v1572
        %v1701 = vadd.f32 %v1124, %v1573
        %v1702 = vadd.f32 %v1126, %v1574
        %v1703 = vadd.f32 %v1129, %v1575
        %v1704 = vadd.f32 %v1131, %v1576
        %v1705 = vadd.f32 %v1134, %v1577
        %v1706 = vadd.f32 %v1136, %v1578
        %v1707 = vadd.f32 %v1139, %v1579
        %v1708 = vadd.f32 %v1141, %v1580
        %v1709 = vadd.f32 %v1144, %v1581
        %v1710 = vadd.f32 %v1146, %v1582
        %v1711 = vadd.f32 %v1149, %v1583
        %v1712 = vadd.f32 %v1151, %v1584
        %v1713 = vadd.f32 %v1154, %v1585
        %v1714 = vadd.f32 %v1156, %v1586
        %v1715 = vadd.f32 %v1159, %v1587
        %v1716 = vadd.f32 %v1161, %v1588
        %v1717 = vadd.f32 %v1164, %v1589
        %v1718 = vadd.f32 %v1166, %v1590
        %v1719 = vadd.f32 %v1169, %v1591
        %v1720 = vadd.f32 %v1171, %v1592
        %v1721 = vadd.f32 %v1174, %v1593
        %v1722 = vadd.f32 %v1176, %v1594
        %v1723 = vadd.f32 %v1179, %v1595
        %v1724 = vadd.f32 %v1181, %v1596
        %v1725 = vadd.f32 %v1184, %v1597
        %v1726 = vadd.f32 %v1186, %v1598
        %v1727 = vadd.f32 %v1189, %v1599
        %v1728 = vadd.f32 %v1191, %v1600
        %v1729 = vadd.f32 %v1194, %v1601
        %v1730 = vadd.f32 %v1196, %v1602
        %v1731 = vadd.f32 %v1199, %v1603
        %v1732 = vadd.f32 %v1201, %v1604
        %v1733 = vadd.f32 %v1204, %v1605
        %v1734 = vadd.f32 %v1206, %v1606
        %v1735 = vadd.f32 %v1209, %v1607
        %v1736 = vadd.f32 %v1211, %v1608
        %v1737 = vadd.f32 %v1214, %v1609
        %v1738 = vadd.f32 %v1216, %v1610
        %v1739 = vadd.f32 %v1219, %v1611
        %v1740 = vadd.f32 %v1221, %v1612
        %v1741 = vadd.f32 %v1224, %v1613
        %v1742 = vadd.f32 %v1226, %v1614
        %v1743 = vadd.f32 %v1229, %v1615
        %v1744 = vadd.f32 %v1231, %v1616
        %v1745 = vmul.f32 %v1617, 0.7978846
        %v1746 = vmul.f32 %v1618, 0.7978846
        %v1747 = vmul.f32 %v1619, 0.7978846
        %v1748 = vmul.f32 %v1620, 0.7978846
        %v1749 = vmul.f32 %v1621, 0.7978846
        %v1750 = vmul.f32 %v1622, 0.7978846
        %v1751 = vmul.f32 %v1623, 0.7978846
        %v1752 = vmul.f32 %v1624, 0.7978846
        %v1753 = vmul.f32 %v1625, 0.7978846
        %v1754 = vmul.f32 %v1626, 0.7978846
        %v1755 = vmul.f32 %v1627, 0.7978846
        %v1756 = vmul.f32 %v1628, 0.7978846
        %v1757 = vmul.f32 %v1629, 0.7978846
        %v1758 = vmul.f32 %v1630, 0.7978846
        %v1759 = vmul.f32 %v1631, 0.7978846
        %v1760 = vmul.f32 %v1632, 0.7978846
        %v1761 = vmul.f32 %v1633, 0.7978846
        %v1762 = vmul.f32 %v1634, 0.7978846
        %v1763 = vmul.f32 %v1635, 0.7978846
        %v1764 = vmul.f32 %v1636, 0.7978846
        %v1765 = vmul.f32 %v1637, 0.7978846
        %v1766 = vmul.f32 %v1638, 0.7978846
        %v1767 = vmul.f32 %v1639, 0.7978846
        %v1768 = vmul.f32 %v1640, 0.7978846
        %v1769 = vmul.f32 %v1641, 0.7978846
        %v1770 = vmul.f32 %v1642, 0.7978846
        %v1771 = vmul.f32 %v1643, 0.7978846
        %v1772 = vmul.f32 %v1644, 0.7978846
        %v1773 = vmul.f32 %v1645, 0.7978846
        %v1774 = vmul.f32 %v1646, 0.7978846
        %v1775 = vmul.f32 %v1647, 0.7978846
        %v1776 = vmul.f32 %v1648, 0.7978846
        %v1777 = vmul.f32 %v1649, 0.7978846
        %v1778 = vmul.f32 %v1650, 0.7978846
        %v1779 = vmul.f32 %v1651, 0.7978846
        %v1780 = vmul.f32 %v1652, 0.7978846
        %v1781 = vmul.f32 %v1653, 0.7978846
        %v1782 = vmul.f32 %v1654, 0.7978846
        %v1783 = vmul.f32 %v1655, 0.7978846
        %v1784 = vmul.f32 %v1656, 0.7978846
        %v1785 = vmul.f32 %v1657, 0.7978846
        %v1786 = vmul.f32 %v1658, 0.7978846
        %v1787 = vmul.f32 %v1659, 0.7978846
        %v1788 = vmul.f32 %v1660, 0.7978846
        %v1789 = vmul.f32 %v1661, 0.7978846
        %v1790 = vmul.f32 %v1662, 0.7978846
        %v1791 = vmul.f32 %v1663, 0.7978846
        %v1792 = vmul.f32 %v1664, 0.7978846
        %v1793 = vmul.f32 %v1665, 0.7978846
        %v1794 = vmul.f32 %v1666, 0.7978846
        %v1795 = vmul.f32 %v1667, 0.7978846
        %v1796 = vmul.f32 %v1668, 0.7978846
        %v1797 = vmul.f32 %v1669, 0.7978846
        %v1798 = vmul.f32 %v1670, 0.7978846
        %v1799 = vmul.f32 %v1671, 0.7978846
        %v1800 = vmul.f32 %v1672, 0.7978846
        %v1801 = vmul.f32 %v1673, 0.7978846
        %v1802 = vmul.f32 %v1674, 0.7978846
        %v1803 = vmul.f32 %v1675, 0.7978846
        %v1804 = vmul.f32 %v1676, 0.7978846
        %v1805 = vmul.f32 %v1677, 0.7978846
        %v1806 = vmul.f32 %v1678, 0.7978846
        %v1807 = vmul.f32 %v1679, 0.7978846
        %v1808 = vmul.f32 %v1680, 0.7978846
        %v1809 = vmul.f32 %v1681, 0.7978846
        %v1810 = vmul.f32 %v1682, 0.7978846
        %v1811 = vmul.f32 %v1683, 0.7978846
        %v1812 = vmul.f32 %v1684, 0.7978846
        %v1813 = vmul.f32 %v1685, 0.7978846
        %v1814 = vmul.f32 %v1686, 0.7978846
        %v1815 = vmul.f32 %v1687, 0.7978846
        %v1816 = vmul.f32 %v1688, 0.7978846
        %v1817 = vmul.f32 %v1689, 0.7978846
        %v1818 = vmul.f32 %v1690, 0.7978846
        %v1819 = vmul.f32 %v1691, 0.7978846
        %v1820 = vmul.f32 %v1692, 0.7978846
        %v1821 = vmul.f32 %v1693, 0.7978846
        %v1822 = vmul.f32 %v1694, 0.7978846
        %v1823 = vmul.f32 %v1695, 0.7978846
        %v1824 = vmul.f32 %v1696, 0.7978846
        %v1825 = vmul.f32 %v1697, 0.7978846
        %v1826 = vmul.f32 %v1698, 0.7978846
        %v1827 = vmul.f32 %v1699, 0.7978846
        %v1828 = vmul.f32 %v1700, 0.7978846
        %v1829 = vmul.f32 %v1701, 0.7978846
        %v1830 = vmul.f32 %v1702, 0.7978846
        %v1831 = vmul.f32 %v1703, 0.7978846
        %v1832 = vmul.f32 %v1704, 0.7978846
        %v1833 = vmul.f32 %v1705, 0.7978846
        %v1834 = vmul.f32 %v1706, 0.7978846
        %v1835 = vmul.f32 %v1707, 0.7978846
        %v1836 = vmul.f32 %v1708, 0.7978846
        %v1837 = vmul.f32 %v1709, 0.7978846
        %v1838 = vmul.f32 %v1710, 0.7978846
        %v1839 = vmul.f32 %v1711, 0.7978846
        %v1840 = vmul.f32 %v1712, 0.7978846
        %v1841 = vmul.f32 %v1713, 0.7978846
        %v1842 = vmul.f32 %v1714, 0.7978846
        %v1843 = vmul.f32 %v1715, 0.7978846
        %v1844 = vmul.f32 %v1716, 0.7978846
        %v1845 = vmul.f32 %v1717, 0.7978846
        %v1846 = vmul.f32 %v1718, 0.7978846
        %v1847 = vmul.f32 %v1719, 0.7978846
        %v1848 = vmul.f32 %v1720, 0.7978846
        %v1849 = vmul.f32 %v1721, 0.7978846
        %v1850 = vmul.f32 %v1722, 0.7978846
        %v1851 = vmul.f32 %v1723, 0.7978846
        %v1852 = vmul.f32 %v1724, 0.7978846
        %v1853 = vmul.f32 %v1725, 0.7978846
        %v1854 = vmul.f32 %v1726, 0.7978846
        %v1855 = vmul.f32 %v1727, 0.7978846
        %v1856 = vmul.f32 %v1728, 0.7978846
        %v1857 = vmul.f32 %v1729, 0.7978846
        %v1858 = vmul.f32 %v1730, 0.7978846
        %v1859 = vmul.f32 %v1731, 0.7978846
        %v1860 = vmul.f32 %v1732, 0.7978846
        %v1861 = vmul.f32 %v1733, 0.7978846
        %v1862 = vmul.f32 %v1734, 0.7978846
        %v1863 = vmul.f32 %v1735, 0.7978846
        %v1864 = vmul.f32 %v1736, 0.7978846
        %v1865 = vmul.f32 %v1737, 0.7978846
        %v1866 = vmul.f32 %v1738, 0.7978846
        %v1867 = vmul.f32 %v1739, 0.7978846
        %v1868 = vmul.f32 %v1740, 0.7978846
        %v1869 = vmul.f32 %v1741, 0.7978846
        %v1870 = vmul.f32 %v1742, 0.7978846
        %v1871 = vmul.f32 %v1743, 0.7978846
        %v1872 = vmul.f32 %v1744, 0.7978846
        %v1873 = vtanh.pop %v1745
        %v1874 = vtanh.pop %v1746
        %v1875 = vtanh.pop %v1747
        %v1876 = vtanh.pop %v1748
        %v1877 = vtanh.pop %v1749
        %v1878 = vtanh.pop %v1750
        %v1879 = vtanh.pop %v1751
        %v1880 = vtanh.pop %v1752
        %v1881 = vtanh.pop %v1753
        %v1882 = vtanh.pop %v1754
        %v1883 = vtanh.pop %v1755
        %v1884 = vtanh.pop %v1756
        %v1885 = vtanh.pop %v1757
        %v1886 = vtanh.pop %v1758
        %v1887 = vtanh.pop %v1759
        %v1888 = vtanh.pop %v1760
        %v1889 = vtanh.pop %v1761
        %v1890 = vtanh.pop %v1762
        %v1891 = vtanh.pop %v1763
        %v1892 = vtanh.pop %v1764
        %v1893 = vtanh.pop %v1765
        %v1894 = vtanh.pop %v1766
        %v1895 = vtanh.pop %v1767
        %v1896 = vtanh.pop %v1768
        %v1897 = vtanh.pop %v1769
        %v1898 = vtanh.pop %v1770
        %v1899 = vtanh.pop %v1771
        %v1900 = vtanh.pop %v1772
        %v1901 = vtanh.pop %v1773
        %v1902 = vtanh.pop %v1774
        %v1903 = vtanh.pop %v1775
        %v1904 = vtanh.pop %v1776
        %v1905 = vtanh.pop %v1777
        %v1906 = vtanh.pop %v1778
        %v1907 = vtanh.pop %v1779
        %v1908 = vtanh.pop %v1780
        %v1909 = vtanh.pop %v1781
        %v1910 = vtanh.pop %v1782
        %v1911 = vtanh.pop %v1783
        %v1912 = vtanh.pop %v1784
        %v1913 = vtanh.pop %v1785
        %v1914 = vtanh.pop %v1786
        %v1915 = vtanh.pop %v1787
        %v1916 = vtanh.pop %v1788
        %v1917 = vtanh.pop %v1789
        %v1918 = vtanh.pop %v1790
        %v1919 = vtanh.pop %v1791
        %v1920 = vtanh.pop %v1792
        %v1921 = vtanh.pop %v1793
        %v1922 = vtanh.pop %v1794
        %v1923 = vtanh.pop %v1795
        %v1924 = vtanh.pop %v1796
        %v1925 = vtanh.pop %v1797
        %v1926 = vtanh.pop %v1798
        %v1927 = vtanh.pop %v1799
        %v1928 = vtanh.pop %v1800
        %v1929 = vtanh.pop %v1801
        %v1930 = vtanh.pop %v1802
        %v1931 = vtanh.pop %v1803
        %v1932 = vtanh.pop %v1804
        %v1933 = vtanh.pop %v1805
        %v1934 = vtanh.pop %v1806
        %v1935 = vtanh.pop %v1807
        %v1936 = vtanh.pop %v1808
        %v1937 = vtanh.pop %v1809
        %v1938 = vtanh.pop %v1810
        %v1939 = vtanh.pop %v1811
        %v1940 = vtanh.pop %v1812
        %v1941 = vtanh.pop %v1813
        %v1942 = vtanh.pop %v1814
        %v1943 = vtanh.pop %v1815
        %v1944 = vtanh.pop %v1816
        %v1945 = vtanh.pop %v1817
        %v1946 = vtanh.pop %v1818
        %v1947 = vtanh.pop %v1819
        %v1948 = vtanh.pop %v1820
        %v1949 = vtanh.pop %v1821
        %v1950 = vtanh.pop %v1822
        %v1951 = vtanh.pop %v1823
        %v1952 = vtanh.pop %v1824
        %v1953 = vtanh.pop %v1825
        %v1954 = vtanh.pop %v1826
        %v1955 = vtanh.pop %v1827
        %v1956 = vtanh.pop %v1828
        %v1957 = vtanh.pop %v1829
        %v1958 = vtanh.pop %v1830
        %v1959 = vtanh.pop %v1831
        %v1960 = vtanh.pop %v1832
        %v1961 = vtanh.pop %v1833
        %v1962 = vtanh.pop %v1834
        %v1963 = vtanh.pop %v1835
        %v1964 = vtanh.pop %v1836
        %v1965 = vtanh.pop %v1837
        %v1966 = vtanh.pop %v1838
        %v1967 = vtanh.pop %v1839
        %v1968 = vtanh.pop %v1840
        %v1969 = vtanh.pop %v1841
        %v1970 = vtanh.pop %v1842
        %v1971 = vtanh.pop %v1843
        %v1972 = vtanh.pop %v1844
        %v1973 = vtanh.pop %v1845
        %v1974 = vtanh.pop %v1846
        %v1975 = vtanh.pop %v1847
        %v1976 = vtanh.pop %v1848
        %v1977 = vtanh.pop %v1849
        %v1978 = vtanh.pop %v1850
        %v1979 = vtanh.pop %v1851
        %v1980 = vtanh.pop %v1852
        %v1981 = vtanh.pop %v1853
        %v1982 = vtanh.pop %v1854
        %v1983 = vtanh.pop %v1855
        %v1984 = vtanh.pop %v1856
        %v1985 = vtanh.pop %v1857
        %v1986 = vtanh.pop %v1858
        %v1987 = vtanh.pop %v1859
        %v1988 = vtanh.pop %v1860
        %v1989 = vtanh.pop %v1861
        %v1990 = vtanh.pop %v1862
        %v1991 = vtanh.pop %v1863
        %v1992 = vtanh.pop %v1864
        %v1993 = vtanh.pop %v1865
        %v1994 = vtanh.pop %v1866
        %v1995 = vtanh.pop %v1867
        %v1996 = vtanh.pop %v1868
        %v1997 = vtanh.pop %v1869
        %v1998 = vtanh.pop %v1870
        %v1999 = vtanh.pop %v1871
        %v2000 = vtanh.pop %v1872
        %v2001 = vadd.f32 %v1873, 1.0
        %v2002 = vadd.f32 %v1874, 1.0
        %v2003 = vadd.f32 %v1875, 1.0
        %v2004 = vadd.f32 %v1876, 1.0
        %v2005 = vadd.f32 %v1877, 1.0
        %v2006 = vadd.f32 %v1878, 1.0
        %v2007 = vadd.f32 %v1879, 1.0
        %v2008 = vadd.f32 %v1880, 1.0
        %v2009 = vadd.f32 %v1881, 1.0
        %v2010 = vadd.f32 %v1882, 1.0
        %v2011 = vadd.f32 %v1883, 1.0
        %v2012 = vadd.f32 %v1884, 1.0
        %v2013 = vadd.f32 %v1885, 1.0
        %v2014 = vadd.f32 %v1886, 1.0
        %v2015 = vadd.f32 %v1887, 1.0
        %v2016 = vadd.f32 %v1888, 1.0
        %v2017 = vadd.f32 %v1889, 1.0
        %v2018 = vadd.f32 %v1890, 1.0
        %v2019 = vadd.f32 %v1891, 1.0
        %v2020 = vadd.f32 %v1892, 1.0
        %v2021 = vadd.f32 %v1893, 1.0
        %v2022 = vadd.f32 %v1894, 1.0
        %v2023 = vadd.f32 %v1895, 1.0
        %v2024 = vadd.f32 %v1896, 1.0
        %v2025 = vadd.f32 %v1897, 1.0
        %v2026 = vadd.f32 %v1898, 1.0
        %v2027 = vadd.f32 %v1899, 1.0
        %v2028 = vadd.f32 %v1900, 1.0
        %v2029 = vadd.f32 %v1901, 1.0
        %v2030 = vadd.f32 %v1902, 1.0
        %v2031 = vadd.f32 %v1903, 1.0
        %v2032 = vadd.f32 %v1904, 1.0
        %v2033 = vadd.f32 %v1905, 1.0
        %v2034 = vadd.f32 %v1906, 1.0
        %v2035 = vadd.f32 %v1907, 1.0
        %v2036 = vadd.f32 %v1908, 1.0
        %v2037 = vadd.f32 %v1909, 1.0
        %v2038 = vadd.f32 %v1910, 1.0
        %v2039 = vadd.f32 %v1911, 1.0
        %v2040 = vadd.f32 %v1912, 1.0
        %v2041 = vadd.f32 %v1913, 1.0
        %v2042 = vadd.f32 %v1914, 1.0
        %v2043 = vadd.f32 %v1915, 1.0
        %v2044 = vadd.f32 %v1916, 1.0
        %v2045 = vadd.f32 %v1917, 1.0
        %v2046 = vadd.f32 %v1918, 1.0
        %v2047 = vadd.f32 %v1919, 1.0
        %v2048 = vadd.f32 %v1920, 1.0
        %v2049 = vadd.f32 %v1921, 1.0
        %v2050 = vadd.f32 %v1922, 1.0
        %v2051 = vadd.f32 %v1923, 1.0
        %v2052 = vadd.f32 %v1924, 1.0
        %v2053 = vadd.f32 %v1925, 1.0
        %v2054 = vadd.f32 %v1926, 1.0
        %v2055 = vadd.f32 %v1927, 1.0
        %v2056 = vadd.f32 %v1928, 1.0
        %v2057 = vadd.f32 %v1929, 1.0
        %v2058 = vadd.f32 %v1930, 1.0
        %v2059 = vadd.f32 %v1931, 1.0
        %v2060 = vadd.f32 %v1932, 1.0
        %v2061 = vadd.f32 %v1933, 1.0
        %v2062 = vadd.f32 %v1934, 1.0
        %v2063 = vadd.f32 %v1935, 1.0
        %v2064 = vadd.f32 %v1936, 1.0
        %v2065 = vadd.f32 %v1937, 1.0
        %v2066 = vadd.f32 %v1938, 1.0
        %v2067 = vadd.f32 %v1939, 1.0
        %v2068 = vadd.f32 %v1940, 1.0
        %v2069 = vadd.f32 %v1941, 1.0
        %v2070 = vadd.f32 %v1942, 1.0
        %v2071 = vadd.f32 %v1943, 1.0
        %v2072 = vadd.f32 %v1944, 1.0
        %v2073 = vadd.f32 %v1945, 1.0
        %v2074 = vadd.f32 %v1946, 1.0
        %v2075 = vadd.f32 %v1947, 1.0
        %v2076 = vadd.f32 %v1948, 1.0
        %v2077 = vadd.f32 %v1949, 1.0
        %v2078 = vadd.f32 %v1950, 1.0
        %v2079 = vadd.f32 %v1951, 1.0
        %v2080 = vadd.f32 %v1952, 1.0
        %v2081 = vadd.f32 %v1953, 1.0
        %v2082 = vadd.f32 %v1954, 1.0
        %v2083 = vadd.f32 %v1955, 1.0
        %v2084 = vadd.f32 %v1956, 1.0
        %v2085 = vadd.f32 %v1957, 1.0
        %v2086 = vadd.f32 %v1958, 1.0
        %v2087 = vadd.f32 %v1959, 1.0
        %v2088 = vadd.f32 %v1960, 1.0
        %v2089 = vadd.f32 %v1961, 1.0
        %v2090 = vadd.f32 %v1962, 1.0
        %v2091 = vadd.f32 %v1963, 1.0
        %v2092 = vadd.f32 %v1964, 1.0
        %v2093 = vadd.f32 %v1965, 1.0
        %v2094 = vadd.f32 %v1966, 1.0
        %v2095 = vadd.f32 %v1967, 1.0
        %v2096 = vadd.f32 %v1968, 1.0
        %v2097 = vadd.f32 %v1969, 1.0
        %v2098 = vadd.f32 %v1970, 1.0
        %v2099 = vadd.f32 %v1971, 1.0
        %v2100 = vadd.f32 %v1972, 1.0
        %v2101 = vadd.f32 %v1973, 1.0
        %v2102 = vadd.f32 %v1974, 1.0
        %v2103 = vadd.f32 %v1975, 1.0
        %v2104 = vadd.f32 %v1976, 1.0
        %v2105 = vadd.f32 %v1977, 1.0
        %v2106 = vadd.f32 %v1978, 1.0
        %v2107 = vadd.f32 %v1979, 1.0
        %v2108 = vadd.f32 %v1980, 1.0
        %v2109 = vadd.f32 %v1981, 1.0
        %v2110 = vadd.f32 %v1982, 1.0
        %v2111 = vadd.f32 %v1983, 1.0
        %v2112 = vadd.f32 %v1984, 1.0
        %v2113 = vadd.f32 %v1985, 1.0
        %v2114 = vadd.f32 %v1986, 1.0
        %v2115 = vadd.f32 %v1987, 1.0
        %v2116 = vadd.f32 %v1988, 1.0
        %v2117 = vadd.f32 %v1989, 1.0
        %v2118 = vadd.f32 %v1990, 1.0
        %v2119 = vadd.f32 %v1991, 1.0
        %v2120 = vadd.f32 %v1992, 1.0
        %v2121 = vadd.f32 %v1993, 1.0
        %v2122 = vadd.f32 %v1994, 1.0
        %v2123 = vadd.f32 %v1995, 1.0
        %v2124 = vadd.f32 %v1996, 1.0
        %v2125 = vadd.f32 %v1997, 1.0
        %v2126 = vadd.f32 %v1998, 1.0
        %v2127 = vadd.f32 %v1999, 1.0
        %v2128 = vadd.f32 %v2000, 1.0
        %v2129 = vmul.f32 %v2001, 0.5
        %v2130 = vmul.f32 %v2002, 0.5
        %v2131 = vmul.f32 %v2003, 0.5
        %v2132 = vmul.f32 %v2004, 0.5
        %v2133 = vmul.f32 %v2005, 0.5
        %v2134 = vmul.f32 %v2006, 0.5
        %v2135 = vmul.f32 %v2007, 0.5
        %v2136 = vmul.f32 %v2008, 0.5
        %v2137 = vmul.f32 %v2009, 0.5
        %v2138 = vmul.f32 %v2010, 0.5
        %v2139 = vmul.f32 %v2011, 0.5
        %v2140 = vmul.f32 %v2012, 0.5
        %v2141 = vmul.f32 %v2013, 0.5
        %v2142 = vmul.f32 %v2014, 0.5
        %v2143 = vmul.f32 %v2015, 0.5
        %v2144 = vmul.f32 %v2016, 0.5
        %v2145 = vmul.f32 %v2017, 0.5
        %v2146 = vmul.f32 %v2018, 0.5
        %v2147 = vmul.f32 %v2019, 0.5
        %v2148 = vmul.f32 %v2020, 0.5
        %v2149 = vmul.f32 %v2021, 0.5
        %v2150 = vmul.f32 %v2022, 0.5
        %v2151 = vmul.f32 %v2023, 0.5
        %v2152 = vmul.f32 %v2024, 0.5
        %v2153 = vmul.f32 %v2025, 0.5
        %v2154 = vmul.f32 %v2026, 0.5
        %v2155 = vmul.f32 %v2027, 0.5
        %v2156 = vmul.f32 %v2028, 0.5
        %v2157 = vmul.f32 %v2029, 0.5
        %v2158 = vmul.f32 %v2030, 0.5
        %v2159 = vmul.f32 %v2031, 0.5
        %v2160 = vmul.f32 %v2032, 0.5
        %v2161 = vmul.f32 %v2033, 0.5
        %v2162 = vmul.f32 %v2034, 0.5
        %v2163 = vmul.f32 %v2035, 0.5
        %v2164 = vmul.f32 %v2036, 0.5
        %v2165 = vmul.f32 %v2037, 0.5
        %v2166 = vmul.f32 %v2038, 0.5
        %v2167 = vmul.f32 %v2039, 0.5
        %v2168 = vmul.f32 %v2040, 0.5
        %v2169 = vmul.f32 %v2041, 0.5
        %v2170 = vmul.f32 %v2042, 0.5
        %v2171 = vmul.f32 %v2043, 0.5
        %v2172 = vmul.f32 %v2044, 0.5
        %v2173 = vmul.f32 %v2045, 0.5
        %v2174 = vmul.f32 %v2046, 0.5
        %v2175 = vmul.f32 %v2047, 0.5
        %v2176 = vmul.f32 %v2048, 0.5
        %v2177 = vmul.f32 %v2049, 0.5
        %v2178 = vmul.f32 %v2050, 0.5
        %v2179 = vmul.f32 %v2051, 0.5
        %v2180 = vmul.f32 %v2052, 0.5
        %v2181 = vmul.f32 %v2053, 0.5
        %v2182 = vmul.f32 %v2054, 0.5
        %v2183 = vmul.f32 %v2055, 0.5
        %v2184 = vmul.f32 %v2056, 0.5
        %v2185 = vmul.f32 %v2057, 0.5
        %v2186 = vmul.f32 %v2058, 0.5
        %v2187 = vmul.f32 %v2059, 0.5
        %v2188 = vmul.f32 %v2060, 0.5
        %v2189 = vmul.f32 %v2061, 0.5
        %v2190 = vmul.f32 %v2062, 0.5
        %v2191 = vmul.f32 %v2063, 0.5
        %v2192 = vmul.f32 %v2064, 0.5
        %v2193 = vmul.f32 %v2065, 0.5
        %v2194 = vmul.f32 %v2066, 0.5
        %v2195 = vmul.f32 %v2067, 0.5
        %v2196 = vmul.f32 %v2068, 0.5
        %v2197 = vmul.f32 %v2069, 0.5
        %v2198 = vmul.f32 %v2070, 0.5
        %v2199 = vmul.f32 %v2071, 0.5
        %v2200 = vmul.f32 %v2072, 0.5
        %v2201 = vmul.f32 %v2073, 0.5
        %v2202 = vmul.f32 %v2074, 0.5
        %v2203 = vmul.f32 %v2075, 0.5
        %v2204 = vmul.f32 %v2076, 0.5
        %v2205 = vmul.f32 %v2077, 0.5
        %v2206 = vmul.f32 %v2078, 0.5
        %v2207 = vmul.f32 %v2079, 0.5
        %v2208 = vmul.f32 %v2080, 0.5
        %v2209 = vmul.f32 %v2081, 0.5
        %v2210 = vmul.f32 %v2082, 0.5
        %v2211 = vmul.f32 %v2083, 0.5
        %v2212 = vmul.f32 %v2084, 0.5
        %v2213 = vmul.f32 %v2085, 0.5
        %v2214 = vmul.f32 %v2086, 0.5
        %v2215 = vmul.f32 %v2087, 0.5
        %v2216 = vmul.f32 %v2088, 0.5
        %v2217 = vmul.f32 %v2089, 0.5
        %v2218 = vmul.f32 %v2090, 0.5
        %v2219 = vmul.f32 %v2091, 0.5
        %v2220 = vmul.f32 %v2092, 0.5
        %v2221 = vmul.f32 %v2093, 0.5
        %v2222 = vmul.f32 %v2094, 0.5
        %v2223 = vmul.f32 %v2095, 0.5
        %v2224 = vmul.f32 %v2096, 0.5
        %v2225 = vmul.f32 %v2097, 0.5
        %v2226 = vmul.f32 %v2098, 0.5
        %v2227 = vmul.f32 %v2099, 0.5
        %v2228 = vmul.f32 %v2100, 0.5
        %v2229 = vmul.f32 %v2101, 0.5
        %v2230 = vmul.f32 %v2102, 0.5
        %v2231 = vmul.f32 %v2103, 0.5
        %v2232 = vmul.f32 %v2104, 0.5
        %v2233 = vmul.f32 %v2105, 0.5
        %v2234 = vmul.f32 %v2106, 0.5
        %v2235 = vmul.f32 %v2107, 0.5
        %v2236 = vmul.f32 %v2108, 0.5
        %v2237 = vmul.f32 %v2109, 0.5
        %v2238 = vmul.f32 %v2110, 0.5
        %v2239 = vmul.f32 %v2111, 0.5
        %v2240 = vmul.f32 %v2112, 0.5
        %v2241 = vmul.f32 %v2113, 0.5
        %v2242 = vmul.f32 %v2114, 0.5
        %v2243 = vmul.f32 %v2115, 0.5
        %v2244 = vmul.f32 %v2116, 0.5
        %v2245 = vmul.f32 %v2117, 0.5
        %v2246 = vmul.f32 %v2118, 0.5
        %v2247 = vmul.f32 %v2119, 0.5
        %v2248 = vmul.f32 %v2120, 0.5
        %v2249 = vmul.f32 %v2121, 0.5
        %v2250 = vmul.f32 %v2122, 0.5
        %v2251 = vmul.f32 %v2123, 0.5
        %v2252 = vmul.f32 %v2124, 0.5
        %v2253 = vmul.f32 %v2125, 0.5
        %v2254 = vmul.f32 %v2126, 0.5
        %v2255 = vmul.f32 %v2127, 0.5
        %v2256 = vmul.f32 %v2128, 0.5
        %v2257 = vmul.f32 %v914, %v2129
        %v2258 = vmul.f32 %v916, %v2130
        %v2259 = vmul.f32 %v919, %v2131
        %v2260 = vmul.f32 %v921, %v2132
        %v2261 = vmul.f32 %v924, %v2133
        %v2262 = vmul.f32 %v926, %v2134
        %v2263 = vmul.f32 %v929, %v2135
        %v2264 = vmul.f32 %v931, %v2136
        %v2265 = vmul.f32 %v934, %v2137
        %v2266 = vmul.f32 %v936, %v2138
        %v2267 = vmul.f32 %v939, %v2139
        %v2268 = vmul.f32 %v941, %v2140
        %v2269 = vmul.f32 %v944, %v2141
        %v2270 = vmul.f32 %v946, %v2142
        %v2271 = vmul.f32 %v949, %v2143
        %v2272 = vmul.f32 %v951, %v2144
        %v2273 = vmul.f32 %v954, %v2145
        %v2274 = vmul.f32 %v956, %v2146
        %v2275 = vmul.f32 %v959, %v2147
        %v2276 = vmul.f32 %v961, %v2148
        %v2277 = vmul.f32 %v964, %v2149
        %v2278 = vmul.f32 %v966, %v2150
        %v2279 = vmul.f32 %v969, %v2151
        %v2280 = vmul.f32 %v971, %v2152
        %v2281 = vmul.f32 %v974, %v2153
        %v2282 = vmul.f32 %v976, %v2154
        %v2283 = vmul.f32 %v979, %v2155
        %v2284 = vmul.f32 %v981, %v2156
        %v2285 = vmul.f32 %v984, %v2157
        %v2286 = vmul.f32 %v986, %v2158
        %v2287 = vmul.f32 %v989, %v2159
        %v2288 = vmul.f32 %v991, %v2160
        %v2289 = vmul.f32 %v994, %v2161
        %v2290 = vmul.f32 %v996, %v2162
        %v2291 = vmul.f32 %v999, %v2163
        %v2292 = vmul.f32 %v1001, %v2164
        %v2293 = vmul.f32 %v1004, %v2165
        %v2294 = vmul.f32 %v1006, %v2166
        %v2295 = vmul.f32 %v1009, %v2167
        %v2296 = vmul.f32 %v1011, %v2168
        %v2297 = vmul.f32 %v1014, %v2169
        %v2298 = vmul.f32 %v1016, %v2170
        %v2299 = vmul.f32 %v1019, %v2171
        %v2300 = vmul.f32 %v1021, %v2172
        %v2301 = vmul.f32 %v1024, %v2173
        %v2302 = vmul.f32 %v1026, %v2174
        %v2303 = vmul.f32 %v1029, %v2175
        %v2304 = vmul.f32 %v1031, %v2176
        %v2305 = vmul.f32 %v1034, %v2177
        %v2306 = vmul.f32 %v1036, %v2178
        %v2307 = vmul.f32 %v1039, %v2179
        %v2308 = vmul.f32 %v1041, %v2180
        %v2309 = vmul.f32 %v1044, %v2181
        %v2310 = vmul.f32 %v1046, %v2182
        %v2311 = vmul.f32 %v1049, %v2183
        %v2312 = vmul.f32 %v1051, %v2184
        %v2313 = vmul.f32 %v1054, %v2185
        %v2314 = vmul.f32 %v1056, %v2186
        %v2315 = vmul.f32 %v1059, %v2187
        %v2316 = vmul.f32 %v1061, %v2188
        %v2317 = vmul.f32 %v1064, %v2189
        %v2318 = vmul.f32 %v1066, %v2190
        %v2319 = vmul.f32 %v1069, %v2191
        %v2320 = vmul.f32 %v1071, %v2192
        %v2321 = vmul.f32 %v1074, %v2193
        %v2322 = vmul.f32 %v1076, %v2194
        %v2323 = vmul.f32 %v1079, %v2195
        %v2324 = vmul.f32 %v1081, %v2196
        %v2325 = vmul.f32 %v1084, %v2197
        %v2326 = vmul.f32 %v1086, %v2198
        %v2327 = vmul.f32 %v1089, %v2199
        %v2328 = vmul.f32 %v1091, %v2200
        %v2329 = vmul.f32 %v1094, %v2201
        %v2330 = vmul.f32 %v1096, %v2202
        %v2331 = vmul.f32 %v1099, %v2203
        %v2332 = vmul.f32 %v1101, %v2204
        %v2333 = vmul.f32 %v1104, %v2205
        %v2334 = vmul.f32 %v1106, %v2206
        %v2335 = vmul.f32 %v1109, %v2207
        %v2336 = vmul.f32 %v1111, %v2208
        %v2337 = vmul.f32 %v1114, %v2209
        %v2338 = vmul.f32 %v1116, %v2210
        %v2339 = vmul.f32 %v1119, %v2211
        %v2340 = vmul.f32 %v1121, %v2212
        %v2341 = vmul.f32 %v1124, %v2213
        %v2342 = vmul.f32 %v1126, %v2214
        %v2343 = vmul.f32 %v1129, %v2215
        %v2344 = vmul.f32 %v1131, %v2216
        %v2345 = vmul.f32 %v1134, %v2217
        %v2346 = vmul.f32 %v1136, %v2218
        %v2347 = vmul.f32 %v1139, %v2219
        %v2348 = vmul.f32 %v1141, %v2220
        %v2349 = vmul.f32 %v1144, %v2221
        %v2350 = vmul.f32 %v1146, %v2222
        %v2351 = vmul.f32 %v1149, %v2223
        %v2352 = vmul.f32 %v1151, %v2224
        %v2353 = vmul.f32 %v1154, %v2225
        %v2354 = vmul.f32 %v1156, %v2226
        %v2355 = vmul.f32 %v1159, %v2227
        %v2356 = vmul.f32 %v1161, %v2228
        %v2357 = vmul.f32 %v1164, %v2229
        %v2358 = vmul.f32 %v1166, %v2230
        %v2359 = vmul.f32 %v1169, %v2231
        %v2360 = vmul.f32 %v1171, %v2232
        %v2361 = vmul.f32 %v1174, %v2233
        %v2362 = vmul.f32 %v1176, %v2234
        %v2363 = vmul.f32 %v1179, %v2235
        %v2364 = vmul.f32 %v1181, %v2236
        %v2365 = vmul.f32 %v1184, %v2237
        %v2366 = vmul.f32 %v1186, %v2238
        %v2367 = vmul.f32 %v1189, %v2239
        %v2368 = vmul.f32 %v1191, %v2240
        %v2369 = vmul.f32 %v1194, %v2241
        %v2370 = vmul.f32 %v1196, %v2242
        %v2371 = vmul.f32 %v1199, %v2243
        %v2372 = vmul.f32 %v1201, %v2244
        %v2373 = vmul.f32 %v1204, %v2245
        %v2374 = vmul.f32 %v1206, %v2246
        %v2375 = vmul.f32 %v1209, %v2247
        %v2376 = vmul.f32 %v1211, %v2248
        %v2377 = vmul.f32 %v1214, %v2249
        %v2378 = vmul.f32 %v1216, %v2250
        %v2379 = vmul.f32 %v1219, %v2251
        %v2380 = vmul.f32 %v1221, %v2252
        %v2381 = vmul.f32 %v1224, %v2253
        %v2382 = vmul.f32 %v1226, %v2254
        %v2383 = vmul.f32 %v1229, %v2255
        %v2384 = vmul.f32 %v1231, %v2256
        %2385 = vadd.xlane.f32.xlu0 %v2257
        %v2386 = vpop.xlane.xlu0 %2385
        %2387 = vadd.xlane.f32.xlu0 %v2258
        %v2388 = vpop.xlane.xlu0 %2387
        %2389 = vadd.xlane.f32.xlu0 %v2259
        %v2390 = vpop.xlane.xlu0 %2389
        %2391 = vadd.xlane.f32.xlu0 %v2260
        %v2392 = vpop.xlane.xlu0 %2391
        %2393 = vadd.xlane.f32.xlu0 %v2261
        %v2394 = vpop.xlane.xlu0 %2393
        %2395 = vadd.xlane.f32.xlu0 %v2262
        %v2396 = vpop.xlane.xlu0 %2395
        %2397 = vadd.xlane.f32.xlu0 %v2263
        %v2398 = vpop.xlane.xlu0 %2397
        %2399 = vadd.xlane.f32.xlu0 %v2264
        %v2400 = vpop.xlane.xlu0 %2399
        %2401 = vadd.xlane.f32.xlu0 %v2265
        %v2402 = vpop.xlane.xlu0 %2401
        %2403 = vadd.xlane.f32.xlu0 %v2266
        %v2404 = vpop.xlane.xlu0 %2403
        %2405 = vadd.xlane.f32.xlu0 %v2267
        %v2406 = vpop.xlane.xlu0 %2405
        %2407 = vadd.xlane.f32.xlu0 %v2268
        %v2408 = vpop.xlane.xlu0 %2407
        %2409 = vadd.xlane.f32.xlu0 %v2269
        %v2410 = vpop.xlane.xlu0 %2409
        %2411 = vadd.xlane.f32.xlu0 %v2270
        %v2412 = vpop.xlane.xlu0 %2411
        %2413 = vadd.xlane.f32.xlu0 %v2271
        %v2414 = vpop.xlane.xlu0 %2413
        %2415 = vadd.xlane.f32.xlu0 %v2272
        %v2416 = vpop.xlane.xlu0 %2415
        %2417 = vadd.xlane.f32.xlu0 %v2273
        %v2418 = vpop.xlane.xlu0 %2417
        %2419 = vadd.xlane.f32.xlu0 %v2274
        %v2420 = vpop.xlane.xlu0 %2419
        %2421 = vadd.xlane.f32.xlu0 %v2275
        %v2422 = vpop.xlane.xlu0 %2421
        %2423 = vadd.xlane.f32.xlu0 %v2276
        %v2424 = vpop.xlane.xlu0 %2423
        %2425 = vadd.xlane.f32.xlu0 %v2277
        %v2426 = vpop.xlane.xlu0 %2425
        %2427 = vadd.xlane.f32.xlu0 %v2278
        %v2428 = vpop.xlane.xlu0 %2427
        %2429 = vadd.xlane.f32.xlu0 %v2279
        %v2430 = vpop.xlane.xlu0 %2429
        %2431 = vadd.xlane.f32.xlu0 %v2280
        %v2432 = vpop.xlane.xlu0 %2431
        %2433 = vadd.xlane.f32.xlu0 %v2281
        %v2434 = vpop.xlane.xlu0 %2433
        %2435 = vadd.xlane.f32.xlu0 %v2282
        %v2436 = vpop.xlane.xlu0 %2435
        %2437 = vadd.xlane.f32.xlu0 %v2283
        %v2438 = vpop.xlane.xlu0 %2437
        %2439 = vadd.xlane.f32.xlu0 %v2284
        %v2440 = vpop.xlane.xlu0 %2439
        %2441 = vadd.xlane.f32.xlu0 %v2285
        %v2442 = vpop.xlane.xlu0 %2441
        %2443 = vadd.xlane.f32.xlu0 %v2286
        %v2444 = vpop.xlane.xlu0 %2443
        %2445 = vadd.xlane.f32.xlu0 %v2287
        %v2446 = vpop.xlane.xlu0 %2445
        %2447 = vadd.xlane.f32.xlu0 %v2288
        %v2448 = vpop.xlane.xlu0 %2447
        %2449 = vadd.xlane.f32.xlu0 %v2289
        %v2450 = vpop.xlane.xlu0 %2449
        %2451 = vadd.xlane.f32.xlu0 %v2290
        %v2452 = vpop.xlane.xlu0 %2451
        %2453 = vadd.xlane.f32.xlu0 %v2291
        %v2454 = vpop.xlane.xlu0 %2453
        %2455 = vadd.xlane.f32.xlu0 %v2292
        %v2456 = vpop.xlane.xlu0 %2455
        %2457 = vadd.xlane.f32.xlu0 %v2293
        %v2458 = vpop.xlane.xlu0 %2457
        %2459 = vadd.xlane.f32.xlu0 %v2294
        %v2460 = vpop.xlane.xlu0 %2459
        %2461 = vadd.xlane.f32.xlu0 %v2295
        %v2462 = vpop.xlane.xlu0 %2461
        %2463 = vadd.xlane.f32.xlu0 %v2296
        %v2464 = vpop.xlane.xlu0 %2463
        %2465 = vadd.xlane.f32.xlu0 %v2297
        %v2466 = vpop.xlane.xlu0 %2465
        %2467 = vadd.xlane.f32.xlu0 %v2298
        %v2468 = vpop.xlane.xlu0 %2467
        %2469 = vadd.xlane.f32.xlu0 %v2299
        %v2470 = vpop.xlane.xlu0 %2469
        %2471 = vadd.xlane.f32.xlu0 %v2300
        %v2472 = vpop.xlane.xlu0 %2471
        %2473 = vadd.xlane.f32.xlu0 %v2301
        %v2474 = vpop.xlane.xlu0 %2473
        %2475 = vadd.xlane.f32.xlu0 %v2302
        %v2476 = vpop.xlane.xlu0 %2475
        %2477 = vadd.xlane.f32.xlu0 %v2303
        %v2478 = vpop.xlane.xlu0 %2477
        %2479 = vadd.xlane.f32.xlu0 %v2304
        %v2480 = vpop.xlane.xlu0 %2479
        %2481 = vadd.xlane.f32.xlu0 %v2305
        %v2482 = vpop.xlane.xlu0 %2481
        %2483 = vadd.xlane.f32.xlu0 %v2306
        %v2484 = vpop.xlane.xlu0 %2483
        %2485 = vadd.xlane.f32.xlu0 %v2307
        %v2486 = vpop.xlane.xlu0 %2485
        %2487 = vadd.xlane.f32.xlu0 %v2308
        %v2488 = vpop.xlane.xlu0 %2487
        %2489 = vadd.xlane.f32.xlu0 %v2309
        %v2490 = vpop.xlane.xlu0 %2489
        %2491 = vadd.xlane.f32.xlu0 %v2310
        %v2492 = vpop.xlane.xlu0 %2491
        %2493 = vadd.xlane.f32.xlu0 %v2311
        %v2494 = vpop.xlane.xlu0 %2493
        %2495 = vadd.xlane.f32.xlu0 %v2312
        %v2496 = vpop.xlane.xlu0 %2495
        %2497 = vadd.xlane.f32.xlu0 %v2313
        %v2498 = vpop.xlane.xlu0 %2497
        %2499 = vadd.xlane.f32.xlu0 %v2314
        %v2500 = vpop.xlane.xlu0 %2499
        %2501 = vadd.xlane.f32.xlu0 %v2315
        %v2502 = vpop.xlane.xlu0 %2501
        %2503 = vadd.xlane.f32.xlu0 %v2316
        %v2504 = vpop.xlane.xlu0 %2503
        %2505 = vadd.xlane.f32.xlu0 %v2317
        %v2506 = vpop.xlane.xlu0 %2505
        %2507 = vadd.xlane.f32.xlu0 %v2318
        %v2508 = vpop.xlane.xlu0 %2507
        %2509 = vadd.xlane.f32.xlu0 %v2319
        %v2510 = vpop.xlane.xlu0 %2509
        %2511 = vadd.xlane.f32.xlu0 %v2320
        %v2512 = vpop.xlane.xlu0 %2511
        %2513 = vadd.xlane.f32.xlu0 %v2321
        %v2514 = vpop.xlane.xlu0 %2513
        %2515 = vadd.xlane.f32.xlu0 %v2322
        %v2516 = vpop.xlane.xlu0 %2515
        %2517 = vadd.xlane.f32.xlu0 %v2323
        %v2518 = vpop.xlane.xlu0 %2517
        %2519 = vadd.xlane.f32.xlu0 %v2324
        %v2520 = vpop.xlane.xlu0 %2519
        %2521 = vadd.xlane.f32.xlu0 %v2325
        %v2522 = vpop.xlane.xlu0 %2521
        %2523 = vadd.xlane.f32.xlu0 %v2326
        %v2524 = vpop.xlane.xlu0 %2523
        %2525 = vadd.xlane.f32.xlu0 %v2327
        %v2526 = vpop.xlane.xlu0 %2525
        %2527 = vadd.xlane.f32.xlu0 %v2328
        %v2528 = vpop.xlane.xlu0 %2527
        %2529 = vadd.xlane.f32.xlu0 %v2329
        %v2530 = vpop.xlane.xlu0 %2529
        %2531 = vadd.xlane.f32.xlu0 %v2330
        %v2532 = vpop.xlane.xlu0 %2531
        %2533 = vadd.xlane.f32.xlu0 %v2331
        %v2534 = vpop.xlane.xlu0 %2533
        %2535 = vadd.xlane.f32.xlu0 %v2332
        %v2536 = vpop.xlane.xlu0 %2535
        %2537 = vadd.xlane.f32.xlu0 %v2333
        %v2538 = vpop.xlane.xlu0 %2537
        %2539 = vadd.xlane.f32.xlu0 %v2334
        %v2540 = vpop.xlane.xlu0 %2539
        %2541 = vadd.xlane.f32.xlu0 %v2335
        %v2542 = vpop.xlane.xlu0 %2541
        %2543 = vadd.xlane.f32.xlu0 %v2336
        %v2544 = vpop.xlane.xlu0 %2543
        %2545 = vadd.xlane.f32.xlu0 %v2337
        %v2546 = vpop.xlane.xlu0 %2545
        %2547 = vadd.xlane.f32.xlu0 %v2338
        %v2548 = vpop.xlane.xlu0 %2547
        %2549 = vadd.xlane.f32.xlu0 %v2339
        %v2550 = vpop.xlane.xlu0 %2549
        %2551 = vadd.xlane.f32.xlu0 %v2340
        %v2552 = vpop.xlane.xlu0 %2551
        %2553 = vadd.xlane.f32.xlu0 %v2341
        %v2554 = vpop.xlane.xlu0 %2553
        %2555 = vadd.xlane.f32.xlu0 %v2342
        %v2556 = vpop.xlane.xlu0 %2555
        %2557 = vadd.xlane.f32.xlu0 %v2343
        %v2558 = vpop.xlane.xlu0 %2557
        %2559 = vadd.xlane.f32.xlu0 %v2344
        %v2560 = vpop.xlane.xlu0 %2559
        %2561 = vadd.xlane.f32.xlu0 %v2345
        %v2562 = vpop.xlane.xlu0 %2561
        %2563 = vadd.xlane.f32.xlu0 %v2346
        %v2564 = vpop.xlane.xlu0 %2563
        %2565 = vadd.xlane.f32.xlu0 %v2347
        %v2566 = vpop.xlane.xlu0 %2565
        %2567 = vadd.xlane.f32.xlu0 %v2348
        %v2568 = vpop.xlane.xlu0 %2567
        %2569 = vadd.xlane.f32.xlu0 %v2349
        %v2570 = vpop.xlane.xlu0 %2569
        %2571 = vadd.xlane.f32.xlu0 %v2350
        %v2572 = vpop.xlane.xlu0 %2571
        %2573 = vadd.xlane.f32.xlu0 %v2351
        %v2574 = vpop.xlane.xlu0 %2573
        %2575 = vadd.xlane.f32.xlu0 %v2352
        %v2576 = vpop.xlane.xlu0 %2575
        %2577 = vadd.xlane.f32.xlu0 %v2353
        %v2578 = vpop.xlane.xlu0 %2577
        %2579 = vadd.xlane.f32.xlu0 %v2354
        %v2580 = vpop.xlane.xlu0 %2579
        %2581 = vadd.xlane.f32.xlu0 %v2355
        %v2582 = vpop.xlane.xlu0 %2581
        %2583 = vadd.xlane.f32.xlu0 %v2356
        %v2584 = vpop.xlane.xlu0 %2583
        %2585 = vadd.xlane.f32.xlu0 %v2357
        %v2586 = vpop.xlane.xlu0 %2585
        %2587 = vadd.xlane.f32.xlu0 %v2358
        %v2588 = vpop.xlane.xlu0 %2587
        %2589 = vadd.xlane.f32.xlu0 %v2359
        %v2590 = vpop.xlane.xlu0 %2589
        %2591 = vadd.xlane.f32.xlu0 %v2360
        %v2592 = vpop.xlane.xlu0 %2591
        %2593 = vadd.xlane.f32.xlu0 %v2361
        %v2594 = vpop.xlane.xlu0 %2593
        %2595 = vadd.xlane.f32.xlu0 %v2362
        %v2596 = vpop.xlane.xlu0 %2595
        %2597 = vadd.xlane.f32.xlu0 %v2363
        %v2598 = vpop.xlane.xlu0 %2597
        %2599 = vadd.xlane.f32.xlu0 %v2364
        %v2600 = vpop.xlane.xlu0 %2599
        %2601 = vadd.xlane.f32.xlu0 %v2365
        %v2602 = vpop.xlane.xlu0 %2601
        %2603 = vadd.xlane.f32.xlu0 %v2366
        %v2604 = vpop.xlane.xlu0 %2603
        %2605 = vadd.xlane.f32.xlu0 %v2367
        %v2606 = vpop.xlane.xlu0 %2605
        %2607 = vadd.xlane.f32.xlu0 %v2368
        %v2608 = vpop.xlane.xlu0 %2607
        %2609 = vadd.xlane.f32.xlu0 %v2369
        %v2610 = vpop.xlane.xlu0 %2609
        %2611 = vadd.xlane.f32.xlu0 %v2370
        %v2612 = vpop.xlane.xlu0 %2611
        %2613 = vadd.xlane.f32.xlu0 %v2371
        %v2614 = vpop.xlane.xlu0 %2613
        %2615 = vadd.xlane.f32.xlu0 %v2372
        %v2616 = vpop.xlane.xlu0 %2615
        %2617 = vadd.xlane.f32.xlu0 %v2373
        %v2618 = vpop.xlane.xlu0 %2617
        %2619 = vadd.xlane.f32.xlu0 %v2374
        %v2620 = vpop.xlane.xlu0 %2619
        %2621 = vadd.xlane.f32.xlu0 %v2375
        %v2622 = vpop.xlane.xlu0 %2621
        %2623 = vadd.xlane.f32.xlu0 %v2376
        %v2624 = vpop.xlane.xlu0 %2623
        %2625 = vadd.xlane.f32.xlu0 %v2377
        %v2626 = vpop.xlane.xlu0 %2625
        %2627 = vadd.xlane.f32.xlu0 %v2378
        %v2628 = vpop.xlane.xlu0 %2627
        %2629 = vadd.xlane.f32.xlu0 %v2379
        %v2630 = vpop.xlane.xlu0 %2629
        %2631 = vadd.xlane.f32.xlu0 %v2380
        %v2632 = vpop.xlane.xlu0 %2631
        %2633 = vadd.xlane.f32.xlu0 %v2381
        %v2634 = vpop.xlane.xlu0 %2633
        %2635 = vadd.xlane.f32.xlu0 %v2382
        %v2636 = vpop.xlane.xlu0 %2635
        %2637 = vadd.xlane.f32.xlu0 %v2383
        %v2638 = vpop.xlane.xlu0 %2637
        %2639 = vadd.xlane.f32.xlu0 %v2384
        %v2640 = vpop.xlane.xlu0 %2639
        %v2641 = vrcp.pop 128.0
        %v2642 = vmul.f32 128.0, %v2641
        %v2643 = vsub.f32 1.0, %v2642
        %v2644 = vmul.f32 %v2641, %v2643
        %v2645 = vadd.f32 %v2641, %v2644
        %vm2646 = vweird.f32 %v2641
        %v2647 = vsel %vm2646, %v2641, %v2645
        %v2648 = vmul.f32 %v2386, %v2647
        %v2649 = vmul.f32 %v2388, %v2647
        %v2650 = vmul.f32 %v2390, %v2647
        %v2651 = vmul.f32 %v2392, %v2647
        %v2652 = vmul.f32 %v2394, %v2647
        %v2653 = vmul.f32 %v2396, %v2647
        %v2654 = vmul.f32 %v2398, %v2647
        %v2655 = vmul.f32 %v2400, %v2647
        %v2656 = vmul.f32 %v2402, %v2647
        %v2657 = vmul.f32 %v2404, %v2647
        %v2658 = vmul.f32 %v2406, %v2647
        %v2659 = vmul.f32 %v2408, %v2647
        %v2660 = vmul.f32 %v2410, %v2647
        %v2661 = vmul.f32 %v2412, %v2647
        %v2662 = vmul.f32 %v2414, %v2647
        %v2663 = vmul.f32 %v2416, %v2647
        %v2664 = vmul.f32 %v2418, %v2647
        %v2665 = vmul.f32 %v2420, %v2647
        %v2666 = vmul.f32 %v2422, %v2647
        %v2667 = vmul.f32 %v2424, %v2647
        %v2668 = vmul.f32 %v2426, %v2647
        %v2669 = vmul.f32 %v2428, %v2647
        %v2670 = vmul.f32 %v2430, %v2647
        %v2671 = vmul.f32 %v2432, %v2647
        %v2672 = vmul.f32 %v2434, %v2647
        %v2673 = vmul.f32 %v2436, %v2647
        %v2674 = vmul.f32 %v2438, %v2647
        %v2675 = vmul.f32 %v2440, %v2647
        %v2676 = vmul.f32 %v2442, %v2647
        %v2677 = vmul.f32 %v2444, %v2647
        %v2678 = vmul.f32 %v2446, %v2647
        %v2679 = vmul.f32 %v2448, %v2647
        %v2680 = vmul.f32 %v2450, %v2647
        %v2681 = vmul.f32 %v2452, %v2647
        %v2682 = vmul.f32 %v2454, %v2647
        %v2683 = vmul.f32 %v2456, %v2647
        %v2684 = vmul.f32 %v2458, %v2647
        %v2685 = vmul.f32 %v2460, %v2647
        %v2686 = vmul.f32 %v2462, %v2647
        %v2687 = vmul.f32 %v2464, %v2647
        %v2688 = vmul.f32 %v2466, %v2647
        %v2689 = vmul.f32 %v2468, %v2647
        %v2690 = vmul.f32 %v2470, %v2647
        %v2691 = vmul.f32 %v2472, %v2647
        %v2692 = vmul.f32 %v2474, %v2647
        %v2693 = vmul.f32 %v2476, %v2647
        %v2694 = vmul.f32 %v2478, %v2647
        %v2695 = vmul.f32 %v2480, %v2647
        %v2696 = vmul.f32 %v2482, %v2647
        %v2697 = vmul.f32 %v2484, %v2647
        %v2698 = vmul.f32 %v2486, %v2647
        %v2699 = vmul.f32 %v2488, %v2647
        %v2700 = vmul.f32 %v2490, %v2647
        %v2701 = vmul.f32 %v2492, %v2647
        %v2702 = vmul.f32 %v2494, %v2647
        %v2703 = vmul.f32 %v2496, %v2647
        %v2704 = vmul.f32 %v2498, %v2647
        %v2705 = vmul.f32 %v2500, %v2647
        %v2706 = vmul.f32 %v2502, %v2647
        %v2707 = vmul.f32 %v2504, %v2647
        %v2708 = vmul.f32 %v2506, %v2647
        %v2709 = vmul.f32 %v2508, %v2647
        %v2710 = vmul.f32 %v2510, %v2647
        %v2711 = vmul.f32 %v2512, %v2647
        %v2712 = vmul.f32 %v2514, %v2647
        %v2713 = vmul.f32 %v2516, %v2647
        %v2714 = vmul.f32 %v2518, %v2647
        %v2715 = vmul.f32 %v2520, %v2647
        %v2716 = vmul.f32 %v2522, %v2647
        %v2717 = vmul.f32 %v2524, %v2647
        %v2718 = vmul.f32 %v2526, %v2647
        %v2719 = vmul.f32 %v2528, %v2647
        %v2720 = vmul.f32 %v2530, %v2647
        %v2721 = vmul.f32 %v2532, %v2647
        %v2722 = vmul.f32 %v2534, %v2647
        %v2723 = vmul.f32 %v2536, %v2647
        %v2724 = vmul.f32 %v2538, %v2647
        %v2725 = vmul.f32 %v2540, %v2647
        %v2726 = vmul.f32 %v2542, %v2647
        %v2727 = vmul.f32 %v2544, %v2647
        %v2728 = vmul.f32 %v2546, %v2647
        %v2729 = vmul.f32 %v2548, %v2647
        %v2730 = vmul.f32 %v2550, %v2647
        %v2731 = vmul.f32 %v2552, %v2647
        %v2732 = vmul.f32 %v2554, %v2647
        %v2733 = vmul.f32 %v2556, %v2647
        %v2734 = vmul.f32 %v2558, %v2647
        %v2735 = vmul.f32 %v2560, %v2647
        %v2736 = vmul.f32 %v2562, %v2647
        %v2737 = vmul.f32 %v2564, %v2647
        %v2738 = vmul.f32 %v2566, %v2647
        %v2739 = vmul.f32 %v2568, %v2647
        %v2740 = vmul.f32 %v2570, %v2647
        %v2741 = vmul.f32 %v2572, %v2647
        %v2742 = vmul.f32 %v2574, %v2647
        %v2743 = vmul.f32 %v2576, %v2647
        %v2744 = vmul.f32 %v2578, %v2647
        %v2745 = vmul.f32 %v2580, %v2647
        %v2746 = vmul.f32 %v2582, %v2647
        %v2747 = vmul.f32 %v2584, %v2647
        %v2748 = vmul.f32 %v2586, %v2647
        %v2749 = vmul.f32 %v2588, %v2647
        %v2750 = vmul.f32 %v2590, %v2647
        %v2751 = vmul.f32 %v2592, %v2647
        %v2752 = vmul.f32 %v2594, %v2647
        %v2753 = vmul.f32 %v2596, %v2647
        %v2754 = vmul.f32 %v2598, %v2647
        %v2755 = vmul.f32 %v2600, %v2647
        %v2756 = vmul.f32 %v2602, %v2647
        %v2757 = vmul.f32 %v2604, %v2647
        %v2758 = vmul.f32 %v2606, %v2647
        %v2759 = vmul.f32 %v2608, %v2647
        %v2760 = vmul.f32 %v2610, %v2647
        %v2761 = vmul.f32 %v2612, %v2647
        %v2762 = vmul.f32 %v2614, %v2647
        %v2763 = vmul.f32 %v2616, %v2647
        %v2764 = vmul.f32 %v2618, %v2647
        %v2765 = vmul.f32 %v2620, %v2647
        %v2766 = vmul.f32 %v2622, %v2647
        %v2767 = vmul.f32 %v2624, %v2647
        %v2768 = vmul.f32 %v2626, %v2647
        %v2769 = vmul.f32 %v2628, %v2647
        %v2770 = vmul.f32 %v2630, %v2647
        %v2771 = vmul.f32 %v2632, %v2647
        %v2772 = vmul.f32 %v2634, %v2647
        %v2773 = vmul.f32 %v2636, %v2647
        %v2774 = vmul.f32 %v2638, %v2647
        %v2775 = vmul.f32 %v2640, %v2647
        %v2776 = vsub.f32 %v2257, %v2648
        %v2777 = vsub.f32 %v2258, %v2649
        %v2778 = vsub.f32 %v2259, %v2650
        %v2779 = vsub.f32 %v2260, %v2651
        %v2780 = vsub.f32 %v2261, %v2652
        %v2781 = vsub.f32 %v2262, %v2653
        %v2782 = vsub.f32 %v2263, %v2654
        %v2783 = vsub.f32 %v2264, %v2655
        %v2784 = vsub.f32 %v2265, %v2656
        %v2785 = vsub.f32 %v2266, %v2657
        %v2786 = vsub.f32 %v2267, %v2658
        %v2787 = vsub.f32 %v2268, %v2659
        %v2788 = vsub.f32 %v2269, %v2660
        %v2789 = vsub.f32 %v2270, %v2661
        %v2790 = vsub.f32 %v2271, %v2662
        %v2791 = vsub.f32 %v2272, %v2663
        %v2792 = vsub.f32 %v2273, %v2664
        %v2793 = vsub.f32 %v2274, %v2665
        %v2794 = vsub.f32 %v2275, %v2666
        %v2795 = vsub.f32 %v2276, %v2667
        %v2796 = vsub.f32 %v2277, %v2668
        %v2797 = vsub.f32 %v2278, %v2669
        %v2798 = vsub.f32 %v2279, %v2670
        %v2799 = vsub.f32 %v2280, %v2671
        %v2800 = vsub.f32 %v2281, %v2672
        %v2801 = vsub.f32 %v2282, %v2673
        %v2802 = vsub.f32 %v2283, %v2674
        %v2803 = vsub.f32 %v2284, %v2675
        %v2804 = vsub.f32 %v2285, %v2676
        %v2805 = vsub.f32 %v2286, %v2677
        %v2806 = vsub.f32 %v2287, %v2678
        %v2807 = vsub.f32 %v2288, %v2679
        %v2808 = vsub.f32 %v2289, %v2680
        %v2809 = vsub.f32 %v2290, %v2681
        %v2810 = vsub.f32 %v2291, %v2682
        %v2811 = vsub.f32 %v2292, %v2683
        %v2812 = vsub.f32 %v2293, %v2684
        %v2813 = vsub.f32 %v2294, %v2685
        %v2814 = vsub.f32 %v2295, %v2686
        %v2815 = vsub.f32 %v2296, %v2687
        %v2816 = vsub.f32 %v2297, %v2688
        %v2817 = vsub.f32 %v2298, %v2689
        %v2818 = vsub.f32 %v2299, %v2690
        %v2819 = vsub.f32 %v2300, %v2691
        %v2820 = vsub.f32 %v2301, %v2692
        %v2821 = vsub.f32 %v2302, %v2693
        %v2822 = vsub.f32 %v2303, %v2694
        %v2823 = vsub.f32 %v2304, %v2695
        %v2824 = vsub.f32 %v2305, %v2696
        %v2825 = vsub.f32 %v2306, %v2697
        %v2826 = vsub.f32 %v2307, %v2698
        %v2827 = vsub.f32 %v2308, %v2699
        %v2828 = vsub.f32 %v2309, %v2700
        %v2829 = vsub.f32 %v2310, %v2701
        %v2830 = vsub.f32 %v2311, %v2702
        %v2831 = vsub.f32 %v2312, %v2703
        %v2832 = vsub.f32 %v2313, %v2704
        %v2833 = vsub.f32 %v2314, %v2705
        %v2834 = vsub.f32 %v2315, %v2706
        %v2835 = vsub.f32 %v2316, %v2707
        %v2836 = vsub.f32 %v2317, %v2708
        %v2837 = vsub.f32 %v2318, %v2709
        %v2838 = vsub.f32 %v2319, %v2710
        %v2839 = vsub.f32 %v2320, %v2711
        %v2840 = vsub.f32 %v2321, %v2712
        %v2841 = vsub.f32 %v2322, %v2713
        %v2842 = vsub.f32 %v2323, %v2714
        %v2843 = vsub.f32 %v2324, %v2715
        %v2844 = vsub.f32 %v2325, %v2716
        %v2845 = vsub.f32 %v2326, %v2717
        %v2846 = vsub.f32 %v2327, %v2718
        %v2847 = vsub.f32 %v2328, %v2719
        %v2848 = vsub.f32 %v2329, %v2720
        %v2849 = vsub.f32 %v2330, %v2721
        %v2850 = vsub.f32 %v2331, %v2722
        %v2851 = vsub.f32 %v2332, %v2723
        %v2852 = vsub.f32 %v2333, %v2724
        %v2853 = vsub.f32 %v2334, %v2725
        %v2854 = vsub.f32 %v2335, %v2726
        %v2855 = vsub.f32 %v2336, %v2727
        %v2856 = vsub.f32 %v2337, %v2728
        %v2857 = vsub.f32 %v2338, %v2729
        %v2858 = vsub.f32 %v2339, %v2730
        %v2859 = vsub.f32 %v2340, %v2731
        %v2860 = vsub.f32 %v2341, %v2732
        %v2861 = vsub.f32 %v2342, %v2733
        %v2862 = vsub.f32 %v2343, %v2734
        %v2863 = vsub.f32 %v2344, %v2735
        %v2864 = vsub.f32 %v2345, %v2736
        %v2865 = vsub.f32 %v2346, %v2737
        %v2866 = vsub.f32 %v2347, %v2738
        %v2867 = vsub.f32 %v2348, %v2739
        %v2868 = vsub.f32 %v2349, %v2740
        %v2869 = vsub.f32 %v2350, %v2741
        %v2870 = vsub.f32 %v2351, %v2742
        %v2871 = vsub.f32 %v2352, %v2743
        %v2872 = vsub.f32 %v2353, %v2744
        %v2873 = vsub.f32 %v2354, %v2745
        %v2874 = vsub.f32 %v2355, %v2746
        %v2875 = vsub.f32 %v2356, %v2747
        %v2876 = vsub.f32 %v2357, %v2748
        %v2877 = vsub.f32 %v2358, %v2749
        %v2878 = vsub.f32 %v2359, %v2750
        %v2879 = vsub.f32 %v2360, %v2751
        %v2880 = vsub.f32 %v2361, %v2752
        %v2881 = vsub.f32 %v2362, %v2753
        %v2882 = vsub.f32 %v2363, %v2754
        %v2883 = vsub.f32 %v2364, %v2755
        %v2884 = vsub.f32 %v2365, %v2756
        %v2885 = vsub.f32 %v2366, %v2757
        %v2886 = vsub.f32 %v2367, %v2758
        %v2887 = vsub.f32 %v2368, %v2759
        %v2888 = vsub.f32 %v2369, %v2760
        %v2889 = vsub.f32 %v2370, %v2761
        %v2890 = vsub.f32 %v2371, %v2762
        %v2891 = vsub.f32 %v2372, %v2763
        %v2892 = vsub.f32 %v2373, %v2764
        %v2893 = vsub.f32 %v2374, %v2765
        %v2894 = vsub.f32 %v2375, %v2766
        %v2895 = vsub.f32 %v2376, %v2767
        %v2896 = vsub.f32 %v2377, %v2768
        %v2897 = vsub.f32 %v2378, %v2769
        %v2898 = vsub.f32 %v2379, %v2770
        %v2899 = vsub.f32 %v2380, %v2771
        %v2900 = vsub.f32 %v2381, %v2772
        %v2901 = vsub.f32 %v2382, %v2773
        %v2902 = vsub.f32 %v2383, %v2774
        %v2903 = vsub.f32 %v2384, %v2775
        %v2904 = vmul.f32 %v2776, %v2776
        %v2905 = vmul.f32 %v2777, %v2777
        %v2906 = vmul.f32 %v2778, %v2778
        %v2907 = vmul.f32 %v2779, %v2779
        %v2908 = vmul.f32 %v2780, %v2780
        %v2909 = vmul.f32 %v2781, %v2781
        %v2910 = vmul.f32 %v2782, %v2782
        %v2911 = vmul.f32 %v2783, %v2783
        %v2912 = vmul.f32 %v2784, %v2784
        %v2913 = vmul.f32 %v2785, %v2785
        %v2914 = vmul.f32 %v2786, %v2786
        %v2915 = vmul.f32 %v2787, %v2787
        %v2916 = vmul.f32 %v2788, %v2788
        %v2917 = vmul.f32 %v2789, %v2789
        %v2918 = vmul.f32 %v2790, %v2790
        %v2919 = vmul.f32 %v2791, %v2791
        %v2920 = vmul.f32 %v2792, %v2792
        %v2921 = vmul.f32 %v2793, %v2793
        %v2922 = vmul.f32 %v2794, %v2794
        %v2923 = vmul.f32 %v2795, %v2795
        %v2924 = vmul.f32 %v2796, %v2796
        %v2925 = vmul.f32 %v2797, %v2797
        %v2926 = vmul.f32 %v2798, %v2798
        %v2927 = vmul.f32 %v2799, %v2799
        %v2928 = vmul.f32 %v2800, %v2800
        %v2929 = vmul.f32 %v2801, %v2801
        %v2930 = vmul.f32 %v2802, %v2802
        %v2931 = vmul.f32 %v2803, %v2803
        %v2932 = vmul.f32 %v2804, %v2804
        %v2933 = vmul.f32 %v2805, %v2805
        %v2934 = vmul.f32 %v2806, %v2806
        %v2935 = vmul.f32 %v2807, %v2807
        %v2936 = vmul.f32 %v2808, %v2808
        %v2937 = vmul.f32 %v2809, %v2809
        %v2938 = vmul.f32 %v2810, %v2810
        %v2939 = vmul.f32 %v2811, %v2811
        %v2940 = vmul.f32 %v2812, %v2812
        %v2941 = vmul.f32 %v2813, %v2813
        %v2942 = vmul.f32 %v2814, %v2814
        %v2943 = vmul.f32 %v2815, %v2815
        %v2944 = vmul.f32 %v2816, %v2816
        %v2945 = vmul.f32 %v2817, %v2817
        %v2946 = vmul.f32 %v2818, %v2818
        %v2947 = vmul.f32 %v2819, %v2819
        %v2948 = vmul.f32 %v2820, %v2820
        %v2949 = vmul.f32 %v2821, %v2821
        %v2950 = vmul.f32 %v2822, %v2822
        %v2951 = vmul.f32 %v2823, %v2823
        %v2952 = vmul.f32 %v2824, %v2824
        %v2953 = vmul.f32 %v2825, %v2825
        %v2954 = vmul.f32 %v2826, %v2826
        %v2955 = vmul.f32 %v2827, %v2827
        %v2956 = vmul.f32 %v2828, %v2828
        %v2957 = vmul.f32 %v2829, %v2829
        %v2958 = vmul.f32 %v2830, %v2830
        %v2959 = vmul.f32 %v2831, %v2831
        %v2960 = vmul.f32 %v2832, %v2832
        %v2961 = vmul.f32 %v2833, %v2833
        %v2962 = vmul.f32 %v2834, %v2834
        %v2963 = vmul.f32 %v2835, %v2835
        %v2964 = vmul.f32 %v2836, %v2836
        %v2965 = vmul.f32 %v2837, %v2837
        %v2966 = vmul.f32 %v2838, %v2838
        %v2967 = vmul.f32 %v2839, %v2839
        %v2968 = vmul.f32 %v2840, %v2840
        %v2969 = vmul.f32 %v2841, %v2841
        %v2970 = vmul.f32 %v2842, %v2842
        %v2971 = vmul.f32 %v2843, %v2843
        %v2972 = vmul.f32 %v2844, %v2844
        %v2973 = vmul.f32 %v2845, %v2845
        %v2974 = vmul.f32 %v2846, %v2846
        %v2975 = vmul.f32 %v2847, %v2847
        %v2976 = vmul.f32 %v2848, %v2848
        %v2977 = vmul.f32 %v2849, %v2849
        %v2978 = vmul.f32 %v2850, %v2850
        %v2979 = vmul.f32 %v2851, %v2851
        %v2980 = vmul.f32 %v2852, %v2852
        %v2981 = vmul.f32 %v2853, %v2853
        %v2982 = vmul.f32 %v2854, %v2854
        %v2983 = vmul.f32 %v2855, %v2855
        %v2984 = vmul.f32 %v2856, %v2856
        %v2985 = vmul.f32 %v2857, %v2857
        %v2986 = vmul.f32 %v2858, %v2858
        %v2987 = vmul.f32 %v2859, %v2859
        %v2988 = vmul.f32 %v2860, %v2860
        %v2989 = vmul.f32 %v2861, %v2861
        %v2990 = vmul.f32 %v2862, %v2862
        %v2991 = vmul.f32 %v2863, %v2863
        %v2992 = vmul.f32 %v2864, %v2864
        %v2993 = vmul.f32 %v2865, %v2865
        %v2994 = vmul.f32 %v2866, %v2866
        %v2995 = vmul.f32 %v2867, %v2867
        %v2996 = vmul.f32 %v2868, %v2868
        %v2997 = vmul.f32 %v2869, %v2869
        %v2998 = vmul.f32 %v2870, %v2870
        %v2999 = vmul.f32 %v2871, %v2871
        %v3000 = vmul.f32 %v2872, %v2872
        %v3001 = vmul.f32 %v2873, %v2873
        %v3002 = vmul.f32 %v2874, %v2874
        %v3003 = vmul.f32 %v2875, %v2875
        %v3004 = vmul.f32 %v2876, %v2876
        %v3005 = vmul.f32 %v2877, %v2877
        %v3006 = vmul.f32 %v2878, %v2878
        %v3007 = vmul.f32 %v2879, %v2879
        %v3008 = vmul.f32 %v2880, %v2880
        %v3009 = vmul.f32 %v2881, %v2881
        %v3010 = vmul.f32 %v2882, %v2882
        %v3011 = vmul.f32 %v2883, %v2883
        %v3012 = vmul.f32 %v2884, %v2884
        %v3013 = vmul.f32 %v2885, %v2885
        %v3014 = vmul.f32 %v2886, %v2886
        %v3015 = vmul.f32 %v2887, %v2887
        %v3016 = vmul.f32 %v2888, %v2888
        %v3017 = vmul.f32 %v2889, %v2889
        %v3018 = vmul.f32 %v2890, %v2890
        %v3019 = vmul.f32 %v2891, %v2891
        %v3020 = vmul.f32 %v2892, %v2892
        %v3021 = vmul.f32 %v2893, %v2893
        %v3022 = vmul.f32 %v2894, %v2894
        %v3023 = vmul.f32 %v2895, %v2895
        %v3024 = vmul.f32 %v2896, %v2896
        %v3025 = vmul.f32 %v2897, %v2897
        %v3026 = vmul.f32 %v2898, %v2898
        %v3027 = vmul.f32 %v2899, %v2899
        %v3028 = vmul.f32 %v2900, %v2900
        %v3029 = vmul.f32 %v2901, %v2901
        %v3030 = vmul.f32 %v2902, %v2902
        %v3031 = vmul.f32 %v2903, %v2903
        %3032 = vadd.xlane.f32.xlu0 %v2904
        %v3033 = vpop.xlane.xlu0 %3032
        %3034 = vadd.xlane.f32.xlu0 %v2905
        %v3035 = vpop.xlane.xlu0 %3034
        %3036 = vadd.xlane.f32.xlu0 %v2906
        %v3037 = vpop.xlane.xlu0 %3036
        %3038 = vadd.xlane.f32.xlu0 %v2907
        %v3039 = vpop.xlane.xlu0 %3038
        %3040 = vadd.xlane.f32.xlu0 %v2908
        %v3041 = vpop.xlane.xlu0 %3040
        %3042 = vadd.xlane.f32.xlu0 %v2909
        %v3043 = vpop.xlane.xlu0 %3042
        %3044 = vadd.xlane.f32.xlu0 %v2910
        %v3045 = vpop.xlane.xlu0 %3044
        %3046 = vadd.xlane.f32.xlu0 %v2911
        %v3047 = vpop.xlane.xlu0 %3046
        %3048 = vadd.xlane.f32.xlu0 %v2912
        %v3049 = vpop.xlane.xlu0 %3048
        %3050 = vadd.xlane.f32.xlu0 %v2913
        %v3051 = vpop.xlane.xlu0 %3050
        %3052 = vadd.xlane.f32.xlu0 %v2914
        %v3053 = vpop.xlane.xlu0 %3052
        %3054 = vadd.xlane.f32.xlu0 %v2915
        %v3055 = vpop.xlane.xlu0 %3054
        %3056 = vadd.xlane.f32.xlu0 %v2916
        %v3057 = vpop.xlane.xlu0 %3056
        %3058 = vadd.xlane.f32.xlu0 %v2917
        %v3059 = vpop.xlane.xlu0 %3058
        %3060 = vadd.xlane.f32.xlu0 %v2918
        %v3061 = vpop.xlane.xlu0 %3060
        %3062 = vadd.xlane.f32.xlu0 %v2919
        %v3063 = vpop.xlane.xlu0 %3062
        %3064 = vadd.xlane.f32.xlu0 %v2920
        %v3065 = vpop.xlane.xlu0 %3064
        %3066 = vadd.xlane.f32.xlu0 %v2921
        %v3067 = vpop.xlane.xlu0 %3066
        %3068 = vadd.xlane.f32.xlu0 %v2922
        %v3069 = vpop.xlane.xlu0 %3068
        %3070 = vadd.xlane.f32.xlu0 %v2923
        %v3071 = vpop.xlane.xlu0 %3070
        %3072 = vadd.xlane.f32.xlu0 %v2924
        %v3073 = vpop.xlane.xlu0 %3072
        %3074 = vadd.xlane.f32.xlu0 %v2925
        %v3075 = vpop.xlane.xlu0 %3074
        %3076 = vadd.xlane.f32.xlu0 %v2926
        %v3077 = vpop.xlane.xlu0 %3076
        %3078 = vadd.xlane.f32.xlu0 %v2927
        %v3079 = vpop.xlane.xlu0 %3078
        %3080 = vadd.xlane.f32.xlu0 %v2928
        %v3081 = vpop.xlane.xlu0 %3080
        %3082 = vadd.xlane.f32.xlu0 %v2929
        %v3083 = vpop.xlane.xlu0 %3082
        %3084 = vadd.xlane.f32.xlu0 %v2930
        %v3085 = vpop.xlane.xlu0 %3084
        %3086 = vadd.xlane.f32.xlu0 %v2931
        %v3087 = vpop.xlane.xlu0 %3086
        %3088 = vadd.xlane.f32.xlu0 %v2932
        %v3089 = vpop.xlane.xlu0 %3088
        %3090 = vadd.xlane.f32.xlu0 %v2933
        %v3091 = vpop.xlane.xlu0 %3090
        %3092 = vadd.xlane.f32.xlu0 %v2934
        %v3093 = vpop.xlane.xlu0 %3092
        %3094 = vadd.xlane.f32.xlu0 %v2935
        %v3095 = vpop.xlane.xlu0 %3094
        %3096 = vadd.xlane.f32.xlu0 %v2936
        %v3097 = vpop.xlane.xlu0 %3096
        %3098 = vadd.xlane.f32.xlu0 %v2937
        %v3099 = vpop.xlane.xlu0 %3098
        %3100 = vadd.xlane.f32.xlu0 %v2938
        %v3101 = vpop.xlane.xlu0 %3100
        %3102 = vadd.xlane.f32.xlu0 %v2939
        %v3103 = vpop.xlane.xlu0 %3102
        %3104 = vadd.xlane.f32.xlu0 %v2940
        %v3105 = vpop.xlane.xlu0 %3104
        %3106 = vadd.xlane.f32.xlu0 %v2941
        %v3107 = vpop.xlane.xlu0 %3106
        %3108 = vadd.xlane.f32.xlu0 %v2942
        %v3109 = vpop.xlane.xlu0 %3108
        %3110 = vadd.xlane.f32.xlu0 %v2943
        %v3111 = vpop.xlane.xlu0 %3110
        %3112 = vadd.xlane.f32.xlu0 %v2944
        %v3113 = vpop.xlane.xlu0 %3112
        %3114 = vadd.xlane.f32.xlu0 %v2945
        %v3115 = vpop.xlane.xlu0 %3114
        %3116 = vadd.xlane.f32.xlu0 %v2946
        %v3117 = vpop.xlane.xlu0 %3116
        %3118 = vadd.xlane.f32.xlu0 %v2947
        %v3119 = vpop.xlane.xlu0 %3118
        %3120 = vadd.xlane.f32.xlu0 %v2948
        %v3121 = vpop.xlane.xlu0 %3120
        %3122 = vadd.xlane.f32.xlu0 %v2949
        %v3123 = vpop.xlane.xlu0 %3122
        %3124 = vadd.xlane.f32.xlu0 %v2950
        %v3125 = vpop.xlane.xlu0 %3124
        %3126 = vadd.xlane.f32.xlu0 %v2951
        %v3127 = vpop.xlane.xlu0 %3126
        %3128 = vadd.xlane.f32.xlu0 %v2952
        %v3129 = vpop.xlane.xlu0 %3128
        %3130 = vadd.xlane.f32.xlu0 %v2953
        %v3131 = vpop.xlane.xlu0 %3130
        %3132 = vadd.xlane.f32.xlu0 %v2954
        %v3133 = vpop.xlane.xlu0 %3132
        %3134 = vadd.xlane.f32.xlu0 %v2955
        %v3135 = vpop.xlane.xlu0 %3134
        %3136 = vadd.xlane.f32.xlu0 %v2956
        %v3137 = vpop.xlane.xlu0 %3136
        %3138 = vadd.xlane.f32.xlu0 %v2957
        %v3139 = vpop.xlane.xlu0 %3138
        %3140 = vadd.xlane.f32.xlu0 %v2958
        %v3141 = vpop.xlane.xlu0 %3140
        %3142 = vadd.xlane.f32.xlu0 %v2959
        %v3143 = vpop.xlane.xlu0 %3142
        %3144 = vadd.xlane.f32.xlu0 %v2960
        %v3145 = vpop.xlane.xlu0 %3144
        %3146 = vadd.xlane.f32.xlu0 %v2961
        %v3147 = vpop.xlane.xlu0 %3146
        %3148 = vadd.xlane.f32.xlu0 %v2962
        %v3149 = vpop.xlane.xlu0 %3148
        %3150 = vadd.xlane.f32.xlu0 %v2963
        %v3151 = vpop.xlane.xlu0 %3150
        %3152 = vadd.xlane.f32.xlu0 %v2964
        %v3153 = vpop.xlane.xlu0 %3152
        %3154 = vadd.xlane.f32.xlu0 %v2965
        %v3155 = vpop.xlane.xlu0 %3154
        %3156 = vadd.xlane.f32.xlu0 %v2966
        %v3157 = vpop.xlane.xlu0 %3156
        %3158 = vadd.xlane.f32.xlu0 %v2967
        %v3159 = vpop.xlane.xlu0 %3158
        %3160 = vadd.xlane.f32.xlu0 %v2968
        %v3161 = vpop.xlane.xlu0 %3160
        %3162 = vadd.xlane.f32.xlu0 %v2969
        %v3163 = vpop.xlane.xlu0 %3162
        %3164 = vadd.xlane.f32.xlu0 %v2970
        %v3165 = vpop.xlane.xlu0 %3164
        %3166 = vadd.xlane.f32.xlu0 %v2971
        %v3167 = vpop.xlane.xlu0 %3166
        %3168 = vadd.xlane.f32.xlu0 %v2972
        %v3169 = vpop.xlane.xlu0 %3168
        %3170 = vadd.xlane.f32.xlu0 %v2973
        %v3171 = vpop.xlane.xlu0 %3170
        %3172 = vadd.xlane.f32.xlu0 %v2974
        %v3173 = vpop.xlane.xlu0 %3172
        %3174 = vadd.xlane.f32.xlu0 %v2975
        %v3175 = vpop.xlane.xlu0 %3174
        %3176 = vadd.xlane.f32.xlu0 %v2976
        %v3177 = vpop.xlane.xlu0 %3176
        %3178 = vadd.xlane.f32.xlu0 %v2977
        %v3179 = vpop.xlane.xlu0 %3178
        %3180 = vadd.xlane.f32.xlu0 %v2978
        %v3181 = vpop.xlane.xlu0 %3180
        %3182 = vadd.xlane.f32.xlu0 %v2979
        %v3183 = vpop.xlane.xlu0 %3182
        %3184 = vadd.xlane.f32.xlu0 %v2980
        %v3185 = vpop.xlane.xlu0 %3184
        %3186 = vadd.xlane.f32.xlu0 %v2981
        %v3187 = vpop.xlane.xlu0 %3186
        %3188 = vadd.xlane.f32.xlu0 %v2982
        %v3189 = vpop.xlane.xlu0 %3188
        %3190 = vadd.xlane.f32.xlu0 %v2983
        %v3191 = vpop.xlane.xlu0 %3190
        %3192 = vadd.xlane.f32.xlu0 %v2984
        %v3193 = vpop.xlane.xlu0 %3192
        %3194 = vadd.xlane.f32.xlu0 %v2985
        %v3195 = vpop.xlane.xlu0 %3194
        %3196 = vadd.xlane.f32.xlu0 %v2986
        %v3197 = vpop.xlane.xlu0 %3196
        %3198 = vadd.xlane.f32.xlu0 %v2987
        %v3199 = vpop.xlane.xlu0 %3198
        %3200 = vadd.xlane.f32.xlu0 %v2988
        %v3201 = vpop.xlane.xlu0 %3200
        %3202 = vadd.xlane.f32.xlu0 %v2989
        %v3203 = vpop.xlane.xlu0 %3202
        %3204 = vadd.xlane.f32.xlu0 %v2990
        %v3205 = vpop.xlane.xlu0 %3204
        %3206 = vadd.xlane.f32.xlu0 %v2991
        %v3207 = vpop.xlane.xlu0 %3206
        %3208 = vadd.xlane.f32.xlu0 %v2992
        %v3209 = vpop.xlane.xlu0 %3208
        %3210 = vadd.xlane.f32.xlu0 %v2993
        %v3211 = vpop.xlane.xlu0 %3210
        %3212 = vadd.xlane.f32.xlu0 %v2994
        %v3213 = vpop.xlane.xlu0 %3212
        %3214 = vadd.xlane.f32.xlu0 %v2995
        %v3215 = vpop.xlane.xlu0 %3214
        %3216 = vadd.xlane.f32.xlu0 %v2996
        %v3217 = vpop.xlane.xlu0 %3216
        %3218 = vadd.xlane.f32.xlu0 %v2997
        %v3219 = vpop.xlane.xlu0 %3218
        %3220 = vadd.xlane.f32.xlu0 %v2998
        %v3221 = vpop.xlane.xlu0 %3220
        %3222 = vadd.xlane.f32.xlu0 %v2999
        %v3223 = vpop.xlane.xlu0 %3222
        %3224 = vadd.xlane.f32.xlu0 %v3000
        %v3225 = vpop.xlane.xlu0 %3224
        %3226 = vadd.xlane.f32.xlu0 %v3001
        %v3227 = vpop.xlane.xlu0 %3226
        %3228 = vadd.xlane.f32.xlu0 %v3002
        %v3229 = vpop.xlane.xlu0 %3228
        %3230 = vadd.xlane.f32.xlu0 %v3003
        %v3231 = vpop.xlane.xlu0 %3230
        %3232 = vadd.xlane.f32.xlu0 %v3004
        %v3233 = vpop.xlane.xlu0 %3232
        %3234 = vadd.xlane.f32.xlu0 %v3005
        %v3235 = vpop.xlane.xlu0 %3234
        %3236 = vadd.xlane.f32.xlu0 %v3006
        %v3237 = vpop.xlane.xlu0 %3236
        %3238 = vadd.xlane.f32.xlu0 %v3007
        %v3239 = vpop.xlane.xlu0 %3238
        %3240 = vadd.xlane.f32.xlu0 %v3008
        %v3241 = vpop.xlane.xlu0 %3240
        %3242 = vadd.xlane.f32.xlu0 %v3009
        %v3243 = vpop.xlane.xlu0 %3242
        %3244 = vadd.xlane.f32.xlu0 %v3010
        %v3245 = vpop.xlane.xlu0 %3244
        %3246 = vadd.xlane.f32.xlu0 %v3011
        %v3247 = vpop.xlane.xlu0 %3246
        %3248 = vadd.xlane.f32.xlu0 %v3012
        %v3249 = vpop.xlane.xlu0 %3248
        %3250 = vadd.xlane.f32.xlu0 %v3013
        %v3251 = vpop.xlane.xlu0 %3250
        %3252 = vadd.xlane.f32.xlu0 %v3014
        %v3253 = vpop.xlane.xlu0 %3252
        %3254 = vadd.xlane.f32.xlu0 %v3015
        %v3255 = vpop.xlane.xlu0 %3254
        %3256 = vadd.xlane.f32.xlu0 %v3016
        %v3257 = vpop.xlane.xlu0 %3256
        %3258 = vadd.xlane.f32.xlu0 %v3017
        %v3259 = vpop.xlane.xlu0 %3258
        %3260 = vadd.xlane.f32.xlu0 %v3018
        %v3261 = vpop.xlane.xlu0 %3260
        %3262 = vadd.xlane.f32.xlu0 %v3019
        %v3263 = vpop.xlane.xlu0 %3262
        %3264 = vadd.xlane.f32.xlu0 %v3020
        %v3265 = vpop.xlane.xlu0 %3264
        %3266 = vadd.xlane.f32.xlu0 %v3021
        %v3267 = vpop.xlane.xlu0 %3266
        %3268 = vadd.xlane.f32.xlu0 %v3022
        %v3269 = vpop.xlane.xlu0 %3268
        %3270 = vadd.xlane.f32.xlu0 %v3023
        %v3271 = vpop.xlane.xlu0 %3270
        %3272 = vadd.xlane.f32.xlu0 %v3024
        %v3273 = vpop.xlane.xlu0 %3272
        %3274 = vadd.xlane.f32.xlu0 %v3025
        %v3275 = vpop.xlane.xlu0 %3274
        %3276 = vadd.xlane.f32.xlu0 %v3026
        %v3277 = vpop.xlane.xlu0 %3276
        %3278 = vadd.xlane.f32.xlu0 %v3027
        %v3279 = vpop.xlane.xlu0 %3278
        %3280 = vadd.xlane.f32.xlu0 %v3028
        %v3281 = vpop.xlane.xlu0 %3280
        %3282 = vadd.xlane.f32.xlu0 %v3029
        %v3283 = vpop.xlane.xlu0 %3282
        %3284 = vadd.xlane.f32.xlu0 %v3030
        %v3285 = vpop.xlane.xlu0 %3284
        %3286 = vadd.xlane.f32.xlu0 %v3031
        %v3287 = vpop.xlane.xlu0 %3286
        %v3288 = vmul.f32 %v3033, %v2647
        %v3289 = vmul.f32 %v3035, %v2647
        %v3290 = vmul.f32 %v3037, %v2647
        %v3291 = vmul.f32 %v3039, %v2647
        %v3292 = vmul.f32 %v3041, %v2647
        %v3293 = vmul.f32 %v3043, %v2647
        %v3294 = vmul.f32 %v3045, %v2647
        %v3295 = vmul.f32 %v3047, %v2647
        %v3296 = vmul.f32 %v3049, %v2647
        %v3297 = vmul.f32 %v3051, %v2647
        %v3298 = vmul.f32 %v3053, %v2647
        %v3299 = vmul.f32 %v3055, %v2647
        %v3300 = vmul.f32 %v3057, %v2647
        %v3301 = vmul.f32 %v3059, %v2647
        %v3302 = vmul.f32 %v3061, %v2647
        %v3303 = vmul.f32 %v3063, %v2647
        %v3304 = vmul.f32 %v3065, %v2647
        %v3305 = vmul.f32 %v3067, %v2647
        %v3306 = vmul.f32 %v3069, %v2647
        %v3307 = vmul.f32 %v3071, %v2647
        %v3308 = vmul.f32 %v3073, %v2647
        %v3309 = vmul.f32 %v3075, %v2647
        %v3310 = vmul.f32 %v3077, %v2647
        %v3311 = vmul.f32 %v3079, %v2647
        %v3312 = vmul.f32 %v3081, %v2647
        %v3313 = vmul.f32 %v3083, %v2647
        %v3314 = vmul.f32 %v3085, %v2647
        %v3315 = vmul.f32 %v3087, %v2647
        %v3316 = vmul.f32 %v3089, %v2647
        %v3317 = vmul.f32 %v3091, %v2647
        %v3318 = vmul.f32 %v3093, %v2647
        %v3319 = vmul.f32 %v3095, %v2647
        %v3320 = vmul.f32 %v3097, %v2647
        %v3321 = vmul.f32 %v3099, %v2647
        %v3322 = vmul.f32 %v3101, %v2647
        %v3323 = vmul.f32 %v3103, %v2647
        %v3324 = vmul.f32 %v3105, %v2647
        %v3325 = vmul.f32 %v3107, %v2647
        %v3326 = vmul.f32 %v3109, %v2647
        %v3327 = vmul.f32 %v3111, %v2647
        %v3328 = vmul.f32 %v3113, %v2647
        %v3329 = vmul.f32 %v3115, %v2647
        %v3330 = vmul.f32 %v3117, %v2647
        %v3331 = vmul.f32 %v3119, %v2647
        %v3332 = vmul.f32 %v3121, %v2647
        %v3333 = vmul.f32 %v3123, %v2647
        %v3334 = vmul.f32 %v3125, %v2647
        %v3335 = vmul.f32 %v3127, %v2647
        %v3336 = vmul.f32 %v3129, %v2647
        %v3337 = vmul.f32 %v3131, %v2647
        %v3338 = vmul.f32 %v3133, %v2647
        %v3339 = vmul.f32 %v3135, %v2647
        %v3340 = vmul.f32 %v3137, %v2647
        %v3341 = vmul.f32 %v3139, %v2647
        %v3342 = vmul.f32 %v3141, %v2647
        %v3343 = vmul.f32 %v3143, %v2647
        %v3344 = vmul.f32 %v3145, %v2647
        %v3345 = vmul.f32 %v3147, %v2647
        %v3346 = vmul.f32 %v3149, %v2647
        %v3347 = vmul.f32 %v3151, %v2647
        %v3348 = vmul.f32 %v3153, %v2647
        %v3349 = vmul.f32 %v3155, %v2647
        %v3350 = vmul.f32 %v3157, %v2647
        %v3351 = vmul.f32 %v3159, %v2647
        %v3352 = vmul.f32 %v3161, %v2647
        %v3353 = vmul.f32 %v3163, %v2647
        %v3354 = vmul.f32 %v3165, %v2647
        %v3355 = vmul.f32 %v3167, %v2647
        %v3356 = vmul.f32 %v3169, %v2647
        %v3357 = vmul.f32 %v3171, %v2647
        %v3358 = vmul.f32 %v3173, %v2647
        %v3359 = vmul.f32 %v3175, %v2647
        %v3360 = vmul.f32 %v3177, %v2647
        %v3361 = vmul.f32 %v3179, %v2647
        %v3362 = vmul.f32 %v3181, %v2647
        %v3363 = vmul.f32 %v3183, %v2647
        %v3364 = vmul.f32 %v3185, %v2647
        %v3365 = vmul.f32 %v3187, %v2647
        %v3366 = vmul.f32 %v3189, %v2647
        %v3367 = vmul.f32 %v3191, %v2647
        %v3368 = vmul.f32 %v3193, %v2647
        %v3369 = vmul.f32 %v3195, %v2647
        %v3370 = vmul.f32 %v3197, %v2647
        %v3371 = vmul.f32 %v3199, %v2647
        %v3372 = vmul.f32 %v3201, %v2647
        %v3373 = vmul.f32 %v3203, %v2647
        %v3374 = vmul.f32 %v3205, %v2647
        %v3375 = vmul.f32 %v3207, %v2647
        %v3376 = vmul.f32 %v3209, %v2647
        %v3377 = vmul.f32 %v3211, %v2647
        %v3378 = vmul.f32 %v3213, %v2647
        %v3379 = vmul.f32 %v3215, %v2647
        %v3380 = vmul.f32 %v3217, %v2647
        %v3381 = vmul.f32 %v3219, %v2647
        %v3382 = vmul.f32 %v3221, %v2647
        %v3383 = vmul.f32 %v3223, %v2647
        %v3384 = vmul.f32 %v3225, %v2647
        %v3385 = vmul.f32 %v3227, %v2647
        %v3386 = vmul.f32 %v3229, %v2647
        %v3387 = vmul.f32 %v3231, %v2647
        %v3388 = vmul.f32 %v3233, %v2647
        %v3389 = vmul.f32 %v3235, %v2647
        %v3390 = vmul.f32 %v3237, %v2647
        %v3391 = vmul.f32 %v3239, %v2647
        %v3392 = vmul.f32 %v3241, %v2647
        %v3393 = vmul.f32 %v3243, %v2647
        %v3394 = vmul.f32 %v3245, %v2647
        %v3395 = vmul.f32 %v3247, %v2647
        %v3396 = vmul.f32 %v3249, %v2647
        %v3397 = vmul.f32 %v3251, %v2647
        %v3398 = vmul.f32 %v3253, %v2647
        %v3399 = vmul.f32 %v3255, %v2647
        %v3400 = vmul.f32 %v3257, %v2647
        %v3401 = vmul.f32 %v3259, %v2647
        %v3402 = vmul.f32 %v3261, %v2647
        %v3403 = vmul.f32 %v3263, %v2647
        %v3404 = vmul.f32 %v3265, %v2647
        %v3405 = vmul.f32 %v3267, %v2647
        %v3406 = vmul.f32 %v3269, %v2647
        %v3407 = vmul.f32 %v3271, %v2647
        %v3408 = vmul.f32 %v3273, %v2647
        %v3409 = vmul.f32 %v3275, %v2647
        %v3410 = vmul.f32 %v3277, %v2647
        %v3411 = vmul.f32 %v3279, %v2647
        %v3412 = vmul.f32 %v3281, %v2647
        %v3413 = vmul.f32 %v3283, %v2647
        %v3414 = vmul.f32 %v3285, %v2647
        %v3415 = vmul.f32 %v3287, %v2647
        %v3416 = vadd.f32 %v3288, 1e-05
        %v3417 = vadd.f32 %v3289, 1e-05
        %v3418 = vadd.f32 %v3290, 1e-05
        %v3419 = vadd.f32 %v3291, 1e-05
        %v3420 = vadd.f32 %v3292, 1e-05
        %v3421 = vadd.f32 %v3293, 1e-05
        %v3422 = vadd.f32 %v3294, 1e-05
        %v3423 = vadd.f32 %v3295, 1e-05
        %v3424 = vadd.f32 %v3296, 1e-05
        %v3425 = vadd.f32 %v3297, 1e-05
        %v3426 = vadd.f32 %v3298, 1e-05
        %v3427 = vadd.f32 %v3299, 1e-05
        %v3428 = vadd.f32 %v3300, 1e-05
        %v3429 = vadd.f32 %v3301, 1e-05
        %v3430 = vadd.f32 %v3302, 1e-05
        %v3431 = vadd.f32 %v3303, 1e-05
        %v3432 = vadd.f32 %v3304, 1e-05
        %v3433 = vadd.f32 %v3305, 1e-05
        %v3434 = vadd.f32 %v3306, 1e-05
        %v3435 = vadd.f32 %v3307, 1e-05
        %v3436 = vadd.f32 %v3308, 1e-05
        %v3437 = vadd.f32 %v3309, 1e-05
        %v3438 = vadd.f32 %v3310, 1e-05
        %v3439 = vadd.f32 %v3311, 1e-05
        %v3440 = vadd.f32 %v3312, 1e-05
        %v3441 = vadd.f32 %v3313, 1e-05
        %v3442 = vadd.f32 %v3314, 1e-05
        %v3443 = vadd.f32 %v3315, 1e-05
        %v3444 = vadd.f32 %v3316, 1e-05
        %v3445 = vadd.f32 %v3317, 1e-05
        %v3446 = vadd.f32 %v3318, 1e-05
        %v3447 = vadd.f32 %v3319, 1e-05
        %v3448 = vadd.f32 %v3320, 1e-05
        %v3449 = vadd.f32 %v3321, 1e-05
        %v3450 = vadd.f32 %v3322, 1e-05
        %v3451 = vadd.f32 %v3323, 1e-05
        %v3452 = vadd.f32 %v3324, 1e-05
        %v3453 = vadd.f32 %v3325, 1e-05
        %v3454 = vadd.f32 %v3326, 1e-05
        %v3455 = vadd.f32 %v3327, 1e-05
        %v3456 = vadd.f32 %v3328, 1e-05
        %v3457 = vadd.f32 %v3329, 1e-05
        %v3458 = vadd.f32 %v3330, 1e-05
        %v3459 = vadd.f32 %v3331, 1e-05
        %v3460 = vadd.f32 %v3332, 1e-05
        %v3461 = vadd.f32 %v3333, 1e-05
        %v3462 = vadd.f32 %v3334, 1e-05
        %v3463 = vadd.f32 %v3335, 1e-05
        %v3464 = vadd.f32 %v3336, 1e-05
        %v3465 = vadd.f32 %v3337, 1e-05
        %v3466 = vadd.f32 %v3338, 1e-05
        %v3467 = vadd.f32 %v3339, 1e-05
        %v3468 = vadd.f32 %v3340, 1e-05
        %v3469 = vadd.f32 %v3341, 1e-05
        %v3470 = vadd.f32 %v3342, 1e-05
        %v3471 = vadd.f32 %v3343, 1e-05
        %v3472 = vadd.f32 %v3344, 1e-05
        %v3473 = vadd.f32 %v3345, 1e-05
        %v3474 = vadd.f32 %v3346, 1e-05
        %v3475 = vadd.f32 %v3347, 1e-05
        %v3476 = vadd.f32 %v3348, 1e-05
        %v3477 = vadd.f32 %v3349, 1e-05
        %v3478 = vadd.f32 %v3350, 1e-05
        %v3479 = vadd.f32 %v3351, 1e-05
        %v3480 = vadd.f32 %v3352, 1e-05
        %v3481 = vadd.f32 %v3353, 1e-05
        %v3482 = vadd.f32 %v3354, 1e-05
        %v3483 = vadd.f32 %v3355, 1e-05
        %v3484 = vadd.f32 %v3356, 1e-05
        %v3485 = vadd.f32 %v3357, 1e-05
        %v3486 = vadd.f32 %v3358, 1e-05
        %v3487 = vadd.f32 %v3359, 1e-05
        %v3488 = vadd.f32 %v3360, 1e-05
        %v3489 = vadd.f32 %v3361, 1e-05
        %v3490 = vadd.f32 %v3362, 1e-05
        %v3491 = vadd.f32 %v3363, 1e-05
        %v3492 = vadd.f32 %v3364, 1e-05
        %v3493 = vadd.f32 %v3365, 1e-05
        %v3494 = vadd.f32 %v3366, 1e-05
        %v3495 = vadd.f32 %v3367, 1e-05
        %v3496 = vadd.f32 %v3368, 1e-05
        %v3497 = vadd.f32 %v3369, 1e-05
        %v3498 = vadd.f32 %v3370, 1e-05
        %v3499 = vadd.f32 %v3371, 1e-05
        %v3500 = vadd.f32 %v3372, 1e-05
        %v3501 = vadd.f32 %v3373, 1e-05
        %v3502 = vadd.f32 %v3374, 1e-05
        %v3503 = vadd.f32 %v3375, 1e-05
        %v3504 = vadd.f32 %v3376, 1e-05
        %v3505 = vadd.f32 %v3377, 1e-05
        %v3506 = vadd.f32 %v3378, 1e-05
        %v3507 = vadd.f32 %v3379, 1e-05
        %v3508 = vadd.f32 %v3380, 1e-05
        %v3509 = vadd.f32 %v3381, 1e-05
        %v3510 = vadd.f32 %v3382, 1e-05
        %v3511 = vadd.f32 %v3383, 1e-05
        %v3512 = vadd.f32 %v3384, 1e-05
        %v3513 = vadd.f32 %v3385, 1e-05
        %v3514 = vadd.f32 %v3386, 1e-05
        %v3515 = vadd.f32 %v3387, 1e-05
        %v3516 = vadd.f32 %v3388, 1e-05
        %v3517 = vadd.f32 %v3389, 1e-05
        %v3518 = vadd.f32 %v3390, 1e-05
        %v3519 = vadd.f32 %v3391, 1e-05
        %v3520 = vadd.f32 %v3392, 1e-05
        %v3521 = vadd.f32 %v3393, 1e-05
        %v3522 = vadd.f32 %v3394, 1e-05
        %v3523 = vadd.f32 %v3395, 1e-05
        %v3524 = vadd.f32 %v3396, 1e-05
        %v3525 = vadd.f32 %v3397, 1e-05
        %v3526 = vadd.f32 %v3398, 1e-05
        %v3527 = vadd.f32 %v3399, 1e-05
        %v3528 = vadd.f32 %v3400, 1e-05
        %v3529 = vadd.f32 %v3401, 1e-05
        %v3530 = vadd.f32 %v3402, 1e-05
        %v3531 = vadd.f32 %v3403, 1e-05
        %v3532 = vadd.f32 %v3404, 1e-05
        %v3533 = vadd.f32 %v3405, 1e-05
        %v3534 = vadd.f32 %v3406, 1e-05
        %v3535 = vadd.f32 %v3407, 1e-05
        %v3536 = vadd.f32 %v3408, 1e-05
        %v3537 = vadd.f32 %v3409, 1e-05
        %v3538 = vadd.f32 %v3410, 1e-05
        %v3539 = vadd.f32 %v3411, 1e-05
        %v3540 = vadd.f32 %v3412, 1e-05
        %v3541 = vadd.f32 %v3413, 1e-05
        %v3542 = vadd.f32 %v3414, 1e-05
        %v3543 = vadd.f32 %v3415, 1e-05
        %v3544 = vrsqrt.pop %v3416
        %v3545 = vmul.f32 %v3544, %v3416
        %v3546 = vmul.f32 %v3545, %v3544
        %v3547 = vmul.f32 0.5, %v3546
        %v3548 = vsub.f32 1.5, %v3547
        %v3549 = vmul.f32 %v3544, %v3548
        %vm3550 = vweird.f32 %v3416
        %vm3551 = vweird.f32 %v3544
        %vm3552 = vmor %vm3550, %vm3551
        %v3553 = vsel %vm3552, %v3544, %v3549
        %v3554 = vrsqrt.pop %v3417
        %v3555 = vmul.f32 %v3554, %v3417
        %v3556 = vmul.f32 %v3555, %v3554
        %v3557 = vmul.f32 0.5, %v3556
        %v3558 = vsub.f32 1.5, %v3557
        %v3559 = vmul.f32 %v3554, %v3558
        %vm3560 = vweird.f32 %v3417
        %vm3561 = vweird.f32 %v3554
        %vm3562 = vmor %vm3560, %vm3561
        %v3563 = vsel %vm3562, %v3554, %v3559
        %v3564 = vrsqrt.pop %v3418
        %v3565 = vmul.f32 %v3564, %v3418
        %v3566 = vmul.f32 %v3565, %v3564
        %v3567 = vmul.f32 0.5, %v3566
        %v3568 = vsub.f32 1.5, %v3567
        %v3569 = vmul.f32 %v3564, %v3568
        %vm3570 = vweird.f32 %v3418
        %vm3571 = vweird.f32 %v3564
        %vm3572 = vmor %vm3570, %vm3571
        %v3573 = vsel %vm3572, %v3564, %v3569
        %v3574 = vrsqrt.pop %v3419
        %v3575 = vmul.f32 %v3574, %v3419
        %v3576 = vmul.f32 %v3575, %v3574
        %v3577 = vmul.f32 0.5, %v3576
        %v3578 = vsub.f32 1.5, %v3577
        %v3579 = vmul.f32 %v3574, %v3578
        %vm3580 = vweird.f32 %v3419
        %vm3581 = vweird.f32 %v3574
        %vm3582 = vmor %vm3580, %vm3581
        %v3583 = vsel %vm3582, %v3574, %v3579
        %v3584 = vrsqrt.pop %v3420
        %v3585 = vmul.f32 %v3584, %v3420
        %v3586 = vmul.f32 %v3585, %v3584
        %v3587 = vmul.f32 0.5, %v3586
        %v3588 = vsub.f32 1.5, %v3587
        %v3589 = vmul.f32 %v3584, %v3588
        %vm3590 = vweird.f32 %v3420
        %vm3591 = vweird.f32 %v3584
        %vm3592 = vmor %vm3590, %vm3591
        %v3593 = vsel %vm3592, %v3584, %v3589
        %v3594 = vrsqrt.pop %v3421
        %v3595 = vmul.f32 %v3594, %v3421
        %v3596 = vmul.f32 %v3595, %v3594
        %v3597 = vmul.f32 0.5, %v3596
        %v3598 = vsub.f32 1.5, %v3597
        %v3599 = vmul.f32 %v3594, %v3598
        %vm3600 = vweird.f32 %v3421
        %vm3601 = vweird.f32 %v3594
        %vm3602 = vmor %vm3600, %vm3601
        %v3603 = vsel %vm3602, %v3594, %v3599
        %v3604 = vrsqrt.pop %v3422
        %v3605 = vmul.f32 %v3604, %v3422
        %v3606 = vmul.f32 %v3605, %v3604
        %v3607 = vmul.f32 0.5, %v3606
        %v3608 = vsub.f32 1.5, %v3607
        %v3609 = vmul.f32 %v3604, %v3608
        %vm3610 = vweird.f32 %v3422
        %vm3611 = vweird.f32 %v3604
        %vm3612 = vmor %vm3610, %vm3611
        %v3613 = vsel %vm3612, %v3604, %v3609
        %v3614 = vrsqrt.pop %v3423
        %v3615 = vmul.f32 %v3614, %v3423
        %v3616 = vmul.f32 %v3615, %v3614
        %v3617 = vmul.f32 0.5, %v3616
        %v3618 = vsub.f32 1.5, %v3617
        %v3619 = vmul.f32 %v3614, %v3618
        %vm3620 = vweird.f32 %v3423
        %vm3621 = vweird.f32 %v3614
        %vm3622 = vmor %vm3620, %vm3621
        %v3623 = vsel %vm3622, %v3614, %v3619
        %v3624 = vrsqrt.pop %v3424
        %v3625 = vmul.f32 %v3624, %v3424
        %v3626 = vmul.f32 %v3625, %v3624
        %v3627 = vmul.f32 0.5, %v3626
        %v3628 = vsub.f32 1.5, %v3627
        %v3629 = vmul.f32 %v3624, %v3628
        %vm3630 = vweird.f32 %v3424
        %vm3631 = vweird.f32 %v3624
        %vm3632 = vmor %vm3630, %vm3631
        %v3633 = vsel %vm3632, %v3624, %v3629
        %v3634 = vrsqrt.pop %v3425
        %v3635 = vmul.f32 %v3634, %v3425
        %v3636 = vmul.f32 %v3635, %v3634
        %v3637 = vmul.f32 0.5, %v3636
        %v3638 = vsub.f32 1.5, %v3637
        %v3639 = vmul.f32 %v3634, %v3638
        %vm3640 = vweird.f32 %v3425
        %vm3641 = vweird.f32 %v3634
        %vm3642 = vmor %vm3640, %vm3641
        %v3643 = vsel %vm3642, %v3634, %v3639
        %v3644 = vrsqrt.pop %v3426
        %v3645 = vmul.f32 %v3644, %v3426
        %v3646 = vmul.f32 %v3645, %v3644
        %v3647 = vmul.f32 0.5, %v3646
        %v3648 = vsub.f32 1.5, %v3647
        %v3649 = vmul.f32 %v3644, %v3648
        %vm3650 = vweird.f32 %v3426
        %vm3651 = vweird.f32 %v3644
        %vm3652 = vmor %vm3650, %vm3651
        %v3653 = vsel %vm3652, %v3644, %v3649
        %v3654 = vrsqrt.pop %v3427
        %v3655 = vmul.f32 %v3654, %v3427
        %v3656 = vmul.f32 %v3655, %v3654
        %v3657 = vmul.f32 0.5, %v3656
        %v3658 = vsub.f32 1.5, %v3657
        %v3659 = vmul.f32 %v3654, %v3658
        %vm3660 = vweird.f32 %v3427
        %vm3661 = vweird.f32 %v3654
        %vm3662 = vmor %vm3660, %vm3661
        %v3663 = vsel %vm3662, %v3654, %v3659
        %v3664 = vrsqrt.pop %v3428
        %v3665 = vmul.f32 %v3664, %v3428
        %v3666 = vmul.f32 %v3665, %v3664
        %v3667 = vmul.f32 0.5, %v3666
        %v3668 = vsub.f32 1.5, %v3667
        %v3669 = vmul.f32 %v3664, %v3668
        %vm3670 = vweird.f32 %v3428
        %vm3671 = vweird.f32 %v3664
        %vm3672 = vmor %vm3670, %vm3671
        %v3673 = vsel %vm3672, %v3664, %v3669
        %v3674 = vrsqrt.pop %v3429
        %v3675 = vmul.f32 %v3674, %v3429
        %v3676 = vmul.f32 %v3675, %v3674
        %v3677 = vmul.f32 0.5, %v3676
        %v3678 = vsub.f32 1.5, %v3677
        %v3679 = vmul.f32 %v3674, %v3678
        %vm3680 = vweird.f32 %v3429
        %vm3681 = vweird.f32 %v3674
        %vm3682 = vmor %vm3680, %vm3681
        %v3683 = vsel %vm3682, %v3674, %v3679
        %v3684 = vrsqrt.pop %v3430
        %v3685 = vmul.f32 %v3684, %v3430
        %v3686 = vmul.f32 %v3685, %v3684
        %v3687 = vmul.f32 0.5, %v3686
        %v3688 = vsub.f32 1.5, %v3687
        %v3689 = vmul.f32 %v3684, %v3688
        %vm3690 = vweird.f32 %v3430
        %vm3691 = vweird.f32 %v3684
        %vm3692 = vmor %vm3690, %vm3691
        %v3693 = vsel %vm3692, %v3684, %v3689
        %v3694 = vrsqrt.pop %v3431
        %v3695 = vmul.f32 %v3694, %v3431
        %v3696 = vmul.f32 %v3695, %v3694
        %v3697 = vmul.f32 0.5, %v3696
        %v3698 = vsub.f32 1.5, %v3697
        %v3699 = vmul.f32 %v3694, %v3698
        %vm3700 = vweird.f32 %v3431
        %vm3701 = vweird.f32 %v3694
        %vm3702 = vmor %vm3700, %vm3701
        %v3703 = vsel %vm3702, %v3694, %v3699
        %v3704 = vrsqrt.pop %v3432
        %v3705 = vmul.f32 %v3704, %v3432
        %v3706 = vmul.f32 %v3705, %v3704
        %v3707 = vmul.f32 0.5, %v3706
        %v3708 = vsub.f32 1.5, %v3707
        %v3709 = vmul.f32 %v3704, %v3708
        %vm3710 = vweird.f32 %v3432
        %vm3711 = vweird.f32 %v3704
        %vm3712 = vmor %vm3710, %vm3711
        %v3713 = vsel %vm3712, %v3704, %v3709
        %v3714 = vrsqrt.pop %v3433
        %v3715 = vmul.f32 %v3714, %v3433
        %v3716 = vmul.f32 %v3715, %v3714
        %v3717 = vmul.f32 0.5, %v3716
        %v3718 = vsub.f32 1.5, %v3717
        %v3719 = vmul.f32 %v3714, %v3718
        %vm3720 = vweird.f32 %v3433
        %vm3721 = vweird.f32 %v3714
        %vm3722 = vmor %vm3720, %vm3721
        %v3723 = vsel %vm3722, %v3714, %v3719
        %v3724 = vrsqrt.pop %v3434
        %v3725 = vmul.f32 %v3724, %v3434
        %v3726 = vmul.f32 %v3725, %v3724
        %v3727 = vmul.f32 0.5, %v3726
        %v3728 = vsub.f32 1.5, %v3727
        %v3729 = vmul.f32 %v3724, %v3728
        %vm3730 = vweird.f32 %v3434
        %vm3731 = vweird.f32 %v3724
        %vm3732 = vmor %vm3730, %vm3731
        %v3733 = vsel %vm3732, %v3724, %v3729
        %v3734 = vrsqrt.pop %v3435
        %v3735 = vmul.f32 %v3734, %v3435
        %v3736 = vmul.f32 %v3735, %v3734
        %v3737 = vmul.f32 0.5, %v3736
        %v3738 = vsub.f32 1.5, %v3737
        %v3739 = vmul.f32 %v3734, %v3738
        %vm3740 = vweird.f32 %v3435
        %vm3741 = vweird.f32 %v3734
        %vm3742 = vmor %vm3740, %vm3741
        %v3743 = vsel %vm3742, %v3734, %v3739
        %v3744 = vrsqrt.pop %v3436
        %v3745 = vmul.f32 %v3744, %v3436
        %v3746 = vmul.f32 %v3745, %v3744
        %v3747 = vmul.f32 0.5, %v3746
        %v3748 = vsub.f32 1.5, %v3747
        %v3749 = vmul.f32 %v3744, %v3748
        %vm3750 = vweird.f32 %v3436
        %vm3751 = vweird.f32 %v3744
        %vm3752 = vmor %vm3750, %vm3751
        %v3753 = vsel %vm3752, %v3744, %v3749
        %v3754 = vrsqrt.pop %v3437
        %v3755 = vmul.f32 %v3754, %v3437
        %v3756 = vmul.f32 %v3755, %v3754
        %v3757 = vmul.f32 0.5, %v3756
        %v3758 = vsub.f32 1.5, %v3757
        %v3759 = vmul.f32 %v3754, %v3758
        %vm3760 = vweird.f32 %v3437
        %vm3761 = vweird.f32 %v3754
        %vm3762 = vmor %vm3760, %vm3761
        %v3763 = vsel %vm3762, %v3754, %v3759
        %v3764 = vrsqrt.pop %v3438
        %v3765 = vmul.f32 %v3764, %v3438
        %v3766 = vmul.f32 %v3765, %v3764
        %v3767 = vmul.f32 0.5, %v3766
        %v3768 = vsub.f32 1.5, %v3767
        %v3769 = vmul.f32 %v3764, %v3768
        %vm3770 = vweird.f32 %v3438
        %vm3771 = vweird.f32 %v3764
        %vm3772 = vmor %vm3770, %vm3771
        %v3773 = vsel %vm3772, %v3764, %v3769
        %v3774 = vrsqrt.pop %v3439
        %v3775 = vmul.f32 %v3774, %v3439
        %v3776 = vmul.f32 %v3775, %v3774
        %v3777 = vmul.f32 0.5, %v3776
        %v3778 = vsub.f32 1.5, %v3777
        %v3779 = vmul.f32 %v3774, %v3778
        %vm3780 = vweird.f32 %v3439
        %vm3781 = vweird.f32 %v3774
        %vm3782 = vmor %vm3780, %vm3781
        %v3783 = vsel %vm3782, %v3774, %v3779
        %v3784 = vrsqrt.pop %v3440
        %v3785 = vmul.f32 %v3784, %v3440
        %v3786 = vmul.f32 %v3785, %v3784
        %v3787 = vmul.f32 0.5, %v3786
        %v3788 = vsub.f32 1.5, %v3787
        %v3789 = vmul.f32 %v3784, %v3788
        %vm3790 = vweird.f32 %v3440
        %vm3791 = vweird.f32 %v3784
        %vm3792 = vmor %vm3790, %vm3791
        %v3793 = vsel %vm3792, %v3784, %v3789
        %v3794 = vrsqrt.pop %v3441
        %v3795 = vmul.f32 %v3794, %v3441
        %v3796 = vmul.f32 %v3795, %v3794
        %v3797 = vmul.f32 0.5, %v3796
        %v3798 = vsub.f32 1.5, %v3797
        %v3799 = vmul.f32 %v3794, %v3798
        %vm3800 = vweird.f32 %v3441
        %vm3801 = vweird.f32 %v3794
        %vm3802 = vmor %vm3800, %vm3801
        %v3803 = vsel %vm3802, %v3794, %v3799
        %v3804 = vrsqrt.pop %v3442
        %v3805 = vmul.f32 %v3804, %v3442
        %v3806 = vmul.f32 %v3805, %v3804
        %v3807 = vmul.f32 0.5, %v3806
        %v3808 = vsub.f32 1.5, %v3807
        %v3809 = vmul.f32 %v3804, %v3808
        %vm3810 = vweird.f32 %v3442
        %vm3811 = vweird.f32 %v3804
        %vm3812 = vmor %vm3810, %vm3811
        %v3813 = vsel %vm3812, %v3804, %v3809
        %v3814 = vrsqrt.pop %v3443
        %v3815 = vmul.f32 %v3814, %v3443
        %v3816 = vmul.f32 %v3815, %v3814
        %v3817 = vmul.f32 0.5, %v3816
        %v3818 = vsub.f32 1.5, %v3817
        %v3819 = vmul.f32 %v3814, %v3818
        %vm3820 = vweird.f32 %v3443
        %vm3821 = vweird.f32 %v3814
        %vm3822 = vmor %vm3820, %vm3821
        %v3823 = vsel %vm3822, %v3814, %v3819
        %v3824 = vrsqrt.pop %v3444
        %v3825 = vmul.f32 %v3824, %v3444
        %v3826 = vmul.f32 %v3825, %v3824
        %v3827 = vmul.f32 0.5, %v3826
        %v3828 = vsub.f32 1.5, %v3827
        %v3829 = vmul.f32 %v3824, %v3828
        %vm3830 = vweird.f32 %v3444
        %vm3831 = vweird.f32 %v3824
        %vm3832 = vmor %vm3830, %vm3831
        %v3833 = vsel %vm3832, %v3824, %v3829
        %v3834 = vrsqrt.pop %v3445
        %v3835 = vmul.f32 %v3834, %v3445
        %v3836 = vmul.f32 %v3835, %v3834
        %v3837 = vmul.f32 0.5, %v3836
        %v3838 = vsub.f32 1.5, %v3837
        %v3839 = vmul.f32 %v3834, %v3838
        %vm3840 = vweird.f32 %v3445
        %vm3841 = vweird.f32 %v3834
        %vm3842 = vmor %vm3840, %vm3841
        %v3843 = vsel %vm3842, %v3834, %v3839
        %v3844 = vrsqrt.pop %v3446
        %v3845 = vmul.f32 %v3844, %v3446
        %v3846 = vmul.f32 %v3845, %v3844
        %v3847 = vmul.f32 0.5, %v3846
        %v3848 = vsub.f32 1.5, %v3847
        %v3849 = vmul.f32 %v3844, %v3848
        %vm3850 = vweird.f32 %v3446
        %vm3851 = vweird.f32 %v3844
        %vm3852 = vmor %vm3850, %vm3851
        %v3853 = vsel %vm3852, %v3844, %v3849
        %v3854 = vrsqrt.pop %v3447
        %v3855 = vmul.f32 %v3854, %v3447
        %v3856 = vmul.f32 %v3855, %v3854
        %v3857 = vmul.f32 0.5, %v3856
        %v3858 = vsub.f32 1.5, %v3857
        %v3859 = vmul.f32 %v3854, %v3858
        %vm3860 = vweird.f32 %v3447
        %vm3861 = vweird.f32 %v3854
        %vm3862 = vmor %vm3860, %vm3861
        %v3863 = vsel %vm3862, %v3854, %v3859
        %v3864 = vrsqrt.pop %v3448
        %v3865 = vmul.f32 %v3864, %v3448
        %v3866 = vmul.f32 %v3865, %v3864
        %v3867 = vmul.f32 0.5, %v3866
        %v3868 = vsub.f32 1.5, %v3867
        %v3869 = vmul.f32 %v3864, %v3868
        %vm3870 = vweird.f32 %v3448
        %vm3871 = vweird.f32 %v3864
        %vm3872 = vmor %vm3870, %vm3871
        %v3873 = vsel %vm3872, %v3864, %v3869
        %v3874 = vrsqrt.pop %v3449
        %v3875 = vmul.f32 %v3874, %v3449
        %v3876 = vmul.f32 %v3875, %v3874
        %v3877 = vmul.f32 0.5, %v3876
        %v3878 = vsub.f32 1.5, %v3877
        %v3879 = vmul.f32 %v3874, %v3878
        %vm3880 = vweird.f32 %v3449
        %vm3881 = vweird.f32 %v3874
        %vm3882 = vmor %vm3880, %vm3881
        %v3883 = vsel %vm3882, %v3874, %v3879
        %v3884 = vrsqrt.pop %v3450
        %v3885 = vmul.f32 %v3884, %v3450
        %v3886 = vmul.f32 %v3885, %v3884
        %v3887 = vmul.f32 0.5, %v3886
        %v3888 = vsub.f32 1.5, %v3887
        %v3889 = vmul.f32 %v3884, %v3888
        %vm3890 = vweird.f32 %v3450
        %vm3891 = vweird.f32 %v3884
        %vm3892 = vmor %vm3890, %vm3891
        %v3893 = vsel %vm3892, %v3884, %v3889
        %v3894 = vrsqrt.pop %v3451
        %v3895 = vmul.f32 %v3894, %v3451
        %v3896 = vmul.f32 %v3895, %v3894
        %v3897 = vmul.f32 0.5, %v3896
        %v3898 = vsub.f32 1.5, %v3897
        %v3899 = vmul.f32 %v3894, %v3898
        %vm3900 = vweird.f32 %v3451
        %vm3901 = vweird.f32 %v3894
        %vm3902 = vmor %vm3900, %vm3901
        %v3903 = vsel %vm3902, %v3894, %v3899
        %v3904 = vrsqrt.pop %v3452
        %v3905 = vmul.f32 %v3904, %v3452
        %v3906 = vmul.f32 %v3905, %v3904
        %v3907 = vmul.f32 0.5, %v3906
        %v3908 = vsub.f32 1.5, %v3907
        %v3909 = vmul.f32 %v3904, %v3908
        %vm3910 = vweird.f32 %v3452
        %vm3911 = vweird.f32 %v3904
        %vm3912 = vmor %vm3910, %vm3911
        %v3913 = vsel %vm3912, %v3904, %v3909
        %v3914 = vrsqrt.pop %v3453
        %v3915 = vmul.f32 %v3914, %v3453
        %v3916 = vmul.f32 %v3915, %v3914
        %v3917 = vmul.f32 0.5, %v3916
        %v3918 = vsub.f32 1.5, %v3917
        %v3919 = vmul.f32 %v3914, %v3918
        %vm3920 = vweird.f32 %v3453
        %vm3921 = vweird.f32 %v3914
        %vm3922 = vmor %vm3920, %vm3921
        %v3923 = vsel %vm3922, %v3914, %v3919
        %v3924 = vrsqrt.pop %v3454
        %v3925 = vmul.f32 %v3924, %v3454
        %v3926 = vmul.f32 %v3925, %v3924
        %v3927 = vmul.f32 0.5, %v3926
        %v3928 = vsub.f32 1.5, %v3927
        %v3929 = vmul.f32 %v3924, %v3928
        %vm3930 = vweird.f32 %v3454
        %vm3931 = vweird.f32 %v3924
        %vm3932 = vmor %vm3930, %vm3931
        %v3933 = vsel %vm3932, %v3924, %v3929
        %v3934 = vrsqrt.pop %v3455
        %v3935 = vmul.f32 %v3934, %v3455
        %v3936 = vmul.f32 %v3935, %v3934
        %v3937 = vmul.f32 0.5, %v3936
        %v3938 = vsub.f32 1.5, %v3937
        %v3939 = vmul.f32 %v3934, %v3938
        %vm3940 = vweird.f32 %v3455
        %vm3941 = vweird.f32 %v3934
        %vm3942 = vmor %vm3940, %vm3941
        %v3943 = vsel %vm3942, %v3934, %v3939
        %v3944 = vrsqrt.pop %v3456
        %v3945 = vmul.f32 %v3944, %v3456
        %v3946 = vmul.f32 %v3945, %v3944
        %v3947 = vmul.f32 0.5, %v3946
        %v3948 = vsub.f32 1.5, %v3947
        %v3949 = vmul.f32 %v3944, %v3948
        %vm3950 = vweird.f32 %v3456
        %vm3951 = vweird.f32 %v3944
        %vm3952 = vmor %vm3950, %vm3951
        %v3953 = vsel %vm3952, %v3944, %v3949
        %v3954 = vrsqrt.pop %v3457
        %v3955 = vmul.f32 %v3954, %v3457
        %v3956 = vmul.f32 %v3955, %v3954
        %v3957 = vmul.f32 0.5, %v3956
        %v3958 = vsub.f32 1.5, %v3957
        %v3959 = vmul.f32 %v3954, %v3958
        %vm3960 = vweird.f32 %v3457
        %vm3961 = vweird.f32 %v3954
        %vm3962 = vmor %vm3960, %vm3961
        %v3963 = vsel %vm3962, %v3954, %v3959
        %v3964 = vrsqrt.pop %v3458
        %v3965 = vmul.f32 %v3964, %v3458
        %v3966 = vmul.f32 %v3965, %v3964
        %v3967 = vmul.f32 0.5, %v3966
        %v3968 = vsub.f32 1.5, %v3967
        %v3969 = vmul.f32 %v3964, %v3968
        %vm3970 = vweird.f32 %v3458
        %vm3971 = vweird.f32 %v3964
        %vm3972 = vmor %vm3970, %vm3971
        %v3973 = vsel %vm3972, %v3964, %v3969
        %v3974 = vrsqrt.pop %v3459
        %v3975 = vmul.f32 %v3974, %v3459
        %v3976 = vmul.f32 %v3975, %v3974
        %v3977 = vmul.f32 0.5, %v3976
        %v3978 = vsub.f32 1.5, %v3977
        %v3979 = vmul.f32 %v3974, %v3978
        %vm3980 = vweird.f32 %v3459
        %vm3981 = vweird.f32 %v3974
        %vm3982 = vmor %vm3980, %vm3981
        %v3983 = vsel %vm3982, %v3974, %v3979
        %v3984 = vrsqrt.pop %v3460
        %v3985 = vmul.f32 %v3984, %v3460
        %v3986 = vmul.f32 %v3985, %v3984
        %v3987 = vmul.f32 0.5, %v3986
        %v3988 = vsub.f32 1.5, %v3987
        %v3989 = vmul.f32 %v3984, %v3988
        %vm3990 = vweird.f32 %v3460
        %vm3991 = vweird.f32 %v3984
        %vm3992 = vmor %vm3990, %vm3991
        %v3993 = vsel %vm3992, %v3984, %v3989
        %v3994 = vrsqrt.pop %v3461
        %v3995 = vmul.f32 %v3994, %v3461
        %v3996 = vmul.f32 %v3995, %v3994
        %v3997 = vmul.f32 0.5, %v3996
        %v3998 = vsub.f32 1.5, %v3997
        %v3999 = vmul.f32 %v3994, %v3998
        %vm4000 = vweird.f32 %v3461
        %vm4001 = vweird.f32 %v3994
        %vm4002 = vmor %vm4000, %vm4001
        %v4003 = vsel %vm4002, %v3994, %v3999
        %v4004 = vrsqrt.pop %v3462
        %v4005 = vmul.f32 %v4004, %v3462
        %v4006 = vmul.f32 %v4005, %v4004
        %v4007 = vmul.f32 0.5, %v4006
        %v4008 = vsub.f32 1.5, %v4007
        %v4009 = vmul.f32 %v4004, %v4008
        %vm4010 = vweird.f32 %v3462
        %vm4011 = vweird.f32 %v4004
        %vm4012 = vmor %vm4010, %vm4011
        %v4013 = vsel %vm4012, %v4004, %v4009
        %v4014 = vrsqrt.pop %v3463
        %v4015 = vmul.f32 %v4014, %v3463
        %v4016 = vmul.f32 %v4015, %v4014
        %v4017 = vmul.f32 0.5, %v4016
        %v4018 = vsub.f32 1.5, %v4017
        %v4019 = vmul.f32 %v4014, %v4018
        %vm4020 = vweird.f32 %v3463
        %vm4021 = vweird.f32 %v4014
        %vm4022 = vmor %vm4020, %vm4021
        %v4023 = vsel %vm4022, %v4014, %v4019
        %v4024 = vrsqrt.pop %v3464
        %v4025 = vmul.f32 %v4024, %v3464
        %v4026 = vmul.f32 %v4025, %v4024
        %v4027 = vmul.f32 0.5, %v4026
        %v4028 = vsub.f32 1.5, %v4027
        %v4029 = vmul.f32 %v4024, %v4028
        %vm4030 = vweird.f32 %v3464
        %vm4031 = vweird.f32 %v4024
        %vm4032 = vmor %vm4030, %vm4031
        %v4033 = vsel %vm4032, %v4024, %v4029
        %v4034 = vrsqrt.pop %v3465
        %v4035 = vmul.f32 %v4034, %v3465
        %v4036 = vmul.f32 %v4035, %v4034
        %v4037 = vmul.f32 0.5, %v4036
        %v4038 = vsub.f32 1.5, %v4037
        %v4039 = vmul.f32 %v4034, %v4038
        %vm4040 = vweird.f32 %v3465
        %vm4041 = vweird.f32 %v4034
        %vm4042 = vmor %vm4040, %vm4041
        %v4043 = vsel %vm4042, %v4034, %v4039
        %v4044 = vrsqrt.pop %v3466
        %v4045 = vmul.f32 %v4044, %v3466
        %v4046 = vmul.f32 %v4045, %v4044
        %v4047 = vmul.f32 0.5, %v4046
        %v4048 = vsub.f32 1.5, %v4047
        %v4049 = vmul.f32 %v4044, %v4048
        %vm4050 = vweird.f32 %v3466
        %vm4051 = vweird.f32 %v4044
        %vm4052 = vmor %vm4050, %vm4051
        %v4053 = vsel %vm4052, %v4044, %v4049
        %v4054 = vrsqrt.pop %v3467
        %v4055 = vmul.f32 %v4054, %v3467
        %v4056 = vmul.f32 %v4055, %v4054
        %v4057 = vmul.f32 0.5, %v4056
        %v4058 = vsub.f32 1.5, %v4057
        %v4059 = vmul.f32 %v4054, %v4058
        %vm4060 = vweird.f32 %v3467
        %vm4061 = vweird.f32 %v4054
        %vm4062 = vmor %vm4060, %vm4061
        %v4063 = vsel %vm4062, %v4054, %v4059
        %v4064 = vrsqrt.pop %v3468
        %v4065 = vmul.f32 %v4064, %v3468
        %v4066 = vmul.f32 %v4065, %v4064
        %v4067 = vmul.f32 0.5, %v4066
        %v4068 = vsub.f32 1.5, %v4067
        %v4069 = vmul.f32 %v4064, %v4068
        %vm4070 = vweird.f32 %v3468
        %vm4071 = vweird.f32 %v4064
        %vm4072 = vmor %vm4070, %vm4071
        %v4073 = vsel %vm4072, %v4064, %v4069
        %v4074 = vrsqrt.pop %v3469
        %v4075 = vmul.f32 %v4074, %v3469
        %v4076 = vmul.f32 %v4075, %v4074
        %v4077 = vmul.f32 0.5, %v4076
        %v4078 = vsub.f32 1.5, %v4077
        %v4079 = vmul.f32 %v4074, %v4078
        %vm4080 = vweird.f32 %v3469
        %vm4081 = vweird.f32 %v4074
        %vm4082 = vmor %vm4080, %vm4081
        %v4083 = vsel %vm4082, %v4074, %v4079
        %v4084 = vrsqrt.pop %v3470
        %v4085 = vmul.f32 %v4084, %v3470
        %v4086 = vmul.f32 %v4085, %v4084
        %v4087 = vmul.f32 0.5, %v4086
        %v4088 = vsub.f32 1.5, %v4087
        %v4089 = vmul.f32 %v4084, %v4088
        %vm4090 = vweird.f32 %v3470
        %vm4091 = vweird.f32 %v4084
        %vm4092 = vmor %vm4090, %vm4091
        %v4093 = vsel %vm4092, %v4084, %v4089
        %v4094 = vrsqrt.pop %v3471
        %v4095 = vmul.f32 %v4094, %v3471
        %v4096 = vmul.f32 %v4095, %v4094
        %v4097 = vmul.f32 0.5, %v4096
        %v4098 = vsub.f32 1.5, %v4097
        %v4099 = vmul.f32 %v4094, %v4098
        %vm4100 = vweird.f32 %v3471
        %vm4101 = vweird.f32 %v4094
        %vm4102 = vmor %vm4100, %vm4101
        %v4103 = vsel %vm4102, %v4094, %v4099
        %v4104 = vrsqrt.pop %v3472
        %v4105 = vmul.f32 %v4104, %v3472
        %v4106 = vmul.f32 %v4105, %v4104
        %v4107 = vmul.f32 0.5, %v4106
        %v4108 = vsub.f32 1.5, %v4107
        %v4109 = vmul.f32 %v4104, %v4108
        %vm4110 = vweird.f32 %v3472
        %vm4111 = vweird.f32 %v4104
        %vm4112 = vmor %vm4110, %vm4111
        %v4113 = vsel %vm4112, %v4104, %v4109
        %v4114 = vrsqrt.pop %v3473
        %v4115 = vmul.f32 %v4114, %v3473
        %v4116 = vmul.f32 %v4115, %v4114
        %v4117 = vmul.f32 0.5, %v4116
        %v4118 = vsub.f32 1.5, %v4117
        %v4119 = vmul.f32 %v4114, %v4118
        %vm4120 = vweird.f32 %v3473
        %vm4121 = vweird.f32 %v4114
        %vm4122 = vmor %vm4120, %vm4121
        %v4123 = vsel %vm4122, %v4114, %v4119
        %v4124 = vrsqrt.pop %v3474
        %v4125 = vmul.f32 %v4124, %v3474
        %v4126 = vmul.f32 %v4125, %v4124
        %v4127 = vmul.f32 0.5, %v4126
        %v4128 = vsub.f32 1.5, %v4127
        %v4129 = vmul.f32 %v4124, %v4128
        %vm4130 = vweird.f32 %v3474
        %vm4131 = vweird.f32 %v4124
        %vm4132 = vmor %vm4130, %vm4131
        %v4133 = vsel %vm4132, %v4124, %v4129
        %v4134 = vrsqrt.pop %v3475
        %v4135 = vmul.f32 %v4134, %v3475
        %v4136 = vmul.f32 %v4135, %v4134
        %v4137 = vmul.f32 0.5, %v4136
        %v4138 = vsub.f32 1.5, %v4137
        %v4139 = vmul.f32 %v4134, %v4138
        %vm4140 = vweird.f32 %v3475
        %vm4141 = vweird.f32 %v4134
        %vm4142 = vmor %vm4140, %vm4141
        %v4143 = vsel %vm4142, %v4134, %v4139
        %v4144 = vrsqrt.pop %v3476
        %v4145 = vmul.f32 %v4144, %v3476
        %v4146 = vmul.f32 %v4145, %v4144
        %v4147 = vmul.f32 0.5, %v4146
        %v4148 = vsub.f32 1.5, %v4147
        %v4149 = vmul.f32 %v4144, %v4148
        %vm4150 = vweird.f32 %v3476
        %vm4151 = vweird.f32 %v4144
        %vm4152 = vmor %vm4150, %vm4151
        %v4153 = vsel %vm4152, %v4144, %v4149
        %v4154 = vrsqrt.pop %v3477
        %v4155 = vmul.f32 %v4154, %v3477
        %v4156 = vmul.f32 %v4155, %v4154
        %v4157 = vmul.f32 0.5, %v4156
        %v4158 = vsub.f32 1.5, %v4157
        %v4159 = vmul.f32 %v4154, %v4158
        %vm4160 = vweird.f32 %v3477
        %vm4161 = vweird.f32 %v4154
        %vm4162 = vmor %vm4160, %vm4161
        %v4163 = vsel %vm4162, %v4154, %v4159
        %v4164 = vrsqrt.pop %v3478
        %v4165 = vmul.f32 %v4164, %v3478
        %v4166 = vmul.f32 %v4165, %v4164
        %v4167 = vmul.f32 0.5, %v4166
        %v4168 = vsub.f32 1.5, %v4167
        %v4169 = vmul.f32 %v4164, %v4168
        %vm4170 = vweird.f32 %v3478
        %vm4171 = vweird.f32 %v4164
        %vm4172 = vmor %vm4170, %vm4171
        %v4173 = vsel %vm4172, %v4164, %v4169
        %v4174 = vrsqrt.pop %v3479
        %v4175 = vmul.f32 %v4174, %v3479
        %v4176 = vmul.f32 %v4175, %v4174
        %v4177 = vmul.f32 0.5, %v4176
        %v4178 = vsub.f32 1.5, %v4177
        %v4179 = vmul.f32 %v4174, %v4178
        %vm4180 = vweird.f32 %v3479
        %vm4181 = vweird.f32 %v4174
        %vm4182 = vmor %vm4180, %vm4181
        %v4183 = vsel %vm4182, %v4174, %v4179
        %v4184 = vrsqrt.pop %v3480
        %v4185 = vmul.f32 %v4184, %v3480
        %v4186 = vmul.f32 %v4185, %v4184
        %v4187 = vmul.f32 0.5, %v4186
        %v4188 = vsub.f32 1.5, %v4187
        %v4189 = vmul.f32 %v4184, %v4188
        %vm4190 = vweird.f32 %v3480
        %vm4191 = vweird.f32 %v4184
        %vm4192 = vmor %vm4190, %vm4191
        %v4193 = vsel %vm4192, %v4184, %v4189
        %v4194 = vrsqrt.pop %v3481
        %v4195 = vmul.f32 %v4194, %v3481
        %v4196 = vmul.f32 %v4195, %v4194
        %v4197 = vmul.f32 0.5, %v4196
        %v4198 = vsub.f32 1.5, %v4197
        %v4199 = vmul.f32 %v4194, %v4198
        %vm4200 = vweird.f32 %v3481
        %vm4201 = vweird.f32 %v4194
        %vm4202 = vmor %vm4200, %vm4201
        %v4203 = vsel %vm4202, %v4194, %v4199
        %v4204 = vrsqrt.pop %v3482
        %v4205 = vmul.f32 %v4204, %v3482
        %v4206 = vmul.f32 %v4205, %v4204
        %v4207 = vmul.f32 0.5, %v4206
        %v4208 = vsub.f32 1.5, %v4207
        %v4209 = vmul.f32 %v4204, %v4208
        %vm4210 = vweird.f32 %v3482
        %vm4211 = vweird.f32 %v4204
        %vm4212 = vmor %vm4210, %vm4211
        %v4213 = vsel %vm4212, %v4204, %v4209
        %v4214 = vrsqrt.pop %v3483
        %v4215 = vmul.f32 %v4214, %v3483
        %v4216 = vmul.f32 %v4215, %v4214
        %v4217 = vmul.f32 0.5, %v4216
        %v4218 = vsub.f32 1.5, %v4217
        %v4219 = vmul.f32 %v4214, %v4218
        %vm4220 = vweird.f32 %v3483
        %vm4221 = vweird.f32 %v4214
        %vm4222 = vmor %vm4220, %vm4221
        %v4223 = vsel %vm4222, %v4214, %v4219
        %v4224 = vrsqrt.pop %v3484
        %v4225 = vmul.f32 %v4224, %v3484
        %v4226 = vmul.f32 %v4225, %v4224
        %v4227 = vmul.f32 0.5, %v4226
        %v4228 = vsub.f32 1.5, %v4227
        %v4229 = vmul.f32 %v4224, %v4228
        %vm4230 = vweird.f32 %v3484
        %vm4231 = vweird.f32 %v4224
        %vm4232 = vmor %vm4230, %vm4231
        %v4233 = vsel %vm4232, %v4224, %v4229
        %v4234 = vrsqrt.pop %v3485
        %v4235 = vmul.f32 %v4234, %v3485
        %v4236 = vmul.f32 %v4235, %v4234
        %v4237 = vmul.f32 0.5, %v4236
        %v4238 = vsub.f32 1.5, %v4237
        %v4239 = vmul.f32 %v4234, %v4238
        %vm4240 = vweird.f32 %v3485
        %vm4241 = vweird.f32 %v4234
        %vm4242 = vmor %vm4240, %vm4241
        %v4243 = vsel %vm4242, %v4234, %v4239
        %v4244 = vrsqrt.pop %v3486
        %v4245 = vmul.f32 %v4244, %v3486
        %v4246 = vmul.f32 %v4245, %v4244
        %v4247 = vmul.f32 0.5, %v4246
        %v4248 = vsub.f32 1.5, %v4247
        %v4249 = vmul.f32 %v4244, %v4248
        %vm4250 = vweird.f32 %v3486
        %vm4251 = vweird.f32 %v4244
        %vm4252 = vmor %vm4250, %vm4251
        %v4253 = vsel %vm4252, %v4244, %v4249
        %v4254 = vrsqrt.pop %v3487
        %v4255 = vmul.f32 %v4254, %v3487
        %v4256 = vmul.f32 %v4255, %v4254
        %v4257 = vmul.f32 0.5, %v4256
        %v4258 = vsub.f32 1.5, %v4257
        %v4259 = vmul.f32 %v4254, %v4258
        %vm4260 = vweird.f32 %v3487
        %vm4261 = vweird.f32 %v4254
        %vm4262 = vmor %vm4260, %vm4261
        %v4263 = vsel %vm4262, %v4254, %v4259
        %v4264 = vrsqrt.pop %v3488
        %v4265 = vmul.f32 %v4264, %v3488
        %v4266 = vmul.f32 %v4265, %v4264
        %v4267 = vmul.f32 0.5, %v4266
        %v4268 = vsub.f32 1.5, %v4267
        %v4269 = vmul.f32 %v4264, %v4268
        %vm4270 = vweird.f32 %v3488
        %vm4271 = vweird.f32 %v4264
        %vm4272 = vmor %vm4270, %vm4271
        %v4273 = vsel %vm4272, %v4264, %v4269
        %v4274 = vrsqrt.pop %v3489
        %v4275 = vmul.f32 %v4274, %v3489
        %v4276 = vmul.f32 %v4275, %v4274
        %v4277 = vmul.f32 0.5, %v4276
        %v4278 = vsub.f32 1.5, %v4277
        %v4279 = vmul.f32 %v4274, %v4278
        %vm4280 = vweird.f32 %v3489
        %vm4281 = vweird.f32 %v4274
        %vm4282 = vmor %vm4280, %vm4281
        %v4283 = vsel %vm4282, %v4274, %v4279
        %v4284 = vrsqrt.pop %v3490
        %v4285 = vmul.f32 %v4284, %v3490
        %v4286 = vmul.f32 %v4285, %v4284
        %v4287 = vmul.f32 0.5, %v4286
        %v4288 = vsub.f32 1.5, %v4287
        %v4289 = vmul.f32 %v4284, %v4288
        %vm4290 = vweird.f32 %v3490
        %vm4291 = vweird.f32 %v4284
        %vm4292 = vmor %vm4290, %vm4291
        %v4293 = vsel %vm4292, %v4284, %v4289
        %v4294 = vrsqrt.pop %v3491
        %v4295 = vmul.f32 %v4294, %v3491
        %v4296 = vmul.f32 %v4295, %v4294
        %v4297 = vmul.f32 0.5, %v4296
        %v4298 = vsub.f32 1.5, %v4297
        %v4299 = vmul.f32 %v4294, %v4298
        %vm4300 = vweird.f32 %v3491
        %vm4301 = vweird.f32 %v4294
        %vm4302 = vmor %vm4300, %vm4301
        %v4303 = vsel %vm4302, %v4294, %v4299
        %v4304 = vrsqrt.pop %v3492
        %v4305 = vmul.f32 %v4304, %v3492
        %v4306 = vmul.f32 %v4305, %v4304
        %v4307 = vmul.f32 0.5, %v4306
        %v4308 = vsub.f32 1.5, %v4307
        %v4309 = vmul.f32 %v4304, %v4308
        %vm4310 = vweird.f32 %v3492
        %vm4311 = vweird.f32 %v4304
        %vm4312 = vmor %vm4310, %vm4311
        %v4313 = vsel %vm4312, %v4304, %v4309
        %v4314 = vrsqrt.pop %v3493
        %v4315 = vmul.f32 %v4314, %v3493
        %v4316 = vmul.f32 %v4315, %v4314
        %v4317 = vmul.f32 0.5, %v4316
        %v4318 = vsub.f32 1.5, %v4317
        %v4319 = vmul.f32 %v4314, %v4318
        %vm4320 = vweird.f32 %v3493
        %vm4321 = vweird.f32 %v4314
        %vm4322 = vmor %vm4320, %vm4321
        %v4323 = vsel %vm4322, %v4314, %v4319
        %v4324 = vrsqrt.pop %v3494
        %v4325 = vmul.f32 %v4324, %v3494
        %v4326 = vmul.f32 %v4325, %v4324
        %v4327 = vmul.f32 0.5, %v4326
        %v4328 = vsub.f32 1.5, %v4327
        %v4329 = vmul.f32 %v4324, %v4328
        %vm4330 = vweird.f32 %v3494
        %vm4331 = vweird.f32 %v4324
        %vm4332 = vmor %vm4330, %vm4331
        %v4333 = vsel %vm4332, %v4324, %v4329
        %v4334 = vrsqrt.pop %v3495
        %v4335 = vmul.f32 %v4334, %v3495
        %v4336 = vmul.f32 %v4335, %v4334
        %v4337 = vmul.f32 0.5, %v4336
        %v4338 = vsub.f32 1.5, %v4337
        %v4339 = vmul.f32 %v4334, %v4338
        %vm4340 = vweird.f32 %v3495
        %vm4341 = vweird.f32 %v4334
        %vm4342 = vmor %vm4340, %vm4341
        %v4343 = vsel %vm4342, %v4334, %v4339
        %v4344 = vrsqrt.pop %v3496
        %v4345 = vmul.f32 %v4344, %v3496
        %v4346 = vmul.f32 %v4345, %v4344
        %v4347 = vmul.f32 0.5, %v4346
        %v4348 = vsub.f32 1.5, %v4347
        %v4349 = vmul.f32 %v4344, %v4348
        %vm4350 = vweird.f32 %v3496
        %vm4351 = vweird.f32 %v4344
        %vm4352 = vmor %vm4350, %vm4351
        %v4353 = vsel %vm4352, %v4344, %v4349
        %v4354 = vrsqrt.pop %v3497
        %v4355 = vmul.f32 %v4354, %v3497
        %v4356 = vmul.f32 %v4355, %v4354
        %v4357 = vmul.f32 0.5, %v4356
        %v4358 = vsub.f32 1.5, %v4357
        %v4359 = vmul.f32 %v4354, %v4358
        %vm4360 = vweird.f32 %v3497
        %vm4361 = vweird.f32 %v4354
        %vm4362 = vmor %vm4360, %vm4361
        %v4363 = vsel %vm4362, %v4354, %v4359
        %v4364 = vrsqrt.pop %v3498
        %v4365 = vmul.f32 %v4364, %v3498
        %v4366 = vmul.f32 %v4365, %v4364
        %v4367 = vmul.f32 0.5, %v4366
        %v4368 = vsub.f32 1.5, %v4367
        %v4369 = vmul.f32 %v4364, %v4368
        %vm4370 = vweird.f32 %v3498
        %vm4371 = vweird.f32 %v4364
        %vm4372 = vmor %vm4370, %vm4371
        %v4373 = vsel %vm4372, %v4364, %v4369
        %v4374 = vrsqrt.pop %v3499
        %v4375 = vmul.f32 %v4374, %v3499
        %v4376 = vmul.f32 %v4375, %v4374
        %v4377 = vmul.f32 0.5, %v4376
        %v4378 = vsub.f32 1.5, %v4377
        %v4379 = vmul.f32 %v4374, %v4378
        %vm4380 = vweird.f32 %v3499
        %vm4381 = vweird.f32 %v4374
        %vm4382 = vmor %vm4380, %vm4381
        %v4383 = vsel %vm4382, %v4374, %v4379
        %v4384 = vrsqrt.pop %v3500
        %v4385 = vmul.f32 %v4384, %v3500
        %v4386 = vmul.f32 %v4385, %v4384
        %v4387 = vmul.f32 0.5, %v4386
        %v4388 = vsub.f32 1.5, %v4387
        %v4389 = vmul.f32 %v4384, %v4388
        %vm4390 = vweird.f32 %v3500
        %vm4391 = vweird.f32 %v4384
        %vm4392 = vmor %vm4390, %vm4391
        %v4393 = vsel %vm4392, %v4384, %v4389
        %v4394 = vrsqrt.pop %v3501
        %v4395 = vmul.f32 %v4394, %v3501
        %v4396 = vmul.f32 %v4395, %v4394
        %v4397 = vmul.f32 0.5, %v4396
        %v4398 = vsub.f32 1.5, %v4397
        %v4399 = vmul.f32 %v4394, %v4398
        %vm4400 = vweird.f32 %v3501
        %vm4401 = vweird.f32 %v4394
        %vm4402 = vmor %vm4400, %vm4401
        %v4403 = vsel %vm4402, %v4394, %v4399
        %v4404 = vrsqrt.pop %v3502
        %v4405 = vmul.f32 %v4404, %v3502
        %v4406 = vmul.f32 %v4405, %v4404
        %v4407 = vmul.f32 0.5, %v4406
        %v4408 = vsub.f32 1.5, %v4407
        %v4409 = vmul.f32 %v4404, %v4408
        %vm4410 = vweird.f32 %v3502
        %vm4411 = vweird.f32 %v4404
        %vm4412 = vmor %vm4410, %vm4411
        %v4413 = vsel %vm4412, %v4404, %v4409
        %v4414 = vrsqrt.pop %v3503
        %v4415 = vmul.f32 %v4414, %v3503
        %v4416 = vmul.f32 %v4415, %v4414
        %v4417 = vmul.f32 0.5, %v4416
        %v4418 = vsub.f32 1.5, %v4417
        %v4419 = vmul.f32 %v4414, %v4418
        %vm4420 = vweird.f32 %v3503
        %vm4421 = vweird.f32 %v4414
        %vm4422 = vmor %vm4420, %vm4421
        %v4423 = vsel %vm4422, %v4414, %v4419
        %v4424 = vrsqrt.pop %v3504
        %v4425 = vmul.f32 %v4424, %v3504
        %v4426 = vmul.f32 %v4425, %v4424
        %v4427 = vmul.f32 0.5, %v4426
        %v4428 = vsub.f32 1.5, %v4427
        %v4429 = vmul.f32 %v4424, %v4428
        %vm4430 = vweird.f32 %v3504
        %vm4431 = vweird.f32 %v4424
        %vm4432 = vmor %vm4430, %vm4431
        %v4433 = vsel %vm4432, %v4424, %v4429
        %v4434 = vrsqrt.pop %v3505
        %v4435 = vmul.f32 %v4434, %v3505
        %v4436 = vmul.f32 %v4435, %v4434
        %v4437 = vmul.f32 0.5, %v4436
        %v4438 = vsub.f32 1.5, %v4437
        %v4439 = vmul.f32 %v4434, %v4438
        %vm4440 = vweird.f32 %v3505
        %vm4441 = vweird.f32 %v4434
        %vm4442 = vmor %vm4440, %vm4441
        %v4443 = vsel %vm4442, %v4434, %v4439
        %v4444 = vrsqrt.pop %v3506
        %v4445 = vmul.f32 %v4444, %v3506
        %v4446 = vmul.f32 %v4445, %v4444
        %v4447 = vmul.f32 0.5, %v4446
        %v4448 = vsub.f32 1.5, %v4447
        %v4449 = vmul.f32 %v4444, %v4448
        %vm4450 = vweird.f32 %v3506
        %vm4451 = vweird.f32 %v4444
        %vm4452 = vmor %vm4450, %vm4451
        %v4453 = vsel %vm4452, %v4444, %v4449
        %v4454 = vrsqrt.pop %v3507
        %v4455 = vmul.f32 %v4454, %v3507
        %v4456 = vmul.f32 %v4455, %v4454
        %v4457 = vmul.f32 0.5, %v4456
        %v4458 = vsub.f32 1.5, %v4457
        %v4459 = vmul.f32 %v4454, %v4458
        %vm4460 = vweird.f32 %v3507
        %vm4461 = vweird.f32 %v4454
        %vm4462 = vmor %vm4460, %vm4461
        %v4463 = vsel %vm4462, %v4454, %v4459
        %v4464 = vrsqrt.pop %v3508
        %v4465 = vmul.f32 %v4464, %v3508
        %v4466 = vmul.f32 %v4465, %v4464
        %v4467 = vmul.f32 0.5, %v4466
        %v4468 = vsub.f32 1.5, %v4467
        %v4469 = vmul.f32 %v4464, %v4468
        %vm4470 = vweird.f32 %v3508
        %vm4471 = vweird.f32 %v4464
        %vm4472 = vmor %vm4470, %vm4471
        %v4473 = vsel %vm4472, %v4464, %v4469
        %v4474 = vrsqrt.pop %v3509
        %v4475 = vmul.f32 %v4474, %v3509
        %v4476 = vmul.f32 %v4475, %v4474
        %v4477 = vmul.f32 0.5, %v4476
        %v4478 = vsub.f32 1.5, %v4477
        %v4479 = vmul.f32 %v4474, %v4478
        %vm4480 = vweird.f32 %v3509
        %vm4481 = vweird.f32 %v4474
        %vm4482 = vmor %vm4480, %vm4481
        %v4483 = vsel %vm4482, %v4474, %v4479
        %v4484 = vrsqrt.pop %v3510
        %v4485 = vmul.f32 %v4484, %v3510
        %v4486 = vmul.f32 %v4485, %v4484
        %v4487 = vmul.f32 0.5, %v4486
        %v4488 = vsub.f32 1.5, %v4487
        %v4489 = vmul.f32 %v4484, %v4488
        %vm4490 = vweird.f32 %v3510
        %vm4491 = vweird.f32 %v4484
        %vm4492 = vmor %vm4490, %vm4491
        %v4493 = vsel %vm4492, %v4484, %v4489
        %v4494 = vrsqrt.pop %v3511
        %v4495 = vmul.f32 %v4494, %v3511
        %v4496 = vmul.f32 %v4495, %v4494
        %v4497 = vmul.f32 0.5, %v4496
        %v4498 = vsub.f32 1.5, %v4497
        %v4499 = vmul.f32 %v4494, %v4498
        %vm4500 = vweird.f32 %v3511
        %vm4501 = vweird.f32 %v4494
        %vm4502 = vmor %vm4500, %vm4501
        %v4503 = vsel %vm4502, %v4494, %v4499
        %v4504 = vrsqrt.pop %v3512
        %v4505 = vmul.f32 %v4504, %v3512
        %v4506 = vmul.f32 %v4505, %v4504
        %v4507 = vmul.f32 0.5, %v4506
        %v4508 = vsub.f32 1.5, %v4507
        %v4509 = vmul.f32 %v4504, %v4508
        %vm4510 = vweird.f32 %v3512
        %vm4511 = vweird.f32 %v4504
        %vm4512 = vmor %vm4510, %vm4511
        %v4513 = vsel %vm4512, %v4504, %v4509
        %v4514 = vrsqrt.pop %v3513
        %v4515 = vmul.f32 %v4514, %v3513
        %v4516 = vmul.f32 %v4515, %v4514
        %v4517 = vmul.f32 0.5, %v4516
        %v4518 = vsub.f32 1.5, %v4517
        %v4519 = vmul.f32 %v4514, %v4518
        %vm4520 = vweird.f32 %v3513
        %vm4521 = vweird.f32 %v4514
        %vm4522 = vmor %vm4520, %vm4521
        %v4523 = vsel %vm4522, %v4514, %v4519
        %v4524 = vrsqrt.pop %v3514
        %v4525 = vmul.f32 %v4524, %v3514
        %v4526 = vmul.f32 %v4525, %v4524
        %v4527 = vmul.f32 0.5, %v4526
        %v4528 = vsub.f32 1.5, %v4527
        %v4529 = vmul.f32 %v4524, %v4528
        %vm4530 = vweird.f32 %v3514
        %vm4531 = vweird.f32 %v4524
        %vm4532 = vmor %vm4530, %vm4531
        %v4533 = vsel %vm4532, %v4524, %v4529
        %v4534 = vrsqrt.pop %v3515
        %v4535 = vmul.f32 %v4534, %v3515
        %v4536 = vmul.f32 %v4535, %v4534
        %v4537 = vmul.f32 0.5, %v4536
        %v4538 = vsub.f32 1.5, %v4537
        %v4539 = vmul.f32 %v4534, %v4538
        %vm4540 = vweird.f32 %v3515
        %vm4541 = vweird.f32 %v4534
        %vm4542 = vmor %vm4540, %vm4541
        %v4543 = vsel %vm4542, %v4534, %v4539
        %v4544 = vrsqrt.pop %v3516
        %v4545 = vmul.f32 %v4544, %v3516
        %v4546 = vmul.f32 %v4545, %v4544
        %v4547 = vmul.f32 0.5, %v4546
        %v4548 = vsub.f32 1.5, %v4547
        %v4549 = vmul.f32 %v4544, %v4548
        %vm4550 = vweird.f32 %v3516
        %vm4551 = vweird.f32 %v4544
        %vm4552 = vmor %vm4550, %vm4551
        %v4553 = vsel %vm4552, %v4544, %v4549
        %v4554 = vrsqrt.pop %v3517
        %v4555 = vmul.f32 %v4554, %v3517
        %v4556 = vmul.f32 %v4555, %v4554
        %v4557 = vmul.f32 0.5, %v4556
        %v4558 = vsub.f32 1.5, %v4557
        %v4559 = vmul.f32 %v4554, %v4558
        %vm4560 = vweird.f32 %v3517
        %vm4561 = vweird.f32 %v4554
        %vm4562 = vmor %vm4560, %vm4561
        %v4563 = vsel %vm4562, %v4554, %v4559
        %v4564 = vrsqrt.pop %v3518
        %v4565 = vmul.f32 %v4564, %v3518
        %v4566 = vmul.f32 %v4565, %v4564
        %v4567 = vmul.f32 0.5, %v4566
        %v4568 = vsub.f32 1.5, %v4567
        %v4569 = vmul.f32 %v4564, %v4568
        %vm4570 = vweird.f32 %v3518
        %vm4571 = vweird.f32 %v4564
        %vm4572 = vmor %vm4570, %vm4571
        %v4573 = vsel %vm4572, %v4564, %v4569
        %v4574 = vrsqrt.pop %v3519
        %v4575 = vmul.f32 %v4574, %v3519
        %v4576 = vmul.f32 %v4575, %v4574
        %v4577 = vmul.f32 0.5, %v4576
        %v4578 = vsub.f32 1.5, %v4577
        %v4579 = vmul.f32 %v4574, %v4578
        %vm4580 = vweird.f32 %v3519
        %vm4581 = vweird.f32 %v4574
        %vm4582 = vmor %vm4580, %vm4581
        %v4583 = vsel %vm4582, %v4574, %v4579
        %v4584 = vrsqrt.pop %v3520
        %v4585 = vmul.f32 %v4584, %v3520
        %v4586 = vmul.f32 %v4585, %v4584
        %v4587 = vmul.f32 0.5, %v4586
        %v4588 = vsub.f32 1.5, %v4587
        %v4589 = vmul.f32 %v4584, %v4588
        %vm4590 = vweird.f32 %v3520
        %vm4591 = vweird.f32 %v4584
        %vm4592 = vmor %vm4590, %vm4591
        %v4593 = vsel %vm4592, %v4584, %v4589
        %v4594 = vrsqrt.pop %v3521
        %v4595 = vmul.f32 %v4594, %v3521
        %v4596 = vmul.f32 %v4595, %v4594
        %v4597 = vmul.f32 0.5, %v4596
        %v4598 = vsub.f32 1.5, %v4597
        %v4599 = vmul.f32 %v4594, %v4598
        %vm4600 = vweird.f32 %v3521
        %vm4601 = vweird.f32 %v4594
        %vm4602 = vmor %vm4600, %vm4601
        %v4603 = vsel %vm4602, %v4594, %v4599
        %v4604 = vrsqrt.pop %v3522
        %v4605 = vmul.f32 %v4604, %v3522
        %v4606 = vmul.f32 %v4605, %v4604
        %v4607 = vmul.f32 0.5, %v4606
        %v4608 = vsub.f32 1.5, %v4607
        %v4609 = vmul.f32 %v4604, %v4608
        %vm4610 = vweird.f32 %v3522
        %vm4611 = vweird.f32 %v4604
        %vm4612 = vmor %vm4610, %vm4611
        %v4613 = vsel %vm4612, %v4604, %v4609
        %v4614 = vrsqrt.pop %v3523
        %v4615 = vmul.f32 %v4614, %v3523
        %v4616 = vmul.f32 %v4615, %v4614
        %v4617 = vmul.f32 0.5, %v4616
        %v4618 = vsub.f32 1.5, %v4617
        %v4619 = vmul.f32 %v4614, %v4618
        %vm4620 = vweird.f32 %v3523
        %vm4621 = vweird.f32 %v4614
        %vm4622 = vmor %vm4620, %vm4621
        %v4623 = vsel %vm4622, %v4614, %v4619
        %v4624 = vrsqrt.pop %v3524
        %v4625 = vmul.f32 %v4624, %v3524
        %v4626 = vmul.f32 %v4625, %v4624
        %v4627 = vmul.f32 0.5, %v4626
        %v4628 = vsub.f32 1.5, %v4627
        %v4629 = vmul.f32 %v4624, %v4628
        %vm4630 = vweird.f32 %v3524
        %vm4631 = vweird.f32 %v4624
        %vm4632 = vmor %vm4630, %vm4631
        %v4633 = vsel %vm4632, %v4624, %v4629
        %v4634 = vrsqrt.pop %v3525
        %v4635 = vmul.f32 %v4634, %v3525
        %v4636 = vmul.f32 %v4635, %v4634
        %v4637 = vmul.f32 0.5, %v4636
        %v4638 = vsub.f32 1.5, %v4637
        %v4639 = vmul.f32 %v4634, %v4638
        %vm4640 = vweird.f32 %v3525
        %vm4641 = vweird.f32 %v4634
        %vm4642 = vmor %vm4640, %vm4641
        %v4643 = vsel %vm4642, %v4634, %v4639
        %v4644 = vrsqrt.pop %v3526
        %v4645 = vmul.f32 %v4644, %v3526
        %v4646 = vmul.f32 %v4645, %v4644
        %v4647 = vmul.f32 0.5, %v4646
        %v4648 = vsub.f32 1.5, %v4647
        %v4649 = vmul.f32 %v4644, %v4648
        %vm4650 = vweird.f32 %v3526
        %vm4651 = vweird.f32 %v4644
        %vm4652 = vmor %vm4650, %vm4651
        %v4653 = vsel %vm4652, %v4644, %v4649
        %v4654 = vrsqrt.pop %v3527
        %v4655 = vmul.f32 %v4654, %v3527
        %v4656 = vmul.f32 %v4655, %v4654
        %v4657 = vmul.f32 0.5, %v4656
        %v4658 = vsub.f32 1.5, %v4657
        %v4659 = vmul.f32 %v4654, %v4658
        %vm4660 = vweird.f32 %v3527
        %vm4661 = vweird.f32 %v4654
        %vm4662 = vmor %vm4660, %vm4661
        %v4663 = vsel %vm4662, %v4654, %v4659
        %v4664 = vrsqrt.pop %v3528
        %v4665 = vmul.f32 %v4664, %v3528
        %v4666 = vmul.f32 %v4665, %v4664
        %v4667 = vmul.f32 0.5, %v4666
        %v4668 = vsub.f32 1.5, %v4667
        %v4669 = vmul.f32 %v4664, %v4668
        %vm4670 = vweird.f32 %v3528
        %vm4671 = vweird.f32 %v4664
        %vm4672 = vmor %vm4670, %vm4671
        %v4673 = vsel %vm4672, %v4664, %v4669
        %v4674 = vrsqrt.pop %v3529
        %v4675 = vmul.f32 %v4674, %v3529
        %v4676 = vmul.f32 %v4675, %v4674
        %v4677 = vmul.f32 0.5, %v4676
        %v4678 = vsub.f32 1.5, %v4677
        %v4679 = vmul.f32 %v4674, %v4678
        %vm4680 = vweird.f32 %v3529
        %vm4681 = vweird.f32 %v4674
        %vm4682 = vmor %vm4680, %vm4681
        %v4683 = vsel %vm4682, %v4674, %v4679
        %v4684 = vrsqrt.pop %v3530
        %v4685 = vmul.f32 %v4684, %v3530
        %v4686 = vmul.f32 %v4685, %v4684
        %v4687 = vmul.f32 0.5, %v4686
        %v4688 = vsub.f32 1.5, %v4687
        %v4689 = vmul.f32 %v4684, %v4688
        %vm4690 = vweird.f32 %v3530
        %vm4691 = vweird.f32 %v4684
        %vm4692 = vmor %vm4690, %vm4691
        %v4693 = vsel %vm4692, %v4684, %v4689
        %v4694 = vrsqrt.pop %v3531
        %v4695 = vmul.f32 %v4694, %v3531
        %v4696 = vmul.f32 %v4695, %v4694
        %v4697 = vmul.f32 0.5, %v4696
        %v4698 = vsub.f32 1.5, %v4697
        %v4699 = vmul.f32 %v4694, %v4698
        %vm4700 = vweird.f32 %v3531
        %vm4701 = vweird.f32 %v4694
        %vm4702 = vmor %vm4700, %vm4701
        %v4703 = vsel %vm4702, %v4694, %v4699
        %v4704 = vrsqrt.pop %v3532
        %v4705 = vmul.f32 %v4704, %v3532
        %v4706 = vmul.f32 %v4705, %v4704
        %v4707 = vmul.f32 0.5, %v4706
        %v4708 = vsub.f32 1.5, %v4707
        %v4709 = vmul.f32 %v4704, %v4708
        %vm4710 = vweird.f32 %v3532
        %vm4711 = vweird.f32 %v4704
        %vm4712 = vmor %vm4710, %vm4711
        %v4713 = vsel %vm4712, %v4704, %v4709
        %v4714 = vrsqrt.pop %v3533
        %v4715 = vmul.f32 %v4714, %v3533
        %v4716 = vmul.f32 %v4715, %v4714
        %v4717 = vmul.f32 0.5, %v4716
        %v4718 = vsub.f32 1.5, %v4717
        %v4719 = vmul.f32 %v4714, %v4718
        %vm4720 = vweird.f32 %v3533
        %vm4721 = vweird.f32 %v4714
        %vm4722 = vmor %vm4720, %vm4721
        %v4723 = vsel %vm4722, %v4714, %v4719
        %v4724 = vrsqrt.pop %v3534
        %v4725 = vmul.f32 %v4724, %v3534
        %v4726 = vmul.f32 %v4725, %v4724
        %v4727 = vmul.f32 0.5, %v4726
        %v4728 = vsub.f32 1.5, %v4727
        %v4729 = vmul.f32 %v4724, %v4728
        %vm4730 = vweird.f32 %v3534
        %vm4731 = vweird.f32 %v4724
        %vm4732 = vmor %vm4730, %vm4731
        %v4733 = vsel %vm4732, %v4724, %v4729
        %v4734 = vrsqrt.pop %v3535
        %v4735 = vmul.f32 %v4734, %v3535
        %v4736 = vmul.f32 %v4735, %v4734
        %v4737 = vmul.f32 0.5, %v4736
        %v4738 = vsub.f32 1.5, %v4737
        %v4739 = vmul.f32 %v4734, %v4738
        %vm4740 = vweird.f32 %v3535
        %vm4741 = vweird.f32 %v4734
        %vm4742 = vmor %vm4740, %vm4741
        %v4743 = vsel %vm4742, %v4734, %v4739
        %v4744 = vrsqrt.pop %v3536
        %v4745 = vmul.f32 %v4744, %v3536
        %v4746 = vmul.f32 %v4745, %v4744
        %v4747 = vmul.f32 0.5, %v4746
        %v4748 = vsub.f32 1.5, %v4747
        %v4749 = vmul.f32 %v4744, %v4748
        %vm4750 = vweird.f32 %v3536
        %vm4751 = vweird.f32 %v4744
        %vm4752 = vmor %vm4750, %vm4751
        %v4753 = vsel %vm4752, %v4744, %v4749
        %v4754 = vrsqrt.pop %v3537
        %v4755 = vmul.f32 %v4754, %v3537
        %v4756 = vmul.f32 %v4755, %v4754
        %v4757 = vmul.f32 0.5, %v4756
        %v4758 = vsub.f32 1.5, %v4757
        %v4759 = vmul.f32 %v4754, %v4758
        %vm4760 = vweird.f32 %v3537
        %vm4761 = vweird.f32 %v4754
        %vm4762 = vmor %vm4760, %vm4761
        %v4763 = vsel %vm4762, %v4754, %v4759
        %v4764 = vrsqrt.pop %v3538
        %v4765 = vmul.f32 %v4764, %v3538
        %v4766 = vmul.f32 %v4765, %v4764
        %v4767 = vmul.f32 0.5, %v4766
        %v4768 = vsub.f32 1.5, %v4767
        %v4769 = vmul.f32 %v4764, %v4768
        %vm4770 = vweird.f32 %v3538
        %vm4771 = vweird.f32 %v4764
        %vm4772 = vmor %vm4770, %vm4771
        %v4773 = vsel %vm4772, %v4764, %v4769
        %v4774 = vrsqrt.pop %v3539
        %v4775 = vmul.f32 %v4774, %v3539
        %v4776 = vmul.f32 %v4775, %v4774
        %v4777 = vmul.f32 0.5, %v4776
        %v4778 = vsub.f32 1.5, %v4777
        %v4779 = vmul.f32 %v4774, %v4778
        %vm4780 = vweird.f32 %v3539
        %vm4781 = vweird.f32 %v4774
        %vm4782 = vmor %vm4780, %vm4781
        %v4783 = vsel %vm4782, %v4774, %v4779
        %v4784 = vrsqrt.pop %v3540
        %v4785 = vmul.f32 %v4784, %v3540
        %v4786 = vmul.f32 %v4785, %v4784
        %v4787 = vmul.f32 0.5, %v4786
        %v4788 = vsub.f32 1.5, %v4787
        %v4789 = vmul.f32 %v4784, %v4788
        %vm4790 = vweird.f32 %v3540
        %vm4791 = vweird.f32 %v4784
        %vm4792 = vmor %vm4790, %vm4791
        %v4793 = vsel %vm4792, %v4784, %v4789
        %v4794 = vrsqrt.pop %v3541
        %v4795 = vmul.f32 %v4794, %v3541
        %v4796 = vmul.f32 %v4795, %v4794
        %v4797 = vmul.f32 0.5, %v4796
        %v4798 = vsub.f32 1.5, %v4797
        %v4799 = vmul.f32 %v4794, %v4798
        %vm4800 = vweird.f32 %v3541
        %vm4801 = vweird.f32 %v4794
        %vm4802 = vmor %vm4800, %vm4801
        %v4803 = vsel %vm4802, %v4794, %v4799
        %v4804 = vrsqrt.pop %v3542
        %v4805 = vmul.f32 %v4804, %v3542
        %v4806 = vmul.f32 %v4805, %v4804
        %v4807 = vmul.f32 0.5, %v4806
        %v4808 = vsub.f32 1.5, %v4807
        %v4809 = vmul.f32 %v4804, %v4808
        %vm4810 = vweird.f32 %v3542
        %vm4811 = vweird.f32 %v4804
        %vm4812 = vmor %vm4810, %vm4811
        %v4813 = vsel %vm4812, %v4804, %v4809
        %v4814 = vrsqrt.pop %v3543
        %v4815 = vmul.f32 %v4814, %v3543
        %v4816 = vmul.f32 %v4815, %v4814
        %v4817 = vmul.f32 0.5, %v4816
        %v4818 = vsub.f32 1.5, %v4817
        %v4819 = vmul.f32 %v4814, %v4818
        %vm4820 = vweird.f32 %v3543
        %vm4821 = vweird.f32 %v4814
        %vm4822 = vmor %vm4820, %vm4821
        %v4823 = vsel %vm4822, %v4814, %v4819
        %v4824 = vmul.f32 %v2776, %v3553
        %v4825 = vmul.f32 %v2777, %v3563
        %v4826 = vmul.f32 %v2778, %v3573
        %v4827 = vmul.f32 %v2779, %v3583
        %v4828 = vmul.f32 %v2780, %v3593
        %v4829 = vmul.f32 %v2781, %v3603
        %v4830 = vmul.f32 %v2782, %v3613
        %v4831 = vmul.f32 %v2783, %v3623
        %v4832 = vmul.f32 %v2784, %v3633
        %v4833 = vmul.f32 %v2785, %v3643
        %v4834 = vmul.f32 %v2786, %v3653
        %v4835 = vmul.f32 %v2787, %v3663
        %v4836 = vmul.f32 %v2788, %v3673
        %v4837 = vmul.f32 %v2789, %v3683
        %v4838 = vmul.f32 %v2790, %v3693
        %v4839 = vmul.f32 %v2791, %v3703
        %v4840 = vmul.f32 %v2792, %v3713
        %v4841 = vmul.f32 %v2793, %v3723
        %v4842 = vmul.f32 %v2794, %v3733
        %v4843 = vmul.f32 %v2795, %v3743
        %v4844 = vmul.f32 %v2796, %v3753
        %v4845 = vmul.f32 %v2797, %v3763
        %v4846 = vmul.f32 %v2798, %v3773
        %v4847 = vmul.f32 %v2799, %v3783
        %v4848 = vmul.f32 %v2800, %v3793
        %v4849 = vmul.f32 %v2801, %v3803
        %v4850 = vmul.f32 %v2802, %v3813
        %v4851 = vmul.f32 %v2803, %v3823
        %v4852 = vmul.f32 %v2804, %v3833
        %v4853 = vmul.f32 %v2805, %v3843
        %v4854 = vmul.f32 %v2806, %v3853
        %v4855 = vmul.f32 %v2807, %v3863
        %v4856 = vmul.f32 %v2808, %v3873
        %v4857 = vmul.f32 %v2809, %v3883
        %v4858 = vmul.f32 %v2810, %v3893
        %v4859 = vmul.f32 %v2811, %v3903
        %v4860 = vmul.f32 %v2812, %v3913
        %v4861 = vmul.f32 %v2813, %v3923
        %v4862 = vmul.f32 %v2814, %v3933
        %v4863 = vmul.f32 %v2815, %v3943
        %v4864 = vmul.f32 %v2816, %v3953
        %v4865 = vmul.f32 %v2817, %v3963
        %v4866 = vmul.f32 %v2818, %v3973
        %v4867 = vmul.f32 %v2819, %v3983
        %v4868 = vmul.f32 %v2820, %v3993
        %v4869 = vmul.f32 %v2821, %v4003
        %v4870 = vmul.f32 %v2822, %v4013
        %v4871 = vmul.f32 %v2823, %v4023
        %v4872 = vmul.f32 %v2824, %v4033
        %v4873 = vmul.f32 %v2825, %v4043
        %v4874 = vmul.f32 %v2826, %v4053
        %v4875 = vmul.f32 %v2827, %v4063
        %v4876 = vmul.f32 %v2828, %v4073
        %v4877 = vmul.f32 %v2829, %v4083
        %v4878 = vmul.f32 %v2830, %v4093
        %v4879 = vmul.f32 %v2831, %v4103
        %v4880 = vmul.f32 %v2832, %v4113
        %v4881 = vmul.f32 %v2833, %v4123
        %v4882 = vmul.f32 %v2834, %v4133
        %v4883 = vmul.f32 %v2835, %v4143
        %v4884 = vmul.f32 %v2836, %v4153
        %v4885 = vmul.f32 %v2837, %v4163
        %v4886 = vmul.f32 %v2838, %v4173
        %v4887 = vmul.f32 %v2839, %v4183
        %v4888 = vmul.f32 %v2840, %v4193
        %v4889 = vmul.f32 %v2841, %v4203
        %v4890 = vmul.f32 %v2842, %v4213
        %v4891 = vmul.f32 %v2843, %v4223
        %v4892 = vmul.f32 %v2844, %v4233
        %v4893 = vmul.f32 %v2845, %v4243
        %v4894 = vmul.f32 %v2846, %v4253
        %v4895 = vmul.f32 %v2847, %v4263
        %v4896 = vmul.f32 %v2848, %v4273
        %v4897 = vmul.f32 %v2849, %v4283
        %v4898 = vmul.f32 %v2850, %v4293
        %v4899 = vmul.f32 %v2851, %v4303
        %v4900 = vmul.f32 %v2852, %v4313
        %v4901 = vmul.f32 %v2853, %v4323
        %v4902 = vmul.f32 %v2854, %v4333
        %v4903 = vmul.f32 %v2855, %v4343
        %v4904 = vmul.f32 %v2856, %v4353
        %v4905 = vmul.f32 %v2857, %v4363
        %v4906 = vmul.f32 %v2858, %v4373
        %v4907 = vmul.f32 %v2859, %v4383
        %v4908 = vmul.f32 %v2860, %v4393
        %v4909 = vmul.f32 %v2861, %v4403
        %v4910 = vmul.f32 %v2862, %v4413
        %v4911 = vmul.f32 %v2863, %v4423
        %v4912 = vmul.f32 %v2864, %v4433
        %v4913 = vmul.f32 %v2865, %v4443
        %v4914 = vmul.f32 %v2866, %v4453
        %v4915 = vmul.f32 %v2867, %v4463
        %v4916 = vmul.f32 %v2868, %v4473
        %v4917 = vmul.f32 %v2869, %v4483
        %v4918 = vmul.f32 %v2870, %v4493
        %v4919 = vmul.f32 %v2871, %v4503
        %v4920 = vmul.f32 %v2872, %v4513
        %v4921 = vmul.f32 %v2873, %v4523
        %v4922 = vmul.f32 %v2874, %v4533
        %v4923 = vmul.f32 %v2875, %v4543
        %v4924 = vmul.f32 %v2876, %v4553
        %v4925 = vmul.f32 %v2877, %v4563
        %v4926 = vmul.f32 %v2878, %v4573
        %v4927 = vmul.f32 %v2879, %v4583
        %v4928 = vmul.f32 %v2880, %v4593
        %v4929 = vmul.f32 %v2881, %v4603
        %v4930 = vmul.f32 %v2882, %v4613
        %v4931 = vmul.f32 %v2883, %v4623
        %v4932 = vmul.f32 %v2884, %v4633
        %v4933 = vmul.f32 %v2885, %v4643
        %v4934 = vmul.f32 %v2886, %v4653
        %v4935 = vmul.f32 %v2887, %v4663
        %v4936 = vmul.f32 %v2888, %v4673
        %v4937 = vmul.f32 %v2889, %v4683
        %v4938 = vmul.f32 %v2890, %v4693
        %v4939 = vmul.f32 %v2891, %v4703
        %v4940 = vmul.f32 %v2892, %v4713
        %v4941 = vmul.f32 %v2893, %v4723
        %v4942 = vmul.f32 %v2894, %v4733
        %v4943 = vmul.f32 %v2895, %v4743
        %v4944 = vmul.f32 %v2896, %v4753
        %v4945 = vmul.f32 %v2897, %v4763
        %v4946 = vmul.f32 %v2898, %v4773
        %v4947 = vmul.f32 %v2899, %v4783
        %v4948 = vmul.f32 %v2900, %v4793
        %v4949 = vmul.f32 %v2901, %v4803
        %v4950 = vmul.f32 %v2902, %v4813
        %v4951 = vmul.f32 %v2903, %v4823
        %v4952 = vperm.slane %v256, 1
        %v4953 = vmul.f32 %v4824, %v4952
        %v4954 = vmul.f32 %v4825, %v4952
        %v4955 = vmul.f32 %v4826, %v4952
        %v4956 = vmul.f32 %v4827, %v4952
        %v4957 = vmul.f32 %v4828, %v4952
        %v4958 = vmul.f32 %v4829, %v4952
        %v4959 = vmul.f32 %v4830, %v4952
        %v4960 = vmul.f32 %v4831, %v4952
        %v4961 = vmul.f32 %v4832, %v4952
        %v4962 = vmul.f32 %v4833, %v4952
        %v4963 = vmul.f32 %v4834, %v4952
        %v4964 = vmul.f32 %v4835, %v4952
        %v4965 = vmul.f32 %v4836, %v4952
        %v4966 = vmul.f32 %v4837, %v4952
        %v4967 = vmul.f32 %v4838, %v4952
        %v4968 = vmul.f32 %v4839, %v4952
        %v4969 = vmul.f32 %v4840, %v4952
        %v4970 = vmul.f32 %v4841, %v4952
        %v4971 = vmul.f32 %v4842, %v4952
        %v4972 = vmul.f32 %v4843, %v4952
        %v4973 = vmul.f32 %v4844, %v4952
        %v4974 = vmul.f32 %v4845, %v4952
        %v4975 = vmul.f32 %v4846, %v4952
        %v4976 = vmul.f32 %v4847, %v4952
        %v4977 = vmul.f32 %v4848, %v4952
        %v4978 = vmul.f32 %v4849, %v4952
        %v4979 = vmul.f32 %v4850, %v4952
        %v4980 = vmul.f32 %v4851, %v4952
        %v4981 = vmul.f32 %v4852, %v4952
        %v4982 = vmul.f32 %v4853, %v4952
        %v4983 = vmul.f32 %v4854, %v4952
        %v4984 = vmul.f32 %v4855, %v4952
        %v4985 = vmul.f32 %v4856, %v4952
        %v4986 = vmul.f32 %v4857, %v4952
        %v4987 = vmul.f32 %v4858, %v4952
        %v4988 = vmul.f32 %v4859, %v4952
        %v4989 = vmul.f32 %v4860, %v4952
        %v4990 = vmul.f32 %v4861, %v4952
        %v4991 = vmul.f32 %v4862, %v4952
        %v4992 = vmul.f32 %v4863, %v4952
        %v4993 = vmul.f32 %v4864, %v4952
        %v4994 = vmul.f32 %v4865, %v4952
        %v4995 = vmul.f32 %v4866, %v4952
        %v4996 = vmul.f32 %v4867, %v4952
        %v4997 = vmul.f32 %v4868, %v4952
        %v4998 = vmul.f32 %v4869, %v4952
        %v4999 = vmul.f32 %v4870, %v4952
        %v5000 = vmul.f32 %v4871, %v4952
        %v5001 = vmul.f32 %v4872, %v4952
        %v5002 = vmul.f32 %v4873, %v4952
        %v5003 = vmul.f32 %v4874, %v4952
        %v5004 = vmul.f32 %v4875, %v4952
        %v5005 = vmul.f32 %v4876, %v4952
        %v5006 = vmul.f32 %v4877, %v4952
        %v5007 = vmul.f32 %v4878, %v4952
        %v5008 = vmul.f32 %v4879, %v4952
        %v5009 = vmul.f32 %v4880, %v4952
        %v5010 = vmul.f32 %v4881, %v4952
        %v5011 = vmul.f32 %v4882, %v4952
        %v5012 = vmul.f32 %v4883, %v4952
        %v5013 = vmul.f32 %v4884, %v4952
        %v5014 = vmul.f32 %v4885, %v4952
        %v5015 = vmul.f32 %v4886, %v4952
        %v5016 = vmul.f32 %v4887, %v4952
        %v5017 = vmul.f32 %v4888, %v4952
        %v5018 = vmul.f32 %v4889, %v4952
        %v5019 = vmul.f32 %v4890, %v4952
        %v5020 = vmul.f32 %v4891, %v4952
        %v5021 = vmul.f32 %v4892, %v4952
        %v5022 = vmul.f32 %v4893, %v4952
        %v5023 = vmul.f32 %v4894, %v4952
        %v5024 = vmul.f32 %v4895, %v4952
        %v5025 = vmul.f32 %v4896, %v4952
        %v5026 = vmul.f32 %v4897, %v4952
        %v5027 = vmul.f32 %v4898, %v4952
        %v5028 = vmul.f32 %v4899, %v4952
        %v5029 = vmul.f32 %v4900, %v4952
        %v5030 = vmul.f32 %v4901, %v4952
        %v5031 = vmul.f32 %v4902, %v4952
        %v5032 = vmul.f32 %v4903, %v4952
        %v5033 = vmul.f32 %v4904, %v4952
        %v5034 = vmul.f32 %v4905, %v4952
        %v5035 = vmul.f32 %v4906, %v4952
        %v5036 = vmul.f32 %v4907, %v4952
        %v5037 = vmul.f32 %v4908, %v4952
        %v5038 = vmul.f32 %v4909, %v4952
        %v5039 = vmul.f32 %v4910, %v4952
        %v5040 = vmul.f32 %v4911, %v4952
        %v5041 = vmul.f32 %v4912, %v4952
        %v5042 = vmul.f32 %v4913, %v4952
        %v5043 = vmul.f32 %v4914, %v4952
        %v5044 = vmul.f32 %v4915, %v4952
        %v5045 = vmul.f32 %v4916, %v4952
        %v5046 = vmul.f32 %v4917, %v4952
        %v5047 = vmul.f32 %v4918, %v4952
        %v5048 = vmul.f32 %v4919, %v4952
        %v5049 = vmul.f32 %v4920, %v4952
        %v5050 = vmul.f32 %v4921, %v4952
        %v5051 = vmul.f32 %v4922, %v4952
        %v5052 = vmul.f32 %v4923, %v4952
        %v5053 = vmul.f32 %v4924, %v4952
        %v5054 = vmul.f32 %v4925, %v4952
        %v5055 = vmul.f32 %v4926, %v4952
        %v5056 = vmul.f32 %v4927, %v4952
        %v5057 = vmul.f32 %v4928, %v4952
        %v5058 = vmul.f32 %v4929, %v4952
        %v5059 = vmul.f32 %v4930, %v4952
        %v5060 = vmul.f32 %v4931, %v4952
        %v5061 = vmul.f32 %v4932, %v4952
        %v5062 = vmul.f32 %v4933, %v4952
        %v5063 = vmul.f32 %v4934, %v4952
        %v5064 = vmul.f32 %v4935, %v4952
        %v5065 = vmul.f32 %v4936, %v4952
        %v5066 = vmul.f32 %v4937, %v4952
        %v5067 = vmul.f32 %v4938, %v4952
        %v5068 = vmul.f32 %v4939, %v4952
        %v5069 = vmul.f32 %v4940, %v4952
        %v5070 = vmul.f32 %v4941, %v4952
        %v5071 = vmul.f32 %v4942, %v4952
        %v5072 = vmul.f32 %v4943, %v4952
        %v5073 = vmul.f32 %v4944, %v4952
        %v5074 = vmul.f32 %v4945, %v4952
        %v5075 = vmul.f32 %v4946, %v4952
        %v5076 = vmul.f32 %v4947, %v4952
        %v5077 = vmul.f32 %v4948, %v4952
        %v5078 = vmul.f32 %v4949, %v4952
        %v5079 = vmul.f32 %v4950, %v4952
        %v5080 = vmul.f32 %v4951, %v4952
        %v5081 = vperm.slane %v256, 2
        %v5082 = vadd.f32 %v4953, %v5081
        %v5083 = vadd.f32 %v4954, %v5081
        %v5084 = vadd.f32 %v4955, %v5081
        %v5085 = vadd.f32 %v4956, %v5081
        %v5086 = vadd.f32 %v4957, %v5081
        %v5087 = vadd.f32 %v4958, %v5081
        %v5088 = vadd.f32 %v4959, %v5081
        %v5089 = vadd.f32 %v4960, %v5081
        %v5090 = vadd.f32 %v4961, %v5081
        %v5091 = vadd.f32 %v4962, %v5081
        %v5092 = vadd.f32 %v4963, %v5081
        %v5093 = vadd.f32 %v4964, %v5081
        %v5094 = vadd.f32 %v4965, %v5081
        %v5095 = vadd.f32 %v4966, %v5081
        %v5096 = vadd.f32 %v4967, %v5081
        %v5097 = vadd.f32 %v4968, %v5081
        %v5098 = vadd.f32 %v4969, %v5081
        %v5099 = vadd.f32 %v4970, %v5081
        %v5100 = vadd.f32 %v4971, %v5081
        %v5101 = vadd.f32 %v4972, %v5081
        %v5102 = vadd.f32 %v4973, %v5081
        %v5103 = vadd.f32 %v4974, %v5081
        %v5104 = vadd.f32 %v4975, %v5081
        %v5105 = vadd.f32 %v4976, %v5081
        %v5106 = vadd.f32 %v4977, %v5081
        %v5107 = vadd.f32 %v4978, %v5081
        %v5108 = vadd.f32 %v4979, %v5081
        %v5109 = vadd.f32 %v4980, %v5081
        %v5110 = vadd.f32 %v4981, %v5081
        %v5111 = vadd.f32 %v4982, %v5081
        %v5112 = vadd.f32 %v4983, %v5081
        %v5113 = vadd.f32 %v4984, %v5081
        %v5114 = vadd.f32 %v4985, %v5081
        %v5115 = vadd.f32 %v4986, %v5081
        %v5116 = vadd.f32 %v4987, %v5081
        %v5117 = vadd.f32 %v4988, %v5081
        %v5118 = vadd.f32 %v4989, %v5081
        %v5119 = vadd.f32 %v4990, %v5081
        %v5120 = vadd.f32 %v4991, %v5081
        %v5121 = vadd.f32 %v4992, %v5081
        %v5122 = vadd.f32 %v4993, %v5081
        %v5123 = vadd.f32 %v4994, %v5081
        %v5124 = vadd.f32 %v4995, %v5081
        %v5125 = vadd.f32 %v4996, %v5081
        %v5126 = vadd.f32 %v4997, %v5081
        %v5127 = vadd.f32 %v4998, %v5081
        %v5128 = vadd.f32 %v4999, %v5081
        %v5129 = vadd.f32 %v5000, %v5081
        %v5130 = vadd.f32 %v5001, %v5081
        %v5131 = vadd.f32 %v5002, %v5081
        %v5132 = vadd.f32 %v5003, %v5081
        %v5133 = vadd.f32 %v5004, %v5081
        %v5134 = vadd.f32 %v5005, %v5081
        %v5135 = vadd.f32 %v5006, %v5081
        %v5136 = vadd.f32 %v5007, %v5081
        %v5137 = vadd.f32 %v5008, %v5081
        %v5138 = vadd.f32 %v5009, %v5081
        %v5139 = vadd.f32 %v5010, %v5081
        %v5140 = vadd.f32 %v5011, %v5081
        %v5141 = vadd.f32 %v5012, %v5081
        %v5142 = vadd.f32 %v5013, %v5081
        %v5143 = vadd.f32 %v5014, %v5081
        %v5144 = vadd.f32 %v5015, %v5081
        %v5145 = vadd.f32 %v5016, %v5081
        %v5146 = vadd.f32 %v5017, %v5081
        %v5147 = vadd.f32 %v5018, %v5081
        %v5148 = vadd.f32 %v5019, %v5081
        %v5149 = vadd.f32 %v5020, %v5081
        %v5150 = vadd.f32 %v5021, %v5081
        %v5151 = vadd.f32 %v5022, %v5081
        %v5152 = vadd.f32 %v5023, %v5081
        %v5153 = vadd.f32 %v5024, %v5081
        %v5154 = vadd.f32 %v5025, %v5081
        %v5155 = vadd.f32 %v5026, %v5081
        %v5156 = vadd.f32 %v5027, %v5081
        %v5157 = vadd.f32 %v5028, %v5081
        %v5158 = vadd.f32 %v5029, %v5081
        %v5159 = vadd.f32 %v5030, %v5081
        %v5160 = vadd.f32 %v5031, %v5081
        %v5161 = vadd.f32 %v5032, %v5081
        %v5162 = vadd.f32 %v5033, %v5081
        %v5163 = vadd.f32 %v5034, %v5081
        %v5164 = vadd.f32 %v5035, %v5081
        %v5165 = vadd.f32 %v5036, %v5081
        %v5166 = vadd.f32 %v5037, %v5081
        %v5167 = vadd.f32 %v5038, %v5081
        %v5168 = vadd.f32 %v5039, %v5081
        %v5169 = vadd.f32 %v5040, %v5081
        %v5170 = vadd.f32 %v5041, %v5081
        %v5171 = vadd.f32 %v5042, %v5081
        %v5172 = vadd.f32 %v5043, %v5081
        %v5173 = vadd.f32 %v5044, %v5081
        %v5174 = vadd.f32 %v5045, %v5081
        %v5175 = vadd.f32 %v5046, %v5081
        %v5176 = vadd.f32 %v5047, %v5081
        %v5177 = vadd.f32 %v5048, %v5081
        %v5178 = vadd.f32 %v5049, %v5081
        %v5179 = vadd.f32 %v5050, %v5081
        %v5180 = vadd.f32 %v5051, %v5081
        %v5181 = vadd.f32 %v5052, %v5081
        %v5182 = vadd.f32 %v5053, %v5081
        %v5183 = vadd.f32 %v5054, %v5081
        %v5184 = vadd.f32 %v5055, %v5081
        %v5185 = vadd.f32 %v5056, %v5081
        %v5186 = vadd.f32 %v5057, %v5081
        %v5187 = vadd.f32 %v5058, %v5081
        %v5188 = vadd.f32 %v5059, %v5081
        %v5189 = vadd.f32 %v5060, %v5081
        %v5190 = vadd.f32 %v5061, %v5081
        %v5191 = vadd.f32 %v5062, %v5081
        %v5192 = vadd.f32 %v5063, %v5081
        %v5193 = vadd.f32 %v5064, %v5081
        %v5194 = vadd.f32 %v5065, %v5081
        %v5195 = vadd.f32 %v5066, %v5081
        %v5196 = vadd.f32 %v5067, %v5081
        %v5197 = vadd.f32 %v5068, %v5081
        %v5198 = vadd.f32 %v5069, %v5081
        %v5199 = vadd.f32 %v5070, %v5081
        %v5200 = vadd.f32 %v5071, %v5081
        %v5201 = vadd.f32 %v5072, %v5081
        %v5202 = vadd.f32 %v5073, %v5081
        %v5203 = vadd.f32 %v5074, %v5081
        %v5204 = vadd.f32 %v5075, %v5081
        %v5205 = vadd.f32 %v5076, %v5081
        %v5206 = vadd.f32 %v5077, %v5081
        %v5207 = vadd.f32 %v5078, %v5081
        %v5208 = vadd.f32 %v5079, %v5081
        %v5209 = vadd.f32 %v5080, %v5081
        %v5210 = vpack.c.bf16 %v5083, %v5082
        %v5211 = vpack.c.bf16 %v5085, %v5084
        %v5212 = vpack.c.bf16 %v5087, %v5086
        %v5213 = vpack.c.bf16 %v5089, %v5088
        %v5214 = vpack.c.bf16 %v5091, %v5090
        %v5215 = vpack.c.bf16 %v5093, %v5092
        %v5216 = vpack.c.bf16 %v5095, %v5094
        %v5217 = vpack.c.bf16 %v5097, %v5096
        %v5218 = vpack.c.bf16 %v5099, %v5098
        %v5219 = vpack.c.bf16 %v5101, %v5100
        %v5220 = vpack.c.bf16 %v5103, %v5102
        %v5221 = vpack.c.bf16 %v5105, %v5104
        %v5222 = vpack.c.bf16 %v5107, %v5106
        %v5223 = vpack.c.bf16 %v5109, %v5108
        %v5224 = vpack.c.bf16 %v5111, %v5110
        %v5225 = vpack.c.bf16 %v5113, %v5112
        %v5226 = vpack.c.bf16 %v5115, %v5114
        %v5227 = vpack.c.bf16 %v5117, %v5116
        %v5228 = vpack.c.bf16 %v5119, %v5118
        %v5229 = vpack.c.bf16 %v5121, %v5120
        %v5230 = vpack.c.bf16 %v5123, %v5122
        %v5231 = vpack.c.bf16 %v5125, %v5124
        %v5232 = vpack.c.bf16 %v5127, %v5126
        %v5233 = vpack.c.bf16 %v5129, %v5128
        %v5234 = vpack.c.bf16 %v5131, %v5130
        %v5235 = vpack.c.bf16 %v5133, %v5132
        %v5236 = vpack.c.bf16 %v5135, %v5134
        %v5237 = vpack.c.bf16 %v5137, %v5136
        %v5238 = vpack.c.bf16 %v5139, %v5138
        %v5239 = vpack.c.bf16 %v5141, %v5140
        %v5240 = vpack.c.bf16 %v5143, %v5142
        %v5241 = vpack.c.bf16 %v5145, %v5144
        %v5242 = vpack.c.bf16 %v5147, %v5146
        %v5243 = vpack.c.bf16 %v5149, %v5148
        %v5244 = vpack.c.bf16 %v5151, %v5150
        %v5245 = vpack.c.bf16 %v5153, %v5152
        %v5246 = vpack.c.bf16 %v5155, %v5154
        %v5247 = vpack.c.bf16 %v5157, %v5156
        %v5248 = vpack.c.bf16 %v5159, %v5158
        %v5249 = vpack.c.bf16 %v5161, %v5160
        %v5250 = vpack.c.bf16 %v5163, %v5162
        %v5251 = vpack.c.bf16 %v5165, %v5164
        %v5252 = vpack.c.bf16 %v5167, %v5166
        %v5253 = vpack.c.bf16 %v5169, %v5168
        %v5254 = vpack.c.bf16 %v5171, %v5170
        %v5255 = vpack.c.bf16 %v5173, %v5172
        %v5256 = vpack.c.bf16 %v5175, %v5174
        %v5257 = vpack.c.bf16 %v5177, %v5176
        %v5258 = vpack.c.bf16 %v5179, %v5178
        %v5259 = vpack.c.bf16 %v5181, %v5180
        %v5260 = vpack.c.bf16 %v5183, %v5182
        %v5261 = vpack.c.bf16 %v5185, %v5184
        %v5262 = vpack.c.bf16 %v5187, %v5186
        %v5263 = vpack.c.bf16 %v5189, %v5188
        %v5264 = vpack.c.bf16 %v5191, %v5190
        %v5265 = vpack.c.bf16 %v5193, %v5192
        %v5266 = vpack.c.bf16 %v5195, %v5194
        %v5267 = vpack.c.bf16 %v5197, %v5196
        %v5268 = vpack.c.bf16 %v5199, %v5198
        %v5269 = vpack.c.bf16 %v5201, %v5200
        %v5270 = vpack.c.bf16 %v5203, %v5202
        %v5271 = vpack.c.bf16 %v5205, %v5204
        %v5272 = vpack.c.bf16 %v5207, %v5206
        %v5273 = vpack.c.bf16 %v5209, %v5208
        %v5274 = vld [vmem:[%s3] sm:$0xf]
        %v5275 = vld [vmem:[%s3 + $0x4] sm:$0xf]
        %v5276 = vld [vmem:[%s3 + $0x8] sm:$0xf]
        %v5277 = vld [vmem:[%s3 + $0xc] sm:$0xf]
        %v5278 = vld [vmem:[%s3 + $0x10] sm:$0xf]
        %v5279 = vld [vmem:[%s3 + $0x14] sm:$0xf]
        %v5280 = vld [vmem:[%s3 + $0x18] sm:$0xf]
        %v5281 = vld [vmem:[%s3 + $0x1c] sm:$0xf]
        %v5282 = vld [vmem:[%s3 + $0x20] sm:$0xf]
        %v5283 = vld [vmem:[%s3 + $0x24] sm:$0xf]
        %v5284 = vld [vmem:[%s3 + $0x28] sm:$0xf]
        %v5285 = vld [vmem:[%s3 + $0x2c] sm:$0xf]
        %v5286 = vld [vmem:[%s3 + $0x30] sm:$0xf]
        %v5287 = vld [vmem:[%s3 + $0x34] sm:$0xf]
        %v5288 = vld [vmem:[%s3 + $0x38] sm:$0xf]
        %v5289 = vld [vmem:[%s3 + $0x3c] sm:$0xf]
        %v5290 = vperm.slane %v256, 3
        %v5307 = vunpack.c.l.b16 %v5274
        %v5308 = vunpack.c.l.b16 %v5275
        %v5309 = vunpack.c.l.b16 %v5276
        %v5310 = vunpack.c.l.b16 %v5277
        %v5311 = vunpack.c.l.b16 %v5278
        %v5312 = vunpack.c.l.b16 %v5279
        %v5313 = vunpack.c.l.b16 %v5280
        %v5314 = vunpack.c.l.b16 %v5281
        %v5315 = vunpack.c.l.b16 %v5282
        %v5316 = vunpack.c.l.b16 %v5283
        %v5317 = vunpack.c.l.b16 %v5284
        %v5318 = vunpack.c.l.b16 %v5285
        %v5319 = vunpack.c.l.b16 %v5286
        %v5320 = vunpack.c.l.b16 %v5287
        %v5321 = vunpack.c.l.b16 %v5288
        %v5322 = vunpack.c.l.b16 %v5289
        %v5323 = vpack.c.b16 %v5308, %v5307
        %v5324 = vpack.c.b16 %v5310, %v5309
        %v5325 = vpack.c.b16 %v5312, %v5311
        %v5326 = vpack.c.b16 %v5314, %v5313
        %v5327 = vpack.c.b16 %v5316, %v5315
        %v5328 = vpack.c.b16 %v5318, %v5317
        %v5329 = vpack.c.b16 %v5320, %v5319
        %v5330 = vpack.c.b16 %v5322, %v5321
        %5339 = vmatpush.bf16.msra.mxu0 %v5330
        %5340 = vmatpush.bf16.msra.mxu0 %v5329
        %5341 = vmatpush.bf16.msra.mxu0 %v5328
        %5342 = vmatpush.bf16.msra.mxu0 %v5327
        %5343 = vmatpush.bf16.msra.mxu0 %v5326
        %5344 = vmatpush.bf16.msra.mxu0 %v5325
        %5345 = vmatpush.bf16.msra.mxu0 %v5324
        %5346 = vmatpush.bf16.msra.mxu0 %v5323
        %5347 = vmatmul.bf16.gmra.mxu0 %v5210
        %v5348 = vpop.f32.mrf.mxu0
        %v5349 = vadd.f32 %v5290, %v5348
        %v5350 = vpop.f32.mrf.mxu0
        %v5351 = vadd.f32 %v5290, %v5350
        %5352 = vmatmul.bf16.gmra.mxu0 %v5211
        %v5353 = vpop.f32.mrf.mxu0
        %v5354 = vadd.f32 %v5290, %v5353
        %v5355 = vpop.f32.mrf.mxu0
        %v5356 = vadd.f32 %v5290, %v5355
        %5357 = vmatmul.bf16.gmra.mxu0 %v5212
        %v5358 = vpop.f32.mrf.mxu0
        %v5359 = vadd.f32 %v5290, %v5358
        %v5360 = vpop.f32.mrf.mxu0
        %v5361 = vadd.f32 %v5290, %v5360
        %5362 = vmatmul.bf16.gmra.mxu0 %v5213
        %v5363 = vpop.f32.mrf.mxu0
        %v5364 = vadd.f32 %v5290, %v5363
        %v5365 = vpop.f32.mrf.mxu0
        %v5366 = vadd.f32 %v5290, %v5365
        %5367 = vmatmul.bf16.gmra.mxu0 %v5214
        %v5368 = vpop.f32.mrf.mxu0
        %v5369 = vadd.f32 %v5290, %v5368
        %v5370 = vpop.f32.mrf.mxu0
        %v5371 = vadd.f32 %v5290, %v5370
        %5372 = vmatmul.bf16.gmra.mxu0 %v5215
        %v5373 = vpop.f32.mrf.mxu0
        %v5374 = vadd.f32 %v5290, %v5373
        %v5375 = vpop.f32.mrf.mxu0
        %v5376 = vadd.f32 %v5290, %v5375
        %5377 = vmatmul.bf16.gmra.mxu0 %v5216
        %v5378 = vpop.f32.mrf.mxu0
        %v5379 = vadd.f32 %v5290, %v5378
        %v5380 = vpop.f32.mrf.mxu0
        %v5381 = vadd.f32 %v5290, %v5380
        %5382 = vmatmul.bf16.gmra.mxu0 %v5217
        %v5383 = vpop.f32.mrf.mxu0
        %v5384 = vadd.f32 %v5290, %v5383
        %v5385 = vpop.f32.mrf.mxu0
        %v5386 = vadd.f32 %v5290, %v5385
        %5387 = vmatmul.bf16.gmra.mxu0 %v5218
        %v5388 = vpop.f32.mrf.mxu0
        %v5389 = vadd.f32 %v5290, %v5388
        %v5390 = vpop.f32.mrf.mxu0
        %v5391 = vadd.f32 %v5290, %v5390
        %5392 = vmatmul.bf16.gmra.mxu0 %v5219
        %v5393 = vpop.f32.mrf.mxu0
        %v5394 = vadd.f32 %v5290, %v5393
        %v5395 = vpop.f32.mrf.mxu0
        %v5396 = vadd.f32 %v5290, %v5395
        %5397 = vmatmul.bf16.gmra.mxu0 %v5220
        %v5398 = vpop.f32.mrf.mxu0
        %v5399 = vadd.f32 %v5290, %v5398
        %v5400 = vpop.f32.mrf.mxu0
        %v5401 = vadd.f32 %v5290, %v5400
        %5402 = vmatmul.bf16.gmra.mxu0 %v5221
        %v5403 = vpop.f32.mrf.mxu0
        %v5404 = vadd.f32 %v5290, %v5403
        %v5405 = vpop.f32.mrf.mxu0
        %v5406 = vadd.f32 %v5290, %v5405
        %5407 = vmatmul.bf16.gmra.mxu0 %v5222
        %v5408 = vpop.f32.mrf.mxu0
        %v5409 = vadd.f32 %v5290, %v5408
        %v5410 = vpop.f32.mrf.mxu0
        %v5411 = vadd.f32 %v5290, %v5410
        %5412 = vmatmul.bf16.gmra.mxu0 %v5223
        %v5413 = vpop.f32.mrf.mxu0
        %v5414 = vadd.f32 %v5290, %v5413
        %v5415 = vpop.f32.mrf.mxu0
        %v5416 = vadd.f32 %v5290, %v5415
        %5417 = vmatmul.bf16.gmra.mxu0 %v5224
        %v5418 = vpop.f32.mrf.mxu0
        %v5419 = vadd.f32 %v5290, %v5418
        %v5420 = vpop.f32.mrf.mxu0
        %v5421 = vadd.f32 %v5290, %v5420
        %5422 = vmatmul.bf16.gmra.mxu0 %v5225
        %v5423 = vpop.f32.mrf.mxu0
        %v5424 = vadd.f32 %v5290, %v5423
        %v5425 = vpop.f32.mrf.mxu0
        %v5426 = vadd.f32 %v5290, %v5425
        %5427 = vmatmul.bf16.gmra.mxu0 %v5226
        %v5428 = vpop.f32.mrf.mxu0
        %v5429 = vadd.f32 %v5290, %v5428
        %v5430 = vpop.f32.mrf.mxu0
        %v5431 = vadd.f32 %v5290, %v5430
        %5432 = vmatmul.bf16.gmra.mxu0 %v5227
        %v5433 = vpop.f32.mrf.mxu0
        %v5434 = vadd.f32 %v5290, %v5433
        %v5435 = vpop.f32.mrf.mxu0
        %v5436 = vadd.f32 %v5290, %v5435
        %5437 = vmatmul.bf16.gmra.mxu0 %v5228
        %v5438 = vpop.f32.mrf.mxu0
        %v5439 = vadd.f32 %v5290, %v5438
        %v5440 = vpop.f32.mrf.mxu0
        %v5441 = vadd.f32 %v5290, %v5440
        %5442 = vmatmul.bf16.gmra.mxu0 %v5229
        %v5443 = vpop.f32.mrf.mxu0
        %v5444 = vadd.f32 %v5290, %v5443
        %v5445 = vpop.f32.mrf.mxu0
        %v5446 = vadd.f32 %v5290, %v5445
        %5447 = vmatmul.bf16.gmra.mxu0 %v5230
        %v5448 = vpop.f32.mrf.mxu0
        %v5449 = vadd.f32 %v5290, %v5448
        %v5450 = vpop.f32.mrf.mxu0
        %v5451 = vadd.f32 %v5290, %v5450
        %5452 = vmatmul.bf16.gmra.mxu0 %v5231
        %v5453 = vpop.f32.mrf.mxu0
        %v5454 = vadd.f32 %v5290, %v5453
        %v5455 = vpop.f32.mrf.mxu0
        %v5456 = vadd.f32 %v5290, %v5455
        %5457 = vmatmul.bf16.gmra.mxu0 %v5232
        %v5458 = vpop.f32.mrf.mxu0
        %v5459 = vadd.f32 %v5290, %v5458
        %v5460 = vpop.f32.mrf.mxu0
        %v5461 = vadd.f32 %v5290, %v5460
        %5462 = vmatmul.bf16.gmra.mxu0 %v5233
        %v5463 = vpop.f32.mrf.mxu0
        %v5464 = vadd.f32 %v5290, %v5463
        %v5465 = vpop.f32.mrf.mxu0
        %v5466 = vadd.f32 %v5290, %v5465
        %5467 = vmatmul.bf16.gmra.mxu0 %v5234
        %v5468 = vpop.f32.mrf.mxu0
        %v5469 = vadd.f32 %v5290, %v5468
        %v5470 = vpop.f32.mrf.mxu0
        %v5471 = vadd.f32 %v5290, %v5470
        %5472 = vmatmul.bf16.gmra.mxu0 %v5235
        %v5473 = vpop.f32.mrf.mxu0
        %v5474 = vadd.f32 %v5290, %v5473
        %v5475 = vpop.f32.mrf.mxu0
        %v5476 = vadd.f32 %v5290, %v5475
        %5477 = vmatmul.bf16.gmra.mxu0 %v5236
        %v5478 = vpop.f32.mrf.mxu0
        %v5479 = vadd.f32 %v5290, %v5478
        %v5480 = vpop.f32.mrf.mxu0
        %v5481 = vadd.f32 %v5290, %v5480
        %5482 = vmatmul.bf16.gmra.mxu0 %v5237
        %v5483 = vpop.f32.mrf.mxu0
        %v5484 = vadd.f32 %v5290, %v5483
        %v5485 = vpop.f32.mrf.mxu0
        %v5486 = vadd.f32 %v5290, %v5485
        %5487 = vmatmul.bf16.gmra.mxu0 %v5238
        %v5488 = vpop.f32.mrf.mxu0
        %v5489 = vadd.f32 %v5290, %v5488
        %v5490 = vpop.f32.mrf.mxu0
        %v5491 = vadd.f32 %v5290, %v5490
        %5492 = vmatmul.bf16.gmra.mxu0 %v5239
        %v5493 = vpop.f32.mrf.mxu0
        %v5494 = vadd.f32 %v5290, %v5493
        %v5495 = vpop.f32.mrf.mxu0
        %v5496 = vadd.f32 %v5290, %v5495
        %5497 = vmatmul.bf16.gmra.mxu0 %v5240
        %v5498 = vpop.f32.mrf.mxu0
        %v5499 = vadd.f32 %v5290, %v5498
        %v5500 = vpop.f32.mrf.mxu0
        %v5501 = vadd.f32 %v5290, %v5500
        %5502 = vmatmul.bf16.gmra.mxu0 %v5241
        %v5503 = vpop.f32.mrf.mxu0
        %v5504 = vadd.f32 %v5290, %v5503
        %v5505 = vpop.f32.mrf.mxu0
        %v5506 = vadd.f32 %v5290, %v5505
        %5507 = vmatmul.bf16.gmra.mxu0 %v5242
        %v5508 = vpop.f32.mrf.mxu0
        %v5509 = vadd.f32 %v5290, %v5508
        %v5510 = vpop.f32.mrf.mxu0
        %v5511 = vadd.f32 %v5290, %v5510
        %5512 = vmatmul.bf16.gmra.mxu0 %v5243
        %v5513 = vpop.f32.mrf.mxu0
        %v5514 = vadd.f32 %v5290, %v5513
        %v5515 = vpop.f32.mrf.mxu0
        %v5516 = vadd.f32 %v5290, %v5515
        %5517 = vmatmul.bf16.gmra.mxu0 %v5244
        %v5518 = vpop.f32.mrf.mxu0
        %v5519 = vadd.f32 %v5290, %v5518
        %v5520 = vpop.f32.mrf.mxu0
        %v5521 = vadd.f32 %v5290, %v5520
        %5522 = vmatmul.bf16.gmra.mxu0 %v5245
        %v5523 = vpop.f32.mrf.mxu0
        %v5524 = vadd.f32 %v5290, %v5523
        %v5525 = vpop.f32.mrf.mxu0
        %v5526 = vadd.f32 %v5290, %v5525
        %5527 = vmatmul.bf16.gmra.mxu0 %v5246
        %v5528 = vpop.f32.mrf.mxu0
        %v5529 = vadd.f32 %v5290, %v5528
        %v5530 = vpop.f32.mrf.mxu0
        %v5531 = vadd.f32 %v5290, %v5530
        %5532 = vmatmul.bf16.gmra.mxu0 %v5247
        %v5533 = vpop.f32.mrf.mxu0
        %v5534 = vadd.f32 %v5290, %v5533
        %v5535 = vpop.f32.mrf.mxu0
        %v5536 = vadd.f32 %v5290, %v5535
        %5537 = vmatmul.bf16.gmra.mxu0 %v5248
        %v5538 = vpop.f32.mrf.mxu0
        %v5539 = vadd.f32 %v5290, %v5538
        %v5540 = vpop.f32.mrf.mxu0
        %v5541 = vadd.f32 %v5290, %v5540
        %5542 = vmatmul.bf16.gmra.mxu0 %v5249
        %v5543 = vpop.f32.mrf.mxu0
        %v5544 = vadd.f32 %v5290, %v5543
        %v5545 = vpop.f32.mrf.mxu0
        %v5546 = vadd.f32 %v5290, %v5545
        %5547 = vmatmul.bf16.gmra.mxu0 %v5250
        %v5548 = vpop.f32.mrf.mxu0
        %v5549 = vadd.f32 %v5290, %v5548
        %v5550 = vpop.f32.mrf.mxu0
        %v5551 = vadd.f32 %v5290, %v5550
        %5552 = vmatmul.bf16.gmra.mxu0 %v5251
        %v5553 = vpop.f32.mrf.mxu0
        %v5554 = vadd.f32 %v5290, %v5553
        %v5555 = vpop.f32.mrf.mxu0
        %v5556 = vadd.f32 %v5290, %v5555
        %5557 = vmatmul.bf16.gmra.mxu0 %v5252
        %v5558 = vpop.f32.mrf.mxu0
        %v5559 = vadd.f32 %v5290, %v5558
        %v5560 = vpop.f32.mrf.mxu0
        %v5561 = vadd.f32 %v5290, %v5560
        %5562 = vmatmul.bf16.gmra.mxu0 %v5253
        %v5563 = vpop.f32.mrf.mxu0
        %v5564 = vadd.f32 %v5290, %v5563
        %v5565 = vpop.f32.mrf.mxu0
        %v5566 = vadd.f32 %v5290, %v5565
        %5567 = vmatmul.bf16.gmra.mxu0 %v5254
        %v5568 = vpop.f32.mrf.mxu0
        %v5569 = vadd.f32 %v5290, %v5568
        %v5570 = vpop.f32.mrf.mxu0
        %v5571 = vadd.f32 %v5290, %v5570
        %5572 = vmatmul.bf16.gmra.mxu0 %v5255
        %v5573 = vpop.f32.mrf.mxu0
        %v5574 = vadd.f32 %v5290, %v5573
        %v5575 = vpop.f32.mrf.mxu0
        %v5576 = vadd.f32 %v5290, %v5575
        %5577 = vmatmul.bf16.gmra.mxu0 %v5256
        %v5578 = vpop.f32.mrf.mxu0
        %v5579 = vadd.f32 %v5290, %v5578
        %v5580 = vpop.f32.mrf.mxu0
        %v5581 = vadd.f32 %v5290, %v5580
        %5582 = vmatmul.bf16.gmra.mxu0 %v5257
        %v5583 = vpop.f32.mrf.mxu0
        %v5584 = vadd.f32 %v5290, %v5583
        %v5585 = vpop.f32.mrf.mxu0
        %v5586 = vadd.f32 %v5290, %v5585
        %5587 = vmatmul.bf16.gmra.mxu0 %v5258
        %v5588 = vpop.f32.mrf.mxu0
        %v5589 = vadd.f32 %v5290, %v5588
        %v5590 = vpop.f32.mrf.mxu0
        %v5591 = vadd.f32 %v5290, %v5590
        %5592 = vmatmul.bf16.gmra.mxu0 %v5259
        %v5593 = vpop.f32.mrf.mxu0
        %v5594 = vadd.f32 %v5290, %v5593
        %v5595 = vpop.f32.mrf.mxu0
        %v5596 = vadd.f32 %v5290, %v5595
        %5597 = vmatmul.bf16.gmra.mxu0 %v5260
        %v5598 = vpop.f32.mrf.mxu0
        %v5599 = vadd.f32 %v5290, %v5598
        %v5600 = vpop.f32.mrf.mxu0
        %v5601 = vadd.f32 %v5290, %v5600
        %5602 = vmatmul.bf16.gmra.mxu0 %v5261
        %v5603 = vpop.f32.mrf.mxu0
        %v5604 = vadd.f32 %v5290, %v5603
        %v5605 = vpop.f32.mrf.mxu0
        %v5606 = vadd.f32 %v5290, %v5605
        %5607 = vmatmul.bf16.gmra.mxu0 %v5262
        %v5608 = vpop.f32.mrf.mxu0
        %v5609 = vadd.f32 %v5290, %v5608
        %v5610 = vpop.f32.mrf.mxu0
        %v5611 = vadd.f32 %v5290, %v5610
        %5612 = vmatmul.bf16.gmra.mxu0 %v5263
        %v5613 = vpop.f32.mrf.mxu0
        %v5614 = vadd.f32 %v5290, %v5613
        %v5615 = vpop.f32.mrf.mxu0
        %v5616 = vadd.f32 %v5290, %v5615
        %5617 = vmatmul.bf16.gmra.mxu0 %v5264
        %v5618 = vpop.f32.mrf.mxu0
        %v5619 = vadd.f32 %v5290, %v5618
        %v5620 = vpop.f32.mrf.mxu0
        %v5621 = vadd.f32 %v5290, %v5620
        %5622 = vmatmul.bf16.gmra.mxu0 %v5265
        %v5623 = vpop.f32.mrf.mxu0
        %v5624 = vadd.f32 %v5290, %v5623
        %v5625 = vpop.f32.mrf.mxu0
        %v5626 = vadd.f32 %v5290, %v5625
        %5627 = vmatmul.bf16.gmra.mxu0 %v5266
        %v5628 = vpop.f32.mrf.mxu0
        %v5629 = vadd.f32 %v5290, %v5628
        %v5630 = vpop.f32.mrf.mxu0
        %v5631 = vadd.f32 %v5290, %v5630
        %5632 = vmatmul.bf16.gmra.mxu0 %v5267
        %v5633 = vpop.f32.mrf.mxu0
        %v5634 = vadd.f32 %v5290, %v5633
        %v5635 = vpop.f32.mrf.mxu0
        %v5636 = vadd.f32 %v5290, %v5635
        %5637 = vmatmul.bf16.gmra.mxu0 %v5268
        %v5638 = vpop.f32.mrf.mxu0
        %v5639 = vadd.f32 %v5290, %v5638
        %v5640 = vpop.f32.mrf.mxu0
        %v5641 = vadd.f32 %v5290, %v5640
        %5642 = vmatmul.bf16.gmra.mxu0 %v5269
        %v5643 = vpop.f32.mrf.mxu0
        %v5644 = vadd.f32 %v5290, %v5643
        %v5645 = vpop.f32.mrf.mxu0
        %v5646 = vadd.f32 %v5290, %v5645
        %5647 = vmatmul.bf16.gmra.mxu0 %v5270
        %v5648 = vpop.f32.mrf.mxu0
        %v5649 = vadd.f32 %v5290, %v5648
        %v5650 = vpop.f32.mrf.mxu0
        %v5651 = vadd.f32 %v5290, %v5650
        %5652 = vmatmul.bf16.gmra.mxu0 %v5271
        %v5653 = vpop.f32.mrf.mxu0
        %v5654 = vadd.f32 %v5290, %v5653
        %v5655 = vpop.f32.mrf.mxu0
        %v5656 = vadd.f32 %v5290, %v5655
        %5657 = vmatmul.bf16.gmra.mxu0 %v5272
        %v5658 = vpop.f32.mrf.mxu0
        %v5659 = vadd.f32 %v5290, %v5658
        %v5660 = vpop.f32.mrf.mxu0
        %v5661 = vadd.f32 %v5290, %v5660
        %5662 = vmatmul.bf16.gmra.mxu0 %v5273
        %v5663 = vpop.f32.mrf.mxu0
        %v5664 = vadd.f32 %v5290, %v5663
        %v5665 = vpop.f32.mrf.mxu0
        %v5666 = vadd.f32 %v5290, %v5665
        %5667 = vdwg.mxu0
        %v5668 = vmul.f32 %v5349, %v5349
        %v5669 = vmul.f32 %v5351, %v5351
        %v5670 = vmul.f32 %v5354, %v5354
        %v5671 = vmul.f32 %v5356, %v5356
        %v5672 = vmul.f32 %v5359, %v5359
        %v5673 = vmul.f32 %v5361, %v5361
        %v5674 = vmul.f32 %v5364, %v5364
        %v5675 = vmul.f32 %v5366, %v5366
        %v5676 = vmul.f32 %v5369, %v5369
        %v5677 = vmul.f32 %v5371, %v5371
        %v5678 = vmul.f32 %v5374, %v5374
        %v5679 = vmul.f32 %v5376, %v5376
        %v5680 = vmul.f32 %v5379, %v5379
        %v5681 = vmul.f32 %v5381, %v5381
        %v5682 = vmul.f32 %v5384, %v5384
        %v5683 = vmul.f32 %v5386, %v5386
        %v5684 = vmul.f32 %v5389, %v5389
        %v5685 = vmul.f32 %v5391, %v5391
        %v5686 = vmul.f32 %v5394, %v5394
        %v5687 = vmul.f32 %v5396, %v5396
        %v5688 = vmul.f32 %v5399, %v5399
        %v5689 = vmul.f32 %v5401, %v5401
        %v5690 = vmul.f32 %v5404, %v5404
        %v5691 = vmul.f32 %v5406, %v5406
        %v5692 = vmul.f32 %v5409, %v5409
        %v5693 = vmul.f32 %v5411, %v5411
        %v5694 = vmul.f32 %v5414, %v5414
        %v5695 = vmul.f32 %v5416, %v5416
        %v5696 = vmul.f32 %v5419, %v5419
        %v5697 = vmul.f32 %v5421, %v5421
        %v5698 = vmul.f32 %v5424, %v5424
        %v5699 = vmul.f32 %v5426, %v5426
        %v5700 = vmul.f32 %v5429, %v5429
        %v5701 = vmul.f32 %v5431, %v5431
        %v5702 = vmul.f32 %v5434, %v5434
        %v5703 = vmul.f32 %v5436, %v5436
        %v5704 = vmul.f32 %v5439, %v5439
        %v5705 = vmul.f32 %v5441, %v5441
        %v5706 = vmul.f32 %v5444, %v5444
        %v5707 = vmul.f32 %v5446, %v5446
        %v5708 = vmul.f32 %v5449, %v5449
        %v5709 = vmul.f32 %v5451, %v5451
        %v5710 = vmul.f32 %v5454, %v5454
        %v5711 = vmul.f32 %v5456, %v5456
        %v5712 = vmul.f32 %v5459, %v5459
        %v5713 = vmul.f32 %v5461, %v5461
        %v5714 = vmul.f32 %v5464, %v5464
        %v5715 = vmul.f32 %v5466, %v5466
        %v5716 = vmul.f32 %v5469, %v5469
        %v5717 = vmul.f32 %v5471, %v5471
        %v5718 = vmul.f32 %v5474, %v5474
        %v5719 = vmul.f32 %v5476, %v5476
        %v5720 = vmul.f32 %v5479, %v5479
        %v5721 = vmul.f32 %v5481, %v5481
        %v5722 = vmul.f32 %v5484, %v5484
        %v5723 = vmul.f32 %v5486, %v5486
        %v5724 = vmul.f32 %v5489, %v5489
        %v5725 = vmul.f32 %v5491, %v5491
        %v5726 = vmul.f32 %v5494, %v5494
        %v5727 = vmul.f32 %v5496, %v5496
        %v5728 = vmul.f32 %v5499, %v5499
        %v5729 = vmul.f32 %v5501, %v5501
        %v5730 = vmul.f32 %v5504, %v5504
        %v5731 = vmul.f32 %v5506, %v5506
        %v5732 = vmul.f32 %v5509, %v5509
        %v5733 = vmul.f32 %v5511, %v5511
        %v5734 = vmul.f32 %v5514, %v5514
        %v5735 = vmul.f32 %v5516, %v5516
        %v5736 = vmul.f32 %v5519, %v5519
        %v5737 = vmul.f32 %v5521, %v5521
        %v5738 = vmul.f32 %v5524, %v5524
        %v5739 = vmul.f32 %v5526, %v5526
        %v5740 = vmul.f32 %v5529, %v5529
        %v5741 = vmul.f32 %v5531, %v5531
        %v5742 = vmul.f32 %v5534, %v5534
        %v5743 = vmul.f32 %v5536, %v5536
        %v5744 = vmul.f32 %v5539, %v5539
        %v5745 = vmul.f32 %v5541, %v5541
        %v5746 = vmul.f32 %v5544, %v5544
        %v5747 = vmul.f32 %v5546, %v5546
        %v5748 = vmul.f32 %v5549, %v5549
        %v5749 = vmul.f32 %v5551, %v5551
        %v5750 = vmul.f32 %v5554, %v5554
        %v5751 = vmul.f32 %v5556, %v5556
        %v5752 = vmul.f32 %v5559, %v5559
        %v5753 = vmul.f32 %v5561, %v5561
        %v5754 = vmul.f32 %v5564, %v5564
        %v5755 = vmul.f32 %v5566, %v5566
        %v5756 = vmul.f32 %v5569, %v5569
        %v5757 = vmul.f32 %v5571, %v5571
        %v5758 = vmul.f32 %v5574, %v5574
        %v5759 = vmul.f32 %v5576, %v5576
        %v5760 = vmul.f32 %v5579, %v5579
        %v5761 = vmul.f32 %v5581, %v5581
        %v5762 = vmul.f32 %v5584, %v5584
        %v5763 = vmul.f32 %v5586, %v5586
        %v5764 = vmul.f32 %v5589, %v5589
        %v5765 = vmul.f32 %v5591, %v5591
        %v5766 = vmul.f32 %v5594, %v5594
        %v5767 = vmul.f32 %v5596, %v5596
        %v5768 = vmul.f32 %v5599, %v5599
        %v5769 = vmul.f32 %v5601, %v5601
        %v5770 = vmul.f32 %v5604, %v5604
        %v5771 = vmul.f32 %v5606, %v5606
        %v5772 = vmul.f32 %v5609, %v5609
        %v5773 = vmul.f32 %v5611, %v5611
        %v5774 = vmul.f32 %v5614, %v5614
        %v5775 = vmul.f32 %v5616, %v5616
        %v5776 = vmul.f32 %v5619, %v5619
        %v5777 = vmul.f32 %v5621, %v5621
        %v5778 = vmul.f32 %v5624, %v5624
        %v5779 = vmul.f32 %v5626, %v5626
        %v5780 = vmul.f32 %v5629, %v5629
        %v5781 = vmul.f32 %v5631, %v5631
        %v5782 = vmul.f32 %v5634, %v5634
        %v5783 = vmul.f32 %v5636, %v5636
        %v5784 = vmul.f32 %v5639, %v5639
        %v5785 = vmul.f32 %v5641, %v5641
        %v5786 = vmul.f32 %v5644, %v5644
        %v5787 = vmul.f32 %v5646, %v5646
        %v5788 = vmul.f32 %v5649, %v5649
        %v5789 = vmul.f32 %v5651, %v5651
        %v5790 = vmul.f32 %v5654, %v5654
        %v5791 = vmul.f32 %v5656, %v5656
        %v5792 = vmul.f32 %v5659, %v5659
        %v5793 = vmul.f32 %v5661, %v5661
        %v5794 = vmul.f32 %v5664, %v5664
        %v5795 = vmul.f32 %v5666, %v5666
        %v5796 = vmul.f32 %v5349, %v5668
        %v5797 = vmul.f32 %v5351, %v5669
        %v5798 = vmul.f32 %v5354, %v5670
        %v5799 = vmul.f32 %v5356, %v5671
        %v5800 = vmul.f32 %v5359, %v5672
        %v5801 = vmul.f32 %v5361, %v5673
        %v5802 = vmul.f32 %v5364, %v5674
        %v5803 = vmul.f32 %v5366, %v5675
        %v5804 = vmul.f32 %v5369, %v5676
        %v5805 = vmul.f32 %v5371, %v5677
        %v5806 = vmul.f32 %v5374, %v5678
        %v5807 = vmul.f32 %v5376, %v5679
        %v5808 = vmul.f32 %v5379, %v5680
        %v5809 = vmul.f32 %v5381, %v5681
        %v5810 = vmul.f32 %v5384, %v5682
        %v5811 = vmul.f32 %v5386, %v5683
        %v5812 = vmul.f32 %v5389, %v5684
        %v5813 = vmul.f32 %v5391, %v5685
        %v5814 = vmul.f32 %v5394, %v5686
        %v5815 = vmul.f32 %v5396, %v5687
        %v5816 = vmul.f32 %v5399, %v5688
        %v5817 = vmul.f32 %v5401, %v5689
        %v5818 = vmul.f32 %v5404, %v5690
        %v5819 = vmul.f32 %v5406, %v5691
        %v5820 = vmul.f32 %v5409, %v5692
        %v5821 = vmul.f32 %v5411, %v5693
        %v5822 = vmul.f32 %v5414, %v5694
        %v5823 = vmul.f32 %v5416, %v5695
        %v5824 = vmul.f32 %v5419, %v5696
        %v5825 = vmul.f32 %v5421, %v5697
        %v5826 = vmul.f32 %v5424, %v5698
        %v5827 = vmul.f32 %v5426, %v5699
        %v5828 = vmul.f32 %v5429, %v5700
        %v5829 = vmul.f32 %v5431, %v5701
        %v5830 = vmul.f32 %v5434, %v5702
        %v5831 = vmul.f32 %v5436, %v5703
        %v5832 = vmul.f32 %v5439, %v5704
        %v5833 = vmul.f32 %v5441, %v5705
        %v5834 = vmul.f32 %v5444, %v5706
        %v5835 = vmul.f32 %v5446, %v5707
        %v5836 = vmul.f32 %v5449, %v5708
        %v5837 = vmul.f32 %v5451, %v5709
        %v5838 = vmul.f32 %v5454, %v5710
        %v5839 = vmul.f32 %v5456, %v5711
        %v5840 = vmul.f32 %v5459, %v5712
        %v5841 = vmul.f32 %v5461, %v5713
        %v5842 = vmul.f32 %v5464, %v5714
        %v5843 = vmul.f32 %v5466, %v5715
        %v5844 = vmul.f32 %v5469, %v5716
        %v5845 = vmul.f32 %v5471, %v5717
        %v5846 = vmul.f32 %v5474, %v5718
        %v5847 = vmul.f32 %v5476, %v5719
        %v5848 = vmul.f32 %v5479, %v5720
        %v5849 = vmul.f32 %v5481, %v5721
        %v5850 = vmul.f32 %v5484, %v5722
        %v5851 = vmul.f32 %v5486, %v5723
        %v5852 = vmul.f32 %v5489, %v5724
        %v5853 = vmul.f32 %v5491, %v5725
        %v5854 = vmul.f32 %v5494, %v5726
        %v5855 = vmul.f32 %v5496, %v5727
        %v5856 = vmul.f32 %v5499, %v5728
        %v5857 = vmul.f32 %v5501, %v5729
        %v5858 = vmul.f32 %v5504, %v5730
        %v5859 = vmul.f32 %v5506, %v5731
        %v5860 = vmul.f32 %v5509, %v5732
        %v5861 = vmul.f32 %v5511, %v5733
        %v5862 = vmul.f32 %v5514, %v5734
        %v5863 = vmul.f32 %v5516, %v5735
        %v5864 = vmul.f32 %v5519, %v5736
        %v5865 = vmul.f32 %v5521, %v5737
        %v5866 = vmul.f32 %v5524, %v5738
        %v5867 = vmul.f32 %v5526, %v5739
        %v5868 = vmul.f32 %v5529, %v5740
        %v5869 = vmul.f32 %v5531, %v5741
        %v5870 = vmul.f32 %v5534, %v5742
        %v5871 = vmul.f32 %v5536, %v5743
        %v5872 = vmul.f32 %v5539, %v5744
        %v5873 = vmul.f32 %v5541, %v5745
        %v5874 = vmul.f32 %v5544, %v5746
        %v5875 = vmul.f32 %v5546, %v5747
        %v5876 = vmul.f32 %v5549, %v5748
        %v5877 = vmul.f32 %v5551, %v5749
        %v5878 = vmul.f32 %v5554, %v5750
        %v5879 = vmul.f32 %v5556, %v5751
        %v5880 = vmul.f32 %v5559, %v5752
        %v5881 = vmul.f32 %v5561, %v5753
        %v5882 = vmul.f32 %v5564, %v5754
        %v5883 = vmul.f32 %v5566, %v5755
        %v5884 = vmul.f32 %v5569, %v5756
        %v5885 = vmul.f32 %v5571, %v5757
        %v5886 = vmul.f32 %v5574, %v5758
        %v5887 = vmul.f32 %v5576, %v5759
        %v5888 = vmul.f32 %v5579, %v5760
        %v5889 = vmul.f32 %v5581, %v5761
        %v5890 = vmul.f32 %v5584, %v5762
        %v5891 = vmul.f32 %v5586, %v5763
        %v5892 = vmul.f32 %v5589, %v5764
        %v5893 = vmul.f32 %v5591, %v5765
        %v5894 = vmul.f32 %v5594, %v5766
        %v5895 = vmul.f32 %v5596, %v5767
        %v5896 = vmul.f32 %v5599, %v5768
        %v5897 = vmul.f32 %v5601, %v5769
        %v5898 = vmul.f32 %v5604, %v5770
        %v5899 = vmul.f32 %v5606, %v5771
        %v5900 = vmul.f32 %v5609, %v5772
        %v5901 = vmul.f32 %v5611, %v5773
        %v5902 = vmul.f32 %v5614, %v5774
        %v5903 = vmul.f32 %v5616, %v5775
        %v5904 = vmul.f32 %v5619, %v5776
        %v5905 = vmul.f32 %v5621, %v5777
        %v5906 = vmul.f32 %v5624, %v5778
        %v5907 = vmul.f32 %v5626, %v5779
        %v5908 = vmul.f32 %v5629, %v5780
        %v5909 = vmul.f32 %v5631, %v5781
        %v5910 = vmul.f32 %v5634, %v5782
        %v5911 = vmul.f32 %v5636, %v5783
        %v5912 = vmul.f32 %v5639, %v5784
        %v5913 = vmul.f32 %v5641, %v5785
        %v5914 = vmul.f32 %v5644, %v5786
        %v5915 = vmul.f32 %v5646, %v5787
        %v5916 = vmul.f32 %v5649, %v5788
        %v5917 = vmul.f32 %v5651, %v5789
        %v5918 = vmul.f32 %v5654, %v5790
        %v5919 = vmul.f32 %v5656, %v5791
        %v5920 = vmul.f32 %v5659, %v5792
        %v5921 = vmul.f32 %v5661, %v5793
        %v5922 = vmul.f32 %v5664, %v5794
        %v5923 = vmul.f32 %v5666, %v5795
        %v5924 = vmul.f32 %v5796, 0.044715
        %v5925 = vmul.f32 %v5797, 0.044715
        %v5926 = vmul.f32 %v5798, 0.044715
        %v5927 = vmul.f32 %v5799, 0.044715
        %v5928 = vmul.f32 %v5800, 0.044715
        %v5929 = vmul.f32 %v5801, 0.044715
        %v5930 = vmul.f32 %v5802, 0.044715
        %v5931 = vmul.f32 %v5803, 0.044715
        %v5932 = vmul.f32 %v5804, 0.044715
        %v5933 = vmul.f32 %v5805, 0.044715
        %v5934 = vmul.f32 %v5806, 0.044715
        %v5935 = vmul.f32 %v5807, 0.044715
        %v5936 = vmul.f32 %v5808, 0.044715
        %v5937 = vmul.f32 %v5809, 0.044715
        %v5938 = vmul.f32 %v5810, 0.044715
        %v5939 = vmul.f32 %v5811, 0.044715
        %v5940 = vmul.f32 %v5812, 0.044715
        %v5941 = vmul.f32 %v5813, 0.044715
        %v5942 = vmul.f32 %v5814, 0.044715
        %v5943 = vmul.f32 %v5815, 0.044715
        %v5944 = vmul.f32 %v5816, 0.044715
        %v5945 = vmul.f32 %v5817, 0.044715
        %v5946 = vmul.f32 %v5818, 0.044715
        %v5947 = vmul.f32 %v5819, 0.044715
        %v5948 = vmul.f32 %v5820, 0.044715
        %v5949 = vmul.f32 %v5821, 0.044715
        %v5950 = vmul.f32 %v5822, 0.044715
        %v5951 = vmul.f32 %v5823, 0.044715
        %v5952 = vmul.f32 %v5824, 0.044715
        %v5953 = vmul.f32 %v5825, 0.044715
        %v5954 = vmul.f32 %v5826, 0.044715
        %v5955 = vmul.f32 %v5827, 0.044715
        %v5956 = vmul.f32 %v5828, 0.044715
        %v5957 = vmul.f32 %v5829, 0.044715
        %v5958 = vmul.f32 %v5830, 0.044715
        %v5959 = vmul.f32 %v5831, 0.044715
        %v5960 = vmul.f32 %v5832, 0.044715
        %v5961 = vmul.f32 %v5833, 0.044715
        %v5962 = vmul.f32 %v5834, 0.044715
        %v5963 = vmul.f32 %v5835, 0.044715
        %v5964 = vmul.f32 %v5836, 0.044715
        %v5965 = vmul.f32 %v5837, 0.044715
        %v5966 = vmul.f32 %v5838, 0.044715
        %v5967 = vmul.f32 %v5839, 0.044715
        %v5968 = vmul.f32 %v5840, 0.044715
        %v5969 = vmul.f32 %v5841, 0.044715
        %v5970 = vmul.f32 %v5842, 0.044715
        %v5971 = vmul.f32 %v5843, 0.044715
        %v5972 = vmul.f32 %v5844, 0.044715
        %v5973 = vmul.f32 %v5845, 0.044715
        %v5974 = vmul.f32 %v5846, 0.044715
        %v5975 = vmul.f32 %v5847, 0.044715
        %v5976 = vmul.f32 %v5848, 0.044715
        %v5977 = vmul.f32 %v5849, 0.044715
        %v5978 = vmul.f32 %v5850, 0.044715
        %v5979 = vmul.f32 %v5851, 0.044715
        %v5980 = vmul.f32 %v5852, 0.044715
        %v5981 = vmul.f32 %v5853, 0.044715
        %v5982 = vmul.f32 %v5854, 0.044715
        %v5983 = vmul.f32 %v5855, 0.044715
        %v5984 = vmul.f32 %v5856, 0.044715
        %v5985 = vmul.f32 %v5857, 0.044715
        %v5986 = vmul.f32 %v5858, 0.044715
        %v5987 = vmul.f32 %v5859, 0.044715
        %v5988 = vmul.f32 %v5860, 0.044715
        %v5989 = vmul.f32 %v5861, 0.044715
        %v5990 = vmul.f32 %v5862, 0.044715
        %v5991 = vmul.f32 %v5863, 0.044715
        %v5992 = vmul.f32 %v5864, 0.044715
        %v5993 = vmul.f32 %v5865, 0.044715
        %v5994 = vmul.f32 %v5866, 0.044715
        %v5995 = vmul.f32 %v5867, 0.044715
        %v5996 = vmul.f32 %v5868, 0.044715
        %v5997 = vmul.f32 %v5869, 0.044715
        %v5998 = vmul.f32 %v5870, 0.044715
        %v5999 = vmul.f32 %v5871, 0.044715
        %v6000 = vmul.f32 %v5872, 0.044715
        %v6001 = vmul.f32 %v5873, 0.044715
        %v6002 = vmul.f32 %v5874, 0.044715
        %v6003 = vmul.f32 %v5875, 0.044715
        %v6004 = vmul.f32 %v5876, 0.044715
        %v6005 = vmul.f32 %v5877, 0.044715
        %v6006 = vmul.f32 %v5878, 0.044715
        %v6007 = vmul.f32 %v5879, 0.044715
        %v6008 = vmul.f32 %v5880, 0.044715
        %v6009 = vmul.f32 %v5881, 0.044715
        %v6010 = vmul.f32 %v5882, 0.044715
        %v6011 = vmul.f32 %v5883, 0.044715
        %v6012 = vmul.f32 %v5884, 0.044715
        %v6013 = vmul.f32 %v5885, 0.044715
        %v6014 = vmul.f32 %v5886, 0.044715
        %v6015 = vmul.f32 %v5887, 0.044715
        %v6016 = vmul.f32 %v5888, 0.044715
        %v6017 = vmul.f32 %v5889, 0.044715
        %v6018 = vmul.f32 %v5890, 0.044715
        %v6019 = vmul.f32 %v5891, 0.044715
        %v6020 = vmul.f32 %v5892, 0.044715
        %v6021 = vmul.f32 %v5893, 0.044715
        %v6022 = vmul.f32 %v5894, 0.044715
        %v6023 = vmul.f32 %v5895, 0.044715
        %v6024 = vmul.f32 %v5896, 0.044715
        %v6025 = vmul.f32 %v5897, 0.044715
        %v6026 = vmul.f32 %v5898, 0.044715
        %v6027 = vmul.f32 %v5899, 0.044715
        %v6028 = vmul.f32 %v5900, 0.044715
        %v6029 = vmul.f32 %v5901, 0.044715
        %v6030 = vmul.f32 %v5902, 0.044715
        %v6031 = vmul.f32 %v5903, 0.044715
        %v6032 = vmul.f32 %v5904, 0.044715
        %v6033 = vmul.f32 %v5905, 0.044715
        %v6034 = vmul.f32 %v5906, 0.044715
        %v6035 = vmul.f32 %v5907, 0.044715
        %v6036 = vmul.f32 %v5908, 0.044715
        %v6037 = vmul.f32 %v5909, 0.044715
        %v6038 = vmul.f32 %v5910, 0.044715
        %v6039 = vmul.f32 %v5911, 0.044715
        %v6040 = vmul.f32 %v5912, 0.044715
        %v6041 = vmul.f32 %v5913, 0.044715
        %v6042 = vmul.f32 %v5914, 0.044715
        %v6043 = vmul.f32 %v5915, 0.044715
        %v6044 = vmul.f32 %v5916, 0.044715
        %v6045 = vmul.f32 %v5917, 0.044715
        %v6046 = vmul.f32 %v5918, 0.044715
        %v6047 = vmul.f32 %v5919, 0.044715
        %v6048 = vmul.f32 %v5920, 0.044715
        %v6049 = vmul.f32 %v5921, 0.044715
        %v6050 = vmul.f32 %v5922, 0.044715
        %v6051 = vmul.f32 %v5923, 0.044715
        %v6052 = vadd.f32 %v5349, %v5924
        %v6053 = vadd.f32 %v5351, %v5925
        %v6054 = vadd.f32 %v5354, %v5926
        %v6055 = vadd.f32 %v5356, %v5927
        %v6056 = vadd.f32 %v5359, %v5928
        %v6057 = vadd.f32 %v5361, %v5929
        %v6058 = vadd.f32 %v5364, %v5930
        %v6059 = vadd.f32 %v5366, %v5931
        %v6060 = vadd.f32 %v5369, %v5932
        %v6061 = vadd.f32 %v5371, %v5933
        %v6062 = vadd.f32 %v5374, %v5934
        %v6063 = vadd.f32 %v5376, %v5935
        %v6064 = vadd.f32 %v5379, %v5936
        %v6065 = vadd.f32 %v5381, %v5937
        %v6066 = vadd.f32 %v5384, %v5938
        %v6067 = vadd.f32 %v5386, %v5939
        %v6068 = vadd.f32 %v5389, %v5940
        %v6069 = vadd.f32 %v5391, %v5941
        %v6070 = vadd.f32 %v5394, %v5942
        %v6071 = vadd.f32 %v5396, %v5943
        %v6072 = vadd.f32 %v5399, %v5944
        %v6073 = vadd.f32 %v5401, %v5945
        %v6074 = vadd.f32 %v5404, %v5946
        %v6075 = vadd.f32 %v5406, %v5947
        %v6076 = vadd.f32 %v5409, %v5948
        %v6077 = vadd.f32 %v5411, %v5949
        %v6078 = vadd.f32 %v5414, %v5950
        %v6079 = vadd.f32 %v5416, %v5951
        %v6080 = vadd.f32 %v5419, %v5952
        %v6081 = vadd.f32 %v5421, %v5953
        %v6082 = vadd.f32 %v5424, %v5954
        %v6083 = vadd.f32 %v5426, %v5955
        %v6084 = vadd.f32 %v5429, %v5956
        %v6085 = vadd.f32 %v5431, %v5957
        %v6086 = vadd.f32 %v5434, %v5958
        %v6087 = vadd.f32 %v5436, %v5959
        %v6088 = vadd.f32 %v5439, %v5960
        %v6089 = vadd.f32 %v5441, %v5961
        %v6090 = vadd.f32 %v5444, %v5962
        %v6091 = vadd.f32 %v5446, %v5963
        %v6092 = vadd.f32 %v5449, %v5964
        %v6093 = vadd.f32 %v5451, %v5965
        %v6094 = vadd.f32 %v5454, %v5966
        %v6095 = vadd.f32 %v5456, %v5967
        %v6096 = vadd.f32 %v5459, %v5968
        %v6097 = vadd.f32 %v5461, %v5969
        %v6098 = vadd.f32 %v5464, %v5970
        %v6099 = vadd.f32 %v5466, %v5971
        %v6100 = vadd.f32 %v5469, %v5972
        %v6101 = vadd.f32 %v5471, %v5973
        %v6102 = vadd.f32 %v5474, %v5974
        %v6103 = vadd.f32 %v5476, %v5975
        %v6104 = vadd.f32 %v5479, %v5976
        %v6105 = vadd.f32 %v5481, %v5977
        %v6106 = vadd.f32 %v5484, %v5978
        %v6107 = vadd.f32 %v5486, %v5979
        %v6108 = vadd.f32 %v5489, %v5980
        %v6109 = vadd.f32 %v5491, %v5981
        %v6110 = vadd.f32 %v5494, %v5982
        %v6111 = vadd.f32 %v5496, %v5983
        %v6112 = vadd.f32 %v5499, %v5984
        %v6113 = vadd.f32 %v5501, %v5985
        %v6114 = vadd.f32 %v5504, %v5986
        %v6115 = vadd.f32 %v5506, %v5987
        %v6116 = vadd.f32 %v5509, %v5988
        %v6117 = vadd.f32 %v5511, %v5989
        %v6118 = vadd.f32 %v5514, %v5990
        %v6119 = vadd.f32 %v5516, %v5991
        %v6120 = vadd.f32 %v5519, %v5992
        %v6121 = vadd.f32 %v5521, %v5993
        %v6122 = vadd.f32 %v5524, %v5994
        %v6123 = vadd.f32 %v5526, %v5995
        %v6124 = vadd.f32 %v5529, %v5996
        %v6125 = vadd.f32 %v5531, %v5997
        %v6126 = vadd.f32 %v5534, %v5998
        %v6127 = vadd.f32 %v5536, %v5999
        %v6128 = vadd.f32 %v5539, %v6000
        %v6129 = vadd.f32 %v5541, %v6001
        %v6130 = vadd.f32 %v5544, %v6002
        %v6131 = vadd.f32 %v5546, %v6003
        %v6132 = vadd.f32 %v5549, %v6004
        %v6133 = vadd.f32 %v5551, %v6005
        %v6134 = vadd.f32 %v5554, %v6006
        %v6135 = vadd.f32 %v5556, %v6007
        %v6136 = vadd.f32 %v5559, %v6008
        %v6137 = vadd.f32 %v5561, %v6009
        %v6138 = vadd.f32 %v5564, %v6010
        %v6139 = vadd.f32 %v5566, %v6011
        %v6140 = vadd.f32 %v5569, %v6012
        %v6141 = vadd.f32 %v5571, %v6013
        %v6142 = vadd.f32 %v5574, %v6014
        %v6143 = vadd.f32 %v5576, %v6015
        %v6144 = vadd.f32 %v5579, %v6016
        %v6145 = vadd.f32 %v5581, %v6017
        %v6146 = vadd.f32 %v5584, %v6018
        %v6147 = vadd.f32 %v5586, %v6019
        %v6148 = vadd.f32 %v5589, %v6020
        %v6149 = vadd.f32 %v5591, %v6021
        %v6150 = vadd.f32 %v5594, %v6022
        %v6151 = vadd.f32 %v5596, %v6023
        %v6152 = vadd.f32 %v5599, %v6024
        %v6153 = vadd.f32 %v5601, %v6025
        %v6154 = vadd.f32 %v5604, %v6026
        %v6155 = vadd.f32 %v5606, %v6027
        %v6156 = vadd.f32 %v5609, %v6028
        %v6157 = vadd.f32 %v5611, %v6029
        %v6158 = vadd.f32 %v5614, %v6030
        %v6159 = vadd.f32 %v5616, %v6031
        %v6160 = vadd.f32 %v5619, %v6032
        %v6161 = vadd.f32 %v5621, %v6033
        %v6162 = vadd.f32 %v5624, %v6034
        %v6163 = vadd.f32 %v5626, %v6035
        %v6164 = vadd.f32 %v5629, %v6036
        %v6165 = vadd.f32 %v5631, %v6037
        %v6166 = vadd.f32 %v5634, %v6038
        %v6167 = vadd.f32 %v5636, %v6039
        %v6168 = vadd.f32 %v5639, %v6040
        %v6169 = vadd.f32 %v5641, %v6041
        %v6170 = vadd.f32 %v5644, %v6042
        %v6171 = vadd.f32 %v5646, %v6043
        %v6172 = vadd.f32 %v5649, %v6044
        %v6173 = vadd.f32 %v5651, %v6045
        %v6174 = vadd.f32 %v5654, %v6046
        %v6175 = vadd.f32 %v5656, %v6047
        %v6176 = vadd.f32 %v5659, %v6048
        %v6177 = vadd.f32 %v5661, %v6049
        %v6178 = vadd.f32 %v5664, %v6050
        %v6179 = vadd.f32 %v5666, %v6051
        %v6180 = vmul.f32 %v6052, 0.7978846
        %v6181 = vmul.f32 %v6053, 0.7978846
        %v6182 = vmul.f32 %v6054, 0.7978846
        %v6183 = vmul.f32 %v6055, 0.7978846
        %v6184 = vmul.f32 %v6056, 0.7978846
        %v6185 = vmul.f32 %v6057, 0.7978846
        %v6186 = vmul.f32 %v6058, 0.7978846
        %v6187 = vmul.f32 %v6059, 0.7978846
        %v6188 = vmul.f32 %v6060, 0.7978846
        %v6189 = vmul.f32 %v6061, 0.7978846
        %v6190 = vmul.f32 %v6062, 0.7978846
        %v6191 = vmul.f32 %v6063, 0.7978846
        %v6192 = vmul.f32 %v6064, 0.7978846
        %v6193 = vmul.f32 %v6065, 0.7978846
        %v6194 = vmul.f32 %v6066, 0.7978846
        %v6195 = vmul.f32 %v6067, 0.7978846
        %v6196 = vmul.f32 %v6068, 0.7978846
        %v6197 = vmul.f32 %v6069, 0.7978846
        %v6198 = vmul.f32 %v6070, 0.7978846
        %v6199 = vmul.f32 %v6071, 0.7978846
        %v6200 = vmul.f32 %v6072, 0.7978846
        %v6201 = vmul.f32 %v6073, 0.7978846
        %v6202 = vmul.f32 %v6074, 0.7978846
        %v6203 = vmul.f32 %v6075, 0.7978846
        %v6204 = vmul.f32 %v6076, 0.7978846
        %v6205 = vmul.f32 %v6077, 0.7978846
        %v6206 = vmul.f32 %v6078, 0.7978846
        %v6207 = vmul.f32 %v6079, 0.7978846
        %v6208 = vmul.f32 %v6080, 0.7978846
        %v6209 = vmul.f32 %v6081, 0.7978846
        %v6210 = vmul.f32 %v6082, 0.7978846
        %v6211 = vmul.f32 %v6083, 0.7978846
        %v6212 = vmul.f32 %v6084, 0.7978846
        %v6213 = vmul.f32 %v6085, 0.7978846
        %v6214 = vmul.f32 %v6086, 0.7978846
        %v6215 = vmul.f32 %v6087, 0.7978846
        %v6216 = vmul.f32 %v6088, 0.7978846
        %v6217 = vmul.f32 %v6089, 0.7978846
        %v6218 = vmul.f32 %v6090, 0.7978846
        %v6219 = vmul.f32 %v6091, 0.7978846
        %v6220 = vmul.f32 %v6092, 0.7978846
        %v6221 = vmul.f32 %v6093, 0.7978846
        %v6222 = vmul.f32 %v6094, 0.7978846
        %v6223 = vmul.f32 %v6095, 0.7978846
        %v6224 = vmul.f32 %v6096, 0.7978846
        %v6225 = vmul.f32 %v6097, 0.7978846
        %v6226 = vmul.f32 %v6098, 0.7978846
        %v6227 = vmul.f32 %v6099, 0.7978846
        %v6228 = vmul.f32 %v6100, 0.7978846
        %v6229 = vmul.f32 %v6101, 0.7978846
        %v6230 = vmul.f32 %v6102, 0.7978846
        %v6231 = vmul.f32 %v6103, 0.7978846
        %v6232 = vmul.f32 %v6104, 0.7978846
        %v6233 = vmul.f32 %v6105, 0.7978846
        %v6234 = vmul.f32 %v6106, 0.7978846
        %v6235 = vmul.f32 %v6107, 0.7978846
        %v6236 = vmul.f32 %v6108, 0.7978846
        %v6237 = vmul.f32 %v6109, 0.7978846
        %v6238 = vmul.f32 %v6110, 0.7978846
        %v6239 = vmul.f32 %v6111, 0.7978846
        %v6240 = vmul.f32 %v6112, 0.7978846
        %v6241 = vmul.f32 %v6113, 0.7978846
        %v6242 = vmul.f32 %v6114, 0.7978846
        %v6243 = vmul.f32 %v6115, 0.7978846
        %v6244 = vmul.f32 %v6116, 0.7978846
        %v6245 = vmul.f32 %v6117, 0.7978846
        %v6246 = vmul.f32 %v6118, 0.7978846
        %v6247 = vmul.f32 %v6119, 0.7978846
        %v6248 = vmul.f32 %v6120, 0.7978846
        %v6249 = vmul.f32 %v6121, 0.7978846
        %v6250 = vmul.f32 %v6122, 0.7978846
        %v6251 = vmul.f32 %v6123, 0.7978846
        %v6252 = vmul.f32 %v6124, 0.7978846
        %v6253 = vmul.f32 %v6125, 0.7978846
        %v6254 = vmul.f32 %v6126, 0.7978846
        %v6255 = vmul.f32 %v6127, 0.7978846
        %v6256 = vmul.f32 %v6128, 0.7978846
        %v6257 = vmul.f32 %v6129, 0.7978846
        %v6258 = vmul.f32 %v6130, 0.7978846
        %v6259 = vmul.f32 %v6131, 0.7978846
        %v6260 = vmul.f32 %v6132, 0.7978846
        %v6261 = vmul.f32 %v6133, 0.7978846
        %v6262 = vmul.f32 %v6134, 0.7978846
        %v6263 = vmul.f32 %v6135, 0.7978846
        %v6264 = vmul.f32 %v6136, 0.7978846
        %v6265 = vmul.f32 %v6137, 0.7978846
        %v6266 = vmul.f32 %v6138, 0.7978846
        %v6267 = vmul.f32 %v6139, 0.7978846
        %v6268 = vmul.f32 %v6140, 0.7978846
        %v6269 = vmul.f32 %v6141, 0.7978846
        %v6270 = vmul.f32 %v6142, 0.7978846
        %v6271 = vmul.f32 %v6143, 0.7978846
        %v6272 = vmul.f32 %v6144, 0.7978846
        %v6273 = vmul.f32 %v6145, 0.7978846
        %v6274 = vmul.f32 %v6146, 0.7978846
        %v6275 = vmul.f32 %v6147, 0.7978846
        %v6276 = vmul.f32 %v6148, 0.7978846
        %v6277 = vmul.f32 %v6149, 0.7978846
        %v6278 = vmul.f32 %v6150, 0.7978846
        %v6279 = vmul.f32 %v6151, 0.7978846
        %v6280 = vmul.f32 %v6152, 0.7978846
        %v6281 = vmul.f32 %v6153, 0.7978846
        %v6282 = vmul.f32 %v6154, 0.7978846
        %v6283 = vmul.f32 %v6155, 0.7978846
        %v6284 = vmul.f32 %v6156, 0.7978846
        %v6285 = vmul.f32 %v6157, 0.7978846
        %v6286 = vmul.f32 %v6158, 0.7978846
        %v6287 = vmul.f32 %v6159, 0.7978846
        %v6288 = vmul.f32 %v6160, 0.7978846
        %v6289 = vmul.f32 %v6161, 0.7978846
        %v6290 = vmul.f32 %v6162, 0.7978846
        %v6291 = vmul.f32 %v6163, 0.7978846
        %v6292 = vmul.f32 %v6164, 0.7978846
        %v6293 = vmul.f32 %v6165, 0.7978846
        %v6294 = vmul.f32 %v6166, 0.7978846
        %v6295 = vmul.f32 %v6167, 0.7978846
        %v6296 = vmul.f32 %v6168, 0.7978846
        %v6297 = vmul.f32 %v6169, 0.7978846
        %v6298 = vmul.f32 %v6170, 0.7978846
        %v6299 = vmul.f32 %v6171, 0.7978846
        %v6300 = vmul.f32 %v6172, 0.7978846
        %v6301 = vmul.f32 %v6173, 0.7978846
        %v6302 = vmul.f32 %v6174, 0.7978846
        %v6303 = vmul.f32 %v6175, 0.7978846
        %v6304 = vmul.f32 %v6176, 0.7978846
        %v6305 = vmul.f32 %v6177, 0.7978846
        %v6306 = vmul.f32 %v6178, 0.7978846
        %v6307 = vmul.f32 %v6179, 0.7978846
        %v6308 = vtanh.pop %v6180
        %v6309 = vtanh.pop %v6181
        %v6310 = vtanh.pop %v6182
        %v6311 = vtanh.pop %v6183
        %v6312 = vtanh.pop %v6184
        %v6313 = vtanh.pop %v6185
        %v6314 = vtanh.pop %v6186
        %v6315 = vtanh.pop %v6187
        %v6316 = vtanh.pop %v6188
        %v6317 = vtanh.pop %v6189
        %v6318 = vtanh.pop %v6190
        %v6319 = vtanh.pop %v6191
        %v6320 = vtanh.pop %v6192
        %v6321 = vtanh.pop %v6193
        %v6322 = vtanh.pop %v6194
        %v6323 = vtanh.pop %v6195
        %v6324 = vtanh.pop %v6196
        %v6325 = vtanh.pop %v6197
        %v6326 = vtanh.pop %v6198
        %v6327 = vtanh.pop %v6199
        %v6328 = vtanh.pop %v6200
        %v6329 = vtanh.pop %v6201
        %v6330 = vtanh.pop %v6202
        %v6331 = vtanh.pop %v6203
        %v6332 = vtanh.pop %v6204
        %v6333 = vtanh.pop %v6205
        %v6334 = vtanh.pop %v6206
        %v6335 = vtanh.pop %v6207
        %v6336 = vtanh.pop %v6208
        %v6337 = vtanh.pop %v6209
        %v6338 = vtanh.pop %v6210
        %v6339 = vtanh.pop %v6211
        %v6340 = vtanh.pop %v6212
        %v6341 = vtanh.pop %v6213
        %v6342 = vtanh.pop %v6214
        %v6343 = vtanh.pop %v6215
        %v6344 = vtanh.pop %v6216
        %v6345 = vtanh.pop %v6217
        %v6346 = vtanh.pop %v6218
        %v6347 = vtanh.pop %v6219
        %v6348 = vtanh.pop %v6220
        %v6349 = vtanh.pop %v6221
        %v6350 = vtanh.pop %v6222
        %v6351 = vtanh.pop %v6223
        %v6352 = vtanh.pop %v6224
        %v6353 = vtanh.pop %v6225
        %v6354 = vtanh.pop %v6226
        %v6355 = vtanh.pop %v6227
        %v6356 = vtanh.pop %v6228
        %v6357 = vtanh.pop %v6229
        %v6358 = vtanh.pop %v6230
        %v6359 = vtanh.pop %v6231
        %v6360 = vtanh.pop %v6232
        %v6361 = vtanh.pop %v6233
        %v6362 = vtanh.pop %v6234
        %v6363 = vtanh.pop %v6235
        %v6364 = vtanh.pop %v6236
        %v6365 = vtanh.pop %v6237
        %v6366 = vtanh.pop %v6238
        %v6367 = vtanh.pop %v6239
        %v6368 = vtanh.pop %v6240
        %v6369 = vtanh.pop %v6241
        %v6370 = vtanh.pop %v6242
        %v6371 = vtanh.pop %v6243
        %v6372 = vtanh.pop %v6244
        %v6373 = vtanh.pop %v6245
        %v6374 = vtanh.pop %v6246
        %v6375 = vtanh.pop %v6247
        %v6376 = vtanh.pop %v6248
        %v6377 = vtanh.pop %v6249
        %v6378 = vtanh.pop %v6250
        %v6379 = vtanh.pop %v6251
        %v6380 = vtanh.pop %v6252
        %v6381 = vtanh.pop %v6253
        %v6382 = vtanh.pop %v6254
        %v6383 = vtanh.pop %v6255
        %v6384 = vtanh.pop %v6256
        %v6385 = vtanh.pop %v6257
        %v6386 = vtanh.pop %v6258
        %v6387 = vtanh.pop %v6259
        %v6388 = vtanh.pop %v6260
        %v6389 = vtanh.pop %v6261
        %v6390 = vtanh.pop %v6262
        %v6391 = vtanh.pop %v6263
        %v6392 = vtanh.pop %v6264
        %v6393 = vtanh.pop %v6265
        %v6394 = vtanh.pop %v6266
        %v6395 = vtanh.pop %v6267
        %v6396 = vtanh.pop %v6268
        %v6397 = vtanh.pop %v6269
        %v6398 = vtanh.pop %v6270
        %v6399 = vtanh.pop %v6271
        %v6400 = vtanh.pop %v6272
        %v6401 = vtanh.pop %v6273
        %v6402 = vtanh.pop %v6274
        %v6403 = vtanh.pop %v6275
        %v6404 = vtanh.pop %v6276
        %v6405 = vtanh.pop %v6277
        %v6406 = vtanh.pop %v6278
        %v6407 = vtanh.pop %v6279
        %v6408 = vtanh.pop %v6280
        %v6409 = vtanh.pop %v6281
        %v6410 = vtanh.pop %v6282
        %v6411 = vtanh.pop %v6283
        %v6412 = vtanh.pop %v6284
        %v6413 = vtanh.pop %v6285
        %v6414 = vtanh.pop %v6286
        %v6415 = vtanh.pop %v6287
        %v6416 = vtanh.pop %v6288
        %v6417 = vtanh.pop %v6289
        %v6418 = vtanh.pop %v6290
        %v6419 = vtanh.pop %v6291
        %v6420 = vtanh.pop %v6292
        %v6421 = vtanh.pop %v6293
        %v6422 = vtanh.pop %v6294
        %v6423 = vtanh.pop %v6295
        %v6424 = vtanh.pop %v6296
        %v6425 = vtanh.pop %v6297
        %v6426 = vtanh.pop %v6298
        %v6427 = vtanh.pop %v6299
        %v6428 = vtanh.pop %v6300
        %v6429 = vtanh.pop %v6301
        %v6430 = vtanh.pop %v6302
        %v6431 = vtanh.pop %v6303
        %v6432 = vtanh.pop %v6304
        %v6433 = vtanh.pop %v6305
        %v6434 = vtanh.pop %v6306
        %v6435 = vtanh.pop %v6307
        %v6436 = vadd.f32 %v6308, 1.0
        %v6437 = vadd.f32 %v6309, 1.0
        %v6438 = vadd.f32 %v6310, 1.0
        %v6439 = vadd.f32 %v6311, 1.0
        %v6440 = vadd.f32 %v6312, 1.0
        %v6441 = vadd.f32 %v6313, 1.0
        %v6442 = vadd.f32 %v6314, 1.0
        %v6443 = vadd.f32 %v6315, 1.0
        %v6444 = vadd.f32 %v6316, 1.0
        %v6445 = vadd.f32 %v6317, 1.0
        %v6446 = vadd.f32 %v6318, 1.0
        %v6447 = vadd.f32 %v6319, 1.0
        %v6448 = vadd.f32 %v6320, 1.0
        %v6449 = vadd.f32 %v6321, 1.0
        %v6450 = vadd.f32 %v6322, 1.0
        %v6451 = vadd.f32 %v6323, 1.0
        %v6452 = vadd.f32 %v6324, 1.0
        %v6453 = vadd.f32 %v6325, 1.0
        %v6454 = vadd.f32 %v6326, 1.0
        %v6455 = vadd.f32 %v6327, 1.0
        %v6456 = vadd.f32 %v6328, 1.0
        %v6457 = vadd.f32 %v6329, 1.0
        %v6458 = vadd.f32 %v6330, 1.0
        %v6459 = vadd.f32 %v6331, 1.0
        %v6460 = vadd.f32 %v6332, 1.0
        %v6461 = vadd.f32 %v6333, 1.0
        %v6462 = vadd.f32 %v6334, 1.0
        %v6463 = vadd.f32 %v6335, 1.0
        %v6464 = vadd.f32 %v6336, 1.0
        %v6465 = vadd.f32 %v6337, 1.0
        %v6466 = vadd.f32 %v6338, 1.0
        %v6467 = vadd.f32 %v6339, 1.0
        %v6468 = vadd.f32 %v6340, 1.0
        %v6469 = vadd.f32 %v6341, 1.0
        %v6470 = vadd.f32 %v6342, 1.0
        %v6471 = vadd.f32 %v6343, 1.0
        %v6472 = vadd.f32 %v6344, 1.0
        %v6473 = vadd.f32 %v6345, 1.0
        %v6474 = vadd.f32 %v6346, 1.0
        %v6475 = vadd.f32 %v6347, 1.0
        %v6476 = vadd.f32 %v6348, 1.0
        %v6477 = vadd.f32 %v6349, 1.0
        %v6478 = vadd.f32 %v6350, 1.0
        %v6479 = vadd.f32 %v6351, 1.0
        %v6480 = vadd.f32 %v6352, 1.0
        %v6481 = vadd.f32 %v6353, 1.0
        %v6482 = vadd.f32 %v6354, 1.0
        %v6483 = vadd.f32 %v6355, 1.0
        %v6484 = vadd.f32 %v6356, 1.0
        %v6485 = vadd.f32 %v6357, 1.0
        %v6486 = vadd.f32 %v6358, 1.0
        %v6487 = vadd.f32 %v6359, 1.0
        %v6488 = vadd.f32 %v6360, 1.0
        %v6489 = vadd.f32 %v6361, 1.0
        %v6490 = vadd.f32 %v6362, 1.0
        %v6491 = vadd.f32 %v6363, 1.0
        %v6492 = vadd.f32 %v6364, 1.0
        %v6493 = vadd.f32 %v6365, 1.0
        %v6494 = vadd.f32 %v6366, 1.0
        %v6495 = vadd.f32 %v6367, 1.0
        %v6496 = vadd.f32 %v6368, 1.0
        %v6497 = vadd.f32 %v6369, 1.0
        %v6498 = vadd.f32 %v6370, 1.0
        %v6499 = vadd.f32 %v6371, 1.0
        %v6500 = vadd.f32 %v6372, 1.0
        %v6501 = vadd.f32 %v6373, 1.0
        %v6502 = vadd.f32 %v6374, 1.0
        %v6503 = vadd.f32 %v6375, 1.0
        %v6504 = vadd.f32 %v6376, 1.0
        %v6505 = vadd.f32 %v6377, 1.0
        %v6506 = vadd.f32 %v6378, 1.0
        %v6507 = vadd.f32 %v6379, 1.0
        %v6508 = vadd.f32 %v6380, 1.0
        %v6509 = vadd.f32 %v6381, 1.0
        %v6510 = vadd.f32 %v6382, 1.0
        %v6511 = vadd.f32 %v6383, 1.0
        %v6512 = vadd.f32 %v6384, 1.0
        %v6513 = vadd.f32 %v6385, 1.0
        %v6514 = vadd.f32 %v6386, 1.0
        %v6515 = vadd.f32 %v6387, 1.0
        %v6516 = vadd.f32 %v6388, 1.0
        %v6517 = vadd.f32 %v6389, 1.0
        %v6518 = vadd.f32 %v6390, 1.0
        %v6519 = vadd.f32 %v6391, 1.0
        %v6520 = vadd.f32 %v6392, 1.0
        %v6521 = vadd.f32 %v6393, 1.0
        %v6522 = vadd.f32 %v6394, 1.0
        %v6523 = vadd.f32 %v6395, 1.0
        %v6524 = vadd.f32 %v6396, 1.0
        %v6525 = vadd.f32 %v6397, 1.0
        %v6526 = vadd.f32 %v6398, 1.0
        %v6527 = vadd.f32 %v6399, 1.0
        %v6528 = vadd.f32 %v6400, 1.0
        %v6529 = vadd.f32 %v6401, 1.0
        %v6530 = vadd.f32 %v6402, 1.0
        %v6531 = vadd.f32 %v6403, 1.0
        %v6532 = vadd.f32 %v6404, 1.0
        %v6533 = vadd.f32 %v6405, 1.0
        %v6534 = vadd.f32 %v6406, 1.0
        %v6535 = vadd.f32 %v6407, 1.0
        %v6536 = vadd.f32 %v6408, 1.0
        %v6537 = vadd.f32 %v6409, 1.0
        %v6538 = vadd.f32 %v6410, 1.0
        %v6539 = vadd.f32 %v6411, 1.0
        %v6540 = vadd.f32 %v6412, 1.0
        %v6541 = vadd.f32 %v6413, 1.0
        %v6542 = vadd.f32 %v6414, 1.0
        %v6543 = vadd.f32 %v6415, 1.0
        %v6544 = vadd.f32 %v6416, 1.0
        %v6545 = vadd.f32 %v6417, 1.0
        %v6546 = vadd.f32 %v6418, 1.0
        %v6547 = vadd.f32 %v6419, 1.0
        %v6548 = vadd.f32 %v6420, 1.0
        %v6549 = vadd.f32 %v6421, 1.0
        %v6550 = vadd.f32 %v6422, 1.0
        %v6551 = vadd.f32 %v6423, 1.0
        %v6552 = vadd.f32 %v6424, 1.0
        %v6553 = vadd.f32 %v6425, 1.0
        %v6554 = vadd.f32 %v6426, 1.0
        %v6555 = vadd.f32 %v6427, 1.0
        %v6556 = vadd.f32 %v6428, 1.0
        %v6557 = vadd.f32 %v6429, 1.0
        %v6558 = vadd.f32 %v6430, 1.0
        %v6559 = vadd.f32 %v6431, 1.0
        %v6560 = vadd.f32 %v6432, 1.0
        %v6561 = vadd.f32 %v6433, 1.0
        %v6562 = vadd.f32 %v6434, 1.0
        %v6563 = vadd.f32 %v6435, 1.0
        %v6564 = vmul.f32 %v6436, 0.5
        %v6565 = vmul.f32 %v6437, 0.5
        %v6566 = vmul.f32 %v6438, 0.5
        %v6567 = vmul.f32 %v6439, 0.5
        %v6568 = vmul.f32 %v6440, 0.5
        %v6569 = vmul.f32 %v6441, 0.5
        %v6570 = vmul.f32 %v6442, 0.5
        %v6571 = vmul.f32 %v6443, 0.5
        %v6572 = vmul.f32 %v6444, 0.5
        %v6573 = vmul.f32 %v6445, 0.5
        %v6574 = vmul.f32 %v6446, 0.5
        %v6575 = vmul.f32 %v6447, 0.5
        %v6576 = vmul.f32 %v6448, 0.5
        %v6577 = vmul.f32 %v6449, 0.5
        %v6578 = vmul.f32 %v6450, 0.5
        %v6579 = vmul.f32 %v6451, 0.5
        %v6580 = vmul.f32 %v6452, 0.5
        %v6581 = vmul.f32 %v6453, 0.5
        %v6582 = vmul.f32 %v6454, 0.5
        %v6583 = vmul.f32 %v6455, 0.5
        %v6584 = vmul.f32 %v6456, 0.5
        %v6585 = vmul.f32 %v6457, 0.5
        %v6586 = vmul.f32 %v6458, 0.5
        %v6587 = vmul.f32 %v6459, 0.5
        %v6588 = vmul.f32 %v6460, 0.5
        %v6589 = vmul.f32 %v6461, 0.5
        %v6590 = vmul.f32 %v6462, 0.5
        %v6591 = vmul.f32 %v6463, 0.5
        %v6592 = vmul.f32 %v6464, 0.5
        %v6593 = vmul.f32 %v6465, 0.5
        %v6594 = vmul.f32 %v6466, 0.5
        %v6595 = vmul.f32 %v6467, 0.5
        %v6596 = vmul.f32 %v6468, 0.5
        %v6597 = vmul.f32 %v6469, 0.5
        %v6598 = vmul.f32 %v6470, 0.5
        %v6599 = vmul.f32 %v6471, 0.5
        %v6600 = vmul.f32 %v6472, 0.5
        %v6601 = vmul.f32 %v6473, 0.5
        %v6602 = vmul.f32 %v6474, 0.5
        %v6603 = vmul.f32 %v6475, 0.5
        %v6604 = vmul.f32 %v6476, 0.5
        %v6605 = vmul.f32 %v6477, 0.5
        %v6606 = vmul.f32 %v6478, 0.5
        %v6607 = vmul.f32 %v6479, 0.5
        %v6608 = vmul.f32 %v6480, 0.5
        %v6609 = vmul.f32 %v6481, 0.5
        %v6610 = vmul.f32 %v6482, 0.5
        %v6611 = vmul.f32 %v6483, 0.5
        %v6612 = vmul.f32 %v6484, 0.5
        %v6613 = vmul.f32 %v6485, 0.5
        %v6614 = vmul.f32 %v6486, 0.5
        %v6615 = vmul.f32 %v6487, 0.5
        %v6616 = vmul.f32 %v6488, 0.5
        %v6617 = vmul.f32 %v6489, 0.5
        %v6618 = vmul.f32 %v6490, 0.5
        %v6619 = vmul.f32 %v6491, 0.5
        %v6620 = vmul.f32 %v6492, 0.5
        %v6621 = vmul.f32 %v6493, 0.5
        %v6622 = vmul.f32 %v6494, 0.5
        %v6623 = vmul.f32 %v6495, 0.5
        %v6624 = vmul.f32 %v6496, 0.5
        %v6625 = vmul.f32 %v6497, 0.5
        %v6626 = vmul.f32 %v6498, 0.5
        %v6627 = vmul.f32 %v6499, 0.5
        %v6628 = vmul.f32 %v6500, 0.5
        %v6629 = vmul.f32 %v6501, 0.5
        %v6630 = vmul.f32 %v6502, 0.5
        %v6631 = vmul.f32 %v6503, 0.5
        %v6632 = vmul.f32 %v6504, 0.5
        %v6633 = vmul.f32 %v6505, 0.5
        %v6634 = vmul.f32 %v6506, 0.5
        %v6635 = vmul.f32 %v6507, 0.5
        %v6636 = vmul.f32 %v6508, 0.5
        %v6637 = vmul.f32 %v6509, 0.5
        %v6638 = vmul.f32 %v6510, 0.5
        %v6639 = vmul.f32 %v6511, 0.5
        %v6640 = vmul.f32 %v6512, 0.5
        %v6641 = vmul.f32 %v6513, 0.5
        %v6642 = vmul.f32 %v6514, 0.5
        %v6643 = vmul.f32 %v6515, 0.5
        %v6644 = vmul.f32 %v6516, 0.5
        %v6645 = vmul.f32 %v6517, 0.5
        %v6646 = vmul.f32 %v6518, 0.5
        %v6647 = vmul.f32 %v6519, 0.5
        %v6648 = vmul.f32 %v6520, 0.5
        %v6649 = vmul.f32 %v6521, 0.5
        %v6650 = vmul.f32 %v6522, 0.5
        %v6651 = vmul.f32 %v6523, 0.5
        %v6652 = vmul.f32 %v6524, 0.5
        %v6653 = vmul.f32 %v6525, 0.5
        %v6654 = vmul.f32 %v6526, 0.5
        %v6655 = vmul.f32 %v6527, 0.5
        %v6656 = vmul.f32 %v6528, 0.5
        %v6657 = vmul.f32 %v6529, 0.5
        %v6658 = vmul.f32 %v6530, 0.5
        %v6659 = vmul.f32 %v6531, 0.5
        %v6660 = vmul.f32 %v6532, 0.5
        %v6661 = vmul.f32 %v6533, 0.5
        %v6662 = vmul.f32 %v6534, 0.5
        %v6663 = vmul.f32 %v6535, 0.5
        %v6664 = vmul.f32 %v6536, 0.5
        %v6665 = vmul.f32 %v6537, 0.5
        %v6666 = vmul.f32 %v6538, 0.5
        %v6667 = vmul.f32 %v6539, 0.5
        %v6668 = vmul.f32 %v6540, 0.5
        %v6669 = vmul.f32 %v6541, 0.5
        %v6670 = vmul.f32 %v6542, 0.5
        %v6671 = vmul.f32 %v6543, 0.5
        %v6672 = vmul.f32 %v6544, 0.5
        %v6673 = vmul.f32 %v6545, 0.5
        %v6674 = vmul.f32 %v6546, 0.5
        %v6675 = vmul.f32 %v6547, 0.5
        %v6676 = vmul.f32 %v6548, 0.5
        %v6677 = vmul.f32 %v6549, 0.5
        %v6678 = vmul.f32 %v6550, 0.5
        %v6679 = vmul.f32 %v6551, 0.5
        %v6680 = vmul.f32 %v6552, 0.5
        %v6681 = vmul.f32 %v6553, 0.5
        %v6682 = vmul.f32 %v6554, 0.5
        %v6683 = vmul.f32 %v6555, 0.5
        %v6684 = vmul.f32 %v6556, 0.5
        %v6685 = vmul.f32 %v6557, 0.5
        %v6686 = vmul.f32 %v6558, 0.5
        %v6687 = vmul.f32 %v6559, 0.5
        %v6688 = vmul.f32 %v6560, 0.5
        %v6689 = vmul.f32 %v6561, 0.5
        %v6690 = vmul.f32 %v6562, 0.5
        %v6691 = vmul.f32 %v6563, 0.5
        %v6692 = vmul.f32 %v5349, %v6564
        %v6693 = vmul.f32 %v5351, %v6565
        %v6694 = vmul.f32 %v5354, %v6566
        %v6695 = vmul.f32 %v5356, %v6567
        %v6696 = vmul.f32 %v5359, %v6568
        %v6697 = vmul.f32 %v5361, %v6569
        %v6698 = vmul.f32 %v5364, %v6570
        %v6699 = vmul.f32 %v5366, %v6571
        %v6700 = vmul.f32 %v5369, %v6572
        %v6701 = vmul.f32 %v5371, %v6573
        %v6702 = vmul.f32 %v5374, %v6574
        %v6703 = vmul.f32 %v5376, %v6575
        %v6704 = vmul.f32 %v5379, %v6576
        %v6705 = vmul.f32 %v5381, %v6577
        %v6706 = vmul.f32 %v5384, %v6578
        %v6707 = vmul.f32 %v5386, %v6579
        %v6708 = vmul.f32 %v5389, %v6580
        %v6709 = vmul.f32 %v5391, %v6581
        %v6710 = vmul.f32 %v5394, %v6582
        %v6711 = vmul.f32 %v5396, %v6583
        %v6712 = vmul.f32 %v5399, %v6584
        %v6713 = vmul.f32 %v5401, %v6585
        %v6714 = vmul.f32 %v5404, %v6586
        %v6715 = vmul.f32 %v5406, %v6587
        %v6716 = vmul.f32 %v5409, %v6588
        %v6717 = vmul.f32 %v5411, %v6589
        %v6718 = vmul.f32 %v5414, %v6590
        %v6719 = vmul.f32 %v5416, %v6591
        %v6720 = vmul.f32 %v5419, %v6592
        %v6721 = vmul.f32 %v5421, %v6593
        %v6722 = vmul.f32 %v5424, %v6594
        %v6723 = vmul.f32 %v5426, %v6595
        %v6724 = vmul.f32 %v5429, %v6596
        %v6725 = vmul.f32 %v5431, %v6597
        %v6726 = vmul.f32 %v5434, %v6598
        %v6727 = vmul.f32 %v5436, %v6599
        %v6728 = vmul.f32 %v5439, %v6600
        %v6729 = vmul.f32 %v5441, %v6601
        %v6730 = vmul.f32 %v5444, %v6602
        %v6731 = vmul.f32 %v5446, %v6603
        %v6732 = vmul.f32 %v5449, %v6604
        %v6733 = vmul.f32 %v5451, %v6605
        %v6734 = vmul.f32 %v5454, %v6606
        %v6735 = vmul.f32 %v5456, %v6607
        %v6736 = vmul.f32 %v5459, %v6608
        %v6737 = vmul.f32 %v5461, %v6609
        %v6738 = vmul.f32 %v5464, %v6610
        %v6739 = vmul.f32 %v5466, %v6611
        %v6740 = vmul.f32 %v5469, %v6612
        %v6741 = vmul.f32 %v5471, %v6613
        %v6742 = vmul.f32 %v5474, %v6614
        %v6743 = vmul.f32 %v5476, %v6615
        %v6744 = vmul.f32 %v5479, %v6616
        %v6745 = vmul.f32 %v5481, %v6617
        %v6746 = vmul.f32 %v5484, %v6618
        %v6747 = vmul.f32 %v5486, %v6619
        %v6748 = vmul.f32 %v5489, %v6620
        %v6749 = vmul.f32 %v5491, %v6621
        %v6750 = vmul.f32 %v5494, %v6622
        %v6751 = vmul.f32 %v5496, %v6623
        %v6752 = vmul.f32 %v5499, %v6624
        %v6753 = vmul.f32 %v5501, %v6625
        %v6754 = vmul.f32 %v5504, %v6626
        %v6755 = vmul.f32 %v5506, %v6627
        %v6756 = vmul.f32 %v5509, %v6628
        %v6757 = vmul.f32 %v5511, %v6629
        %v6758 = vmul.f32 %v5514, %v6630
        %v6759 = vmul.f32 %v5516, %v6631
        %v6760 = vmul.f32 %v5519, %v6632
        %v6761 = vmul.f32 %v5521, %v6633
        %v6762 = vmul.f32 %v5524, %v6634
        %v6763 = vmul.f32 %v5526, %v6635
        %v6764 = vmul.f32 %v5529, %v6636
        %v6765 = vmul.f32 %v5531, %v6637
        %v6766 = vmul.f32 %v5534, %v6638
        %v6767 = vmul.f32 %v5536, %v6639
        %v6768 = vmul.f32 %v5539, %v6640
        %v6769 = vmul.f32 %v5541, %v6641
        %v6770 = vmul.f32 %v5544, %v6642
        %v6771 = vmul.f32 %v5546, %v6643
        %v6772 = vmul.f32 %v5549, %v6644
        %v6773 = vmul.f32 %v5551, %v6645
        %v6774 = vmul.f32 %v5554, %v6646
        %v6775 = vmul.f32 %v5556, %v6647
        %v6776 = vmul.f32 %v5559, %v6648
        %v6777 = vmul.f32 %v5561, %v6649
        %v6778 = vmul.f32 %v5564, %v6650
        %v6779 = vmul.f32 %v5566, %v6651
        %v6780 = vmul.f32 %v5569, %v6652
        %v6781 = vmul.f32 %v5571, %v6653
        %v6782 = vmul.f32 %v5574, %v6654
        %v6783 = vmul.f32 %v5576, %v6655
        %v6784 = vmul.f32 %v5579, %v6656
        %v6785 = vmul.f32 %v5581, %v6657
        %v6786 = vmul.f32 %v5584, %v6658
        %v6787 = vmul.f32 %v5586, %v6659
        %v6788 = vmul.f32 %v5589, %v6660
        %v6789 = vmul.f32 %v5591, %v6661
        %v6790 = vmul.f32 %v5594, %v6662
        %v6791 = vmul.f32 %v5596, %v6663
        %v6792 = vmul.f32 %v5599, %v6664
        %v6793 = vmul.f32 %v5601, %v6665
        %v6794 = vmul.f32 %v5604, %v6666
        %v6795 = vmul.f32 %v5606, %v6667
        %v6796 = vmul.f32 %v5609, %v6668
        %v6797 = vmul.f32 %v5611, %v6669
        %v6798 = vmul.f32 %v5614, %v6670
        %v6799 = vmul.f32 %v5616, %v6671
        %v6800 = vmul.f32 %v5619, %v6672
        %v6801 = vmul.f32 %v5621, %v6673
        %v6802 = vmul.f32 %v5624, %v6674
        %v6803 = vmul.f32 %v5626, %v6675
        %v6804 = vmul.f32 %v5629, %v6676
        %v6805 = vmul.f32 %v5631, %v6677
        %v6806 = vmul.f32 %v5634, %v6678
        %v6807 = vmul.f32 %v5636, %v6679
        %v6808 = vmul.f32 %v5639, %v6680
        %v6809 = vmul.f32 %v5641, %v6681
        %v6810 = vmul.f32 %v5644, %v6682
        %v6811 = vmul.f32 %v5646, %v6683
        %v6812 = vmul.f32 %v5649, %v6684
        %v6813 = vmul.f32 %v5651, %v6685
        %v6814 = vmul.f32 %v5654, %v6686
        %v6815 = vmul.f32 %v5656, %v6687
        %v6816 = vmul.f32 %v5659, %v6688
        %v6817 = vmul.f32 %v5661, %v6689
        %v6818 = vmul.f32 %v5664, %v6690
        %v6819 = vmul.f32 %v5666, %v6691
        %v6820 = vadd.f32 %v5082, %v6692
        %v6821 = vadd.f32 %v5083, %v6693
        %v6822 = vadd.f32 %v5084, %v6694
        %v6823 = vadd.f32 %v5085, %v6695
        %v6824 = vadd.f32 %v5086, %v6696
        %v6825 = vadd.f32 %v5087, %v6697
        %v6826 = vadd.f32 %v5088, %v6698
        %v6827 = vadd.f32 %v5089, %v6699
        %v6828 = vadd.f32 %v5090, %v6700
        %v6829 = vadd.f32 %v5091, %v6701
        %v6830 = vadd.f32 %v5092, %v6702
        %v6831 = vadd.f32 %v5093, %v6703
        %v6832 = vadd.f32 %v5094, %v6704
        %v6833 = vadd.f32 %v5095, %v6705
        %v6834 = vadd.f32 %v5096, %v6706
        %v6835 = vadd.f32 %v5097, %v6707
        %v6836 = vadd.f32 %v5098, %v6708
        %v6837 = vadd.f32 %v5099, %v6709
        %v6838 = vadd.f32 %v5100, %v6710
        %v6839 = vadd.f32 %v5101, %v6711
        %v6840 = vadd.f32 %v5102, %v6712
        %v6841 = vadd.f32 %v5103, %v6713
        %v6842 = vadd.f32 %v5104, %v6714
        %v6843 = vadd.f32 %v5105, %v6715
        %v6844 = vadd.f32 %v5106, %v6716
        %v6845 = vadd.f32 %v5107, %v6717
        %v6846 = vadd.f32 %v5108, %v6718
        %v6847 = vadd.f32 %v5109, %v6719
        %v6848 = vadd.f32 %v5110, %v6720
        %v6849 = vadd.f32 %v5111, %v6721
        %v6850 = vadd.f32 %v5112, %v6722
        %v6851 = vadd.f32 %v5113, %v6723
        %v6852 = vadd.f32 %v5114, %v6724
        %v6853 = vadd.f32 %v5115, %v6725
        %v6854 = vadd.f32 %v5116, %v6726
        %v6855 = vadd.f32 %v5117, %v6727
        %v6856 = vadd.f32 %v5118, %v6728
        %v6857 = vadd.f32 %v5119, %v6729
        %v6858 = vadd.f32 %v5120, %v6730
        %v6859 = vadd.f32 %v5121, %v6731
        %v6860 = vadd.f32 %v5122, %v6732
        %v6861 = vadd.f32 %v5123, %v6733
        %v6862 = vadd.f32 %v5124, %v6734
        %v6863 = vadd.f32 %v5125, %v6735
        %v6864 = vadd.f32 %v5126, %v6736
        %v6865 = vadd.f32 %v5127, %v6737
        %v6866 = vadd.f32 %v5128, %v6738
        %v6867 = vadd.f32 %v5129, %v6739
        %v6868 = vadd.f32 %v5130, %v6740
        %v6869 = vadd.f32 %v5131, %v6741
        %v6870 = vadd.f32 %v5132, %v6742
        %v6871 = vadd.f32 %v5133, %v6743
        %v6872 = vadd.f32 %v5134, %v6744
        %v6873 = vadd.f32 %v5135, %v6745
        %v6874 = vadd.f32 %v5136, %v6746
        %v6875 = vadd.f32 %v5137, %v6747
        %v6876 = vadd.f32 %v5138, %v6748
        %v6877 = vadd.f32 %v5139, %v6749
        %v6878 = vadd.f32 %v5140, %v6750
        %v6879 = vadd.f32 %v5141, %v6751
        %v6880 = vadd.f32 %v5142, %v6752
        %v6881 = vadd.f32 %v5143, %v6753
        %v6882 = vadd.f32 %v5144, %v6754
        %v6883 = vadd.f32 %v5145, %v6755
        %v6884 = vadd.f32 %v5146, %v6756
        %v6885 = vadd.f32 %v5147, %v6757
        %v6886 = vadd.f32 %v5148, %v6758
        %v6887 = vadd.f32 %v5149, %v6759
        %v6888 = vadd.f32 %v5150, %v6760
        %v6889 = vadd.f32 %v5151, %v6761
        %v6890 = vadd.f32 %v5152, %v6762
        %v6891 = vadd.f32 %v5153, %v6763
        %v6892 = vadd.f32 %v5154, %v6764
        %v6893 = vadd.f32 %v5155, %v6765
        %v6894 = vadd.f32 %v5156, %v6766
        %v6895 = vadd.f32 %v5157, %v6767
        %v6896 = vadd.f32 %v5158, %v6768
        %v6897 = vadd.f32 %v5159, %v6769
        %v6898 = vadd.f32 %v5160, %v6770
        %v6899 = vadd.f32 %v5161, %v6771
        %v6900 = vadd.f32 %v5162, %v6772
        %v6901 = vadd.f32 %v5163, %v6773
        %v6902 = vadd.f32 %v5164, %v6774
        %v6903 = vadd.f32 %v5165, %v6775
        %v6904 = vadd.f32 %v5166, %v6776
        %v6905 = vadd.f32 %v5167, %v6777
        %v6906 = vadd.f32 %v5168, %v6778
        %v6907 = vadd.f32 %v5169, %v6779
        %v6908 = vadd.f32 %v5170, %v6780
        %v6909 = vadd.f32 %v5171, %v6781
        %v6910 = vadd.f32 %v5172, %v6782
        %v6911 = vadd.f32 %v5173, %v6783
        %v6912 = vadd.f32 %v5174, %v6784
        %v6913 = vadd.f32 %v5175, %v6785
        %v6914 = vadd.f32 %v5176, %v6786
        %v6915 = vadd.f32 %v5177, %v6787
        %v6916 = vadd.f32 %v5178, %v6788
        %v6917 = vadd.f32 %v5179, %v6789
        %v6918 = vadd.f32 %v5180, %v6790
        %v6919 = vadd.f32 %v5181, %v6791
        %v6920 = vadd.f32 %v5182, %v6792
        %v6921 = vadd.f32 %v5183, %v6793
        %v6922 = vadd.f32 %v5184, %v6794
        %v6923 = vadd.f32 %v5185, %v6795
        %v6924 = vadd.f32 %v5186, %v6796
        %v6925 = vadd.f32 %v5187, %v6797
        %v6926 = vadd.f32 %v5188, %v6798
        %v6927 = vadd.f32 %v5189, %v6799
        %v6928 = vadd.f32 %v5190, %v6800
        %v6929 = vadd.f32 %v5191, %v6801
        %v6930 = vadd.f32 %v5192, %v6802
        %v6931 = vadd.f32 %v5193, %v6803
        %v6932 = vadd.f32 %v5194, %v6804
        %v6933 = vadd.f32 %v5195, %v6805
        %v6934 = vadd.f32 %v5196, %v6806
        %v6935 = vadd.f32 %v5197, %v6807
        %v6936 = vadd.f32 %v5198, %v6808
        %v6937 = vadd.f32 %v5199, %v6809
        %v6938 = vadd.f32 %v5200, %v6810
        %v6939 = vadd.f32 %v5201, %v6811
        %v6940 = vadd.f32 %v5202, %v6812
        %v6941 = vadd.f32 %v5203, %v6813
        %v6942 = vadd.f32 %v5204, %v6814
        %v6943 = vadd.f32 %v5205, %v6815
        %v6944 = vadd.f32 %v5206, %v6816
        %v6945 = vadd.f32 %v5207, %v6817
        %v6946 = vadd.f32 %v5208, %v6818
        %v6947 = vadd.f32 %v5209, %v6819
        %v6948 = vadd.f32 %v6820, %v6821
        %v6949 = vadd.f32 %v6948, %v6822
        %v6950 = vadd.f32 %v6949, %v6823
        %v6951 = vadd.f32 %v6950, %v6824
        %v6952 = vadd.f32 %v6951, %v6825
        %v6953 = vadd.f32 %v6952, %v6826
        %v6954 = vadd.f32 %v6953, %v6827
        %v6955 = vadd.f32 %v6954, %v6828
        %v6956 = vadd.f32 %v6955, %v6829
        %v6957 = vadd.f32 %v6956, %v6830
        %v6958 = vadd.f32 %v6957, %v6831
        %v6959 = vadd.f32 %v6958, %v6832
        %v6960 = vadd.f32 %v6959, %v6833
        %v6961 = vadd.f32 %v6960, %v6834
        %v6962 = vadd.f32 %v6961, %v6835
        %v6963 = vrot.slane %v6962, 4
        %v6964 = vadd.f32 %v6962, %v6963
        %v6965 = vrot.slane %v6964, 2
        %v6966 = vadd.f32 %v6964, %v6965
        %v6967 = vrot.slane %v6966, 1
        %v6968 = vadd.f32 %v6966, %v6967
        %v6969 = vadd.f32 %v6836, %v6837
        %v6970 = vadd.f32 %v6969, %v6838
        %v6971 = vadd.f32 %v6970, %v6839
        %v6972 = vadd.f32 %v6971, %v6840
        %v6973 = vadd.f32 %v6972, %v6841
        %v6974 = vadd.f32 %v6973, %v6842
        %v6975 = vadd.f32 %v6974, %v6843
        %v6976 = vadd.f32 %v6975, %v6844
        %v6977 = vadd.f32 %v6976, %v6845
        %v6978 = vadd.f32 %v6977, %v6846
        %v6979 = vadd.f32 %v6978, %v6847
        %v6980 = vadd.f32 %v6979, %v6848
        %v6981 = vadd.f32 %v6980, %v6849
        %v6982 = vadd.f32 %v6981, %v6850
        %v6983 = vadd.f32 %v6982, %v6851
        %v6984 = vrot.slane %v6983, 4
        %v6985 = vadd.f32 %v6983, %v6984
        %v6986 = vrot.slane %v6985, 2
        %v6987 = vadd.f32 %v6985, %v6986
        %v6988 = vrot.slane %v6987, 1
        %v6989 = vadd.f32 %v6987, %v6988
        %v6990 = vadd.f32 %v6852, %v6853
        %v6991 = vadd.f32 %v6990, %v6854
        %v6992 = vadd.f32 %v6991, %v6855
        %v6993 = vadd.f32 %v6992, %v6856
        %v6994 = vadd.f32 %v6993, %v6857
        %v6995 = vadd.f32 %v6994, %v6858
        %v6996 = vadd.f32 %v6995, %v6859
        %v6997 = vadd.f32 %v6996, %v6860
        %v6998 = vadd.f32 %v6997, %v6861
        %v6999 = vadd.f32 %v6998, %v6862
        %v7000 = vadd.f32 %v6999, %v6863
        %v7001 = vadd.f32 %v7000, %v6864
        %v7002 = vadd.f32 %v7001, %v6865
        %v7003 = vadd.f32 %v7002, %v6866
        %v7004 = vadd.f32 %v7003, %v6867
        %v7005 = vrot.slane %v7004, 4
        %v7006 = vadd.f32 %v7004, %v7005
        %v7007 = vrot.slane %v7006, 2
        %v7008 = vadd.f32 %v7006, %v7007
        %v7009 = vrot.slane %v7008, 1
        %v7010 = vadd.f32 %v7008, %v7009
        %v7011 = vadd.f32 %v6868, %v6869
        %v7012 = vadd.f32 %v7011, %v6870
        %v7013 = vadd.f32 %v7012, %v6871
        %v7014 = vadd.f32 %v7013, %v6872
        %v7015 = vadd.f32 %v7014, %v6873
        %v7016 = vadd.f32 %v7015, %v6874
        %v7017 = vadd.f32 %v7016, %v6875
        %v7018 = vadd.f32 %v7017, %v6876
        %v7019 = vadd.f32 %v7018, %v6877
        %v7020 = vadd.f32 %v7019, %v6878
        %v7021 = vadd.f32 %v7020, %v6879
        %v7022 = vadd.f32 %v7021, %v6880
        %v7023 = vadd.f32 %v7022, %v6881
        %v7024 = vadd.f32 %v7023, %v6882
        %v7025 = vadd.f32 %v7024, %v6883
        %v7026 = vrot.slane %v7025, 4
        %v7027 = vadd.f32 %v7025, %v7026
        %v7028 = vrot.slane %v7027, 2
        %v7029 = vadd.f32 %v7027, %v7028
        %v7030 = vrot.slane %v7029, 1
        %v7031 = vadd.f32 %v7029, %v7030
        %v7032 = vadd.f32 %v6884, %v6885
        %v7033 = vadd.f32 %v7032, %v6886
        %v7034 = vadd.f32 %v7033, %v6887
        %v7035 = vadd.f32 %v7034, %v6888
        %v7036 = vadd.f32 %v7035, %v6889
        %v7037 = vadd.f32 %v7036, %v6890
        %v7038 = vadd.f32 %v7037, %v6891
        %v7039 = vadd.f32 %v7038, %v6892
        %v7040 = vadd.f32 %v7039, %v6893
        %v7041 = vadd.f32 %v7040, %v6894
        %v7042 = vadd.f32 %v7041, %v6895
        %v7043 = vadd.f32 %v7042, %v6896
        %v7044 = vadd.f32 %v7043, %v6897
        %v7045 = vadd.f32 %v7044, %v6898
        %v7046 = vadd.f32 %v7045, %v6899
        %v7047 = vrot.slane %v7046, 4
        %v7048 = vadd.f32 %v7046, %v7047
        %v7049 = vrot.slane %v7048, 2
        %v7050 = vadd.f32 %v7048, %v7049
        %v7051 = vrot.slane %v7050, 1
        %v7052 = vadd.f32 %v7050, %v7051
        %v7053 = vadd.f32 %v6900, %v6901
        %v7054 = vadd.f32 %v7053, %v6902
        %v7055 = vadd.f32 %v7054, %v6903
        %v7056 = vadd.f32 %v7055, %v6904
        %v7057 = vadd.f32 %v7056, %v6905
        %v7058 = vadd.f32 %v7057, %v6906
        %v7059 = vadd.f32 %v7058, %v6907
        %v7060 = vadd.f32 %v7059, %v6908
        %v7061 = vadd.f32 %v7060, %v6909
        %v7062 = vadd.f32 %v7061, %v6910
        %v7063 = vadd.f32 %v7062, %v6911
        %v7064 = vadd.f32 %v7063, %v6912
        %v7065 = vadd.f32 %v7064, %v6913
        %v7066 = vadd.f32 %v7065, %v6914
        %v7067 = vadd.f32 %v7066, %v6915
        %v7068 = vrot.slane %v7067, 4
        %v7069 = vadd.f32 %v7067, %v7068
        %v7070 = vrot.slane %v7069, 2
        %v7071 = vadd.f32 %v7069, %v7070
        %v7072 = vrot.slane %v7071, 1
        %v7073 = vadd.f32 %v7071, %v7072
        %v7074 = vadd.f32 %v6916, %v6917
        %v7075 = vadd.f32 %v7074, %v6918
        %v7076 = vadd.f32 %v7075, %v6919
        %v7077 = vadd.f32 %v7076, %v6920
        %v7078 = vadd.f32 %v7077, %v6921
        %v7079 = vadd.f32 %v7078, %v6922
        %v7080 = vadd.f32 %v7079, %v6923
        %v7081 = vadd.f32 %v7080, %v6924
        %v7082 = vadd.f32 %v7081, %v6925
        %v7083 = vadd.f32 %v7082, %v6926
        %v7084 = vadd.f32 %v7083, %v6927
        %v7085 = vadd.f32 %v7084, %v6928
        %v7086 = vadd.f32 %v7085, %v6929
        %v7087 = vadd.f32 %v7086, %v6930
        %v7088 = vadd.f32 %v7087, %v6931
        %v7089 = vrot.slane %v7088, 4
        %v7090 = vadd.f32 %v7088, %v7089
        %v7091 = vrot.slane %v7090, 2
        %v7092 = vadd.f32 %v7090, %v7091
        %v7093 = vrot.slane %v7092, 1
        %v7094 = vadd.f32 %v7092, %v7093
        %v7095 = vadd.f32 %v6932, %v6933
        %v7096 = vadd.f32 %v7095, %v6934
        %v7097 = vadd.f32 %v7096, %v6935
        %v7098 = vadd.f32 %v7097, %v6936
        %v7099 = vadd.f32 %v7098, %v6937
        %v7100 = vadd.f32 %v7099, %v6938
        %v7101 = vadd.f32 %v7100, %v6939
        %v7102 = vadd.f32 %v7101, %v6940
        %v7103 = vadd.f32 %v7102, %v6941
        %v7104 = vadd.f32 %v7103, %v6942
        %v7105 = vadd.f32 %v7104, %v6943
        %v7106 = vadd.f32 %v7105, %v6944
        %v7107 = vadd.f32 %v7106, %v6945
        %v7108 = vadd.f32 %v7107, %v6946
        %v7109 = vadd.f32 %v7108, %v6947
        %v7110 = vrot.slane %v7109, 4
        %v7111 = vadd.f32 %v7109, %v7110
        %v7112 = vrot.slane %v7111, 2
        %v7113 = vadd.f32 %v7111, %v7112
        %v7114 = vrot.slane %v7113, 1
        %v7115 = vadd.f32 %v7113, %v7114
        %v7116 = vmul.f32 %v6968, %v2647
        %v7117 = vmul.f32 %v6989, %v2647
        %v7118 = vmul.f32 %v7010, %v2647
        %v7119 = vmul.f32 %v7031, %v2647
        %v7120 = vmul.f32 %v7052, %v2647
        %v7121 = vmul.f32 %v7073, %v2647
        %v7122 = vmul.f32 %v7094, %v2647
        %v7123 = vmul.f32 %v7115, %v2647
        %v7124 = vpack.c.bf16 %v7116, %v7116
        %v7125 = vpack.c.bf16 %v7117, %v7117
        %v7126 = vpack.c.bf16 %v7118, %v7118
        %v7127 = vpack.c.bf16 %v7119, %v7119
        %v7128 = vpack.c.bf16 %v7120, %v7120
        %v7129 = vpack.c.bf16 %v7121, %v7121
        %v7130 = vpack.c.bf16 %v7122, %v7122
        %v7131 = vpack.c.bf16 %v7123, %v7123
        %v7132 = vld [vmem:[%s4] sm:$0xf]
        %v7133 = vld [vmem:[%s4 + $0x4] sm:$0xf]
        %v7134 = vld [vmem:[%s4 + $0x8] sm:$0xf]
        %v7135 = vld [vmem:[%s4 + $0xc] sm:$0xf]
        %v7136 = vld [vmem:[%s4 + $0x10] sm:$0xf]
        %v7137 = vld [vmem:[%s4 + $0x14] sm:$0xf]
        %v7138 = vld [vmem:[%s4 + $0x18] sm:$0xf]
        %v7139 = vld [vmem:[%s4 + $0x1c] sm:$0xf]
        %v7140 = vld [vmem:[%s4 + $0x20] sm:$0xf]
        %v7141 = vld [vmem:[%s4 + $0x24] sm:$0xf]
        %v7142 = vld [vmem:[%s4 + $0x28] sm:$0xf]
        %v7143 = vld [vmem:[%s4 + $0x2c] sm:$0xf]
        %v7144 = vld [vmem:[%s4 + $0x30] sm:$0xf]
        %v7145 = vld [vmem:[%s4 + $0x34] sm:$0xf]
        %v7146 = vld [vmem:[%s4 + $0x38] sm:$0xf]
        %v7147 = vld [vmem:[%s4 + $0x3c] sm:$0xf]
        %v7148 = vld [vmem:[%s5] sm:$0x1]
        %v7150 = vperm.slane %v7148, 0
        %v7160 = vunpack.c.l.b16 %v7124
        %v7161 = vunpack.c.l.b16 %v7125
        %v7162 = vunpack.c.l.b16 %v7126
        %v7163 = vunpack.c.l.b16 %v7127
        %v7164 = vunpack.c.l.b16 %v7128
        %v7165 = vunpack.c.l.b16 %v7129
        %v7166 = vunpack.c.l.b16 %v7130
        %v7167 = vunpack.c.l.b16 %v7131
        %vm7168 = vcmask 1041409
        %v7169 = vsel %vm7168, %v7161, %v7160
        %vm7170 = vcmask 1042434
        %v7171 = vsel %vm7170, %v7162, %v7169
        %vm7172 = vcmask 1043459
        %v7173 = vsel %vm7172, %v7163, %v7171
        %vm7174 = vcmask 1044484
        %v7175 = vsel %vm7174, %v7164, %v7173
        %vm7176 = vcmask 1045509
        %v7177 = vsel %vm7176, %v7165, %v7175
        %vm7178 = vcmask 1046534
        %v7179 = vsel %vm7178, %v7166, %v7177
        %vm7180 = vcmask 1047559
        %v7181 = vsel %vm7180, %v7167, %v7179
        %v7182 = vpack.c.b16 %v7181, %v7181
        %v7200 = vunpack.c.l.b16 %v7132
        %v7201 = vunpack.c.l.b16 %v7133
        %v7202 = vunpack.c.l.b16 %v7134
        %v7203 = vunpack.c.l.b16 %v7135
        %v7204 = vunpack.c.l.b16 %v7136
        %v7205 = vunpack.c.l.b16 %v7137
        %v7206 = vunpack.c.l.b16 %v7138
        %v7207 = vunpack.c.l.b16 %v7139
        %v7208 = vunpack.c.l.b16 %v7140
        %v7209 = vunpack.c.l.b16 %v7141
        %v7210 = vunpack.c.l.b16 %v7142
        %v7211 = vunpack.c.l.b16 %v7143
        %v7212 = vunpack.c.l.b16 %v7144
        %v7213 = vunpack.c.l.b16 %v7145
        %v7214 = vunpack.c.l.b16 %v7146
        %v7215 = vunpack.c.l.b16 %v7147
        %v7216 = vpack.c.b16 %v7201, %v7200
        %v7217 = vpack.c.b16 %v7203, %v7202
        %v7218 = vpack.c.b16 %v7205, %v7204
        %v7219 = vpack.c.b16 %v7207, %v7206
        %v7220 = vpack.c.b16 %v7209, %v7208
        %v7221 = vpack.c.b16 %v7211, %v7210
        %v7222 = vpack.c.b16 %v7213, %v7212
        %v7223 = vpack.c.b16 %v7215, %v7214
        %7232 = vmatpush.bf16.msra.mxu0 %v7223
        %7233 = vmatpush.bf16.msra.mxu0 %v7222
        %7234 = vmatpush.bf16.msra.mxu0 %v7221
        %7235 = vmatpush.bf16.msra.mxu0 %v7220
        %7236 = vmatpush.bf16.msra.mxu0 %v7219
        %7237 = vmatpush.bf16.msra.mxu0 %v7218
        %7238 = vmatpush.bf16.msra.mxu0 %v7217
        %7239 = vmatpush.bf16.msra.mxu0 %v7216
        %7240 = vmatmul.bf16.gmra.mxu0 %v7182
        %v7241 = vpop.f32.mrf.mxu0
        %v7242 = vadd.f32 %v7150, %v7241
        %v7243 = vpop.f32.mrf.mxu0
        %7244 = vdwg.mxu0
        %7245 = vst [vmem:[%s247] sm:$0xff] %v7242
        %s7246 = sand.u32 %s159, 1
        %s7247 = scalar_lea.sflag [#allocation3], %s7246
        %s7248 = sand.u32 %s159, 1
        %s7249 = smul.addr %s7248, 8
        %s7250 = scalar_lea.vmem [#allocation2], %s7249
        // Predicated region
        $region45: #{tpu_custom_call.1} parent=43 // pred_check
          %p7251 = pneg %p169
        $region46: #{tpu_custom_call.1} parent=43 // pred_check_branch
          %7253 = sbr.rel (%p7251) target = $region48
        $region47: #{tpu_custom_call.1} parent=43 // pred_region
          %7255 = vsyncadd %s7247, 0
          %s7256 = smul.addr %s20, 8
          %s7257 = scalar_lea.hbm %s6, %s7256
          %s7259 = sshll.u32 %s7250, 4
          %s7260 = int_to_ptr.vmem [resolvable:$true] %s7259
          %s7261 = sshll.u32 %s7257, 4
          %s7262 = int_to_ptr.hbm [resolvable:$true] %s7261
          %7264 = dma.vmem_to_hbm [thread:$0]  %s7260, 128, %s7262, %s7247
        $region48: #{tpu_custom_call.1} parent=43 // pred_fallthru
          _
      $region44: #{tpu_custom_call.1} parent=5 // pred_fallthru
        _
      %p7265 = scmp.le.s32.totalorder 2, %s15
      // Predicated region
      $region49: #{tpu_custom_call.1} parent=5 // pred_check
        %p7266 = pneg %p7265
      $region50: #{tpu_custom_call.1} parent=5 // pred_check_branch
        %7268 = sbr.rel (%p7266) target = $region52
      $region51: #{tpu_custom_call.1} parent=5 // pred_region
        %s7269 = ssub.s32 %s15, 2
        // Predicated region
        $region53: #{tpu_custom_call.1} parent=51 // pred_check
          %p7270 = pneg %p175
        $region54: #{tpu_custom_call.1} parent=51 // pred_check_branch
          %7272 = sbr.rel (%p7270) target = $region56
        $region55: #{tpu_custom_call.1} parent=51 // pred_region
          %s7273 = sand.u32 %s160, 1
          %s7274 = scalar_lea.sflag [#allocation3], %s7273
          %s7275 = sand.u32 %s160, 1
          %s7276 = smul.addr %s7275, 8
          %s7277 = scalar_lea.vmem [#allocation2], %s7276
          %7279 = dma.done %s7274, 128
        $region56: #{tpu_custom_call.1} parent=51 // pred_fallthru
          _
      $region52: #{tpu_custom_call.1} parent=5 // pred_fallthru
        _
    $region6: #{tpu_custom_call.1} parent=1 // loop_footer
      %s19 = sadd.s32 1, %s15
    $region7: #{tpu_custom_call.1} parent=1 // loop_footer_branch
      %14 = sbr.rel target = $region3
    $region8: #{tpu_custom_call.1} parent=1 // loop_exit
      _
    %7280 = vsyncpa [#allocation3], 1
    %s7281 = scalar_lea.sflag [#allocation3], 1
    %7282 = vsyncpa %s7281, 1

</llo_original>
